<compile_context>
chip_gen: v6e
topology: v6e:2x2x1
jax: 0.10.0
libtpu: 0.0.40
codegen_flags: <defaults>
</compile_context>

<pallas_src>
import functools

import jax
import jax.numpy as jnp
from jax.experimental import pallas as pl
from jax.experimental.pallas import tpu as pltpu


def _triple_conv_kernel(x_ref, w1_ref, s1_ref, b1_ref,
                        w2_ref, s2_ref, b2_ref,
                        w3_ref, s3_ref, b3_ref,
                        o_ref, pad1, pad2, pad3, *, H, W):
    """Fused (3x3 conv + folded BN + ReLU) * 3 for one batch element.

    x_ref : (1, H*Wp, Cin)  f32   width-prepadded, flattened input
    wX_ref: (9*CinX, CoutX) bf16  tap-major packed weights, row = tap*Cin + c
    sX/bX : (1, CoutX)      f32   folded BN scale / bias
    o_ref : (1, H*Wp, Cout) f32   flat output (garbage cols sliced in wrapper)
    padX  : (R, CX)         bf16  flat zero-padded activation scratch;
                                  padded pixel (i, j) lives at row i*Wp + j
    """
    Wp = W + 2
    rows = H * Wp                 # acc rows; rows with (row % Wp) >= W are garbage
    R = pad1.shape[0]             # (H + 3) * Wp
    head = Wp + 1                 # rows [0, head) must stay zero (top halo + (1,0))
    tail = (H + 1) * Wp           # rows [tail, R) must stay zero (bottom halo)

    def zero_halo_bands(dst):
        # Scratch persists across grid steps (per-TensorCore), so the halo
        # bands are re-zeroed every step; the interior is fully overwritten
        # below, so no full-buffer memset is needed.
        dst[0:head, :] = jnp.zeros((head, dst.shape[1]), dst.dtype)
        dst[tail:R, :] = jnp.zeros((R - tail, dst.shape[1]), dst.dtype)

    zero_halo_bands(pad1)
    zero_halo_bands(pad2)
    zero_halo_bands(pad3)

    # Input was pre-padded to width Wp in the wrapper (zero halo columns
    # included), so the whole interior is one flat band store + one cast.
    pad1[Wp:Wp + rows, :] = x_ref[0].astype(pad1.dtype)

    def conv_bn_relu(src, w_ref, s_ref, b_ref):
        # Tap-packed conv: 9 row-offset windows of the flat padded activation,
        # concatenated on the lane axis -> single MXU dot with K = 9*Cin.
        patch = jnp.concatenate(
            [src[kh * Wp + kw:kh * Wp + kw + rows, :]
             for kh in range(3) for kw in range(3)], axis=1)
        acc = jnp.dot(patch, w_ref[...], preferred_element_type=jnp.float32)
        # f32 epilogue: folded BN affine + ReLU (v5e has no bf16 VPU).
        return jnp.maximum(acc * s_ref[...] + b_ref[...], 0.0)

    def scatter_to_padded(act, dst):
        # Valid columns ((row % Wp) < W) land on the interior of dst; garbage
        # columns are zeroed so they land exactly on dst's halo columns.
        keep = jax.lax.broadcasted_iota(jnp.int32, act.shape, 0) % Wp < W
        dst[Wp + 1:Wp + 1 + rows, :] = (
            jnp.where(keep, act, 0.0).astype(dst.dtype))

    a1 = conv_bn_relu(pad1, w1_ref, s1_ref, b1_ref)
    scatter_to_padded(a1, pad2)
    a2 = conv_bn_relu(pad2, w2_ref, s2_ref, b2_ref)
    scatter_to_padded(a2, pad3)
    a3 = conv_bn_relu(pad3, w3_ref, s3_ref, b3_ref)

    # Single whole-block store; the (row % Wp) >= W garbage columns are
    # discarded by the wrapper's reshape/slice.
    o_ref[0] = a3.astype(o_ref.dtype)


def _triple_conv_call(x_flat, params, H, W):
    """x_flat: (N, H*Wp, Cin) f32 (width pre-padded).  params: 3 dicts."""
    N, rows, Cin = x_flat.shape
    Wp = W + 2
    R = (H + 3) * Wp
    p1, p2, p3 = params
    Cmid = p1["w"].shape[1]
    C2 = p2["w"].shape[1]
    Cout = p3["w"].shape[1]

    const2 = lambda n: (0, 0)
    full = lambda a: pl.BlockSpec(a.shape, const2)

    return pl.pallas_call(
        functools.partial(_triple_conv_kernel, H=H, W=W),
        out_shape=jax.ShapeDtypeStruct((N, rows, Cout), x_flat.dtype),
        grid_spec=pltpu.PrefetchScalarGridSpec(
            num_scalar_prefetch=0,
            grid=(N,),
            in_specs=[
                pl.BlockSpec((1, rows, Cin), lambda n: (n, 0, 0)),
                full(p1["w"]), full(p1["scale"]), full(p1["bias"]),
                full(p2["w"]), full(p2["scale"]), full(p2["bias"]),
                full(p3["w"]), full(p3["scale"]), full(p3["bias"]),
            ],
            out_specs=pl.BlockSpec((1, rows, Cout), lambda n: (n, 0, 0)),
            scratch_shapes=[
                pltpu.VMEM((R, Cin), jnp.bfloat16),
                pltpu.VMEM((R, Cmid), jnp.bfloat16),
                pltpu.VMEM((R, C2), jnp.bfloat16),
            ],
        ),
        compiler_params=pltpu.CompilerParams(
            dimension_semantics=("parallel",),
            # Leaves headroom on v7x (64 MiB / TC); v5e/v6e could go higher
            # and block several batch elements per step (TODO above).
            vmem_limit_bytes=48 * 1024 * 1024,
        ),
    )(x_flat,
      p1["w"], p1["scale"], p1["bias"],
      p2["w"], p2["scale"], p2["bias"],
      p3["w"], p3["scale"], p3["bias"])


def _fold_bn(conv_b, gamma, beta, mean, var, eps=1e-5):
    scale = gamma / jnp.sqrt(var + eps)
    bias = beta + (conv_b - mean) * scale
    return scale, bias


def _prep_weight(w_oihw):
    """(Cout, Cin, 3, 3) -> tap-packed (9*Cin, Cout), bf16."""
    cout, cin, _, _ = w_oihw.shape
    w = jnp.transpose(w_oihw, (2, 3, 1, 0)).reshape(9 * cin, cout)
    return w.astype(jnp.bfloat16)


def make_triple_conv_params(key, in_channels, out_channels, mid_channels=None):
    if not mid_channels:
        mid_channels = out_channels
    if mid_channels != out_channels:
        # The PyTorch module declares conv3 as (mid -> out) but feeds it the
        # conv2 output (out channels); it only runs when mid == out.
        raise ValueError("TripleConv requires mid_channels == out_channels")
    chans = [(in_channels, mid_channels),
             (mid_channels, out_channels),
             (mid_channels, out_channels)]   # matches the PyTorch module
    params = []
    for i, (cin, cout) in enumerate(chans):
        k = jax.random.fold_in(key, i)
        k_w, k_b, k_g, k_bt, k_m, k_v = jax.random.split(k, 6)
        fan_in = cin * 9
        bound = 1.0 / jnp.sqrt(fan_in)
        w = jax.random.uniform(k_w, (cout, cin, 3, 3), jnp.float32, -bound, bound)
        b = jax.random.uniform(k_b, (cout,), jnp.float32, -bound, bound)
        gamma = 1.0 + 0.1 * jax.random.normal(k_g, (cout,), jnp.float32)
        beta = 0.1 * jax.random.normal(k_bt, (cout,), jnp.float32)
        mean = 0.1 * jax.random.normal(k_m, (cout,), jnp.float32)
        var = jnp.abs(jax.random.normal(k_v, (cout,), jnp.float32)) + 0.5
        scale, bias = _fold_bn(b, gamma, beta, mean, var)
        params.append({"w": _prep_weight(w),
                       "scale": scale.reshape(1, cout),
                       "bias": bias.reshape(1, cout)})
    return params


@jax.jit
def triple_conv_forward(x_nchw, params):
    N, _, H, W = x_nchw.shape
    Wp = W + 2
    # Single layout pass at the module boundary: NCHW -> NHWC, width pre-padded
    # to Wp (zero halo columns) and flattened so the kernel's interior scatter
    # is one flat band store.  TODO(synk): in a full UNet keep activations in
    # this layout end-to-end and drop the boundary transposes.
    x = jnp.transpose(x_nchw, (0, 2, 3, 1))
    x = jnp.pad(x, ((0, 0), (0, 0), (1, 1), (0, 0)))
    x = x.reshape(N, H * Wp, -1)
    y = _triple_conv_call(x, params, H, W)           # (N, H*Wp, Cout)
    y = y.reshape(N, H, Wp, -1)[:, :, :W, :]         # drop garbage halo cols
    return jnp.transpose(y, (0, 3, 1, 2))


def _reference_forward(x_nchw, params):
    """Pure-JAX reference (same inference-mode folded BN)."""
    x = jnp.transpose(x_nchw, (0, 2, 3, 1)).astype(jnp.float32)
    for p in params:
        kcin, cout = p["w"].shape
        cin = kcin // 9
        w = p["w"].astype(jnp.float32).reshape(3, 3, cin, cout)   # HWIO
        y = jax.lax.conv_general_dilated(
            x, w, window_strides=(1, 1), padding="SAME",
            dimension_numbers=("NHWC", "HWIO", "NHWC"))
        x = jnp.maximum(y * p["scale"] + p["bias"], 0.0)
    return jnp.transpose(x, (0, 3, 1, 2))


if __name__ == "__main__":
    key = jax.random.PRNGKey(0)
    kx, kp = jax.random.split(key)

    N, Cin, H, W = 2, 4, 16, 16
    Cout = 8  # mid_channels defaults to out_channels
    x = jax.random.normal(kx, (N, Cin, H, W), jnp.float32)

    params = make_triple_conv_params(kp, Cin, Cout)
    y = triple_conv_forward(x, params)
    jax.block_until_ready(y)

    assert y.shape == (N, Cout, H, W), y.shape
    y_ref = _reference_forward(x, params)
    assert jnp.allclose(y, y_ref, atol=5e-2, rtol=5e-2), (
        float(jnp.max(jnp.abs(y - y_ref))))
    print("KERNEL_OK")
</pallas_src>

<mosaic_0001>
module attributes {stable_mosaic.version = 11 : i64} {
  func.func @_triple_conv_kernel(%arg0: i32, %arg1: memref<1x288x4xf32, #tpu.memory_space<vmem>>, %arg2: memref<36x8xbf16, #tpu.memory_space<vmem>>, %arg3: memref<1x8xf32, #tpu.memory_space<vmem>>, %arg4: memref<1x8xf32, #tpu.memory_space<vmem>>, %arg5: memref<72x8xbf16, #tpu.memory_space<vmem>>, %arg6: memref<1x8xf32, #tpu.memory_space<vmem>>, %arg7: memref<1x8xf32, #tpu.memory_space<vmem>>, %arg8: memref<72x8xbf16, #tpu.memory_space<vmem>>, %arg9: memref<1x8xf32, #tpu.memory_space<vmem>>, %arg10: memref<1x8xf32, #tpu.memory_space<vmem>>, %arg11: memref<1x288x8xf32, #tpu.memory_space<vmem>>, %arg12: memref<342x4xbf16, #tpu.memory_space<vmem>>, %arg13: memref<342x8xbf16, #tpu.memory_space<vmem>>, %arg14: memref<342x8xbf16, #tpu.memory_space<vmem>>) attributes {dimension_semantics = [#tpu.dimension_semantics<parallel>], iteration_bounds = array<i64: 2>, scalar_prefetch = 0 : i64, scratch_operands = 3 : i64, tpu.core_type = #tpu.core_type<tc>, window_params = [{transform_indices = @transform_0, window_bounds = array<i64: 1, 288, 4>}, {pipeline_mode = #tpu.pipeline_mode<synchronous>, transform_indices = @transform_1, window_bounds = array<i64: 36, 8>}, {pipeline_mode = #tpu.pipeline_mode<synchronous>, transform_indices = @transform_2, window_bounds = array<i64: 1, 8>}, {pipeline_mode = #tpu.pipeline_mode<synchronous>, transform_indices = @transform_3, window_bounds = array<i64: 1, 8>}, {pipeline_mode = #tpu.pipeline_mode<synchronous>, transform_indices = @transform_4, window_bounds = array<i64: 72, 8>}, {pipeline_mode = #tpu.pipeline_mode<synchronous>, transform_indices = @transform_5, window_bounds = array<i64: 1, 8>}, {pipeline_mode = #tpu.pipeline_mode<synchronous>, transform_indices = @transform_6, window_bounds = array<i64: 1, 8>}, {pipeline_mode = #tpu.pipeline_mode<synchronous>, transform_indices = @transform_7, window_bounds = array<i64: 72, 8>}, {pipeline_mode = #tpu.pipeline_mode<synchronous>, transform_indices = @transform_8, window_bounds = array<i64: 1, 8>}, {pipeline_mode = #tpu.pipeline_mode<synchronous>, transform_indices = @transform_9, window_bounds = array<i64: 1, 8>}, {transform_indices = @transform_10, window_bounds = array<i64: 1, 288, 8>}]} {
    %cst = arith.constant 0.000000e+00 : bf16
    %0 = vector.broadcast %cst : bf16 to vector<19x4xbf16>
    %c0 = arith.constant 0 : index
    %c0_0 = arith.constant 0 : index
    %1 = vector.load %arg12[%c0, %c0_0] : memref<342x4xbf16, #tpu.memory_space<vmem>>, vector<19x4xbf16>
    tpu.vector_store %arg12[%c0, %c0_0], %0 {strides = array<i32>} : memref<342x4xbf16, #tpu.memory_space<vmem>>, vector<19x4xbf16>,
    %cst_1 = arith.constant 0.000000e+00 : bf16
    %2 = vector.broadcast %cst_1 : bf16 to vector<36x4xbf16>
    %c306 = arith.constant 306 : index
    %c0_2 = arith.constant 0 : index
    %3 = vector.load %arg12[%c306, %c0_2] : memref<342x4xbf16, #tpu.memory_space<vmem>>, vector<36x4xbf16>
    tpu.vector_store %arg12[%c306, %c0_2], %2 {strides = array<i32>} : memref<342x4xbf16, #tpu.memory_space<vmem>>, vector<36x4xbf16>,
    %cst_3 = arith.constant 0.000000e+00 : bf16
    %4 = vector.broadcast %cst_3 : bf16 to vector<19x8xbf16>
    %c0_4 = arith.constant 0 : index
    %c0_5 = arith.constant 0 : index
    %5 = vector.load %arg13[%c0_4, %c0_5] : memref<342x8xbf16, #tpu.memory_space<vmem>>, vector<19x8xbf16>
    tpu.vector_store %arg13[%c0_4, %c0_5], %4 {strides = array<i32>} : memref<342x8xbf16, #tpu.memory_space<vmem>>, vector<19x8xbf16>,
    %cst_6 = arith.constant 0.000000e+00 : bf16
    %6 = vector.broadcast %cst_6 : bf16 to vector<36x8xbf16>
    %c306_7 = arith.constant 306 : index
    %c0_8 = arith.constant 0 : index
    %7 = vector.load %arg13[%c306_7, %c0_8] : memref<342x8xbf16, #tpu.memory_space<vmem>>, vector<36x8xbf16>
    tpu.vector_store %arg13[%c306_7, %c0_8], %6 {strides = array<i32>} : memref<342x8xbf16, #tpu.memory_space<vmem>>, vector<36x8xbf16>,
    %cst_9 = arith.constant 0.000000e+00 : bf16
    %8 = vector.broadcast %cst_9 : bf16 to vector<19x8xbf16>
    %c0_10 = arith.constant 0 : index
    %c0_11 = arith.constant 0 : index
    %9 = vector.load %arg14[%c0_10, %c0_11] : memref<342x8xbf16, #tpu.memory_space<vmem>>, vector<19x8xbf16>
    tpu.vector_store %arg14[%c0_10, %c0_11], %8 {strides = array<i32>} : memref<342x8xbf16, #tpu.memory_space<vmem>>, vector<19x8xbf16>,
    %cst_12 = arith.constant 0.000000e+00 : bf16
    %10 = vector.broadcast %cst_12 : bf16 to vector<36x8xbf16>
    %c306_13 = arith.constant 306 : index
    %c0_14 = arith.constant 0 : index
    %11 = vector.load %arg14[%c306_13, %c0_14] : memref<342x8xbf16, #tpu.memory_space<vmem>>, vector<36x8xbf16>
    tpu.vector_store %arg14[%c306_13, %c0_14], %10 {strides = array<i32>} : memref<342x8xbf16, #tpu.memory_space<vmem>>, vector<36x8xbf16>,
    %c0_15 = arith.constant 0 : index
    %c0_16 = arith.constant 0 : index
    %c0_17 = arith.constant 0 : index
    %12 = vector.load %arg1[%c0_15, %c0_16, %c0_17] : memref<1x288x4xf32, #tpu.memory_space<vmem>>, vector<1x288x4xf32>
    %13 = vector.shape_cast %12 : vector<1x288x4xf32> to vector<288x4xf32>
    %14 = arith.truncf %13 : vector<288x4xf32> to vector<288x4xbf16>
    %c18 = arith.constant 18 : index
    %c0_18 = arith.constant 0 : index
    %15 = vector.load %arg12[%c18, %c0_18] : memref<342x4xbf16, #tpu.memory_space<vmem>>, vector<288x4xbf16>
    tpu.vector_store %arg12[%c18, %c0_18], %14 {strides = array<i32>} : memref<342x4xbf16, #tpu.memory_space<vmem>>, vector<288x4xbf16>,
    %c0_19 = arith.constant 0 : index
    %c0_20 = arith.constant 0 : index
    %16 = vector.load %arg12[%c0_19, %c0_20] : memref<342x4xbf16, #tpu.memory_space<vmem>>, vector<288x4xbf16>
    %c1 = arith.constant 1 : index
    %c0_21 = arith.constant 0 : index
    %17 = vector.load %arg12[%c1, %c0_21] : memref<342x4xbf16, #tpu.memory_space<vmem>>, vector<288x4xbf16>
    %c2 = arith.constant 2 : index
    %c0_22 = arith.constant 0 : index
    %18 = vector.load %arg12[%c2, %c0_22] : memref<342x4xbf16, #tpu.memory_space<vmem>>, vector<288x4xbf16>
    %c18_23 = arith.constant 18 : index
    %c0_24 = arith.constant 0 : index
    %19 = vector.load %arg12[%c18_23, %c0_24] : memref<342x4xbf16, #tpu.memory_space<vmem>>, vector<288x4xbf16>
    %c19 = arith.constant 19 : index
    %c0_25 = arith.constant 0 : index
    %20 = vector.load %arg12[%c19, %c0_25] : memref<342x4xbf16, #tpu.memory_space<vmem>>, vector<288x4xbf16>
    %c20 = arith.constant 20 : index
    %c0_26 = arith.constant 0 : index
    %21 = vector.load %arg12[%c20, %c0_26] : memref<342x4xbf16, #tpu.memory_space<vmem>>, vector<288x4xbf16>
    %c36 = arith.constant 36 : index
    %c0_27 = arith.constant 0 : index
    %22 = vector.load %arg12[%c36, %c0_27] : memref<342x4xbf16, #tpu.memory_space<vmem>>, vector<288x4xbf16>
    %c37 = arith.constant 37 : index
    %c0_28 = arith.constant 0 : index
    %23 = vector.load %arg12[%c37, %c0_28] : memref<342x4xbf16, #tpu.memory_space<vmem>>, vector<288x4xbf16>
    %c38 = arith.constant 38 : index
    %c0_29 = arith.constant 0 : index
    %24 = vector.load %arg12[%c38, %c0_29] : memref<342x4xbf16, #tpu.memory_space<vmem>>, vector<288x4xbf16>
    %25 = tpu.concatenate %16, %17, %18, %19, %20, %21, %22, %23, %24 in 1 : vector<288x4xbf16>, vector<288x4xbf16>, vector<288x4xbf16>, vector<288x4xbf16>, vector<288x4xbf16>, vector<288x4xbf16>, vector<288x4xbf16>, vector<288x4xbf16>, vector<288x4xbf16> -> vector<288x36xbf16>
    %c0_30 = arith.constant 0 : index
    %c0_31 = arith.constant 0 : index
    %26 = vector.load %arg2[%c0_30, %c0_31] : memref<36x8xbf16, #tpu.memory_space<vmem>>, vector<36x8xbf16>
    %cst_32 = arith.constant dense<0.000000e+00> : vector<288x8xf32>
    %27 = tpu.matmul %25, %26, %cst_32 {dimension_numbers = #tpu.dot_dimension_numbers<[1], [0], [0], [1], [0, 0, 1, 1], [], []>} : vector<288x36xbf16>, vector<36x8xbf16>, vector<288x8xf32> -> vector<288x8xf32>
    %c0_33 = arith.constant 0 : index
    %c0_34 = arith.constant 0 : index
    %28 = vector.load %arg3[%c0_33, %c0_34] : memref<1x8xf32, #tpu.memory_space<vmem>>, vector<1x8xf32>
    %29 = vector.broadcast %28 : vector<1x8xf32> to vector<288x8xf32>
    %30 = arith.mulf %27, %29 : vector<288x8xf32>
    %c0_35 = arith.constant 0 : index
    %c0_36 = arith.constant 0 : index
    %31 = vector.load %arg4[%c0_35, %c0_36] : memref<1x8xf32, #tpu.memory_space<vmem>>, vector<1x8xf32>
    %32 = vector.broadcast %31 : vector<1x8xf32> to vector<288x8xf32>
    %33 = arith.addf %30, %32 : vector<288x8xf32>
    %cst_37 = arith.constant 0.000000e+00 : f32
    %34 = vector.broadcast %cst_37 : f32 to vector<288x8xf32>
    %35 = arith.maximumf %33, %34 : vector<288x8xf32>
    %36 = tpu.iota {dimensions = array<i32: 0>} : vector<288x8xi32>
    %c18_i32 = arith.constant 18 : i32
    %c0_i32 = arith.constant 0 : i32
    %37 = arith.cmpi eq, %c18_i32, %c0_i32 : i32
    %c1_i32 = arith.constant 1 : i32
    %38 = arith.select %37, %c1_i32, %c18_i32 : i32
    %39 = vector.broadcast %38 : i32 to vector<288x8xi32>
    %40 = arith.remsi %36, %39 : vector<288x8xi32>
    %c0_i32_38 = arith.constant 0 : i32
    %41 = vector.broadcast %c0_i32_38 : i32 to vector<288x8xi32>
    %42 = arith.cmpi ne, %40, %41 : vector<288x8xi32>
    %c0_i32_39 = arith.constant 0 : i32
    %43 = vector.broadcast %c0_i32_39 : i32 to vector<288x8xi32>
    %44 = arith.cmpi slt, %40, %43 : vector<288x8xi32>
    %c0_i32_40 = arith.constant 0 : i32
    %45 = arith.cmpi slt, %38, %c0_i32_40 : i32
    %46 = vector.broadcast %45 : i1 to vector<288x8xi1>
    %47 = vector.broadcast %46 : vector<288x8xi1> to vector<288x8xi1>
    %48 = arith.xori %44, %47 : vector<288x8xi1>
    %49 = arith.andi %48, %42 : vector<288x8xi1>
    %50 = vector.broadcast %38 : i32 to vector<288x8xi32>
    %51 = arith.addi %40, %50 : vector<288x8xi32>
    %52 = arith.select %49, %51, %40 : vector<288x8xi1>, vector<288x8xi32>
    %c16_i32 = arith.constant 16 : i32
    %53 = vector.broadcast %c16_i32 : i32 to vector<288x8xi32>
    %54 = arith.cmpi slt, %52, %53 : vector<288x8xi32>
    %cst_41 = arith.constant 0.000000e+00 : f32
    %55 = vector.broadcast %cst_41 : f32 to vector<288x8xf32>
    %56 = arith.select %54, %35, %55 : vector<288x8xi1>, vector<288x8xf32>
    %57 = arith.truncf %56 : vector<288x8xf32> to vector<288x8xbf16>
    %c19_42 = arith.constant 19 : index
    %c0_43 = arith.constant 0 : index
    %58 = vector.load %arg13[%c19_42, %c0_43] : memref<342x8xbf16, #tpu.memory_space<vmem>>, vector<288x8xbf16>
    tpu.vector_store %arg13[%c19_42, %c0_43], %57 {strides = array<i32>} : memref<342x8xbf16, #tpu.memory_space<vmem>>, vector<288x8xbf16>,
    %c0_44 = arith.constant 0 : index
    %c0_45 = arith.constant 0 : index
    %59 = vector.load %arg13[%c0_44, %c0_45] : memref<342x8xbf16, #tpu.memory_space<vmem>>, vector<288x8xbf16>
    %c1_46 = arith.constant 1 : index
    %c0_47 = arith.constant 0 : index
    %60 = vector.load %arg13[%c1_46, %c0_47] : memref<342x8xbf16, #tpu.memory_space<vmem>>, vector<288x8xbf16>
    %c2_48 = arith.constant 2 : index
    %c0_49 = arith.constant 0 : index
    %61 = vector.load %arg13[%c2_48, %c0_49] : memref<342x8xbf16, #tpu.memory_space<vmem>>, vector<288x8xbf16>
    %c18_50 = arith.constant 18 : index
    %c0_51 = arith.constant 0 : index
    %62 = vector.load %arg13[%c18_50, %c0_51] : memref<342x8xbf16, #tpu.memory_space<vmem>>, vector<288x8xbf16>
    %c19_52 = arith.constant 19 : index
    %c0_53 = arith.constant 0 : index
    %63 = vector.load %arg13[%c19_52, %c0_53] : memref<342x8xbf16, #tpu.memory_space<vmem>>, vector<288x8xbf16>
    %c20_54 = arith.constant 20 : index
    %c0_55 = arith.constant 0 : index
    %64 = vector.load %arg13[%c20_54, %c0_55] : memref<342x8xbf16, #tpu.memory_space<vmem>>, vector<288x8xbf16>
    %c36_56 = arith.constant 36 : index
    %c0_57 = arith.constant 0 : index
    %65 = vector.load %arg13[%c36_56, %c0_57] : memref<342x8xbf16, #tpu.memory_space<vmem>>, vector<288x8xbf16>
    %c37_58 = arith.constant 37 : index
    %c0_59 = arith.constant 0 : index
    %66 = vector.load %arg13[%c37_58, %c0_59] : memref<342x8xbf16, #tpu.memory_space<vmem>>, vector<288x8xbf16>
    %c38_60 = arith.constant 38 : index
    %c0_61 = arith.constant 0 : index
    %67 = vector.load %arg13[%c38_60, %c0_61] : memref<342x8xbf16, #tpu.memory_space<vmem>>, vector<288x8xbf16>
    %68 = tpu.concatenate %59, %60, %61, %62, %63, %64, %65, %66, %67 in 1 : vector<288x8xbf16>, vector<288x8xbf16>, vector<288x8xbf16>, vector<288x8xbf16>, vector<288x8xbf16>, vector<288x8xbf16>, vector<288x8xbf16>, vector<288x8xbf16>, vector<288x8xbf16> -> vector<288x72xbf16>
    %c0_62 = arith.constant 0 : index
    %c0_63 = arith.constant 0 : index
    %69 = vector.load %arg5[%c0_62, %c0_63] : memref<72x8xbf16, #tpu.memory_space<vmem>>, vector<72x8xbf16>
    %cst_64 = arith.constant dense<0.000000e+00> : vector<288x8xf32>
    %70 = tpu.matmul %68, %69, %cst_64 {dimension_numbers = #tpu.dot_dimension_numbers<[1], [0], [0], [1], [0, 0, 1, 1], [], []>} : vector<288x72xbf16>, vector<72x8xbf16>, vector<288x8xf32> -> vector<288x8xf32>
    %c0_65 = arith.constant 0 : index
    %c0_66 = arith.constant 0 : index
    %71 = vector.load %arg6[%c0_65, %c0_66] : memref<1x8xf32, #tpu.memory_space<vmem>>, vector<1x8xf32>
    %72 = vector.broadcast %71 : vector<1x8xf32> to vector<288x8xf32>
    %73 = arith.mulf %70, %72 : vector<288x8xf32>
    %c0_67 = arith.constant 0 : index
    %c0_68 = arith.constant 0 : index
    %74 = vector.load %arg7[%c0_67, %c0_68] : memref<1x8xf32, #tpu.memory_space<vmem>>, vector<1x8xf32>
    %75 = vector.broadcast %74 : vector<1x8xf32> to vector<288x8xf32>
    %76 = arith.addf %73, %75 : vector<288x8xf32>
    %cst_69 = arith.constant 0.000000e+00 : f32
    %77 = vector.broadcast %cst_69 : f32 to vector<288x8xf32>
    %78 = arith.maximumf %76, %77 : vector<288x8xf32>
    %79 = tpu.iota {dimensions = array<i32: 0>} : vector<288x8xi32>
    %c18_i32_70 = arith.constant 18 : i32
    %c0_i32_71 = arith.constant 0 : i32
    %80 = arith.cmpi eq, %c18_i32_70, %c0_i32_71 : i32
    %c1_i32_72 = arith.constant 1 : i32
    %81 = arith.select %80, %c1_i32_72, %c18_i32_70 : i32
    %82 = vector.broadcast %81 : i32 to vector<288x8xi32>
    %83 = arith.remsi %79, %82 : vector<288x8xi32>
    %c0_i32_73 = arith.constant 0 : i32
    %84 = vector.broadcast %c0_i32_73 : i32 to vector<288x8xi32>
    %85 = arith.cmpi ne, %83, %84 : vector<288x8xi32>
    %c0_i32_74 = arith.constant 0 : i32
    %86 = vector.broadcast %c0_i32_74 : i32 to vector<288x8xi32>
    %87 = arith.cmpi slt, %83, %86 : vector<288x8xi32>
    %c0_i32_75 = arith.constant 0 : i32
    %88 = arith.cmpi slt, %81, %c0_i32_75 : i32
    %89 = vector.broadcast %88 : i1 to vector<288x8xi1>
    %90 = vector.broadcast %89 : vector<288x8xi1> to vector<288x8xi1>
    %91 = arith.xori %87, %90 : vector<288x8xi1>
    %92 = arith.andi %91, %85 : vector<288x8xi1>
    %93 = vector.broadcast %81 : i32 to vector<288x8xi32>
    %94 = arith.addi %83, %93 : vector<288x8xi32>
    %95 = arith.select %92, %94, %83 : vector<288x8xi1>, vector<288x8xi32>
    %c16_i32_76 = arith.constant 16 : i32
    %96 = vector.broadcast %c16_i32_76 : i32 to vector<288x8xi32>
    %97 = arith.cmpi slt, %95, %96 : vector<288x8xi32>
    %cst_77 = arith.constant 0.000000e+00 : f32
    %98 = vector.broadcast %cst_77 : f32 to vector<288x8xf32>
    %99 = arith.select %97, %78, %98 : vector<288x8xi1>, vector<288x8xf32>
    %100 = arith.truncf %99 : vector<288x8xf32> to vector<288x8xbf16>
    %c19_78 = arith.constant 19 : index
    %c0_79 = arith.constant 0 : index
    %101 = vector.load %arg14[%c19_78, %c0_79] : memref<342x8xbf16, #tpu.memory_space<vmem>>, vector<288x8xbf16>
    tpu.vector_store %arg14[%c19_78, %c0_79], %100 {strides = array<i32>} : memref<342x8xbf16, #tpu.memory_space<vmem>>, vector<288x8xbf16>,
    %c0_80 = arith.constant 0 : index
    %c0_81 = arith.constant 0 : index
    %102 = vector.load %arg14[%c0_80, %c0_81] : memref<342x8xbf16, #tpu.memory_space<vmem>>, vector<288x8xbf16>
    %c1_82 = arith.constant 1 : index
    %c0_83 = arith.constant 0 : index
    %103 = vector.load %arg14[%c1_82, %c0_83] : memref<342x8xbf16, #tpu.memory_space<vmem>>, vector<288x8xbf16>
    %c2_84 = arith.constant 2 : index
    %c0_85 = arith.constant 0 : index
    %104 = vector.load %arg14[%c2_84, %c0_85] : memref<342x8xbf16, #tpu.memory_space<vmem>>, vector<288x8xbf16>
    %c18_86 = arith.constant 18 : index
    %c0_87 = arith.constant 0 : index
    %105 = vector.load %arg14[%c18_86, %c0_87] : memref<342x8xbf16, #tpu.memory_space<vmem>>, vector<288x8xbf16>
    %c19_88 = arith.constant 19 : index
    %c0_89 = arith.constant 0 : index
    %106 = vector.load %arg14[%c19_88, %c0_89] : memref<342x8xbf16, #tpu.memory_space<vmem>>, vector<288x8xbf16>
    %c20_90 = arith.constant 20 : index
    %c0_91 = arith.constant 0 : index
    %107 = vector.load %arg14[%c20_90, %c0_91] : memref<342x8xbf16, #tpu.memory_space<vmem>>, vector<288x8xbf16>
    %c36_92 = arith.constant 36 : index
    %c0_93 = arith.constant 0 : index
    %108 = vector.load %arg14[%c36_92, %c0_93] : memref<342x8xbf16, #tpu.memory_space<vmem>>, vector<288x8xbf16>
    %c37_94 = arith.constant 37 : index
    %c0_95 = arith.constant 0 : index
    %109 = vector.load %arg14[%c37_94, %c0_95] : memref<342x8xbf16, #tpu.memory_space<vmem>>, vector<288x8xbf16>
    %c38_96 = arith.constant 38 : index
    %c0_97 = arith.constant 0 : index
    %110 = vector.load %arg14[%c38_96, %c0_97] : memref<342x8xbf16, #tpu.memory_space<vmem>>, vector<288x8xbf16>
    %111 = tpu.concatenate %102, %103, %104, %105, %106, %107, %108, %109, %110 in 1 : vector<288x8xbf16>, vector<288x8xbf16>, vector<288x8xbf16>, vector<288x8xbf16>, vector<288x8xbf16>, vector<288x8xbf16>, vector<288x8xbf16>, vector<288x8xbf16>, vector<288x8xbf16> -> vector<288x72xbf16>
    %c0_98 = arith.constant 0 : index
    %c0_99 = arith.constant 0 : index
    %112 = vector.load %arg8[%c0_98, %c0_99] : memref<72x8xbf16, #tpu.memory_space<vmem>>, vector<72x8xbf16>
    %cst_100 = arith.constant dense<0.000000e+00> : vector<288x8xf32>
    %113 = tpu.matmul %111, %112, %cst_100 {dimension_numbers = #tpu.dot_dimension_numbers<[1], [0], [0], [1], [0, 0, 1, 1], [], []>} : vector<288x72xbf16>, vector<72x8xbf16>, vector<288x8xf32> -> vector<288x8xf32>
    %c0_101 = arith.constant 0 : index
    %c0_102 = arith.constant 0 : index
    %114 = vector.load %arg9[%c0_101, %c0_102] : memref<1x8xf32, #tpu.memory_space<vmem>>, vector<1x8xf32>
    %115 = vector.broadcast %114 : vector<1x8xf32> to vector<288x8xf32>
    %116 = arith.mulf %113, %115 : vector<288x8xf32>
    %c0_103 = arith.constant 0 : index
    %c0_104 = arith.constant 0 : index
    %117 = vector.load %arg10[%c0_103, %c0_104] : memref<1x8xf32, #tpu.memory_space<vmem>>, vector<1x8xf32>
    %118 = vector.broadcast %117 : vector<1x8xf32> to vector<288x8xf32>
    %119 = arith.addf %116, %118 : vector<288x8xf32>
    %cst_105 = arith.constant 0.000000e+00 : f32
    %120 = vector.broadcast %cst_105 : f32 to vector<288x8xf32>
    %121 = arith.maximumf %119, %120 : vector<288x8xf32>
    %c0_106 = arith.constant 0 : index
    %c0_107 = arith.constant 0 : index
    %c0_108 = arith.constant 0 : index
    %122 = vector.load %arg11[%c0_106, %c0_107, %c0_108] : memref<1x288x8xf32, #tpu.memory_space<vmem>>, vector<1x288x8xf32>
    %123 = vector.shape_cast %122 : vector<1x288x8xf32> to vector<288x8xf32>
    %124 = vector.shape_cast %121 : vector<288x8xf32> to vector<1x288x8xf32>
    tpu.vector_store %arg11[%c0_106, %c0_107, %c0_108], %124 {strides = array<i32>} : memref<1x288x8xf32, #tpu.memory_space<vmem>>, vector<1x288x8xf32>,
    return
  }
  func.func @transform_0(%arg0: i32) -> (i32, i32, i32) {
    %c0_i32 = arith.constant 0 : i32
    %c0_i32_0 = arith.constant 0 : i32
    %c0_i32_1 = arith.constant 0 : i32
    return %arg0, %c0_i32, %c0_i32_0 : i32, i32, i32
  }
  func.func @transform_1(%arg0: i32) -> (i32, i32) {
    %c0_i32 = arith.constant 0 : i32
    %c0_i32_0 = arith.constant 0 : i32
    %c0_i32_1 = arith.constant 0 : i32
    return %c0_i32, %c0_i32_0 : i32, i32
  }
  func.func @transform_2(%arg0: i32) -> (i32, i32) {
    %c0_i32 = arith.constant 0 : i32
    %c0_i32_0 = arith.constant 0 : i32
    %c0_i32_1 = arith.constant 0 : i32
    return %c0_i32, %c0_i32_0 : i32, i32
  }
  func.func @transform_3(%arg0: i32) -> (i32, i32) {
    %c0_i32 = arith.constant 0 : i32
    %c0_i32_0 = arith.constant 0 : i32
    %c0_i32_1 = arith.constant 0 : i32
    return %c0_i32, %c0_i32_0 : i32, i32
  }
  func.func @transform_4(%arg0: i32) -> (i32, i32) {
    %c0_i32 = arith.constant 0 : i32
    %c0_i32_0 = arith.constant 0 : i32
    %c0_i32_1 = arith.constant 0 : i32
    return %c0_i32, %c0_i32_0 : i32, i32
  }
  func.func @transform_5(%arg0: i32) -> (i32, i32) {
    %c0_i32 = arith.constant 0 : i32
    %c0_i32_0 = arith.constant 0 : i32
    %c0_i32_1 = arith.constant 0 : i32
    return %c0_i32, %c0_i32_0 : i32, i32
  }
  func.func @transform_6(%arg0: i32) -> (i32, i32) {
    %c0_i32 = arith.constant 0 : i32
    %c0_i32_0 = arith.constant 0 : i32
    %c0_i32_1 = arith.constant 0 : i32
    return %c0_i32, %c0_i32_0 : i32, i32
  }
  func.func @transform_7(%arg0: i32) -> (i32, i32) {
    %c0_i32 = arith.constant 0 : i32
    %c0_i32_0 = arith.constant 0 : i32
    %c0_i32_1 = arith.constant 0 : i32
    return %c0_i32, %c0_i32_0 : i32, i32
  }
  func.func @transform_8(%arg0: i32) -> (i32, i32) {
    %c0_i32 = arith.constant 0 : i32
    %c0_i32_0 = arith.constant 0 : i32
    %c0_i32_1 = arith.constant 0 : i32
    return %c0_i32, %c0_i32_0 : i32, i32
  }
  func.func @transform_9(%arg0: i32) -> (i32, i32) {
    %c0_i32 = arith.constant 0 : i32
    %c0_i32_0 = arith.constant 0 : i32
    %c0_i32_1 = arith.constant 0 : i32
    return %c0_i32, %c0_i32_0 : i32, i32
  }
  func.func @transform_10(%arg0: i32) -> (i32, i32, i32) {
    %c0_i32 = arith.constant 0 : i32
    %c0_i32_0 = arith.constant 0 : i32
    %c0_i32_1 = arith.constant 0 : i32
    return %arg0, %c0_i32, %c0_i32_0 : i32, i32, i32
  }
}

</mosaic_0001>

<llo_original>
// kernel: triple_conv_forward.1
$region0: #{triple_conv_forward.1}
  #allocation0 [shape = 'u32[]', space=smem, size = 0x4, offset = 0x4, fixed_abs, tag = 'smem constant byte address 0x4 - core index']
  #allocation1 [shape = 'u32[144,128]{1,0:T(1,128)}', space=vmem, size = 0x12000, scoped, tag = 'internal scratch']
  #allocation2 [shape = 'bf16[342,4]{1,0:T(8,128)(2,1)}', space=vmem, size = 0x15800, scoped, tag = 'scratch operand']
  #allocation3 [shape = 'bf16[342,8]{1,0:T(8,128)(2,1)}', space=vmem, size = 0x15800, scoped, tag = 'scratch operand']
  #allocation4 [shape = 'bf16[342,8]{1,0:T(8,128)(2,1)}', space=vmem, size = 0x15800, scoped, tag = 'scratch operand']
  %s0 = inlined_call_operand.vmem [shape: f32[2,288,4], index: 0, kind: input, shape index: {}]
  %s1 = inlined_call_operand.vmem [shape: bf16[36,8], index: 1, kind: input, shape index: {}]
  %s2 = inlined_call_operand.vmem [shape: f32[1,8], index: 2, kind: input, shape index: {}]
  %s3 = inlined_call_operand.vmem [shape: f32[1,8], index: 3, kind: input, shape index: {}]
  %s4 = inlined_call_operand.vmem [shape: bf16[72,8], index: 4, kind: input, shape index: {}]
  %s5 = inlined_call_operand.vmem [shape: f32[1,8], index: 5, kind: input, shape index: {}]
  %s6 = inlined_call_operand.vmem [shape: f32[1,8], index: 6, kind: input, shape index: {}]
  %s7 = inlined_call_operand.vmem [shape: bf16[72,8], index: 7, kind: input, shape index: {}]
  %s8 = inlined_call_operand.vmem [shape: f32[1,8], index: 8, kind: input, shape index: {}]
  %s9 = inlined_call_operand.vmem [shape: f32[1,8], index: 9, kind: input, shape index: {}]
  %s10 = inlined_call_operand.vmem [shape: f32[2,288,8], index: 10, kind: output, shape index: {}]
  %s11 = sld [smem:[#allocation0]]
  $region73: #{triple_conv_forward.1} parent=0
    _
  %s13 = ssub.s32 1, %s11
  %s14 = scalar_select 0, %s13, %s11
  loop: start=0, step=1, limit=4
  $region2: #{triple_conv_forward.1} parent=0 // loop_pre_header
    _
  $region3: #{triple_conv_forward.1} parent=0 // loop_header
    %s16 = sphi 0, %s20
    %p17 = scmp.ge.s32.totalorder %s16, 4
    %s26 = sphi 0, %s28
    %s29 = sphi 0, %s26
    %s30 = sphi 0, %s29
    %s46 = sphi 0, %s30
    %s50 = sphi 0, %s50
    %s52 = sphi 0, %s50
    %s53 = sphi 0, %s52
    %s67 = sphi 0, %s53
    %s71 = sphi 0, %s71
    %s73 = sphi 0, %s71
    %s74 = sphi 0, %s73
    %s88 = sphi 0, %s74
    %s92 = sphi 0, %s92
    %s94 = sphi 0, %s92
    %s95 = sphi 0, %s94
    %s109 = sphi 0, %s95
    %s113 = sphi 0, %s113
    %s115 = sphi 0, %s113
    %s116 = sphi 0, %s115
    %s130 = sphi 0, %s116
    %s134 = sphi 0, %s134
    %s136 = sphi 0, %s134
    %s137 = sphi 0, %s136
    %s151 = sphi 0, %s137
    %s155 = sphi 0, %s155
    %s157 = sphi 0, %s155
    %s158 = sphi 0, %s157
    %s172 = sphi 0, %s158
    %s176 = sphi 0, %s176
    %s178 = sphi 0, %s176
    %s179 = sphi 0, %s178
    %s193 = sphi 0, %s179
    %s197 = sphi 0, %s197
    %s199 = sphi 0, %s197
    %s200 = sphi 0, %s199
    %s214 = sphi 0, %s200
    %s218 = sphi 0, %s218
    %s220 = sphi 0, %s218
    %s221 = sphi 0, %s220
    %s235 = sphi 0, %s221
    %s241 = sphi 0, %s243
    %s244 = sphi 0, %s241
    %s245 = sphi 0, %s244
    %s261 = sphi 0, %s245
  $region4: #{triple_conv_forward.1} parent=0 // loop_header_branch
    %19 = sbr.rel (%p17) target = $region8
  $region5: #{triple_conv_forward.1} parent=0 // loop_body
    %s21 = ssub.s32 %s16, 1
    %s22 = ssub.s32 %s16, 2
    %s23 = sadd.s32 %s16, 1
    %s24 = ssub.s32 %s16, %s23
    %p25 = scmp.eq.s32.totalorder %s24, 0
    %s27 = sadd.s32 %s26, 1
    %s28 = scalar_select %p25, %s26, %s27
    %p31 = pneg %p25
    %p32 = scmp.eq.s32.totalorder %s16, 1
    %p33 = por %p31, %p32
    %p34 = scmp.ne.s32.totalorder %s26, %s29
    %p35 = scmp.eq.s32.totalorder %s16, 0
    %p36 = por %p34, %p35
    %p37 = scmp.ne.s32.totalorder %s26, %s29
    %p38 = scmp.eq.s32.totalorder %s21, 1
    %p39 = por %p37, %p38
    %p40 = scmp.ne.s32.totalorder %s29, %s30
    %p41 = scmp.eq.s32.totalorder %s21, 0
    %p42 = por %p40, %p41
    %p43 = scmp.ne.s32.totalorder %s29, %s30
    %p44 = scmp.eq.s32.totalorder %s22, 1
    %p45 = por %p43, %p44
    %p47 = scmp.ne.s32.totalorder %s30, %s46
    %p48 = scmp.eq.s32.totalorder %s22, 0
    %p49 = por %p47, %p48
    %s51 = sadd.s32 %s50, 1
    %p54 = scmp.eq.s32.totalorder %s16, 1
    %p55 = scmp.ne.s32.totalorder %s50, %s52
    %p56 = scmp.eq.s32.totalorder %s16, 0
    %p57 = por %p55, %p56
    %p58 = scmp.ne.s32.totalorder %s50, %s52
    %p59 = scmp.eq.s32.totalorder %s21, 1
    %p60 = por %p58, %p59
    %p61 = scmp.ne.s32.totalorder %s52, %s53
    %p62 = scmp.eq.s32.totalorder %s21, 0
    %p63 = por %p61, %p62
    %p64 = scmp.ne.s32.totalorder %s52, %s53
    %p65 = scmp.eq.s32.totalorder %s22, 1
    %p66 = por %p64, %p65
    %p68 = scmp.ne.s32.totalorder %s53, %s67
    %p69 = scmp.eq.s32.totalorder %s22, 0
    %p70 = por %p68, %p69
    %s72 = sadd.s32 %s71, 1
    %p75 = scmp.eq.s32.totalorder %s16, 1
    %p76 = scmp.ne.s32.totalorder %s71, %s73
    %p77 = scmp.eq.s32.totalorder %s16, 0
    %p78 = por %p76, %p77
    %p79 = scmp.ne.s32.totalorder %s71, %s73
    %p80 = scmp.eq.s32.totalorder %s21, 1
    %p81 = por %p79, %p80
    %p82 = scmp.ne.s32.totalorder %s73, %s74
    %p83 = scmp.eq.s32.totalorder %s21, 0
    %p84 = por %p82, %p83
    %p85 = scmp.ne.s32.totalorder %s73, %s74
    %p86 = scmp.eq.s32.totalorder %s22, 1
    %p87 = por %p85, %p86
    %p89 = scmp.ne.s32.totalorder %s74, %s88
    %p90 = scmp.eq.s32.totalorder %s22, 0
    %p91 = por %p89, %p90
    %s93 = sadd.s32 %s92, 1
    %p96 = scmp.eq.s32.totalorder %s16, 1
    %p97 = scmp.ne.s32.totalorder %s92, %s94
    %p98 = scmp.eq.s32.totalorder %s16, 0
    %p99 = por %p97, %p98
    %p100 = scmp.ne.s32.totalorder %s92, %s94
    %p101 = scmp.eq.s32.totalorder %s21, 1
    %p102 = por %p100, %p101
    %p103 = scmp.ne.s32.totalorder %s94, %s95
    %p104 = scmp.eq.s32.totalorder %s21, 0
    %p105 = por %p103, %p104
    %p106 = scmp.ne.s32.totalorder %s94, %s95
    %p107 = scmp.eq.s32.totalorder %s22, 1
    %p108 = por %p106, %p107
    %p110 = scmp.ne.s32.totalorder %s95, %s109
    %p111 = scmp.eq.s32.totalorder %s22, 0
    %p112 = por %p110, %p111
    %s114 = sadd.s32 %s113, 1
    %p117 = scmp.eq.s32.totalorder %s16, 1
    %p118 = scmp.ne.s32.totalorder %s113, %s115
    %p119 = scmp.eq.s32.totalorder %s16, 0
    %p120 = por %p118, %p119
    %p121 = scmp.ne.s32.totalorder %s113, %s115
    %p122 = scmp.eq.s32.totalorder %s21, 1
    %p123 = por %p121, %p122
    %p124 = scmp.ne.s32.totalorder %s115, %s116
    %p125 = scmp.eq.s32.totalorder %s21, 0
    %p126 = por %p124, %p125
    %p127 = scmp.ne.s32.totalorder %s115, %s116
    %p128 = scmp.eq.s32.totalorder %s22, 1
    %p129 = por %p127, %p128
    %p131 = scmp.ne.s32.totalorder %s116, %s130
    %p132 = scmp.eq.s32.totalorder %s22, 0
    %p133 = por %p131, %p132
    %s135 = sadd.s32 %s134, 1
    %p138 = scmp.eq.s32.totalorder %s16, 1
    %p139 = scmp.ne.s32.totalorder %s134, %s136
    %p140 = scmp.eq.s32.totalorder %s16, 0
    %p141 = por %p139, %p140
    %p142 = scmp.ne.s32.totalorder %s134, %s136
    %p143 = scmp.eq.s32.totalorder %s21, 1
    %p144 = por %p142, %p143
    %p145 = scmp.ne.s32.totalorder %s136, %s137
    %p146 = scmp.eq.s32.totalorder %s21, 0
    %p147 = por %p145, %p146
    %p148 = scmp.ne.s32.totalorder %s136, %s137
    %p149 = scmp.eq.s32.totalorder %s22, 1
    %p150 = por %p148, %p149
    %p152 = scmp.ne.s32.totalorder %s137, %s151
    %p153 = scmp.eq.s32.totalorder %s22, 0
    %p154 = por %p152, %p153
    %s156 = sadd.s32 %s155, 1
    %p159 = scmp.eq.s32.totalorder %s16, 1
    %p160 = scmp.ne.s32.totalorder %s155, %s157
    %p161 = scmp.eq.s32.totalorder %s16, 0
    %p162 = por %p160, %p161
    %p163 = scmp.ne.s32.totalorder %s155, %s157
    %p164 = scmp.eq.s32.totalorder %s21, 1
    %p165 = por %p163, %p164
    %p166 = scmp.ne.s32.totalorder %s157, %s158
    %p167 = scmp.eq.s32.totalorder %s21, 0
    %p168 = por %p166, %p167
    %p169 = scmp.ne.s32.totalorder %s157, %s158
    %p170 = scmp.eq.s32.totalorder %s22, 1
    %p171 = por %p169, %p170
    %p173 = scmp.ne.s32.totalorder %s158, %s172
    %p174 = scmp.eq.s32.totalorder %s22, 0
    %p175 = por %p173, %p174
    %s177 = sadd.s32 %s176, 1
    %p180 = scmp.eq.s32.totalorder %s16, 1
    %p181 = scmp.ne.s32.totalorder %s176, %s178
    %p182 = scmp.eq.s32.totalorder %s16, 0
    %p183 = por %p181, %p182
    %p184 = scmp.ne.s32.totalorder %s176, %s178
    %p185 = scmp.eq.s32.totalorder %s21, 1
    %p186 = por %p184, %p185
    %p187 = scmp.ne.s32.totalorder %s178, %s179
    %p188 = scmp.eq.s32.totalorder %s21, 0
    %p189 = por %p187, %p188
    %p190 = scmp.ne.s32.totalorder %s178, %s179
    %p191 = scmp.eq.s32.totalorder %s22, 1
    %p192 = por %p190, %p191
    %p194 = scmp.ne.s32.totalorder %s179, %s193
    %p195 = scmp.eq.s32.totalorder %s22, 0
    %p196 = por %p194, %p195
    %s198 = sadd.s32 %s197, 1
    %p201 = scmp.eq.s32.totalorder %s16, 1
    %p202 = scmp.ne.s32.totalorder %s197, %s199
    %p203 = scmp.eq.s32.totalorder %s16, 0
    %p204 = por %p202, %p203
    %p205 = scmp.ne.s32.totalorder %s197, %s199
    %p206 = scmp.eq.s32.totalorder %s21, 1
    %p207 = por %p205, %p206
    %p208 = scmp.ne.s32.totalorder %s199, %s200
    %p209 = scmp.eq.s32.totalorder %s21, 0
    %p210 = por %p208, %p209
    %p211 = scmp.ne.s32.totalorder %s199, %s200
    %p212 = scmp.eq.s32.totalorder %s22, 1
    %p213 = por %p211, %p212
    %p215 = scmp.ne.s32.totalorder %s200, %s214
    %p216 = scmp.eq.s32.totalorder %s22, 0
    %p217 = por %p215, %p216
    %s219 = sadd.s32 %s218, 1
    %p222 = scmp.eq.s32.totalorder %s16, 1
    %p223 = scmp.ne.s32.totalorder %s218, %s220
    %p224 = scmp.eq.s32.totalorder %s16, 0
    %p225 = por %p223, %p224
    %p226 = scmp.ne.s32.totalorder %s218, %s220
    %p227 = scmp.eq.s32.totalorder %s21, 1
    %p228 = por %p226, %p227
    %p229 = scmp.ne.s32.totalorder %s220, %s221
    %p230 = scmp.eq.s32.totalorder %s21, 0
    %p231 = por %p229, %p230
    %p232 = scmp.ne.s32.totalorder %s220, %s221
    %p233 = scmp.eq.s32.totalorder %s22, 1
    %p234 = por %p232, %p233
    %p236 = scmp.ne.s32.totalorder %s221, %s235
    %p237 = scmp.eq.s32.totalorder %s22, 0
    %p238 = por %p236, %p237
    %s239 = ssub.s32 %s16, %s23
    %p240 = scmp.eq.s32.totalorder %s239, 0
    %s242 = sadd.s32 %s241, 1
    %s243 = scalar_select %p240, %s241, %s242
    %p246 = pneg %p240
    %p247 = scmp.eq.s32.totalorder %s16, 1
    %p248 = por %p246, %p247
    %p249 = scmp.ne.s32.totalorder %s241, %s244
    %p250 = scmp.eq.s32.totalorder %s16, 0
    %p251 = por %p249, %p250
    %p252 = scmp.ne.s32.totalorder %s241, %s244
    %p253 = scmp.eq.s32.totalorder %s21, 1
    %p254 = por %p252, %p253
    %p255 = scmp.ne.s32.totalorder %s244, %s245
    %p256 = scmp.eq.s32.totalorder %s21, 0
    %p257 = por %p255, %p256
    %p258 = scmp.ne.s32.totalorder %s244, %s245
    %p259 = scmp.eq.s32.totalorder %s22, 1
    %p260 = por %p258, %p259
    %p262 = scmp.ne.s32.totalorder %s245, %s261
    %p263 = scmp.eq.s32.totalorder %s22, 0
    %p264 = por %p262, %p263
    %p265 = scmp.le.s32.totalorder 1, %s16
    %p266 = scmp.lt.s32.totalorder %s16, 3
    %p267 = pnand %p265, %p266
    %p268 = pneg %p267
    // Predicated region
    $region9: #{triple_conv_forward.1} parent=5 // pred_check
      _
    $region10: #{triple_conv_forward.1} parent=5 // pred_check_branch
      %270 = sbr.rel (%p267) target = $region12
    $region11: #{triple_conv_forward.1} parent=5 // pred_region
      %s271 = ssub.s32 %s16, 1
      // Predicated region
      $region13: #{triple_conv_forward.1} parent=11 // pred_check
        %p272 = pneg %p63
      $region14: #{triple_conv_forward.1} parent=11 // pred_check_branch
        %274 = sbr.rel (%p272) target = $region16
      $region15: #{triple_conv_forward.1} parent=11 // pred_region
        _
      $region16: #{triple_conv_forward.1} parent=11 // pred_fallthru
        _
      // Predicated region
      $region17: #{triple_conv_forward.1} parent=11 // pred_check
        %p275 = pneg %p84
      $region18: #{triple_conv_forward.1} parent=11 // pred_check_branch
        %277 = sbr.rel (%p275) target = $region20
      $region19: #{triple_conv_forward.1} parent=11 // pred_region
        _
      $region20: #{triple_conv_forward.1} parent=11 // pred_fallthru
        _
      // Predicated region
      $region21: #{triple_conv_forward.1} parent=11 // pred_check
        %p278 = pneg %p105
      $region22: #{triple_conv_forward.1} parent=11 // pred_check_branch
        %280 = sbr.rel (%p278) target = $region24
      $region23: #{triple_conv_forward.1} parent=11 // pred_region
        _
      $region24: #{triple_conv_forward.1} parent=11 // pred_fallthru
        _
      // Predicated region
      $region25: #{triple_conv_forward.1} parent=11 // pred_check
        %p281 = pneg %p126
      $region26: #{triple_conv_forward.1} parent=11 // pred_check_branch
        %283 = sbr.rel (%p281) target = $region28
      $region27: #{triple_conv_forward.1} parent=11 // pred_region
        _
      $region28: #{triple_conv_forward.1} parent=11 // pred_fallthru
        _
      // Predicated region
      $region29: #{triple_conv_forward.1} parent=11 // pred_check
        %p284 = pneg %p147
      $region30: #{triple_conv_forward.1} parent=11 // pred_check_branch
        %286 = sbr.rel (%p284) target = $region32
      $region31: #{triple_conv_forward.1} parent=11 // pred_region
        _
      $region32: #{triple_conv_forward.1} parent=11 // pred_fallthru
        _
      // Predicated region
      $region33: #{triple_conv_forward.1} parent=11 // pred_check
        %p287 = pneg %p168
      $region34: #{triple_conv_forward.1} parent=11 // pred_check_branch
        %289 = sbr.rel (%p287) target = $region36
      $region35: #{triple_conv_forward.1} parent=11 // pred_region
        _
      $region36: #{triple_conv_forward.1} parent=11 // pred_fallthru
        _
      // Predicated region
      $region37: #{triple_conv_forward.1} parent=11 // pred_check
        %p290 = pneg %p189
      $region38: #{triple_conv_forward.1} parent=11 // pred_check_branch
        %292 = sbr.rel (%p290) target = $region40
      $region39: #{triple_conv_forward.1} parent=11 // pred_region
        _
      $region40: #{triple_conv_forward.1} parent=11 // pred_fallthru
        _
      // Predicated region
      $region41: #{triple_conv_forward.1} parent=11 // pred_check
        %p293 = pneg %p210
      $region42: #{triple_conv_forward.1} parent=11 // pred_check_branch
        %295 = sbr.rel (%p293) target = $region44
      $region43: #{triple_conv_forward.1} parent=11 // pred_region
        _
      $region44: #{triple_conv_forward.1} parent=11 // pred_fallthru
        _
      // Predicated region
      $region45: #{triple_conv_forward.1} parent=11 // pred_check
        %p296 = pneg %p231
      $region46: #{triple_conv_forward.1} parent=11 // pred_check_branch
        %298 = sbr.rel (%p296) target = $region48
      $region47: #{triple_conv_forward.1} parent=11 // pred_region
        _
      $region48: #{triple_conv_forward.1} parent=11 // pred_fallthru
        _
    $region12: #{triple_conv_forward.1} parent=5 // pred_fallthru
      _
    %p299 = scmp.lt.s32.totalorder %s16, 2
    // Predicated region
    $region49: #{triple_conv_forward.1} parent=5 // pred_check
      %p300 = pneg %p299
    $region50: #{triple_conv_forward.1} parent=5 // pred_check_branch
      %302 = sbr.rel (%p300) target = $region52
    $region51: #{triple_conv_forward.1} parent=5 // pred_region
      // Predicated region
      $region53: #{triple_conv_forward.1} parent=51 // pred_check
        %p303 = pneg %p36
      $region54: #{triple_conv_forward.1} parent=51 // pred_check_branch
        %305 = sbr.rel (%p303) target = $region56
      $region55: #{triple_conv_forward.1} parent=51 // pred_region
        %p306 = scmp.lt.s32.totalorder %s16, 1
        %s307 = scalar_select %p306, %s16, 1
        %s308 = smul.addr %s307, 36
        %s309 = smul.addr %s308, 8
        %s310 = scalar_lea.vmem %s0, %s309
      $region56: #{triple_conv_forward.1} parent=51 // pred_fallthru
        _
    $region52: #{triple_conv_forward.1} parent=5 // pred_fallthru
      _
    %p311 = scmp.le.s32.totalorder 1, %s16
    %p312 = scmp.lt.s32.totalorder %s16, 3
    %p313 = pnand %p311, %p312
    %p314 = pneg %p313
    // Predicated region
    $region57: #{triple_conv_forward.1} parent=5 // pred_check
      _
    $region58: #{triple_conv_forward.1} parent=5 // pred_check_branch
      %316 = sbr.rel (%p313) target = $region60
    $region59: #{triple_conv_forward.1} parent=5 // pred_region
      %s317 = ssub.s32 %s16, 1
      %p318 = scmp.lt.s32.totalorder %s21, 1
      %s319 = scalar_select %p318, %s21, 1
      %s320 = smul.addr %s319, 36
      %s321 = smul.addr %s320, 8
      %s322 = scalar_lea.vmem %s0, %s321
      %p323 = pneg %p42
      %p324 = pneg %p39
      %p325 = pneg %p63
      %p326 = pneg %p60
      %p327 = pneg %p84
      %p328 = pneg %p81
      %p329 = pneg %p105
      %p330 = pneg %p102
      %p331 = pneg %p126
      %p332 = pneg %p123
      %p333 = pneg %p147
      %p334 = pneg %p144
      %p335 = pneg %p168
      %p336 = pneg %p165
      %p337 = pneg %p189
      %p338 = pneg %p186
      %p339 = pneg %p210
      %p340 = pneg %p207
      %p341 = pneg %p231
      %p342 = pneg %p228
      %p343 = pneg %p257
      %p344 = pneg %p254
      %p345 = scmp.lt.s32.totalorder %s21, 1
      %s346 = scalar_select %p345, %s21, 1
      %s347 = smul.addr %s346, 36
      %s348 = smul.addr %s347, 8
      %s349 = scalar_lea.vmem %s10, %s348
      %p350 = scmp.lt.s32.totalorder %s21, 1
      %s351 = scalar_select %p350, %s21, 1
      %s352 = smul.addr %s351, 36
      %s353 = smul.addr %s352, 8
      %s354 = scalar_lea.vmem %s0, %s353
      %p355 = scmp.lt.s32.totalorder %s21, 1
      %s356 = scalar_select %p355, %s21, 1
      %s357 = smul.addr %s356, 36
      %s358 = smul.addr %s357, 8
      %s359 = scalar_lea.vmem %s10, %s358
      %vm361 = vcmask 27648
      %362 = vst.msk [vmem:[#allocation2] sm:$0xf] %vm361, 0
      %363 = vst.msk [vmem:[#allocation2 + $0x4] sm:$0xf] %vm361, 0
      %vm364 = vcmask 25600
      %vm365 = vsmask.f32 1280
      %vm366 = vmand %vm364, %vm365
      %v367 = vld [vmem:[#allocation2 + $0x8] sm:$0x3]
      %v368 = vsel %vm366, 0, %v367
      %369 = vst [vmem:[#allocation2 + $0x8] sm:$0x3] %v368
      %vm370 = vcmask 27649
      %371 = vst.msk [vmem:[#allocation2 + $0x98] sm:$0xe] %vm370, 0
      %372 = vst.msk [vmem:[#allocation2 + $0x9c] sm:$0xf] %vm361, 0
      %373 = vst.msk [vmem:[#allocation2 + $0xa0] sm:$0xf] %vm361, 0
      %374 = vst.msk [vmem:[#allocation2 + $0xa4] sm:$0xf] %vm361, 0
      %vm375 = vcmask 26624
      %376 = vst.msk [vmem:[#allocation2 + $0xa8] sm:$0x7] %vm375, 0
      %vm377 = vcmask 60416
      %378 = vst.msk [vmem:[#allocation3] sm:$0xf] %vm377, 0
      %379 = vst.msk [vmem:[#allocation3 + $0x4] sm:$0xf] %vm377, 0
      %vm380 = vcmask 58368
      %vm381 = vmand %vm380, %vm365
      %v382 = vld [vmem:[#allocation3 + $0x8] sm:$0x3]
      %v383 = vsel %vm381, 0, %v382
      %384 = vst [vmem:[#allocation3 + $0x8] sm:$0x3] %v383
      %vm385 = vcmask 60417
      %386 = vst.msk [vmem:[#allocation3 + $0x98] sm:$0xe] %vm385, 0
      %387 = vst.msk [vmem:[#allocation3 + $0x9c] sm:$0xf] %vm377, 0
      %388 = vst.msk [vmem:[#allocation3 + $0xa0] sm:$0xf] %vm377, 0
      %389 = vst.msk [vmem:[#allocation3 + $0xa4] sm:$0xf] %vm377, 0
      %vm390 = vcmask 59392
      %391 = vst.msk [vmem:[#allocation3 + $0xa8] sm:$0x7] %vm390, 0
      %392 = vst.msk [vmem:[#allocation4] sm:$0xf] %vm377, 0
      %393 = vst.msk [vmem:[#allocation4 + $0x4] sm:$0xf] %vm377, 0
      %v394 = vld [vmem:[#allocation4 + $0x8] sm:$0x3]
      %v395 = vsel %vm381, 0, %v394
      %396 = vst [vmem:[#allocation4 + $0x8] sm:$0x3] %v395
      %397 = vst.msk [vmem:[#allocation4 + $0x98] sm:$0xe] %vm385, 0
      %398 = vst.msk [vmem:[#allocation4 + $0x9c] sm:$0xf] %vm377, 0
      %399 = vst.msk [vmem:[#allocation4 + $0xa0] sm:$0xf] %vm377, 0
      %400 = vst.msk [vmem:[#allocation4 + $0xa4] sm:$0xf] %vm377, 0
      %401 = vst.msk [vmem:[#allocation4 + $0xa8] sm:$0x7] %vm390, 0
      %v402 = vld [vmem:[%s354] sm:$0xff]
      %v403 = vld [vmem:[%s354 + $0x8] sm:$0xff]
      %v404 = vld [vmem:[%s354 + $0x10] sm:$0xff]
      %v405 = vld [vmem:[%s354 + $0x18] sm:$0xff]
      %v406 = vld [vmem:[%s354 + $0x20] sm:$0xff]
      %v407 = vld [vmem:[%s354 + $0x28] sm:$0xff]
      %v408 = vld [vmem:[%s354 + $0x30] sm:$0xff]
      %v409 = vld [vmem:[%s354 + $0x38] sm:$0xff]
      %v410 = vld [vmem:[%s354 + $0x40] sm:$0xff]
      %v411 = vld [vmem:[%s354 + $0x48] sm:$0xff]
      %v412 = vld [vmem:[%s354 + $0x50] sm:$0xff]
      %v413 = vld [vmem:[%s354 + $0x58] sm:$0xff]
      %v414 = vld [vmem:[%s354 + $0x60] sm:$0xff]
      %v415 = vld [vmem:[%s354 + $0x68] sm:$0xff]
      %v416 = vld [vmem:[%s354 + $0x70] sm:$0xff]
      %v417 = vld [vmem:[%s354 + $0x78] sm:$0xff]
      %v418 = vld [vmem:[%s354 + $0x80] sm:$0xff]
      %v419 = vld [vmem:[%s354 + $0x88] sm:$0xff]
      %v420 = vld [vmem:[%s354 + $0x90] sm:$0xff]
      %v421 = vld [vmem:[%s354 + $0x98] sm:$0xff]
      %v422 = vld [vmem:[%s354 + $0xa0] sm:$0xff]
      %v423 = vld [vmem:[%s354 + $0xa8] sm:$0xff]
      %v424 = vld [vmem:[%s354 + $0xb0] sm:$0xff]
      %v425 = vld [vmem:[%s354 + $0xb8] sm:$0xff]
      %v426 = vld [vmem:[%s354 + $0xc0] sm:$0xff]
      %v427 = vld [vmem:[%s354 + $0xc8] sm:$0xff]
      %v428 = vld [vmem:[%s354 + $0xd0] sm:$0xff]
      %v429 = vld [vmem:[%s354 + $0xd8] sm:$0xff]
      %v430 = vld [vmem:[%s354 + $0xe0] sm:$0xff]
      %v431 = vld [vmem:[%s354 + $0xe8] sm:$0xff]
      %v432 = vld [vmem:[%s354 + $0xf0] sm:$0xff]
      %v433 = vld [vmem:[%s354 + $0xf8] sm:$0xff]
      %v434 = vld [vmem:[%s354 + $0x100] sm:$0xff]
      %v435 = vld [vmem:[%s354 + $0x108] sm:$0xff]
      %v436 = vld [vmem:[%s354 + $0x110] sm:$0xff]
      %v437 = vld [vmem:[%s354 + $0x118] sm:$0xff]
      %v438 = vpack.c.bf16 %v403, %v402
      %v439 = vpack.c.bf16 %v405, %v404
      %v440 = vpack.c.bf16 %v407, %v406
      %v441 = vpack.c.bf16 %v409, %v408
      %v442 = vpack.c.bf16 %v411, %v410
      %v443 = vpack.c.bf16 %v413, %v412
      %v444 = vpack.c.bf16 %v415, %v414
      %v445 = vpack.c.bf16 %v417, %v416
      %v446 = vpack.c.bf16 %v419, %v418
      %v447 = vpack.c.bf16 %v421, %v420
      %v448 = vpack.c.bf16 %v423, %v422
      %v449 = vpack.c.bf16 %v425, %v424
      %v450 = vpack.c.bf16 %v427, %v426
      %v451 = vpack.c.bf16 %v429, %v428
      %v452 = vpack.c.bf16 %v431, %v430
      %v453 = vpack.c.bf16 %v433, %v432
      %v454 = vpack.c.bf16 %v435, %v434
      %v455 = vpack.c.bf16 %v437, %v436
      %v474 = vunpack.c.l.b16 %v438
      %v475 = vunpack.c.h.b16 %v438
      %v476 = vunpack.c.l.b16 %v439
      %v477 = vunpack.c.h.b16 %v439
      %v478 = vunpack.c.l.b16 %v440
      %v479 = vunpack.c.h.b16 %v440
      %v480 = vunpack.c.l.b16 %v441
      %v481 = vunpack.c.h.b16 %v441
      %v482 = vunpack.c.l.b16 %v442
      %v483 = vunpack.c.h.b16 %v442
      %v484 = vunpack.c.l.b16 %v443
      %v485 = vunpack.c.h.b16 %v443
      %v486 = vunpack.c.l.b16 %v444
      %v487 = vunpack.c.h.b16 %v444
      %v488 = vunpack.c.l.b16 %v445
      %v489 = vunpack.c.h.b16 %v445
      %v490 = vunpack.c.l.b16 %v446
      %v491 = vunpack.c.h.b16 %v446
      %v492 = vunpack.c.l.b16 %v447
      %v493 = vunpack.c.h.b16 %v447
      %v494 = vunpack.c.l.b16 %v448
      %v495 = vunpack.c.h.b16 %v448
      %v496 = vunpack.c.l.b16 %v449
      %v497 = vunpack.c.h.b16 %v449
      %v498 = vunpack.c.l.b16 %v450
      %v499 = vunpack.c.h.b16 %v450
      %v500 = vunpack.c.l.b16 %v451
      %v501 = vunpack.c.h.b16 %v451
      %v502 = vunpack.c.l.b16 %v452
      %v503 = vunpack.c.h.b16 %v452
      %v504 = vunpack.c.l.b16 %v453
      %v505 = vunpack.c.h.b16 %v453
      %v506 = vunpack.c.l.b16 %v454
      %v507 = vunpack.c.h.b16 %v454
      %v508 = vunpack.c.l.b16 %v455
      %v509 = vunpack.c.h.b16 %v455
      %v510 = vpack.c.b16 %v474, %v474
      %v511 = vpack.c.b16 %v475, %v475
      %v512 = vpack.c.b16 %v476, %v476
      %v513 = vpack.c.b16 %v477, %v477
      %v514 = vpack.c.b16 %v478, %v478
      %v515 = vpack.c.b16 %v479, %v479
      %v516 = vpack.c.b16 %v480, %v480
      %v517 = vpack.c.b16 %v481, %v481
      %v518 = vpack.c.b16 %v482, %v482
      %v519 = vpack.c.b16 %v483, %v483
      %v520 = vpack.c.b16 %v484, %v484
      %v521 = vpack.c.b16 %v485, %v485
      %v522 = vpack.c.b16 %v486, %v486
      %v523 = vpack.c.b16 %v487, %v487
      %v524 = vpack.c.b16 %v488, %v488
      %v525 = vpack.c.b16 %v489, %v489
      %v526 = vpack.c.b16 %v490, %v490
      %v527 = vpack.c.b16 %v491, %v491
      %v528 = vpack.c.b16 %v492, %v492
      %v529 = vpack.c.b16 %v493, %v493
      %v530 = vpack.c.b16 %v494, %v494
      %v531 = vpack.c.b16 %v495, %v495
      %v532 = vpack.c.b16 %v496, %v496
      %v533 = vpack.c.b16 %v497, %v497
      %v534 = vpack.c.b16 %v498, %v498
      %v535 = vpack.c.b16 %v499, %v499
      %v536 = vpack.c.b16 %v500, %v500
      %v537 = vpack.c.b16 %v501, %v501
      %v538 = vpack.c.b16 %v502, %v502
      %v539 = vpack.c.b16 %v503, %v503
      %v540 = vpack.c.b16 %v504, %v504
      %v541 = vpack.c.b16 %v505, %v505
      %v542 = vpack.c.b16 %v506, %v506
      %v543 = vpack.c.b16 %v507, %v507
      %v544 = vpack.c.b16 %v508, %v508
      %v545 = vpack.c.b16 %v509, %v509
      %vm546 = vcmask 1040384
      %vm547 = vcmask 1044484
      %vm548 = vmor %vm546, %vm547
      %v549 = vrot.slane %v510, 7
      %v550 = vrot.slane %v549, 4
      %v551 = vrot.slane %v511, 7
      %v552 = vsel %vm548, %v550, %v551
      %v553 = vrot.slane %v551, 4
      %v554 = vrot.slane %v512, 7
      %v555 = vsel %vm548, %v553, %v554
      %v556 = vrot.slane %v554, 4
      %v557 = vrot.slane %v513, 7
      %v558 = vsel %vm548, %v556, %v557
      %v559 = vrot.slane %v557, 4
      %v560 = vrot.slane %v514, 7
      %v561 = vsel %vm548, %v559, %v560
      %v562 = vrot.slane %v560, 4
      %v563 = vrot.slane %v515, 7
      %v564 = vsel %vm548, %v562, %v563
      %v565 = vrot.slane %v563, 4
      %v566 = vrot.slane %v516, 7
      %v567 = vsel %vm548, %v565, %v566
      %v568 = vrot.slane %v566, 4
      %v569 = vrot.slane %v517, 7
      %v570 = vsel %vm548, %v568, %v569
      %v571 = vrot.slane %v569, 4
      %v572 = vrot.slane %v518, 7
      %v573 = vsel %vm548, %v571, %v572
      %v574 = vrot.slane %v572, 4
      %v575 = vrot.slane %v519, 7
      %v576 = vsel %vm548, %v574, %v575
      %v577 = vrot.slane %v575, 4
      %v578 = vrot.slane %v520, 7
      %v579 = vsel %vm548, %v577, %v578
      %v580 = vrot.slane %v578, 4
      %v581 = vrot.slane %v521, 7
      %v582 = vsel %vm548, %v580, %v581
      %v583 = vrot.slane %v581, 4
      %v584 = vrot.slane %v522, 7
      %v585 = vsel %vm548, %v583, %v584
      %v586 = vrot.slane %v584, 4
      %v587 = vrot.slane %v523, 7
      %v588 = vsel %vm548, %v586, %v587
      %v589 = vrot.slane %v587, 4
      %v590 = vrot.slane %v524, 7
      %v591 = vsel %vm548, %v589, %v590
      %v592 = vrot.slane %v590, 4
      %v593 = vrot.slane %v525, 7
      %v594 = vsel %vm548, %v592, %v593
      %v595 = vrot.slane %v593, 4
      %v596 = vrot.slane %v526, 7
      %v597 = vsel %vm548, %v595, %v596
      %v598 = vrot.slane %v596, 4
      %v599 = vrot.slane %v527, 7
      %v600 = vsel %vm548, %v598, %v599
      %v601 = vrot.slane %v599, 4
      %v602 = vrot.slane %v528, 7
      %v603 = vsel %vm548, %v601, %v602
      %v604 = vrot.slane %v602, 4
      %v605 = vrot.slane %v529, 7
      %v606 = vsel %vm548, %v604, %v605
      %v607 = vrot.slane %v605, 4
      %v608 = vrot.slane %v530, 7
      %v609 = vsel %vm548, %v607, %v608
      %v610 = vrot.slane %v608, 4
      %v611 = vrot.slane %v531, 7
      %v612 = vsel %vm548, %v610, %v611
      %v613 = vrot.slane %v611, 4
      %v614 = vrot.slane %v532, 7
      %v615 = vsel %vm548, %v613, %v614
      %v616 = vrot.slane %v614, 4
      %v617 = vrot.slane %v533, 7
      %v618 = vsel %vm548, %v616, %v617
      %v619 = vrot.slane %v617, 4
      %v620 = vrot.slane %v534, 7
      %v621 = vsel %vm548, %v619, %v620
      %v622 = vrot.slane %v620, 4
      %v623 = vrot.slane %v535, 7
      %v624 = vsel %vm548, %v622, %v623
      %v625 = vrot.slane %v623, 4
      %v626 = vrot.slane %v536, 7
      %v627 = vsel %vm548, %v625, %v626
      %v628 = vrot.slane %v626, 4
      %v629 = vrot.slane %v537, 7
      %v630 = vsel %vm548, %v628, %v629
      %v631 = vrot.slane %v629, 4
      %v632 = vrot.slane %v538, 7
      %v633 = vsel %vm548, %v631, %v632
      %v634 = vrot.slane %v632, 4
      %v635 = vrot.slane %v539, 7
      %v636 = vsel %vm548, %v634, %v635
      %v637 = vrot.slane %v635, 4
      %v638 = vrot.slane %v540, 7
      %v639 = vsel %vm548, %v637, %v638
      %v640 = vrot.slane %v638, 4
      %v641 = vrot.slane %v541, 7
      %v642 = vsel %vm548, %v640, %v641
      %v643 = vrot.slane %v641, 4
      %v644 = vrot.slane %v542, 7
      %v645 = vsel %vm548, %v643, %v644
      %v646 = vrot.slane %v644, 4
      %v647 = vrot.slane %v543, 7
      %v648 = vsel %vm548, %v646, %v647
      %v649 = vrot.slane %v647, 4
      %v650 = vrot.slane %v544, 7
      %v651 = vsel %vm548, %v649, %v650
      %v652 = vrot.slane %v650, 4
      %v653 = vrot.slane %v545, 7
      %v654 = vsel %vm548, %v652, %v653
      %v655 = vrot.slane %v653, 4
      %693 = vst.msk [vmem:[#allocation2 + $0x8] sm:$0xe] %vm370, %v549
      %694 = vst.msk [vmem:[#allocation2 + $0xc] sm:$0xf] %vm361, %v552
      %695 = vst.msk [vmem:[#allocation2 + $0x10] sm:$0xf] %vm361, %v555
      %696 = vst.msk [vmem:[#allocation2 + $0x14] sm:$0xf] %vm361, %v558
      %697 = vst.msk [vmem:[#allocation2 + $0x18] sm:$0xf] %vm361, %v561
      %698 = vst.msk [vmem:[#allocation2 + $0x1c] sm:$0xf] %vm361, %v564
      %699 = vst.msk [vmem:[#allocation2 + $0x20] sm:$0xf] %vm361, %v567
      %700 = vst.msk [vmem:[#allocation2 + $0x24] sm:$0xf] %vm361, %v570
      %701 = vst.msk [vmem:[#allocation2 + $0x28] sm:$0xf] %vm361, %v573
      %702 = vst.msk [vmem:[#allocation2 + $0x2c] sm:$0xf] %vm361, %v576
      %703 = vst.msk [vmem:[#allocation2 + $0x30] sm:$0xf] %vm361, %v579
      %704 = vst.msk [vmem:[#allocation2 + $0x34] sm:$0xf] %vm361, %v582
      %705 = vst.msk [vmem:[#allocation2 + $0x38] sm:$0xf] %vm361, %v585
      %706 = vst.msk [vmem:[#allocation2 + $0x3c] sm:$0xf] %vm361, %v588
      %707 = vst.msk [vmem:[#allocation2 + $0x40] sm:$0xf] %vm361, %v591
      %708 = vst.msk [vmem:[#allocation2 + $0x44] sm:$0xf] %vm361, %v594
      %709 = vst.msk [vmem:[#allocation2 + $0x48] sm:$0xf] %vm361, %v597
      %710 = vst.msk [vmem:[#allocation2 + $0x4c] sm:$0xf] %vm361, %v600
      %711 = vst.msk [vmem:[#allocation2 + $0x50] sm:$0xf] %vm361, %v603
      %712 = vst.msk [vmem:[#allocation2 + $0x54] sm:$0xf] %vm361, %v606
      %713 = vst.msk [vmem:[#allocation2 + $0x58] sm:$0xf] %vm361, %v609
      %714 = vst.msk [vmem:[#allocation2 + $0x5c] sm:$0xf] %vm361, %v612
      %715 = vst.msk [vmem:[#allocation2 + $0x60] sm:$0xf] %vm361, %v615
      %716 = vst.msk [vmem:[#allocation2 + $0x64] sm:$0xf] %vm361, %v618
      %717 = vst.msk [vmem:[#allocation2 + $0x68] sm:$0xf] %vm361, %v621
      %718 = vst.msk [vmem:[#allocation2 + $0x6c] sm:$0xf] %vm361, %v624
      %719 = vst.msk [vmem:[#allocation2 + $0x70] sm:$0xf] %vm361, %v627
      %720 = vst.msk [vmem:[#allocation2 + $0x74] sm:$0xf] %vm361, %v630
      %721 = vst.msk [vmem:[#allocation2 + $0x78] sm:$0xf] %vm361, %v633
      %722 = vst.msk [vmem:[#allocation2 + $0x7c] sm:$0xf] %vm361, %v636
      %723 = vst.msk [vmem:[#allocation2 + $0x80] sm:$0xf] %vm361, %v639
      %724 = vst.msk [vmem:[#allocation2 + $0x84] sm:$0xf] %vm361, %v642
      %725 = vst.msk [vmem:[#allocation2 + $0x88] sm:$0xf] %vm361, %v645
      %726 = vst.msk [vmem:[#allocation2 + $0x8c] sm:$0xf] %vm361, %v648
      %727 = vst.msk [vmem:[#allocation2 + $0x90] sm:$0xf] %vm361, %v651
      %728 = vst.msk [vmem:[#allocation2 + $0x94] sm:$0xf] %vm361, %v654
      %vm729 = vcmask 24576
      %730 = vst.msk [vmem:[#allocation2 + $0x98] sm:$0x1] %vm729, %v655
      %v731 = vld [vmem:[#allocation2] sm:$0xf]
      %v732 = vld [vmem:[#allocation2 + $0x4] sm:$0xf]
      %v733 = vld [vmem:[#allocation2 + $0x8] sm:$0xf]
      %v734 = vld [vmem:[#allocation2 + $0xc] sm:$0xf]
      %v735 = vld [vmem:[#allocation2 + $0x10] sm:$0xf]
      %v736 = vld [vmem:[#allocation2 + $0x14] sm:$0xf]
      %v737 = vld [vmem:[#allocation2 + $0x18] sm:$0xf]
      %v738 = vld [vmem:[#allocation2 + $0x1c] sm:$0xf]
      %v739 = vld [vmem:[#allocation2 + $0x20] sm:$0xf]
      %v740 = vld [vmem:[#allocation2 + $0x24] sm:$0xf]
      %v741 = vld [vmem:[#allocation2 + $0x28] sm:$0xf]
      %v742 = vld [vmem:[#allocation2 + $0x2c] sm:$0xf]
      %v743 = vld [vmem:[#allocation2 + $0x30] sm:$0xf]
      %v744 = vld [vmem:[#allocation2 + $0x34] sm:$0xf]
      %v745 = vld [vmem:[#allocation2 + $0x38] sm:$0xf]
      %v746 = vld [vmem:[#allocation2 + $0x3c] sm:$0xf]
      %v747 = vld [vmem:[#allocation2 + $0x40] sm:$0xf]
      %v748 = vld [vmem:[#allocation2 + $0x44] sm:$0xf]
      %v749 = vld [vmem:[#allocation2 + $0x48] sm:$0xf]
      %v750 = vld [vmem:[#allocation2 + $0x4c] sm:$0xf]
      %v751 = vld [vmem:[#allocation2 + $0x50] sm:$0xf]
      %v752 = vld [vmem:[#allocation2 + $0x54] sm:$0xf]
      %v753 = vld [vmem:[#allocation2 + $0x58] sm:$0xf]
      %v754 = vld [vmem:[#allocation2 + $0x5c] sm:$0xf]
      %v755 = vld [vmem:[#allocation2 + $0x60] sm:$0xf]
      %v756 = vld [vmem:[#allocation2 + $0x64] sm:$0xf]
      %v757 = vld [vmem:[#allocation2 + $0x68] sm:$0xf]
      %v758 = vld [vmem:[#allocation2 + $0x6c] sm:$0xf]
      %v759 = vld [vmem:[#allocation2 + $0x70] sm:$0xf]
      %v760 = vld [vmem:[#allocation2 + $0x74] sm:$0xf]
      %v761 = vld [vmem:[#allocation2 + $0x78] sm:$0xf]
      %v762 = vld [vmem:[#allocation2 + $0x7c] sm:$0xf]
      %v763 = vld [vmem:[#allocation2 + $0x80] sm:$0xf]
      %v764 = vld [vmem:[#allocation2 + $0x84] sm:$0xf]
      %v765 = vld [vmem:[#allocation2 + $0x88] sm:$0xf]
      %v766 = vld [vmem:[#allocation2 + $0x8c] sm:$0xf]
      %v767 = vld [vmem:[#allocation2 + $0x90] sm:$0x1]
      %v768 = vld [vmem:[#allocation2] sm:$0xe]
      %v769 = vld [vmem:[#allocation2 + $0x8] sm:$0xe]
      %v770 = vld [vmem:[#allocation2 + $0x90] sm:$0xf]
      %v771 = vld [vmem:[#allocation2 + $0x94] sm:$0xf]
      %v772 = vld [vmem:[#allocation2 + $0x98] sm:$0x1]
      %v773 = vld [vmem:[#allocation2 + $0x98] sm:$0x3]
      %v774 = vld [vmem:[#allocation2 + $0x8] sm:$0xc]
      %v775 = vld [vmem:[#allocation2 + $0x10] sm:$0xc]
      %v776 = vld [vmem:[#allocation2 + $0x98] sm:$0xf]
      %v777 = vld [vmem:[#allocation2 + $0x9c] sm:$0xf]
      %v778 = vld [vmem:[#allocation2 + $0xa0] sm:$0x3]
      %v779 = vld [vmem:[#allocation2 + $0xa0] sm:$0x7]
      %v780 = vld [vmem:[#allocation2 + $0x10] sm:$0x8]
      %v817 = vunpack.c.l.b16 %v731
      %v818 = vunpack.c.l.b16 %v732
      %v819 = vunpack.c.l.b16 %v733
      %v820 = vunpack.c.l.b16 %v734
      %v821 = vunpack.c.l.b16 %v735
      %v822 = vunpack.c.l.b16 %v736
      %v823 = vunpack.c.l.b16 %v737
      %v824 = vunpack.c.l.b16 %v738
      %v825 = vunpack.c.l.b16 %v739
      %v826 = vunpack.c.l.b16 %v740
      %v827 = vunpack.c.l.b16 %v741
      %v828 = vunpack.c.l.b16 %v742
      %v829 = vunpack.c.l.b16 %v743
      %v830 = vunpack.c.l.b16 %v744
      %v831 = vunpack.c.l.b16 %v745
      %v832 = vunpack.c.l.b16 %v746
      %v833 = vunpack.c.l.b16 %v747
      %v834 = vunpack.c.l.b16 %v748
      %v835 = vunpack.c.l.b16 %v749
      %v836 = vunpack.c.l.b16 %v750
      %v837 = vunpack.c.l.b16 %v751
      %v838 = vunpack.c.l.b16 %v752
      %v839 = vunpack.c.l.b16 %v753
      %v840 = vunpack.c.l.b16 %v754
      %v841 = vunpack.c.l.b16 %v755
      %v842 = vunpack.c.l.b16 %v756
      %v843 = vunpack.c.l.b16 %v757
      %v844 = vunpack.c.l.b16 %v758
      %v845 = vunpack.c.l.b16 %v759
      %v846 = vunpack.c.l.b16 %v760
      %v847 = vunpack.c.l.b16 %v761
      %v848 = vunpack.c.l.b16 %v762
      %v849 = vunpack.c.l.b16 %v763
      %v850 = vunpack.c.l.b16 %v764
      %v851 = vunpack.c.l.b16 %v765
      %v852 = vunpack.c.l.b16 %v766
      %v853 = vpack.c.b16 %v818, %v817
      %v854 = vpack.c.b16 %v820, %v819
      %v855 = vpack.c.b16 %v822, %v821
      %v856 = vpack.c.b16 %v824, %v823
      %v857 = vpack.c.b16 %v826, %v825
      %v858 = vpack.c.b16 %v828, %v827
      %v859 = vpack.c.b16 %v830, %v829
      %v860 = vpack.c.b16 %v832, %v831
      %v861 = vpack.c.b16 %v834, %v833
      %v862 = vpack.c.b16 %v836, %v835
      %v863 = vpack.c.b16 %v838, %v837
      %v864 = vpack.c.b16 %v840, %v839
      %v865 = vpack.c.b16 %v842, %v841
      %v866 = vpack.c.b16 %v844, %v843
      %v867 = vpack.c.b16 %v846, %v845
      %v868 = vpack.c.b16 %v848, %v847
      %v869 = vpack.c.b16 %v850, %v849
      %v870 = vpack.c.b16 %v852, %v851
      %v872 = vunpack.c.l.b16 %v767
      %v873 = vpack.c.b16 %v872, %v872
      %vm874 = vsmask.f32 7424
      %v876 = vshrl.u32 %v853, 16
      %v878 = vshll.u32 %v853, 16
      %v880 = vrot.slane %v878, 1
      %v881 = vor.u32 %v876, %v880
      %v883 = vshll.u32 %v854, 16
      %v885 = vrot.slane %v883, 1
      %v886 = vsel %vm874, %v881, %v885
      %v887 = vshrl.u32 %v854, 16
      %v889 = vor.u32 %v887, %v885
      %v891 = vshll.u32 %v855, 16
      %v893 = vrot.slane %v891, 1
      %v894 = vsel %vm874, %v889, %v893
      %v895 = vshrl.u32 %v855, 16
      %v897 = vor.u32 %v895, %v893
      %v899 = vshll.u32 %v856, 16
      %v901 = vrot.slane %v899, 1
      %v902 = vsel %vm874, %v897, %v901
      %v903 = vshrl.u32 %v856, 16
      %v905 = vor.u32 %v903, %v901
      %v907 = vshll.u32 %v857, 16
      %v909 = vrot.slane %v907, 1
      %v910 = vsel %vm874, %v905, %v909
      %v911 = vshrl.u32 %v857, 16
      %v913 = vor.u32 %v911, %v909
      %v915 = vshll.u32 %v858, 16
      %v917 = vrot.slane %v915, 1
      %v918 = vsel %vm874, %v913, %v917
      %v919 = vshrl.u32 %v858, 16
      %v921 = vor.u32 %v919, %v917
      %v923 = vshll.u32 %v859, 16
      %v925 = vrot.slane %v923, 1
      %v926 = vsel %vm874, %v921, %v925
      %v927 = vshrl.u32 %v859, 16
      %v929 = vor.u32 %v927, %v925
      %v931 = vshll.u32 %v860, 16
      %v933 = vrot.slane %v931, 1
      %v934 = vsel %vm874, %v929, %v933
      %v935 = vshrl.u32 %v860, 16
      %v937 = vor.u32 %v935, %v933
      %v939 = vshll.u32 %v861, 16
      %v941 = vrot.slane %v939, 1
      %v942 = vsel %vm874, %v937, %v941
      %v943 = vshrl.u32 %v861, 16
      %v945 = vor.u32 %v943, %v941
      %v947 = vshll.u32 %v862, 16
      %v949 = vrot.slane %v947, 1
      %v950 = vsel %vm874, %v945, %v949
      %v951 = vshrl.u32 %v862, 16
      %v953 = vor.u32 %v951, %v949
      %v955 = vshll.u32 %v863, 16
      %v957 = vrot.slane %v955, 1
      %v958 = vsel %vm874, %v953, %v957
      %v959 = vshrl.u32 %v863, 16
      %v961 = vor.u32 %v959, %v957
      %v963 = vshll.u32 %v864, 16
      %v965 = vrot.slane %v963, 1
      %v966 = vsel %vm874, %v961, %v965
      %v967 = vshrl.u32 %v864, 16
      %v969 = vor.u32 %v967, %v965
      %v971 = vshll.u32 %v865, 16
      %v973 = vrot.slane %v971, 1
      %v974 = vsel %vm874, %v969, %v973
      %v975 = vshrl.u32 %v865, 16
      %v977 = vor.u32 %v975, %v973
      %v979 = vshll.u32 %v866, 16
      %v981 = vrot.slane %v979, 1
      %v982 = vsel %vm874, %v977, %v981
      %v983 = vshrl.u32 %v866, 16
      %v985 = vor.u32 %v983, %v981
      %v987 = vshll.u32 %v867, 16
      %v989 = vrot.slane %v987, 1
      %v990 = vsel %vm874, %v985, %v989
      %v991 = vshrl.u32 %v867, 16
      %v993 = vor.u32 %v991, %v989
      %v995 = vshll.u32 %v868, 16
      %v997 = vrot.slane %v995, 1
      %v998 = vsel %vm874, %v993, %v997
      %v999 = vshrl.u32 %v868, 16
      %v1001 = vor.u32 %v999, %v997
      %v1003 = vshll.u32 %v869, 16
      %v1005 = vrot.slane %v1003, 1
      %v1006 = vsel %vm874, %v1001, %v1005
      %v1007 = vshrl.u32 %v869, 16
      %v1009 = vor.u32 %v1007, %v1005
      %v1011 = vshll.u32 %v870, 16
      %v1013 = vrot.slane %v1011, 1
      %v1014 = vsel %vm874, %v1009, %v1013
      %v1015 = vshrl.u32 %v870, 16
      %v1017 = vor.u32 %v1015, %v1013
      %v1019 = vshll.u32 %v873, 16
      %v1021 = vrot.slane %v1019, 1
      %v1022 = vsel %vm874, %v1017, %v1021
      %1023 = vrot.lane.b32.xlu0 %v886, 4
      %v1024 = vpop.permute.xlu0 %1023
      %1025 = vrot.lane.b32.xlu0 %v894, 4
      %v1026 = vpop.permute.xlu0 %1025
      %1027 = vrot.lane.b32.xlu0 %v902, 4
      %v1028 = vpop.permute.xlu0 %1027
      %1029 = vrot.lane.b32.xlu0 %v910, 4
      %v1030 = vpop.permute.xlu0 %1029
      %1031 = vrot.lane.b32.xlu0 %v918, 4
      %v1032 = vpop.permute.xlu0 %1031
      %1033 = vrot.lane.b32.xlu0 %v926, 4
      %v1034 = vpop.permute.xlu0 %1033
      %1035 = vrot.lane.b32.xlu0 %v934, 4
      %v1036 = vpop.permute.xlu0 %1035
      %1037 = vrot.lane.b32.xlu0 %v942, 4
      %v1038 = vpop.permute.xlu0 %1037
      %1039 = vrot.lane.b32.xlu0 %v950, 4
      %v1040 = vpop.permute.xlu0 %1039
      %1041 = vrot.lane.b32.xlu0 %v958, 4
      %v1042 = vpop.permute.xlu0 %1041
      %1043 = vrot.lane.b32.xlu0 %v966, 4
      %v1044 = vpop.permute.xlu0 %1043
      %1045 = vrot.lane.b32.xlu0 %v974, 4
      %v1046 = vpop.permute.xlu0 %1045
      %1047 = vrot.lane.b32.xlu0 %v982, 4
      %v1048 = vpop.permute.xlu0 %1047
      %1049 = vrot.lane.b32.xlu0 %v990, 4
      %v1050 = vpop.permute.xlu0 %1049
      %1051 = vrot.lane.b32.xlu0 %v998, 4
      %v1052 = vpop.permute.xlu0 %1051
      %1053 = vrot.lane.b32.xlu0 %v1006, 4
      %v1054 = vpop.permute.xlu0 %1053
      %1055 = vrot.lane.b32.xlu0 %v1014, 4
      %v1056 = vpop.permute.xlu0 %1055
      %1057 = vrot.lane.b32.xlu0 %v1022, 4
      %v1058 = vpop.permute.xlu0 %1057
      %v1060 = vunpack.c.l.b16 %v768
      %v1061 = vpack.c.b16 %v818, %v1060
      %vm1062 = vcmask 1046528
      %v1063 = vrot.slane %v1061, 1
      %v1064 = vrot.slane %v854, 1
      %v1065 = vsel %vm1062, %v1063, %v1064
      %v1066 = vrot.slane %v855, 1
      %v1067 = vsel %vm1062, %v1064, %v1066
      %v1068 = vrot.slane %v856, 1
      %v1069 = vsel %vm1062, %v1066, %v1068
      %v1070 = vrot.slane %v857, 1
      %v1071 = vsel %vm1062, %v1068, %v1070
      %v1072 = vrot.slane %v858, 1
      %v1073 = vsel %vm1062, %v1070, %v1072
      %v1074 = vrot.slane %v859, 1
      %v1075 = vsel %vm1062, %v1072, %v1074
      %v1076 = vrot.slane %v860, 1
      %v1077 = vsel %vm1062, %v1074, %v1076
      %v1078 = vrot.slane %v861, 1
      %v1079 = vsel %vm1062, %v1076, %v1078
      %v1080 = vrot.slane %v862, 1
      %v1081 = vsel %vm1062, %v1078, %v1080
      %v1082 = vrot.slane %v863, 1
      %v1083 = vsel %vm1062, %v1080, %v1082
      %v1084 = vrot.slane %v864, 1
      %v1085 = vsel %vm1062, %v1082, %v1084
      %v1086 = vrot.slane %v865, 1
      %v1087 = vsel %vm1062, %v1084, %v1086
      %v1088 = vrot.slane %v866, 1
      %v1089 = vsel %vm1062, %v1086, %v1088
      %v1090 = vrot.slane %v867, 1
      %v1091 = vsel %vm1062, %v1088, %v1090
      %v1092 = vrot.slane %v868, 1
      %v1093 = vsel %vm1062, %v1090, %v1092
      %v1094 = vrot.slane %v869, 1
      %v1095 = vsel %vm1062, %v1092, %v1094
      %v1096 = vrot.slane %v870, 1
      %v1097 = vsel %vm1062, %v1094, %v1096
      %v1098 = vrot.slane %v873, 1
      %v1099 = vsel %vm1062, %v1096, %v1098
      %1100 = vrot.lane.b32.xlu0 %v1065, 8
      %v1101 = vpop.permute.xlu0 %1100
      %1102 = vrot.lane.b32.xlu0 %v1067, 8
      %v1103 = vpop.permute.xlu0 %1102
      %1104 = vrot.lane.b32.xlu0 %v1069, 8
      %v1105 = vpop.permute.xlu0 %1104
      %1106 = vrot.lane.b32.xlu0 %v1071, 8
      %v1107 = vpop.permute.xlu0 %1106
      %1108 = vrot.lane.b32.xlu0 %v1073, 8
      %v1109 = vpop.permute.xlu0 %1108
      %1110 = vrot.lane.b32.xlu0 %v1075, 8
      %v1111 = vpop.permute.xlu0 %1110
      %1112 = vrot.lane.b32.xlu0 %v1077, 8
      %v1113 = vpop.permute.xlu0 %1112
      %1114 = vrot.lane.b32.xlu0 %v1079, 8
      %v1115 = vpop.permute.xlu0 %1114
      %1116 = vrot.lane.b32.xlu0 %v1081, 8
      %v1117 = vpop.permute.xlu0 %1116
      %1118 = vrot.lane.b32.xlu0 %v1083, 8
      %v1119 = vpop.permute.xlu0 %1118
      %1120 = vrot.lane.b32.xlu0 %v1085, 8
      %v1121 = vpop.permute.xlu0 %1120
      %1122 = vrot.lane.b32.xlu0 %v1087, 8
      %v1123 = vpop.permute.xlu0 %1122
      %1124 = vrot.lane.b32.xlu0 %v1089, 8
      %v1125 = vpop.permute.xlu0 %1124
      %1126 = vrot.lane.b32.xlu0 %v1091, 8
      %v1127 = vpop.permute.xlu0 %1126
      %1128 = vrot.lane.b32.xlu0 %v1093, 8
      %v1129 = vpop.permute.xlu0 %1128
      %1130 = vrot.lane.b32.xlu0 %v1095, 8
      %v1131 = vpop.permute.xlu0 %1130
      %1132 = vrot.lane.b32.xlu0 %v1097, 8
      %v1133 = vpop.permute.xlu0 %1132
      %1134 = vrot.lane.b32.xlu0 %v1099, 8
      %v1135 = vpop.permute.xlu0 %1134
      %v1140 = vunpack.c.l.b16 %v769
      %v1141 = vunpack.c.l.b16 %v770
      %v1142 = vunpack.c.l.b16 %v771
      %v1143 = vunpack.c.l.b16 %v772
      %v1144 = vpack.c.b16 %v820, %v1140
      %v1145 = vpack.c.b16 %v1142, %v1141
      %v1146 = vpack.c.b16 %v1143, %v1143
      %v1147 = vrot.slane %v1144, 1
      %v1148 = vsel %vm1062, %v1147, %v1066
      %v1149 = vrot.slane %v1145, 1
      %v1150 = vsel %vm1062, %v1096, %v1149
      %v1151 = vrot.slane %v1146, 1
      %v1152 = vsel %vm1062, %v1149, %v1151
      %1153 = vrot.lane.b32.xlu0 %v1148, 12
      %v1154 = vpop.permute.xlu0 %1153
      %1155 = vrot.lane.b32.xlu0 %v1069, 12
      %v1156 = vpop.permute.xlu0 %1155
      %1157 = vrot.lane.b32.xlu0 %v1071, 12
      %v1158 = vpop.permute.xlu0 %1157
      %1159 = vrot.lane.b32.xlu0 %v1073, 12
      %v1160 = vpop.permute.xlu0 %1159
      %1161 = vrot.lane.b32.xlu0 %v1075, 12
      %v1162 = vpop.permute.xlu0 %1161
      %1163 = vrot.lane.b32.xlu0 %v1077, 12
      %v1164 = vpop.permute.xlu0 %1163
      %1165 = vrot.lane.b32.xlu0 %v1079, 12
      %v1166 = vpop.permute.xlu0 %1165
      %1167 = vrot.lane.b32.xlu0 %v1081, 12
      %v1168 = vpop.permute.xlu0 %1167
      %1169 = vrot.lane.b32.xlu0 %v1083, 12
      %v1170 = vpop.permute.xlu0 %1169
      %1171 = vrot.lane.b32.xlu0 %v1085, 12
      %v1172 = vpop.permute.xlu0 %1171
      %1173 = vrot.lane.b32.xlu0 %v1087, 12
      %v1174 = vpop.permute.xlu0 %1173
      %1175 = vrot.lane.b32.xlu0 %v1089, 12
      %v1176 = vpop.permute.xlu0 %1175
      %1177 = vrot.lane.b32.xlu0 %v1091, 12
      %v1178 = vpop.permute.xlu0 %1177
      %1179 = vrot.lane.b32.xlu0 %v1093, 12
      %v1180 = vpop.permute.xlu0 %1179
      %1181 = vrot.lane.b32.xlu0 %v1095, 12
      %v1182 = vpop.permute.xlu0 %1181
      %1183 = vrot.lane.b32.xlu0 %v1097, 12
      %v1184 = vpop.permute.xlu0 %1183
      %1185 = vrot.lane.b32.xlu0 %v1150, 12
      %v1186 = vpop.permute.xlu0 %1185
      %1187 = vrot.lane.b32.xlu0 %v1152, 12
      %v1188 = vpop.permute.xlu0 %1187
      %v1190 = vunpack.c.l.b16 %v773
      %v1191 = vpack.c.b16 %v1190, %v1190
      %vm1192 = vsmask.f32 6400
      %v1194 = vshrl.u32 %v1144, 16
      %v1196 = vrot.slane %v1194, 1
      %v1197 = vshll.u32 %v1144, 16
      %v1199 = vrot.slane %v1197, 2
      %v1200 = vor.u32 %v1196, %v1199
      %v1201 = vrot.slane %v895, 1
      %v1202 = vrot.slane %v891, 2
      %v1203 = vor.u32 %v1201, %v1202
      %v1204 = vsel %vm1192, %v1200, %v1203
      %v1205 = vrot.slane %v903, 1
      %v1206 = vrot.slane %v899, 2
      %v1207 = vor.u32 %v1205, %v1206
      %v1208 = vsel %vm1192, %v1203, %v1207
      %v1209 = vrot.slane %v911, 1
      %v1210 = vrot.slane %v907, 2
      %v1211 = vor.u32 %v1209, %v1210
      %v1212 = vsel %vm1192, %v1207, %v1211
      %v1213 = vrot.slane %v919, 1
      %v1214 = vrot.slane %v915, 2
      %v1215 = vor.u32 %v1213, %v1214
      %v1216 = vsel %vm1192, %v1211, %v1215
      %v1217 = vrot.slane %v927, 1
      %v1218 = vrot.slane %v923, 2
      %v1219 = vor.u32 %v1217, %v1218
      %v1220 = vsel %vm1192, %v1215, %v1219
      %v1221 = vrot.slane %v935, 1
      %v1222 = vrot.slane %v931, 2
      %v1223 = vor.u32 %v1221, %v1222
      %v1224 = vsel %vm1192, %v1219, %v1223
      %v1225 = vrot.slane %v943, 1
      %v1226 = vrot.slane %v939, 2
      %v1227 = vor.u32 %v1225, %v1226
      %v1228 = vsel %vm1192, %v1223, %v1227
      %v1229 = vrot.slane %v951, 1
      %v1230 = vrot.slane %v947, 2
      %v1231 = vor.u32 %v1229, %v1230
      %v1232 = vsel %vm1192, %v1227, %v1231
      %v1233 = vrot.slane %v959, 1
      %v1234 = vrot.slane %v955, 2
      %v1235 = vor.u32 %v1233, %v1234
      %v1236 = vsel %vm1192, %v1231, %v1235
      %v1237 = vrot.slane %v967, 1
      %v1238 = vrot.slane %v963, 2
      %v1239 = vor.u32 %v1237, %v1238
      %v1240 = vsel %vm1192, %v1235, %v1239
      %v1241 = vrot.slane %v975, 1
      %v1242 = vrot.slane %v971, 2
      %v1243 = vor.u32 %v1241, %v1242
      %v1244 = vsel %vm1192, %v1239, %v1243
      %v1245 = vrot.slane %v983, 1
      %v1246 = vrot.slane %v979, 2
      %v1247 = vor.u32 %v1245, %v1246
      %v1248 = vsel %vm1192, %v1243, %v1247
      %v1249 = vrot.slane %v991, 1
      %v1250 = vrot.slane %v987, 2
      %v1251 = vor.u32 %v1249, %v1250
      %v1252 = vsel %vm1192, %v1247, %v1251
      %v1253 = vrot.slane %v999, 1
      %v1254 = vrot.slane %v995, 2
      %v1255 = vor.u32 %v1253, %v1254
      %v1256 = vsel %vm1192, %v1251, %v1255
      %v1257 = vrot.slane %v1007, 1
      %v1258 = vrot.slane %v1003, 2
      %v1259 = vor.u32 %v1257, %v1258
      %v1260 = vsel %vm1192, %v1255, %v1259
      %v1261 = vrot.slane %v1015, 1
      %v1262 = vrot.slane %v1011, 2
      %v1263 = vor.u32 %v1261, %v1262
      %v1264 = vsel %vm1192, %v1259, %v1263
      %v1266 = vshrl.u32 %v1145, 16
      %v1268 = vrot.slane %v1266, 1
      %v1269 = vshll.u32 %v1145, 16
      %v1271 = vrot.slane %v1269, 2
      %v1272 = vor.u32 %v1268, %v1271
      %v1273 = vsel %vm1192, %v1263, %v1272
      %v1275 = vshrl.u32 %v1191, 16
      %v1277 = vrot.slane %v1275, 1
      %v1278 = vshll.u32 %v1191, 16
      %v1280 = vrot.slane %v1278, 2
      %v1281 = vor.u32 %v1277, %v1280
      %v1282 = vsel %vm1192, %v1272, %v1281
      %1283 = vrot.lane.b32.xlu0 %v1204, 16
      %v1284 = vpop.permute.xlu0 %1283
      %1285 = vrot.lane.b32.xlu0 %v1208, 16
      %v1286 = vpop.permute.xlu0 %1285
      %1287 = vrot.lane.b32.xlu0 %v1212, 16
      %v1288 = vpop.permute.xlu0 %1287
      %1289 = vrot.lane.b32.xlu0 %v1216, 16
      %v1290 = vpop.permute.xlu0 %1289
      %1291 = vrot.lane.b32.xlu0 %v1220, 16
      %v1292 = vpop.permute.xlu0 %1291
      %1293 = vrot.lane.b32.xlu0 %v1224, 16
      %v1294 = vpop.permute.xlu0 %1293
      %1295 = vrot.lane.b32.xlu0 %v1228, 16
      %v1296 = vpop.permute.xlu0 %1295
      %1297 = vrot.lane.b32.xlu0 %v1232, 16
      %v1298 = vpop.permute.xlu0 %1297
      %1299 = vrot.lane.b32.xlu0 %v1236, 16
      %v1300 = vpop.permute.xlu0 %1299
      %1301 = vrot.lane.b32.xlu0 %v1240, 16
      %v1302 = vpop.permute.xlu0 %1301
      %1303 = vrot.lane.b32.xlu0 %v1244, 16
      %v1304 = vpop.permute.xlu0 %1303
      %1305 = vrot.lane.b32.xlu0 %v1248, 16
      %v1306 = vpop.permute.xlu0 %1305
      %1307 = vrot.lane.b32.xlu0 %v1252, 16
      %v1308 = vpop.permute.xlu0 %1307
      %1309 = vrot.lane.b32.xlu0 %v1256, 16
      %v1310 = vpop.permute.xlu0 %1309
      %1311 = vrot.lane.b32.xlu0 %v1260, 16
      %v1312 = vpop.permute.xlu0 %1311
      %1313 = vrot.lane.b32.xlu0 %v1264, 16
      %v1314 = vpop.permute.xlu0 %1313
      %1315 = vrot.lane.b32.xlu0 %v1273, 16
      %v1316 = vpop.permute.xlu0 %1315
      %1317 = vrot.lane.b32.xlu0 %v1282, 16
      %v1318 = vpop.permute.xlu0 %1317
      %v1320 = vunpack.c.l.b16 %v774
      %v1321 = vpack.c.b16 %v820, %v1320
      %vm1322 = vcmask 1045504
      %v1323 = vrot.slane %v1321, 2
      %v1324 = vrot.slane %v855, 2
      %v1325 = vsel %vm1322, %v1323, %v1324
      %v1326 = vrot.slane %v856, 2
      %v1327 = vsel %vm1322, %v1324, %v1326
      %v1328 = vrot.slane %v857, 2
      %v1329 = vsel %vm1322, %v1326, %v1328
      %v1330 = vrot.slane %v858, 2
      %v1331 = vsel %vm1322, %v1328, %v1330
      %v1332 = vrot.slane %v859, 2
      %v1333 = vsel %vm1322, %v1330, %v1332
      %v1334 = vrot.slane %v860, 2
      %v1335 = vsel %vm1322, %v1332, %v1334
      %v1336 = vrot.slane %v861, 2
      %v1337 = vsel %vm1322, %v1334, %v1336
      %v1338 = vrot.slane %v862, 2
      %v1339 = vsel %vm1322, %v1336, %v1338
      %v1340 = vrot.slane %v863, 2
      %v1341 = vsel %vm1322, %v1338, %v1340
      %v1342 = vrot.slane %v864, 2
      %v1343 = vsel %vm1322, %v1340, %v1342
      %v1344 = vrot.slane %v865, 2
      %v1345 = vsel %vm1322, %v1342, %v1344
      %v1346 = vrot.slane %v866, 2
      %v1347 = vsel %vm1322, %v1344, %v1346
      %v1348 = vrot.slane %v867, 2
      %v1349 = vsel %vm1322, %v1346, %v1348
      %v1350 = vrot.slane %v868, 2
      %v1351 = vsel %vm1322, %v1348, %v1350
      %v1352 = vrot.slane %v869, 2
      %v1353 = vsel %vm1322, %v1350, %v1352
      %v1354 = vrot.slane %v870, 2
      %v1355 = vsel %vm1322, %v1352, %v1354
      %v1356 = vrot.slane %v1145, 2
      %v1357 = vsel %vm1322, %v1354, %v1356
      %v1358 = vrot.slane %v1191, 2
      %v1359 = vsel %vm1322, %v1356, %v1358
      %1360 = vrot.lane.b32.xlu0 %v1325, 20
      %v1361 = vpop.permute.xlu0 %1360
      %1362 = vrot.lane.b32.xlu0 %v1327, 20
      %v1363 = vpop.permute.xlu0 %1362
      %1364 = vrot.lane.b32.xlu0 %v1329, 20
      %v1365 = vpop.permute.xlu0 %1364
      %1366 = vrot.lane.b32.xlu0 %v1331, 20
      %v1367 = vpop.permute.xlu0 %1366
      %1368 = vrot.lane.b32.xlu0 %v1333, 20
      %v1369 = vpop.permute.xlu0 %1368
      %1370 = vrot.lane.b32.xlu0 %v1335, 20
      %v1371 = vpop.permute.xlu0 %1370
      %1372 = vrot.lane.b32.xlu0 %v1337, 20
      %v1373 = vpop.permute.xlu0 %1372
      %1374 = vrot.lane.b32.xlu0 %v1339, 20
      %v1375 = vpop.permute.xlu0 %1374
      %1376 = vrot.lane.b32.xlu0 %v1341, 20
      %v1377 = vpop.permute.xlu0 %1376
      %1378 = vrot.lane.b32.xlu0 %v1343, 20
      %v1379 = vpop.permute.xlu0 %1378
      %1380 = vrot.lane.b32.xlu0 %v1345, 20
      %v1381 = vpop.permute.xlu0 %1380
      %1382 = vrot.lane.b32.xlu0 %v1347, 20
      %v1383 = vpop.permute.xlu0 %1382
      %1384 = vrot.lane.b32.xlu0 %v1349, 20
      %v1385 = vpop.permute.xlu0 %1384
      %1386 = vrot.lane.b32.xlu0 %v1351, 20
      %v1387 = vpop.permute.xlu0 %1386
      %1388 = vrot.lane.b32.xlu0 %v1353, 20
      %v1389 = vpop.permute.xlu0 %1388
      %1390 = vrot.lane.b32.xlu0 %v1355, 20
      %v1391 = vpop.permute.xlu0 %1390
      %1392 = vrot.lane.b32.xlu0 %v1357, 20
      %v1393 = vpop.permute.xlu0 %1392
      %1394 = vrot.lane.b32.xlu0 %v1359, 20
      %v1395 = vpop.permute.xlu0 %1394
      %v1400 = vunpack.c.l.b16 %v775
      %v1401 = vunpack.c.l.b16 %v776
      %v1402 = vunpack.c.l.b16 %v777
      %v1403 = vunpack.c.l.b16 %v778
      %v1404 = vpack.c.b16 %v822, %v1400
      %v1405 = vpack.c.b16 %v1402, %v1401
      %v1406 = vpack.c.b16 %v1403, %v1403
      %v1407 = vrot.slane %v1404, 2
      %v1408 = vsel %vm1322, %v1407, %v1326
      %v1409 = vrot.slane %v1405, 2
      %v1410 = vsel %vm1322, %v1356, %v1409
      %v1411 = vrot.slane %v1406, 2
      %v1412 = vsel %vm1322, %v1409, %v1411
      %1413 = vrot.lane.b32.xlu0 %v1408, 24
      %v1414 = vpop.permute.xlu0 %1413
      %1415 = vrot.lane.b32.xlu0 %v1329, 24
      %v1416 = vpop.permute.xlu0 %1415
      %1417 = vrot.lane.b32.xlu0 %v1331, 24
      %v1418 = vpop.permute.xlu0 %1417
      %1419 = vrot.lane.b32.xlu0 %v1333, 24
      %v1420 = vpop.permute.xlu0 %1419
      %1421 = vrot.lane.b32.xlu0 %v1335, 24
      %v1422 = vpop.permute.xlu0 %1421
      %1423 = vrot.lane.b32.xlu0 %v1337, 24
      %v1424 = vpop.permute.xlu0 %1423
      %1425 = vrot.lane.b32.xlu0 %v1339, 24
      %v1426 = vpop.permute.xlu0 %1425
      %1427 = vrot.lane.b32.xlu0 %v1341, 24
      %v1428 = vpop.permute.xlu0 %1427
      %1429 = vrot.lane.b32.xlu0 %v1343, 24
      %v1430 = vpop.permute.xlu0 %1429
      %1431 = vrot.lane.b32.xlu0 %v1345, 24
      %v1432 = vpop.permute.xlu0 %1431
      %1433 = vrot.lane.b32.xlu0 %v1347, 24
      %v1434 = vpop.permute.xlu0 %1433
      %1435 = vrot.lane.b32.xlu0 %v1349, 24
      %v1436 = vpop.permute.xlu0 %1435
      %1437 = vrot.lane.b32.xlu0 %v1351, 24
      %v1438 = vpop.permute.xlu0 %1437
      %1439 = vrot.lane.b32.xlu0 %v1353, 24
      %v1440 = vpop.permute.xlu0 %1439
      %1441 = vrot.lane.b32.xlu0 %v1355, 24
      %v1442 = vpop.permute.xlu0 %1441
      %1443 = vrot.lane.b32.xlu0 %v1357, 24
      %v1444 = vpop.permute.xlu0 %1443
      %1445 = vrot.lane.b32.xlu0 %v1410, 24
      %v1446 = vpop.permute.xlu0 %1445
      %1447 = vrot.lane.b32.xlu0 %v1412, 24
      %v1448 = vpop.permute.xlu0 %1447
      %v1450 = vunpack.c.l.b16 %v779
      %v1451 = vpack.c.b16 %v1450, %v1450
      %vm1452 = vsmask.f32 5376
      %v1454 = vshrl.u32 %v1404, 16
      %v1456 = vrot.slane %v1454, 2
      %v1457 = vshll.u32 %v1404, 16
      %v1459 = vrot.slane %v1457, 3
      %v1460 = vor.u32 %v1456, %v1459
      %v1461 = vrot.slane %v903, 2
      %v1462 = vrot.slane %v899, 3
      %v1463 = vor.u32 %v1461, %v1462
      %v1464 = vsel %vm1452, %v1460, %v1463
      %v1465 = vrot.slane %v911, 2
      %v1466 = vrot.slane %v907, 3
      %v1467 = vor.u32 %v1465, %v1466
      %v1468 = vsel %vm1452, %v1463, %v1467
      %v1469 = vrot.slane %v919, 2
      %v1470 = vrot.slane %v915, 3
      %v1471 = vor.u32 %v1469, %v1470
      %v1472 = vsel %vm1452, %v1467, %v1471
      %v1473 = vrot.slane %v927, 2
      %v1474 = vrot.slane %v923, 3
      %v1475 = vor.u32 %v1473, %v1474
      %v1476 = vsel %vm1452, %v1471, %v1475
      %v1477 = vrot.slane %v935, 2
      %v1478 = vrot.slane %v931, 3
      %v1479 = vor.u32 %v1477, %v1478
      %v1480 = vsel %vm1452, %v1475, %v1479
      %v1481 = vrot.slane %v943, 2
      %v1482 = vrot.slane %v939, 3
      %v1483 = vor.u32 %v1481, %v1482
      %v1484 = vsel %vm1452, %v1479, %v1483
      %v1485 = vrot.slane %v951, 2
      %v1486 = vrot.slane %v947, 3
      %v1487 = vor.u32 %v1485, %v1486
      %v1488 = vsel %vm1452, %v1483, %v1487
      %v1489 = vrot.slane %v959, 2
      %v1490 = vrot.slane %v955, 3
      %v1491 = vor.u32 %v1489, %v1490
      %v1492 = vsel %vm1452, %v1487, %v1491
      %v1493 = vrot.slane %v967, 2
      %v1494 = vrot.slane %v963, 3
      %v1495 = vor.u32 %v1493, %v1494
      %v1496 = vsel %vm1452, %v1491, %v1495
      %v1497 = vrot.slane %v975, 2
      %v1498 = vrot.slane %v971, 3
      %v1499 = vor.u32 %v1497, %v1498
      %v1500 = vsel %vm1452, %v1495, %v1499
      %v1501 = vrot.slane %v983, 2
      %v1502 = vrot.slane %v979, 3
      %v1503 = vor.u32 %v1501, %v1502
      %v1504 = vsel %vm1452, %v1499, %v1503
      %v1505 = vrot.slane %v991, 2
      %v1506 = vrot.slane %v987, 3
      %v1507 = vor.u32 %v1505, %v1506
      %v1508 = vsel %vm1452, %v1503, %v1507
      %v1509 = vrot.slane %v999, 2
      %v1510 = vrot.slane %v995, 3
      %v1511 = vor.u32 %v1509, %v1510
      %v1512 = vsel %vm1452, %v1507, %v1511
      %v1513 = vrot.slane %v1007, 2
      %v1514 = vrot.slane %v1003, 3
      %v1515 = vor.u32 %v1513, %v1514
      %v1516 = vsel %vm1452, %v1511, %v1515
      %v1517 = vrot.slane %v1015, 2
      %v1518 = vrot.slane %v1011, 3
      %v1519 = vor.u32 %v1517, %v1518
      %v1520 = vsel %vm1452, %v1515, %v1519
      %v1521 = vrot.slane %v1266, 2
      %v1522 = vrot.slane %v1269, 3
      %v1523 = vor.u32 %v1521, %v1522
      %v1524 = vsel %vm1452, %v1519, %v1523
      %v1526 = vshrl.u32 %v1405, 16
      %v1528 = vrot.slane %v1526, 2
      %v1529 = vshll.u32 %v1405, 16
      %v1531 = vrot.slane %v1529, 3
      %v1532 = vor.u32 %v1528, %v1531
      %v1533 = vsel %vm1452, %v1523, %v1532
      %v1535 = vshrl.u32 %v1451, 16
      %v1537 = vrot.slane %v1535, 2
      %v1538 = vshll.u32 %v1451, 16
      %v1540 = vrot.slane %v1538, 3
      %v1541 = vor.u32 %v1537, %v1540
      %v1542 = vsel %vm1452, %v1532, %v1541
      %1543 = vrot.lane.b32.xlu0 %v1464, 28
      %v1544 = vpop.permute.xlu0 %1543
      %1545 = vrot.lane.b32.xlu0 %v1468, 28
      %v1546 = vpop.permute.xlu0 %1545
      %1547 = vrot.lane.b32.xlu0 %v1472, 28
      %v1548 = vpop.permute.xlu0 %1547
      %1549 = vrot.lane.b32.xlu0 %v1476, 28
      %v1550 = vpop.permute.xlu0 %1549
      %1551 = vrot.lane.b32.xlu0 %v1480, 28
      %v1552 = vpop.permute.xlu0 %1551
      %1553 = vrot.lane.b32.xlu0 %v1484, 28
      %v1554 = vpop.permute.xlu0 %1553
      %1555 = vrot.lane.b32.xlu0 %v1488, 28
      %v1556 = vpop.permute.xlu0 %1555
      %1557 = vrot.lane.b32.xlu0 %v1492, 28
      %v1558 = vpop.permute.xlu0 %1557
      %1559 = vrot.lane.b32.xlu0 %v1496, 28
      %v1560 = vpop.permute.xlu0 %1559
      %1561 = vrot.lane.b32.xlu0 %v1500, 28
      %v1562 = vpop.permute.xlu0 %1561
      %1563 = vrot.lane.b32.xlu0 %v1504, 28
      %v1564 = vpop.permute.xlu0 %1563
      %1565 = vrot.lane.b32.xlu0 %v1508, 28
      %v1566 = vpop.permute.xlu0 %1565
      %1567 = vrot.lane.b32.xlu0 %v1512, 28
      %v1568 = vpop.permute.xlu0 %1567
      %1569 = vrot.lane.b32.xlu0 %v1516, 28
      %v1570 = vpop.permute.xlu0 %1569
      %1571 = vrot.lane.b32.xlu0 %v1520, 28
      %v1572 = vpop.permute.xlu0 %1571
      %1573 = vrot.lane.b32.xlu0 %v1524, 28
      %v1574 = vpop.permute.xlu0 %1573
      %1575 = vrot.lane.b32.xlu0 %v1533, 28
      %v1576 = vpop.permute.xlu0 %1575
      %1577 = vrot.lane.b32.xlu0 %v1542, 28
      %v1578 = vpop.permute.xlu0 %1577
      %v1580 = vunpack.c.l.b16 %v780
      %v1581 = vpack.c.b16 %v822, %v1580
      %vm1582 = vcmask 1044480
      %v1583 = vrot.slane %v1581, 3
      %v1584 = vrot.slane %v856, 3
      %v1585 = vsel %vm1582, %v1583, %v1584
      %v1586 = vrot.slane %v857, 3
      %v1587 = vsel %vm1582, %v1584, %v1586
      %v1588 = vrot.slane %v858, 3
      %v1589 = vsel %vm1582, %v1586, %v1588
      %v1590 = vrot.slane %v859, 3
      %v1591 = vsel %vm1582, %v1588, %v1590
      %v1592 = vrot.slane %v860, 3
      %v1593 = vsel %vm1582, %v1590, %v1592
      %v1594 = vrot.slane %v861, 3
      %v1595 = vsel %vm1582, %v1592, %v1594
      %v1596 = vrot.slane %v862, 3
      %v1597 = vsel %vm1582, %v1594, %v1596
      %v1598 = vrot.slane %v863, 3
      %v1599 = vsel %vm1582, %v1596, %v1598
      %v1600 = vrot.slane %v864, 3
      %v1601 = vsel %vm1582, %v1598, %v1600
      %v1602 = vrot.slane %v865, 3
      %v1603 = vsel %vm1582, %v1600, %v1602
      %v1604 = vrot.slane %v866, 3
      %v1605 = vsel %vm1582, %v1602, %v1604
      %v1606 = vrot.slane %v867, 3
      %v1607 = vsel %vm1582, %v1604, %v1606
      %v1608 = vrot.slane %v868, 3
      %v1609 = vsel %vm1582, %v1606, %v1608
      %v1610 = vrot.slane %v869, 3
      %v1611 = vsel %vm1582, %v1608, %v1610
      %v1612 = vrot.slane %v870, 3
      %v1613 = vsel %vm1582, %v1610, %v1612
      %v1614 = vrot.slane %v1145, 3
      %v1615 = vsel %vm1582, %v1612, %v1614
      %v1616 = vrot.slane %v1405, 3
      %v1617 = vsel %vm1582, %v1614, %v1616
      %v1618 = vrot.slane %v1451, 3
      %v1619 = vsel %vm1582, %v1616, %v1618
      %1620 = vrot.lane.b32.xlu0 %v1585, 32
      %v1621 = vpop.permute.xlu0 %1620
      %1622 = vrot.lane.b32.xlu0 %v1587, 32
      %v1623 = vpop.permute.xlu0 %1622
      %1624 = vrot.lane.b32.xlu0 %v1589, 32
      %v1625 = vpop.permute.xlu0 %1624
      %1626 = vrot.lane.b32.xlu0 %v1591, 32
      %v1627 = vpop.permute.xlu0 %1626
      %1628 = vrot.lane.b32.xlu0 %v1593, 32
      %v1629 = vpop.permute.xlu0 %1628
      %1630 = vrot.lane.b32.xlu0 %v1595, 32
      %v1631 = vpop.permute.xlu0 %1630
      %1632 = vrot.lane.b32.xlu0 %v1597, 32
      %v1633 = vpop.permute.xlu0 %1632
      %1634 = vrot.lane.b32.xlu0 %v1599, 32
      %v1635 = vpop.permute.xlu0 %1634
      %1636 = vrot.lane.b32.xlu0 %v1601, 32
      %v1637 = vpop.permute.xlu0 %1636
      %1638 = vrot.lane.b32.xlu0 %v1603, 32
      %v1639 = vpop.permute.xlu0 %1638
      %1640 = vrot.lane.b32.xlu0 %v1605, 32
      %v1641 = vpop.permute.xlu0 %1640
      %1642 = vrot.lane.b32.xlu0 %v1607, 32
      %v1643 = vpop.permute.xlu0 %1642
      %1644 = vrot.lane.b32.xlu0 %v1609, 32
      %v1645 = vpop.permute.xlu0 %1644
      %1646 = vrot.lane.b32.xlu0 %v1611, 32
      %v1647 = vpop.permute.xlu0 %1646
      %1648 = vrot.lane.b32.xlu0 %v1613, 32
      %v1649 = vpop.permute.xlu0 %1648
      %1650 = vrot.lane.b32.xlu0 %v1615, 32
      %v1651 = vpop.permute.xlu0 %1650
      %1652 = vrot.lane.b32.xlu0 %v1617, 32
      %v1653 = vpop.permute.xlu0 %1652
      %1654 = vrot.lane.b32.xlu0 %v1619, 32
      %v1655 = vpop.permute.xlu0 %1654
      %vm1656 = vcmask 31744
      %v1658 = vsel %vm1656, %v853, %v1024
      %v1660 = vsel %vm1656, %v854, %v1026
      %v1662 = vsel %vm1656, %v855, %v1028
      %v1664 = vsel %vm1656, %v856, %v1030
      %v1666 = vsel %vm1656, %v857, %v1032
      %v1668 = vsel %vm1656, %v858, %v1034
      %v1670 = vsel %vm1656, %v859, %v1036
      %v1672 = vsel %vm1656, %v860, %v1038
      %v1674 = vsel %vm1656, %v861, %v1040
      %v1676 = vsel %vm1656, %v862, %v1042
      %v1678 = vsel %vm1656, %v863, %v1044
      %v1680 = vsel %vm1656, %v864, %v1046
      %v1682 = vsel %vm1656, %v865, %v1048
      %v1684 = vsel %vm1656, %v866, %v1050
      %v1686 = vsel %vm1656, %v867, %v1052
      %v1688 = vsel %vm1656, %v868, %v1054
      %v1690 = vsel %vm1656, %v869, %v1056
      %v1692 = vsel %vm1656, %v870, %v1058
      %vm1693 = vcmask 64512
      %v1695 = vsel %vm1693, %v1658, %v1101
      %v1697 = vsel %vm1693, %v1660, %v1103
      %v1699 = vsel %vm1693, %v1662, %v1105
      %v1701 = vsel %vm1693, %v1664, %v1107
      %v1703 = vsel %vm1693, %v1666, %v1109
      %v1705 = vsel %vm1693, %v1668, %v1111
      %v1707 = vsel %vm1693, %v1670, %v1113
      %v1709 = vsel %vm1693, %v1672, %v1115
      %v1711 = vsel %vm1693, %v1674, %v1117
      %v1713 = vsel %vm1693, %v1676, %v1119
      %v1715 = vsel %vm1693, %v1678, %v1121
      %v1717 = vsel %vm1693, %v1680, %v1123
      %v1719 = vsel %vm1693, %v1682, %v1125
      %v1721 = vsel %vm1693, %v1684, %v1127
      %v1723 = vsel %vm1693, %v1686, %v1129
      %v1725 = vsel %vm1693, %v1688, %v1131
      %v1727 = vsel %vm1693, %v1690, %v1133
      %v1729 = vsel %vm1693, %v1692, %v1135
      %vm1730 = vcmask 97280
      %v1732 = vsel %vm1730, %v1695, %v1154
      %v1734 = vsel %vm1730, %v1697, %v1156
      %v1736 = vsel %vm1730, %v1699, %v1158
      %v1738 = vsel %vm1730, %v1701, %v1160
      %v1740 = vsel %vm1730, %v1703, %v1162
      %v1742 = vsel %vm1730, %v1705, %v1164
      %v1744 = vsel %vm1730, %v1707, %v1166
      %v1746 = vsel %vm1730, %v1709, %v1168
      %v1748 = vsel %vm1730, %v1711, %v1170
      %v1750 = vsel %vm1730, %v1713, %v1172
      %v1752 = vsel %vm1730, %v1715, %v1174
      %v1754 = vsel %vm1730, %v1717, %v1176
      %v1756 = vsel %vm1730, %v1719, %v1178
      %v1758 = vsel %vm1730, %v1721, %v1180
      %v1760 = vsel %vm1730, %v1723, %v1182
      %v1762 = vsel %vm1730, %v1725, %v1184
      %v1764 = vsel %vm1730, %v1727, %v1186
      %v1766 = vsel %vm1730, %v1729, %v1188
      %vm1767 = vcmask 130048
      %v1769 = vsel %vm1767, %v1732, %v1284
      %v1771 = vsel %vm1767, %v1734, %v1286
      %v1773 = vsel %vm1767, %v1736, %v1288
      %v1775 = vsel %vm1767, %v1738, %v1290
      %v1777 = vsel %vm1767, %v1740, %v1292
      %v1779 = vsel %vm1767, %v1742, %v1294
      %v1781 = vsel %vm1767, %v1744, %v1296
      %v1783 = vsel %vm1767, %v1746, %v1298
      %v1785 = vsel %vm1767, %v1748, %v1300
      %v1787 = vsel %vm1767, %v1750, %v1302
      %v1789 = vsel %vm1767, %v1752, %v1304
      %v1791 = vsel %vm1767, %v1754, %v1306
      %v1793 = vsel %vm1767, %v1756, %v1308
      %v1795 = vsel %vm1767, %v1758, %v1310
      %v1797 = vsel %vm1767, %v1760, %v1312
      %v1799 = vsel %vm1767, %v1762, %v1314
      %v1801 = vsel %vm1767, %v1764, %v1316
      %v1803 = vsel %vm1767, %v1766, %v1318
      %vm1804 = vcmask 162816
      %v1806 = vsel %vm1804, %v1769, %v1361
      %v1808 = vsel %vm1804, %v1771, %v1363
      %v1810 = vsel %vm1804, %v1773, %v1365
      %v1812 = vsel %vm1804, %v1775, %v1367
      %v1814 = vsel %vm1804, %v1777, %v1369
      %v1816 = vsel %vm1804, %v1779, %v1371
      %v1818 = vsel %vm1804, %v1781, %v1373
      %v1820 = vsel %vm1804, %v1783, %v1375
      %v1822 = vsel %vm1804, %v1785, %v1377
      %v1824 = vsel %vm1804, %v1787, %v1379
      %v1826 = vsel %vm1804, %v1789, %v1381
      %v1828 = vsel %vm1804, %v1791, %v1383
      %v1830 = vsel %vm1804, %v1793, %v1385
      %v1832 = vsel %vm1804, %v1795, %v1387
      %v1834 = vsel %vm1804, %v1797, %v1389
      %v1836 = vsel %vm1804, %v1799, %v1391
      %v1838 = vsel %vm1804, %v1801, %v1393
      %v1840 = vsel %vm1804, %v1803, %v1395
      %vm1841 = vcmask 195584
      %v1843 = vsel %vm1841, %v1806, %v1414
      %v1845 = vsel %vm1841, %v1808, %v1416
      %v1847 = vsel %vm1841, %v1810, %v1418
      %v1849 = vsel %vm1841, %v1812, %v1420
      %v1851 = vsel %vm1841, %v1814, %v1422
      %v1853 = vsel %vm1841, %v1816, %v1424
      %v1855 = vsel %vm1841, %v1818, %v1426
      %v1857 = vsel %vm1841, %v1820, %v1428
      %v1859 = vsel %vm1841, %v1822, %v1430
      %v1861 = vsel %vm1841, %v1824, %v1432
      %v1863 = vsel %vm1841, %v1826, %v1434
      %v1865 = vsel %vm1841, %v1828, %v1436
      %v1867 = vsel %vm1841, %v1830, %v1438
      %v1869 = vsel %vm1841, %v1832, %v1440
      %v1871 = vsel %vm1841, %v1834, %v1442
      %v1873 = vsel %vm1841, %v1836, %v1444
      %v1875 = vsel %vm1841, %v1838, %v1446
      %v1877 = vsel %vm1841, %v1840, %v1448
      %vm1878 = vcmask 228352
      %v1880 = vsel %vm1878, %v1843, %v1544
      %v1882 = vsel %vm1878, %v1845, %v1546
      %v1884 = vsel %vm1878, %v1847, %v1548
      %v1886 = vsel %vm1878, %v1849, %v1550
      %v1888 = vsel %vm1878, %v1851, %v1552
      %v1890 = vsel %vm1878, %v1853, %v1554
      %v1892 = vsel %vm1878, %v1855, %v1556
      %v1894 = vsel %vm1878, %v1857, %v1558
      %v1896 = vsel %vm1878, %v1859, %v1560
      %v1898 = vsel %vm1878, %v1861, %v1562
      %v1900 = vsel %vm1878, %v1863, %v1564
      %v1902 = vsel %vm1878, %v1865, %v1566
      %v1904 = vsel %vm1878, %v1867, %v1568
      %v1906 = vsel %vm1878, %v1869, %v1570
      %v1908 = vsel %vm1878, %v1871, %v1572
      %v1910 = vsel %vm1878, %v1873, %v1574
      %v1912 = vsel %vm1878, %v1875, %v1576
      %v1914 = vsel %vm1878, %v1877, %v1578
      %vm1915 = vcmask 261120
      %v1917 = vsel %vm1915, %v1880, %v1621
      %v1919 = vsel %vm1915, %v1882, %v1623
      %v1921 = vsel %vm1915, %v1884, %v1625
      %v1923 = vsel %vm1915, %v1886, %v1627
      %v1925 = vsel %vm1915, %v1888, %v1629
      %v1927 = vsel %vm1915, %v1890, %v1631
      %v1929 = vsel %vm1915, %v1892, %v1633
      %v1931 = vsel %vm1915, %v1894, %v1635
      %v1933 = vsel %vm1915, %v1896, %v1637
      %v1935 = vsel %vm1915, %v1898, %v1639
      %v1937 = vsel %vm1915, %v1900, %v1641
      %v1939 = vsel %vm1915, %v1902, %v1643
      %v1941 = vsel %vm1915, %v1904, %v1645
      %v1943 = vsel %vm1915, %v1906, %v1647
      %v1945 = vsel %vm1915, %v1908, %v1649
      %v1947 = vsel %vm1915, %v1910, %v1651
      %v1949 = vsel %vm1915, %v1912, %v1653
      %v1951 = vsel %vm1915, %v1914, %v1655
      %v1952 = vld [vmem:[%s1] sm:$0xf]
      %v1953 = vld [vmem:[%s1 + $0x4] sm:$0xf]
      %v1954 = vld [vmem:[%s1 + $0x8] sm:$0xf]
      %v1955 = vld [vmem:[%s1 + $0xc] sm:$0xf]
      %v1956 = vld [vmem:[%s1 + $0x10] sm:$0x3]
      %v1962 = vunpack.c.l.b16 %v1952
      %v1963 = vunpack.c.l.b16 %v1953
      %v1964 = vunpack.c.l.b16 %v1954
      %v1965 = vunpack.c.l.b16 %v1955
      %v1966 = vunpack.c.l.b16 %v1956
      %v1967 = vpack.c.b16 %v1963, %v1962
      %v1968 = vpack.c.b16 %v1965, %v1964
      %v1969 = vpack.c.b16 %v1966, %v1966
      %vm1972 = vcmask 293888
      %v1973 = vsel %vm1972, %v1917, 0
      %v1975 = vsel %vm1972, %v1919, 0
      %v1977 = vsel %vm1972, %v1921, 0
      %v1979 = vsel %vm1972, %v1923, 0
      %v1981 = vsel %vm1972, %v1925, 0
      %v1983 = vsel %vm1972, %v1927, 0
      %v1985 = vsel %vm1972, %v1929, 0
      %v1987 = vsel %vm1972, %v1931, 0
      %v1989 = vsel %vm1972, %v1933, 0
      %v1991 = vsel %vm1972, %v1935, 0
      %v1993 = vsel %vm1972, %v1937, 0
      %v1995 = vsel %vm1972, %v1939, 0
      %v1997 = vsel %vm1972, %v1941, 0
      %v1999 = vsel %vm1972, %v1943, 0
      %v2001 = vsel %vm1972, %v1945, 0
      %v2003 = vsel %vm1972, %v1947, 0
      %v2005 = vsel %vm1972, %v1949, 0
      %v2007 = vsel %vm1972, %v1951, 0
      %vm2009 = vcmask 1041408
      %v2011 = vsel %vm2009, %v1969, 0
      %2013 = vmatprep.subr.bf16.mxu0 0
      %2014 = vmatpush1.bf16.msra.mxu0 0
      %2015 = vmatprep.subr.bf16.mxu0 0
      %2016 = vmatpush1.bf16.msra.mxu0 0
      %2017 = vmatprep.subr.bf16.mxu0 0
      %2018 = vmatpush1.bf16.msra.mxu0 0
      %2019 = vmatprep.subr.bf16.mxu0 0
      %2020 = vmatpush1.bf16.msra.mxu0 0
      %2021 = vmatprep.subr.bf16.mxu0 0
      %2022 = vmatpush1.bf16.msra.mxu0 0
      %2023 = vmatprep.subr.bf16.mxu0 0
      %2024 = vmatpush1.bf16.msra.mxu0 %v2011
      %2025 = vmatprep.subr.bf16.mxu0 0
      %2026 = vmatpush1.bf16.msra.mxu0 %v1968
      %2027 = vmatprep.subr.bf16.mxu0 0
      %2028 = vmatpush1.bf16.msra.mxu0 %v1967
      %2029 = vmatprep.subr.bf16.mxu0 0
      %2030 = vmatpush2.bf16.msra.mxu0 0
      %2031 = vmatprep.subr.bf16.mxu0 0
      %2032 = vmatpush2.bf16.msra.mxu0 0
      %2033 = vmatprep.subr.bf16.mxu0 0
      %2034 = vmatpush2.bf16.msra.mxu0 0
      %2035 = vmatprep.subr.bf16.mxu0 0
      %2036 = vmatpush2.bf16.msra.mxu0 0
      %2037 = vmatprep.subr.bf16.mxu0 0
      %2038 = vmatpush2.bf16.msra.mxu0 0
      %2039 = vmatprep.subr.bf16.mxu0 0
      %2040 = vmatpush2.bf16.msra.mxu0 0
      %2041 = vmatprep.subr.bf16.mxu0 0
      %2042 = vmatpush2.bf16.msra.mxu0 0
      %2043 = vmatprep.subr.bf16.mxu0 0
      %2044 = vmatpush2.bf16.msra.mxu0 0
      %2045 = vmatprep.mubr.bf16.mxu0 0
      %2046 = vmatmul.mubr.bf16.gmra.mxu0 %v1973
      %v2047 = vpop.f32.mrf.mxu0
      %v2048 = vadd.f32 0.0, %v2047
      %v2049 = vpop.f32.mrf.mxu0
      %v2050 = vpop.f32.mrf.mxu0
      %v2051 = vadd.f32 0.0, %v2050
      %v2052 = vpop.f32.mrf.mxu0
      %2053 = vmatprep.mubr.bf16.mxu0 0
      %2054 = vmatmul.mubr.bf16.gmra.mxu0 %v1975
      %v2055 = vpop.f32.mrf.mxu0
      %v2056 = vadd.f32 0.0, %v2055
      %v2057 = vpop.f32.mrf.mxu0
      %v2058 = vpop.f32.mrf.mxu0
      %v2059 = vadd.f32 0.0, %v2058
      %v2060 = vpop.f32.mrf.mxu0
      %2061 = vmatprep.mubr.bf16.mxu0 0
      %2062 = vmatmul.mubr.bf16.gmra.mxu0 %v1977
      %v2063 = vpop.f32.mrf.mxu0
      %v2064 = vadd.f32 0.0, %v2063
      %v2065 = vpop.f32.mrf.mxu0
      %v2066 = vpop.f32.mrf.mxu0
      %v2067 = vadd.f32 0.0, %v2066
      %v2068 = vpop.f32.mrf.mxu0
      %2069 = vmatprep.mubr.bf16.mxu0 0
      %2070 = vmatmul.mubr.bf16.gmra.mxu0 %v1979
      %v2071 = vpop.f32.mrf.mxu0
      %v2072 = vadd.f32 0.0, %v2071
      %v2073 = vpop.f32.mrf.mxu0
      %v2074 = vpop.f32.mrf.mxu0
      %v2075 = vadd.f32 0.0, %v2074
      %v2076 = vpop.f32.mrf.mxu0
      %2077 = vmatprep.mubr.bf16.mxu0 0
      %2078 = vmatmul.mubr.bf16.gmra.mxu0 %v1981
      %v2079 = vpop.f32.mrf.mxu0
      %v2080 = vadd.f32 0.0, %v2079
      %v2081 = vpop.f32.mrf.mxu0
      %v2082 = vpop.f32.mrf.mxu0
      %v2083 = vadd.f32 0.0, %v2082
      %v2084 = vpop.f32.mrf.mxu0
      %2085 = vmatprep.mubr.bf16.mxu0 0
      %2086 = vmatmul.mubr.bf16.gmra.mxu0 %v1983
      %v2087 = vpop.f32.mrf.mxu0
      %v2088 = vadd.f32 0.0, %v2087
      %v2089 = vpop.f32.mrf.mxu0
      %v2090 = vpop.f32.mrf.mxu0
      %v2091 = vadd.f32 0.0, %v2090
      %v2092 = vpop.f32.mrf.mxu0
      %2093 = vmatprep.mubr.bf16.mxu0 0
      %2094 = vmatmul.mubr.bf16.gmra.mxu0 %v1985
      %v2095 = vpop.f32.mrf.mxu0
      %v2096 = vadd.f32 0.0, %v2095
      %v2097 = vpop.f32.mrf.mxu0
      %v2098 = vpop.f32.mrf.mxu0
      %v2099 = vadd.f32 0.0, %v2098
      %v2100 = vpop.f32.mrf.mxu0
      %2101 = vmatprep.mubr.bf16.mxu0 0
      %2102 = vmatmul.mubr.bf16.gmra.mxu0 %v1987
      %v2103 = vpop.f32.mrf.mxu0
      %v2104 = vadd.f32 0.0, %v2103
      %v2105 = vpop.f32.mrf.mxu0
      %v2106 = vpop.f32.mrf.mxu0
      %v2107 = vadd.f32 0.0, %v2106
      %v2108 = vpop.f32.mrf.mxu0
      %2109 = vmatprep.mubr.bf16.mxu0 0
      %2110 = vmatmul.mubr.bf16.gmra.mxu0 %v1989
      %v2111 = vpop.f32.mrf.mxu0
      %v2112 = vadd.f32 0.0, %v2111
      %v2113 = vpop.f32.mrf.mxu0
      %v2114 = vpop.f32.mrf.mxu0
      %v2115 = vadd.f32 0.0, %v2114
      %v2116 = vpop.f32.mrf.mxu0
      %2117 = vmatprep.mubr.bf16.mxu0 0
      %2118 = vmatmul.mubr.bf16.gmra.mxu0 %v1991
      %v2119 = vpop.f32.mrf.mxu0
      %v2120 = vadd.f32 0.0, %v2119
      %v2121 = vpop.f32.mrf.mxu0
      %v2122 = vpop.f32.mrf.mxu0
      %v2123 = vadd.f32 0.0, %v2122
      %v2124 = vpop.f32.mrf.mxu0
      %2125 = vmatprep.mubr.bf16.mxu0 0
      %2126 = vmatmul.mubr.bf16.gmra.mxu0 %v1993
      %v2127 = vpop.f32.mrf.mxu0
      %v2128 = vadd.f32 0.0, %v2127
      %v2129 = vpop.f32.mrf.mxu0
      %v2130 = vpop.f32.mrf.mxu0
      %v2131 = vadd.f32 0.0, %v2130
      %v2132 = vpop.f32.mrf.mxu0
      %2133 = vmatprep.mubr.bf16.mxu0 0
      %2134 = vmatmul.mubr.bf16.gmra.mxu0 %v1995
      %v2135 = vpop.f32.mrf.mxu0
      %v2136 = vadd.f32 0.0, %v2135
      %v2137 = vpop.f32.mrf.mxu0
      %v2138 = vpop.f32.mrf.mxu0
      %v2139 = vadd.f32 0.0, %v2138
      %v2140 = vpop.f32.mrf.mxu0
      %2141 = vmatprep.mubr.bf16.mxu0 0
      %2142 = vmatmul.mubr.bf16.gmra.mxu0 %v1997
      %v2143 = vpop.f32.mrf.mxu0
      %v2144 = vadd.f32 0.0, %v2143
      %v2145 = vpop.f32.mrf.mxu0
      %v2146 = vpop.f32.mrf.mxu0
      %v2147 = vadd.f32 0.0, %v2146
      %v2148 = vpop.f32.mrf.mxu0
      %2149 = vmatprep.mubr.bf16.mxu0 0
      %2150 = vmatmul.mubr.bf16.gmra.mxu0 %v1999
      %v2151 = vpop.f32.mrf.mxu0
      %v2152 = vadd.f32 0.0, %v2151
      %v2153 = vpop.f32.mrf.mxu0
      %v2154 = vpop.f32.mrf.mxu0
      %v2155 = vadd.f32 0.0, %v2154
      %v2156 = vpop.f32.mrf.mxu0
      %2157 = vmatprep.mubr.bf16.mxu0 0
      %2158 = vmatmul.mubr.bf16.gmra.mxu0 %v2001
      %v2159 = vpop.f32.mrf.mxu0
      %v2160 = vadd.f32 0.0, %v2159
      %v2161 = vpop.f32.mrf.mxu0
      %v2162 = vpop.f32.mrf.mxu0
      %v2163 = vadd.f32 0.0, %v2162
      %v2164 = vpop.f32.mrf.mxu0
      %2165 = vmatprep.mubr.bf16.mxu0 0
      %2166 = vmatmul.mubr.bf16.gmra.mxu0 %v2003
      %v2167 = vpop.f32.mrf.mxu0
      %v2168 = vadd.f32 0.0, %v2167
      %v2169 = vpop.f32.mrf.mxu0
      %v2170 = vpop.f32.mrf.mxu0
      %v2171 = vadd.f32 0.0, %v2170
      %v2172 = vpop.f32.mrf.mxu0
      %2173 = vmatprep.mubr.bf16.mxu0 0
      %2174 = vmatmul.mubr.bf16.gmra.mxu0 %v2005
      %v2175 = vpop.f32.mrf.mxu0
      %v2176 = vadd.f32 0.0, %v2175
      %v2177 = vpop.f32.mrf.mxu0
      %v2178 = vpop.f32.mrf.mxu0
      %v2179 = vadd.f32 0.0, %v2178
      %v2180 = vpop.f32.mrf.mxu0
      %2181 = vmatprep.mubr.bf16.mxu0 0
      %2182 = vmatmul.mubr.bf16.gmra.mxu0 %v2007
      %v2183 = vpop.f32.mrf.mxu0
      %v2184 = vadd.f32 0.0, %v2183
      %v2185 = vpop.f32.mrf.mxu0
      %v2186 = vpop.f32.mrf.mxu0
      %v2187 = vadd.f32 0.0, %v2186
      %v2188 = vpop.f32.mrf.mxu0
      %2189 = vdwg.mxu0
      %v2190 = vld [vmem:[%s2] sm:$0x1]
      %v2192 = vlaneseq
      %v2193 = vshrl.u32 %v2192, 7
      %v2194 = vsub.s32 0, %v2193
      %v2195 = vrot.slane %v2190, %v2194
      %v2197 = vmul.f32 %v2048, %v2195
      %v2198 = vmul.f32 %v2051, %v2195
      %v2199 = vmul.f32 %v2056, %v2195
      %v2200 = vmul.f32 %v2059, %v2195
      %v2201 = vmul.f32 %v2064, %v2195
      %v2202 = vmul.f32 %v2067, %v2195
      %v2203 = vmul.f32 %v2072, %v2195
      %v2204 = vmul.f32 %v2075, %v2195
      %v2205 = vmul.f32 %v2080, %v2195
      %v2206 = vmul.f32 %v2083, %v2195
      %v2207 = vmul.f32 %v2088, %v2195
      %v2208 = vmul.f32 %v2091, %v2195
      %v2209 = vmul.f32 %v2096, %v2195
      %v2210 = vmul.f32 %v2099, %v2195
      %v2211 = vmul.f32 %v2104, %v2195
      %v2212 = vmul.f32 %v2107, %v2195
      %v2213 = vmul.f32 %v2112, %v2195
      %v2214 = vmul.f32 %v2115, %v2195
      %v2215 = vmul.f32 %v2120, %v2195
      %v2216 = vmul.f32 %v2123, %v2195
      %v2217 = vmul.f32 %v2128, %v2195
      %v2218 = vmul.f32 %v2131, %v2195
      %v2219 = vmul.f32 %v2136, %v2195
      %v2220 = vmul.f32 %v2139, %v2195
      %v2221 = vmul.f32 %v2144, %v2195
      %v2222 = vmul.f32 %v2147, %v2195
      %v2223 = vmul.f32 %v2152, %v2195
      %v2224 = vmul.f32 %v2155, %v2195
      %v2225 = vmul.f32 %v2160, %v2195
      %v2226 = vmul.f32 %v2163, %v2195
      %v2227 = vmul.f32 %v2168, %v2195
      %v2228 = vmul.f32 %v2171, %v2195
      %v2229 = vmul.f32 %v2176, %v2195
      %v2230 = vmul.f32 %v2179, %v2195
      %v2231 = vmul.f32 %v2184, %v2195
      %v2232 = vmul.f32 %v2187, %v2195
      %v2233 = vld [vmem:[%s3] sm:$0x1]
      %v2235 = vlaneseq
      %v2236 = vshrl.u32 %v2235, 7
      %v2237 = vsub.s32 0, %v2236
      %v2238 = vrot.slane %v2233, %v2237
      %v2240 = vadd.f32 %v2197, %v2238
      %v2241 = vadd.f32 %v2198, %v2238
      %v2242 = vadd.f32 %v2199, %v2238
      %v2243 = vadd.f32 %v2200, %v2238
      %v2244 = vadd.f32 %v2201, %v2238
      %v2245 = vadd.f32 %v2202, %v2238
      %v2246 = vadd.f32 %v2203, %v2238
      %v2247 = vadd.f32 %v2204, %v2238
      %v2248 = vadd.f32 %v2205, %v2238
      %v2249 = vadd.f32 %v2206, %v2238
      %v2250 = vadd.f32 %v2207, %v2238
      %v2251 = vadd.f32 %v2208, %v2238
      %v2252 = vadd.f32 %v2209, %v2238
      %v2253 = vadd.f32 %v2210, %v2238
      %v2254 = vadd.f32 %v2211, %v2238
      %v2255 = vadd.f32 %v2212, %v2238
      %v2256 = vadd.f32 %v2213, %v2238
      %v2257 = vadd.f32 %v2214, %v2238
      %v2258 = vadd.f32 %v2215, %v2238
      %v2259 = vadd.f32 %v2216, %v2238
      %v2260 = vadd.f32 %v2217, %v2238
      %v2261 = vadd.f32 %v2218, %v2238
      %v2262 = vadd.f32 %v2219, %v2238
      %v2263 = vadd.f32 %v2220, %v2238
      %v2264 = vadd.f32 %v2221, %v2238
      %v2265 = vadd.f32 %v2222, %v2238
      %v2266 = vadd.f32 %v2223, %v2238
      %v2267 = vadd.f32 %v2224, %v2238
      %v2268 = vadd.f32 %v2225, %v2238
      %v2269 = vadd.f32 %v2226, %v2238
      %v2270 = vadd.f32 %v2227, %v2238
      %v2271 = vadd.f32 %v2228, %v2238
      %v2272 = vadd.f32 %v2229, %v2238
      %v2273 = vadd.f32 %v2230, %v2238
      %v2274 = vadd.f32 %v2231, %v2238
      %v2275 = vadd.f32 %v2232, %v2238
      %v2276 = vmax.f32 %v2240, 0.0
      %v2277 = vmax.f32 %v2241, 0.0
      %v2278 = vmax.f32 %v2242, 0.0
      %v2279 = vmax.f32 %v2243, 0.0
      %v2280 = vmax.f32 %v2244, 0.0
      %v2281 = vmax.f32 %v2245, 0.0
      %v2282 = vmax.f32 %v2246, 0.0
      %v2283 = vmax.f32 %v2247, 0.0
      %v2284 = vmax.f32 %v2248, 0.0
      %v2285 = vmax.f32 %v2249, 0.0
      %v2286 = vmax.f32 %v2250, 0.0
      %v2287 = vmax.f32 %v2251, 0.0
      %v2288 = vmax.f32 %v2252, 0.0
      %v2289 = vmax.f32 %v2253, 0.0
      %v2290 = vmax.f32 %v2254, 0.0
      %v2291 = vmax.f32 %v2255, 0.0
      %v2292 = vmax.f32 %v2256, 0.0
      %v2293 = vmax.f32 %v2257, 0.0
      %v2294 = vmax.f32 %v2258, 0.0
      %v2295 = vmax.f32 %v2259, 0.0
      %v2296 = vmax.f32 %v2260, 0.0
      %v2297 = vmax.f32 %v2261, 0.0
      %v2298 = vmax.f32 %v2262, 0.0
      %v2299 = vmax.f32 %v2263, 0.0
      %v2300 = vmax.f32 %v2264, 0.0
      %v2301 = vmax.f32 %v2265, 0.0
      %v2302 = vmax.f32 %v2266, 0.0
      %v2303 = vmax.f32 %v2267, 0.0
      %v2304 = vmax.f32 %v2268, 0.0
      %v2305 = vmax.f32 %v2269, 0.0
      %v2306 = vmax.f32 %v2270, 0.0
      %v2307 = vmax.f32 %v2271, 0.0
      %v2308 = vmax.f32 %v2272, 0.0
      %v2309 = vmax.f32 %v2273, 0.0
      %v2310 = vmax.f32 %v2274, 0.0
      %v2311 = vmax.f32 %v2275, 0.0
      %v2312 = vlaneseq
      %v2313 = vshrl.u32 %v2312, 7
      %v2314 = vadd.s32 %v2313, 8
      %v2315 = vadd.s32 %v2313, 16
      %v2316 = vadd.s32 %v2313, 24
      %v2317 = vadd.s32 %v2313, 32
      %v2318 = vadd.s32 %v2313, 40
      %v2319 = vadd.s32 %v2313, 48
      %v2320 = vadd.s32 %v2313, 56
      %v2321 = vadd.s32 %v2313, 64
      %v2322 = vadd.s32 %v2313, 72
      %v2323 = vadd.s32 %v2313, 80
      %v2324 = vadd.s32 %v2313, 88
      %v2325 = vadd.s32 %v2313, 96
      %v2326 = vadd.s32 %v2313, 104
      %v2327 = vadd.s32 %v2313, 112
      %v2328 = vadd.s32 %v2313, 120
      %v2329 = vadd.s32 %v2313, 128
      %v2330 = vadd.s32 %v2313, 136
      %v2331 = vadd.s32 %v2313, 144
      %v2332 = vadd.s32 %v2313, 152
      %v2333 = vadd.s32 %v2313, 160
      %v2334 = vadd.s32 %v2313, 168
      %v2335 = vadd.s32 %v2313, 176
      %v2336 = vadd.s32 %v2313, 184
      %v2337 = vadd.s32 %v2313, 192
      %v2338 = vadd.s32 %v2313, 200
      %v2339 = vadd.s32 %v2313, 208
      %v2340 = vadd.s32 %v2313, 216
      %v2341 = vadd.s32 %v2313, 224
      %v2342 = vadd.s32 %v2313, 232
      %v2343 = vadd.s32 %v2313, 240
      %v2344 = vadd.s32 %v2313, 248
      %v2345 = vadd.s32 %v2313, 256
      %v2346 = vadd.s32 %v2313, 264
      %v2347 = vadd.s32 %v2313, 272
      %v2348 = vadd.s32 %v2313, 280
      %vm2349 = vcmp.lt.s32.totalorder %v2313, 0
      %v2350 = vsub.s32 0, %v2313
      %v2351 = vsel %vm2349, %v2350, %v2313
      %v2352 = vmul.u32.u64.compose %v2351, 3817748708
      %v2353 = vextract.low.u32 %v2352
      %v2354 = vextract.high.u32 %v2352
      %v2355 = vshrl.u32 %v2354, 4
      %v2356 = vmul.u32 %v2355, 18
      %v2357 = vsub.s32 %v2351, %v2356
      %v2358 = vsub.s32 0, %v2357
      %v2359 = vsel %vm2349, %v2358, %v2357
      %vm2360 = vcmp.lt.s32.totalorder %v2314, 0
      %v2361 = vsub.s32 0, %v2314
      %v2362 = vsel %vm2360, %v2361, %v2314
      %v2363 = vmul.u32.u64.compose %v2362, 3817748708
      %v2364 = vextract.low.u32 %v2363
      %v2365 = vextract.high.u32 %v2363
      %v2366 = vshrl.u32 %v2365, 4
      %v2367 = vmul.u32 %v2366, 18
      %v2368 = vsub.s32 %v2362, %v2367
      %v2369 = vsub.s32 0, %v2368
      %v2370 = vsel %vm2360, %v2369, %v2368
      %vm2371 = vcmp.lt.s32.totalorder %v2315, 0
      %v2372 = vsub.s32 0, %v2315
      %v2373 = vsel %vm2371, %v2372, %v2315
      %v2374 = vmul.u32.u64.compose %v2373, 3817748708
      %v2375 = vextract.low.u32 %v2374
      %v2376 = vextract.high.u32 %v2374
      %v2377 = vshrl.u32 %v2376, 4
      %v2378 = vmul.u32 %v2377, 18
      %v2379 = vsub.s32 %v2373, %v2378
      %v2380 = vsub.s32 0, %v2379
      %v2381 = vsel %vm2371, %v2380, %v2379
      %vm2382 = vcmp.lt.s32.totalorder %v2316, 0
      %v2383 = vsub.s32 0, %v2316
      %v2384 = vsel %vm2382, %v2383, %v2316
      %v2385 = vmul.u32.u64.compose %v2384, 3817748708
      %v2386 = vextract.low.u32 %v2385
      %v2387 = vextract.high.u32 %v2385
      %v2388 = vshrl.u32 %v2387, 4
      %v2389 = vmul.u32 %v2388, 18
      %v2390 = vsub.s32 %v2384, %v2389
      %v2391 = vsub.s32 0, %v2390
      %v2392 = vsel %vm2382, %v2391, %v2390
      %vm2393 = vcmp.lt.s32.totalorder %v2317, 0
      %v2394 = vsub.s32 0, %v2317
      %v2395 = vsel %vm2393, %v2394, %v2317
      %v2396 = vmul.u32.u64.compose %v2395, 3817748708
      %v2397 = vextract.low.u32 %v2396
      %v2398 = vextract.high.u32 %v2396
      %v2399 = vshrl.u32 %v2398, 4
      %v2400 = vmul.u32 %v2399, 18
      %v2401 = vsub.s32 %v2395, %v2400
      %v2402 = vsub.s32 0, %v2401
      %v2403 = vsel %vm2393, %v2402, %v2401
      %vm2404 = vcmp.lt.s32.totalorder %v2318, 0
      %v2405 = vsub.s32 0, %v2318
      %v2406 = vsel %vm2404, %v2405, %v2318
      %v2407 = vmul.u32.u64.compose %v2406, 3817748708
      %v2408 = vextract.low.u32 %v2407
      %v2409 = vextract.high.u32 %v2407
      %v2410 = vshrl.u32 %v2409, 4
      %v2411 = vmul.u32 %v2410, 18
      %v2412 = vsub.s32 %v2406, %v2411
      %v2413 = vsub.s32 0, %v2412
      %v2414 = vsel %vm2404, %v2413, %v2412
      %vm2415 = vcmp.lt.s32.totalorder %v2319, 0
      %v2416 = vsub.s32 0, %v2319
      %v2417 = vsel %vm2415, %v2416, %v2319
      %v2418 = vmul.u32.u64.compose %v2417, 3817748708
      %v2419 = vextract.low.u32 %v2418
      %v2420 = vextract.high.u32 %v2418
      %v2421 = vshrl.u32 %v2420, 4
      %v2422 = vmul.u32 %v2421, 18
      %v2423 = vsub.s32 %v2417, %v2422
      %v2424 = vsub.s32 0, %v2423
      %v2425 = vsel %vm2415, %v2424, %v2423
      %vm2426 = vcmp.lt.s32.totalorder %v2320, 0
      %v2427 = vsub.s32 0, %v2320
      %v2428 = vsel %vm2426, %v2427, %v2320
      %v2429 = vmul.u32.u64.compose %v2428, 3817748708
      %v2430 = vextract.low.u32 %v2429
      %v2431 = vextract.high.u32 %v2429
      %v2432 = vshrl.u32 %v2431, 4
      %v2433 = vmul.u32 %v2432, 18
      %v2434 = vsub.s32 %v2428, %v2433
      %v2435 = vsub.s32 0, %v2434
      %v2436 = vsel %vm2426, %v2435, %v2434
      %vm2437 = vcmp.lt.s32.totalorder %v2321, 0
      %v2438 = vsub.s32 0, %v2321
      %v2439 = vsel %vm2437, %v2438, %v2321
      %v2440 = vmul.u32.u64.compose %v2439, 3817748708
      %v2441 = vextract.low.u32 %v2440
      %v2442 = vextract.high.u32 %v2440
      %v2443 = vshrl.u32 %v2442, 4
      %v2444 = vmul.u32 %v2443, 18
      %v2445 = vsub.s32 %v2439, %v2444
      %v2446 = vsub.s32 0, %v2445
      %v2447 = vsel %vm2437, %v2446, %v2445
      %vm2448 = vcmp.lt.s32.totalorder %v2322, 0
      %v2449 = vsub.s32 0, %v2322
      %v2450 = vsel %vm2448, %v2449, %v2322
      %v2451 = vmul.u32.u64.compose %v2450, 3817748708
      %v2452 = vextract.low.u32 %v2451
      %v2453 = vextract.high.u32 %v2451
      %v2454 = vshrl.u32 %v2453, 4
      %v2455 = vmul.u32 %v2454, 18
      %v2456 = vsub.s32 %v2450, %v2455
      %v2457 = vsub.s32 0, %v2456
      %v2458 = vsel %vm2448, %v2457, %v2456
      %vm2459 = vcmp.lt.s32.totalorder %v2323, 0
      %v2460 = vsub.s32 0, %v2323
      %v2461 = vsel %vm2459, %v2460, %v2323
      %v2462 = vmul.u32.u64.compose %v2461, 3817748708
      %v2463 = vextract.low.u32 %v2462
      %v2464 = vextract.high.u32 %v2462
      %v2465 = vshrl.u32 %v2464, 4
      %v2466 = vmul.u32 %v2465, 18
      %v2467 = vsub.s32 %v2461, %v2466
      %v2468 = vsub.s32 0, %v2467
      %v2469 = vsel %vm2459, %v2468, %v2467
      %vm2470 = vcmp.lt.s32.totalorder %v2324, 0
      %v2471 = vsub.s32 0, %v2324
      %v2472 = vsel %vm2470, %v2471, %v2324
      %v2473 = vmul.u32.u64.compose %v2472, 3817748708
      %v2474 = vextract.low.u32 %v2473
      %v2475 = vextract.high.u32 %v2473
      %v2476 = vshrl.u32 %v2475, 4
      %v2477 = vmul.u32 %v2476, 18
      %v2478 = vsub.s32 %v2472, %v2477
      %v2479 = vsub.s32 0, %v2478
      %v2480 = vsel %vm2470, %v2479, %v2478
      %vm2481 = vcmp.lt.s32.totalorder %v2325, 0
      %v2482 = vsub.s32 0, %v2325
      %v2483 = vsel %vm2481, %v2482, %v2325
      %v2484 = vmul.u32.u64.compose %v2483, 3817748708
      %v2485 = vextract.low.u32 %v2484
      %v2486 = vextract.high.u32 %v2484
      %v2487 = vshrl.u32 %v2486, 4
      %v2488 = vmul.u32 %v2487, 18
      %v2489 = vsub.s32 %v2483, %v2488
      %v2490 = vsub.s32 0, %v2489
      %v2491 = vsel %vm2481, %v2490, %v2489
      %vm2492 = vcmp.lt.s32.totalorder %v2326, 0
      %v2493 = vsub.s32 0, %v2326
      %v2494 = vsel %vm2492, %v2493, %v2326
      %v2495 = vmul.u32.u64.compose %v2494, 3817748708
      %v2496 = vextract.low.u32 %v2495
      %v2497 = vextract.high.u32 %v2495
      %v2498 = vshrl.u32 %v2497, 4
      %v2499 = vmul.u32 %v2498, 18
      %v2500 = vsub.s32 %v2494, %v2499
      %v2501 = vsub.s32 0, %v2500
      %v2502 = vsel %vm2492, %v2501, %v2500
      %vm2503 = vcmp.lt.s32.totalorder %v2327, 0
      %v2504 = vsub.s32 0, %v2327
      %v2505 = vsel %vm2503, %v2504, %v2327
      %v2506 = vmul.u32.u64.compose %v2505, 3817748708
      %v2507 = vextract.low.u32 %v2506
      %v2508 = vextract.high.u32 %v2506
      %v2509 = vshrl.u32 %v2508, 4
      %v2510 = vmul.u32 %v2509, 18
      %v2511 = vsub.s32 %v2505, %v2510
      %v2512 = vsub.s32 0, %v2511
      %v2513 = vsel %vm2503, %v2512, %v2511
      %vm2514 = vcmp.lt.s32.totalorder %v2328, 0
      %v2515 = vsub.s32 0, %v2328
      %v2516 = vsel %vm2514, %v2515, %v2328
      %v2517 = vmul.u32.u64.compose %v2516, 3817748708
      %v2518 = vextract.low.u32 %v2517
      %v2519 = vextract.high.u32 %v2517
      %v2520 = vshrl.u32 %v2519, 4
      %v2521 = vmul.u32 %v2520, 18
      %v2522 = vsub.s32 %v2516, %v2521
      %v2523 = vsub.s32 0, %v2522
      %v2524 = vsel %vm2514, %v2523, %v2522
      %vm2525 = vcmp.lt.s32.totalorder %v2329, 0
      %v2526 = vsub.s32 0, %v2329
      %v2527 = vsel %vm2525, %v2526, %v2329
      %v2528 = vmul.u32.u64.compose %v2527, 3817748708
      %v2529 = vextract.low.u32 %v2528
      %v2530 = vextract.high.u32 %v2528
      %v2531 = vshrl.u32 %v2530, 4
      %v2532 = vmul.u32 %v2531, 18
      %v2533 = vsub.s32 %v2527, %v2532
      %v2534 = vsub.s32 0, %v2533
      %v2535 = vsel %vm2525, %v2534, %v2533
      %vm2536 = vcmp.lt.s32.totalorder %v2330, 0
      %v2537 = vsub.s32 0, %v2330
      %v2538 = vsel %vm2536, %v2537, %v2330
      %v2539 = vmul.u32.u64.compose %v2538, 3817748708
      %v2540 = vextract.low.u32 %v2539
      %v2541 = vextract.high.u32 %v2539
      %v2542 = vshrl.u32 %v2541, 4
      %v2543 = vmul.u32 %v2542, 18
      %v2544 = vsub.s32 %v2538, %v2543
      %v2545 = vsub.s32 0, %v2544
      %v2546 = vsel %vm2536, %v2545, %v2544
      %vm2547 = vcmp.lt.s32.totalorder %v2331, 0
      %v2548 = vsub.s32 0, %v2331
      %v2549 = vsel %vm2547, %v2548, %v2331
      %v2550 = vmul.u32.u64.compose %v2549, 3817748708
      %v2551 = vextract.low.u32 %v2550
      %v2552 = vextract.high.u32 %v2550
      %v2553 = vshrl.u32 %v2552, 4
      %v2554 = vmul.u32 %v2553, 18
      %v2555 = vsub.s32 %v2549, %v2554
      %v2556 = vsub.s32 0, %v2555
      %v2557 = vsel %vm2547, %v2556, %v2555
      %vm2558 = vcmp.lt.s32.totalorder %v2332, 0
      %v2559 = vsub.s32 0, %v2332
      %v2560 = vsel %vm2558, %v2559, %v2332
      %v2561 = vmul.u32.u64.compose %v2560, 3817748708
      %v2562 = vextract.low.u32 %v2561
      %v2563 = vextract.high.u32 %v2561
      %v2564 = vshrl.u32 %v2563, 4
      %v2565 = vmul.u32 %v2564, 18
      %v2566 = vsub.s32 %v2560, %v2565
      %v2567 = vsub.s32 0, %v2566
      %v2568 = vsel %vm2558, %v2567, %v2566
      %vm2569 = vcmp.lt.s32.totalorder %v2333, 0
      %v2570 = vsub.s32 0, %v2333
      %v2571 = vsel %vm2569, %v2570, %v2333
      %v2572 = vmul.u32.u64.compose %v2571, 3817748708
      %v2573 = vextract.low.u32 %v2572
      %v2574 = vextract.high.u32 %v2572
      %v2575 = vshrl.u32 %v2574, 4
      %v2576 = vmul.u32 %v2575, 18
      %v2577 = vsub.s32 %v2571, %v2576
      %v2578 = vsub.s32 0, %v2577
      %v2579 = vsel %vm2569, %v2578, %v2577
      %vm2580 = vcmp.lt.s32.totalorder %v2334, 0
      %v2581 = vsub.s32 0, %v2334
      %v2582 = vsel %vm2580, %v2581, %v2334
      %v2583 = vmul.u32.u64.compose %v2582, 3817748708
      %v2584 = vextract.low.u32 %v2583
      %v2585 = vextract.high.u32 %v2583
      %v2586 = vshrl.u32 %v2585, 4
      %v2587 = vmul.u32 %v2586, 18
      %v2588 = vsub.s32 %v2582, %v2587
      %v2589 = vsub.s32 0, %v2588
      %v2590 = vsel %vm2580, %v2589, %v2588
      %vm2591 = vcmp.lt.s32.totalorder %v2335, 0
      %v2592 = vsub.s32 0, %v2335
      %v2593 = vsel %vm2591, %v2592, %v2335
      %v2594 = vmul.u32.u64.compose %v2593, 3817748708
      %v2595 = vextract.low.u32 %v2594
      %v2596 = vextract.high.u32 %v2594
      %v2597 = vshrl.u32 %v2596, 4
      %v2598 = vmul.u32 %v2597, 18
      %v2599 = vsub.s32 %v2593, %v2598
      %v2600 = vsub.s32 0, %v2599
      %v2601 = vsel %vm2591, %v2600, %v2599
      %vm2602 = vcmp.lt.s32.totalorder %v2336, 0
      %v2603 = vsub.s32 0, %v2336
      %v2604 = vsel %vm2602, %v2603, %v2336
      %v2605 = vmul.u32.u64.compose %v2604, 3817748708
      %v2606 = vextract.low.u32 %v2605
      %v2607 = vextract.high.u32 %v2605
      %v2608 = vshrl.u32 %v2607, 4
      %v2609 = vmul.u32 %v2608, 18
      %v2610 = vsub.s32 %v2604, %v2609
      %v2611 = vsub.s32 0, %v2610
      %v2612 = vsel %vm2602, %v2611, %v2610
      %vm2613 = vcmp.lt.s32.totalorder %v2337, 0
      %v2614 = vsub.s32 0, %v2337
      %v2615 = vsel %vm2613, %v2614, %v2337
      %v2616 = vmul.u32.u64.compose %v2615, 3817748708
      %v2617 = vextract.low.u32 %v2616
      %v2618 = vextract.high.u32 %v2616
      %v2619 = vshrl.u32 %v2618, 4
      %v2620 = vmul.u32 %v2619, 18
      %v2621 = vsub.s32 %v2615, %v2620
      %v2622 = vsub.s32 0, %v2621
      %v2623 = vsel %vm2613, %v2622, %v2621
      %vm2624 = vcmp.lt.s32.totalorder %v2338, 0
      %v2625 = vsub.s32 0, %v2338
      %v2626 = vsel %vm2624, %v2625, %v2338
      %v2627 = vmul.u32.u64.compose %v2626, 3817748708
      %v2628 = vextract.low.u32 %v2627
      %v2629 = vextract.high.u32 %v2627
      %v2630 = vshrl.u32 %v2629, 4
      %v2631 = vmul.u32 %v2630, 18
      %v2632 = vsub.s32 %v2626, %v2631
      %v2633 = vsub.s32 0, %v2632
      %v2634 = vsel %vm2624, %v2633, %v2632
      %vm2635 = vcmp.lt.s32.totalorder %v2339, 0
      %v2636 = vsub.s32 0, %v2339
      %v2637 = vsel %vm2635, %v2636, %v2339
      %v2638 = vmul.u32.u64.compose %v2637, 3817748708
      %v2639 = vextract.low.u32 %v2638
      %v2640 = vextract.high.u32 %v2638
      %v2641 = vshrl.u32 %v2640, 4
      %v2642 = vmul.u32 %v2641, 18
      %v2643 = vsub.s32 %v2637, %v2642
      %v2644 = vsub.s32 0, %v2643
      %v2645 = vsel %vm2635, %v2644, %v2643
      %vm2646 = vcmp.lt.s32.totalorder %v2340, 0
      %v2647 = vsub.s32 0, %v2340
      %v2648 = vsel %vm2646, %v2647, %v2340
      %v2649 = vmul.u32.u64.compose %v2648, 3817748708
      %v2650 = vextract.low.u32 %v2649
      %v2651 = vextract.high.u32 %v2649
      %v2652 = vshrl.u32 %v2651, 4
      %v2653 = vmul.u32 %v2652, 18
      %v2654 = vsub.s32 %v2648, %v2653
      %v2655 = vsub.s32 0, %v2654
      %v2656 = vsel %vm2646, %v2655, %v2654
      %vm2657 = vcmp.lt.s32.totalorder %v2341, 0
      %v2658 = vsub.s32 0, %v2341
      %v2659 = vsel %vm2657, %v2658, %v2341
      %v2660 = vmul.u32.u64.compose %v2659, 3817748708
      %v2661 = vextract.low.u32 %v2660
      %v2662 = vextract.high.u32 %v2660
      %v2663 = vshrl.u32 %v2662, 4
      %v2664 = vmul.u32 %v2663, 18
      %v2665 = vsub.s32 %v2659, %v2664
      %v2666 = vsub.s32 0, %v2665
      %v2667 = vsel %vm2657, %v2666, %v2665
      %vm2668 = vcmp.lt.s32.totalorder %v2342, 0
      %v2669 = vsub.s32 0, %v2342
      %v2670 = vsel %vm2668, %v2669, %v2342
      %v2671 = vmul.u32.u64.compose %v2670, 3817748708
      %v2672 = vextract.low.u32 %v2671
      %v2673 = vextract.high.u32 %v2671
      %v2674 = vshrl.u32 %v2673, 4
      %v2675 = vmul.u32 %v2674, 18
      %v2676 = vsub.s32 %v2670, %v2675
      %v2677 = vsub.s32 0, %v2676
      %v2678 = vsel %vm2668, %v2677, %v2676
      %vm2679 = vcmp.lt.s32.totalorder %v2343, 0
      %v2680 = vsub.s32 0, %v2343
      %v2681 = vsel %vm2679, %v2680, %v2343
      %v2682 = vmul.u32.u64.compose %v2681, 3817748708
      %v2683 = vextract.low.u32 %v2682
      %v2684 = vextract.high.u32 %v2682
      %v2685 = vshrl.u32 %v2684, 4
      %v2686 = vmul.u32 %v2685, 18
      %v2687 = vsub.s32 %v2681, %v2686
      %v2688 = vsub.s32 0, %v2687
      %v2689 = vsel %vm2679, %v2688, %v2687
      %vm2690 = vcmp.lt.s32.totalorder %v2344, 0
      %v2691 = vsub.s32 0, %v2344
      %v2692 = vsel %vm2690, %v2691, %v2344
      %v2693 = vmul.u32.u64.compose %v2692, 3817748708
      %v2694 = vextract.low.u32 %v2693
      %v2695 = vextract.high.u32 %v2693
      %v2696 = vshrl.u32 %v2695, 4
      %v2697 = vmul.u32 %v2696, 18
      %v2698 = vsub.s32 %v2692, %v2697
      %v2699 = vsub.s32 0, %v2698
      %v2700 = vsel %vm2690, %v2699, %v2698
      %vm2701 = vcmp.lt.s32.totalorder %v2345, 0
      %v2702 = vsub.s32 0, %v2345
      %v2703 = vsel %vm2701, %v2702, %v2345
      %v2704 = vmul.u32.u64.compose %v2703, 3817748708
      %v2705 = vextract.low.u32 %v2704
      %v2706 = vextract.high.u32 %v2704
      %v2707 = vshrl.u32 %v2706, 4
      %v2708 = vmul.u32 %v2707, 18
      %v2709 = vsub.s32 %v2703, %v2708
      %v2710 = vsub.s32 0, %v2709
      %v2711 = vsel %vm2701, %v2710, %v2709
      %vm2712 = vcmp.lt.s32.totalorder %v2346, 0
      %v2713 = vsub.s32 0, %v2346
      %v2714 = vsel %vm2712, %v2713, %v2346
      %v2715 = vmul.u32.u64.compose %v2714, 3817748708
      %v2716 = vextract.low.u32 %v2715
      %v2717 = vextract.high.u32 %v2715
      %v2718 = vshrl.u32 %v2717, 4
      %v2719 = vmul.u32 %v2718, 18
      %v2720 = vsub.s32 %v2714, %v2719
      %v2721 = vsub.s32 0, %v2720
      %v2722 = vsel %vm2712, %v2721, %v2720
      %vm2723 = vcmp.lt.s32.totalorder %v2347, 0
      %v2724 = vsub.s32 0, %v2347
      %v2725 = vsel %vm2723, %v2724, %v2347
      %v2726 = vmul.u32.u64.compose %v2725, 3817748708
      %v2727 = vextract.low.u32 %v2726
      %v2728 = vextract.high.u32 %v2726
      %v2729 = vshrl.u32 %v2728, 4
      %v2730 = vmul.u32 %v2729, 18
      %v2731 = vsub.s32 %v2725, %v2730
      %v2732 = vsub.s32 0, %v2731
      %v2733 = vsel %vm2723, %v2732, %v2731
      %vm2734 = vcmp.lt.s32.totalorder %v2348, 0
      %v2735 = vsub.s32 0, %v2348
      %v2736 = vsel %vm2734, %v2735, %v2348
      %v2737 = vmul.u32.u64.compose %v2736, 3817748708
      %v2738 = vextract.low.u32 %v2737
      %v2739 = vextract.high.u32 %v2737
      %v2740 = vshrl.u32 %v2739, 4
      %v2741 = vmul.u32 %v2740, 18
      %v2742 = vsub.s32 %v2736, %v2741
      %v2743 = vsub.s32 0, %v2742
      %v2744 = vsel %vm2734, %v2743, %v2742
      %vm2745 = vcmp.ne.s32.totalorder %v2359, 0
      %vm2746 = vcmp.ne.s32.totalorder %v2370, 0
      %vm2747 = vcmp.ne.s32.totalorder %v2381, 0
      %vm2748 = vcmp.ne.s32.totalorder %v2392, 0
      %vm2749 = vcmp.ne.s32.totalorder %v2403, 0
      %vm2750 = vcmp.ne.s32.totalorder %v2414, 0
      %vm2751 = vcmp.ne.s32.totalorder %v2425, 0
      %vm2752 = vcmp.ne.s32.totalorder %v2436, 0
      %vm2753 = vcmp.ne.s32.totalorder %v2447, 0
      %vm2754 = vcmp.ne.s32.totalorder %v2458, 0
      %vm2755 = vcmp.ne.s32.totalorder %v2469, 0
      %vm2756 = vcmp.ne.s32.totalorder %v2480, 0
      %vm2757 = vcmp.ne.s32.totalorder %v2491, 0
      %vm2758 = vcmp.ne.s32.totalorder %v2502, 0
      %vm2759 = vcmp.ne.s32.totalorder %v2513, 0
      %vm2760 = vcmp.ne.s32.totalorder %v2524, 0
      %vm2761 = vcmp.ne.s32.totalorder %v2535, 0
      %vm2762 = vcmp.ne.s32.totalorder %v2546, 0
      %vm2763 = vcmp.ne.s32.totalorder %v2557, 0
      %vm2764 = vcmp.ne.s32.totalorder %v2568, 0
      %vm2765 = vcmp.ne.s32.totalorder %v2579, 0
      %vm2766 = vcmp.ne.s32.totalorder %v2590, 0
      %vm2767 = vcmp.ne.s32.totalorder %v2601, 0
      %vm2768 = vcmp.ne.s32.totalorder %v2612, 0
      %vm2769 = vcmp.ne.s32.totalorder %v2623, 0
      %vm2770 = vcmp.ne.s32.totalorder %v2634, 0
      %vm2771 = vcmp.ne.s32.totalorder %v2645, 0
      %vm2772 = vcmp.ne.s32.totalorder %v2656, 0
      %vm2773 = vcmp.ne.s32.totalorder %v2667, 0
      %vm2774 = vcmp.ne.s32.totalorder %v2678, 0
      %vm2775 = vcmp.ne.s32.totalorder %v2689, 0
      %vm2776 = vcmp.ne.s32.totalorder %v2700, 0
      %vm2777 = vcmp.ne.s32.totalorder %v2711, 0
      %vm2778 = vcmp.ne.s32.totalorder %v2722, 0
      %vm2779 = vcmp.ne.s32.totalorder %v2733, 0
      %vm2780 = vcmp.ne.s32.totalorder %v2744, 0
      %vm2781 = vcmp.lt.s32.totalorder %v2359, 0
      %vm2782 = vcmp.lt.s32.totalorder %v2370, 0
      %vm2783 = vcmp.lt.s32.totalorder %v2381, 0
      %vm2784 = vcmp.lt.s32.totalorder %v2392, 0
      %vm2785 = vcmp.lt.s32.totalorder %v2403, 0
      %vm2786 = vcmp.lt.s32.totalorder %v2414, 0
      %vm2787 = vcmp.lt.s32.totalorder %v2425, 0
      %vm2788 = vcmp.lt.s32.totalorder %v2436, 0
      %vm2789 = vcmp.lt.s32.totalorder %v2447, 0
      %vm2790 = vcmp.lt.s32.totalorder %v2458, 0
      %vm2791 = vcmp.lt.s32.totalorder %v2469, 0
      %vm2792 = vcmp.lt.s32.totalorder %v2480, 0
      %vm2793 = vcmp.lt.s32.totalorder %v2491, 0
      %vm2794 = vcmp.lt.s32.totalorder %v2502, 0
      %vm2795 = vcmp.lt.s32.totalorder %v2513, 0
      %vm2796 = vcmp.lt.s32.totalorder %v2524, 0
      %vm2797 = vcmp.lt.s32.totalorder %v2535, 0
      %vm2798 = vcmp.lt.s32.totalorder %v2546, 0
      %vm2799 = vcmp.lt.s32.totalorder %v2557, 0
      %vm2800 = vcmp.lt.s32.totalorder %v2568, 0
      %vm2801 = vcmp.lt.s32.totalorder %v2579, 0
      %vm2802 = vcmp.lt.s32.totalorder %v2590, 0
      %vm2803 = vcmp.lt.s32.totalorder %v2601, 0
      %vm2804 = vcmp.lt.s32.totalorder %v2612, 0
      %vm2805 = vcmp.lt.s32.totalorder %v2623, 0
      %vm2806 = vcmp.lt.s32.totalorder %v2634, 0
      %vm2807 = vcmp.lt.s32.totalorder %v2645, 0
      %vm2808 = vcmp.lt.s32.totalorder %v2656, 0
      %vm2809 = vcmp.lt.s32.totalorder %v2667, 0
      %vm2810 = vcmp.lt.s32.totalorder %v2678, 0
      %vm2811 = vcmp.lt.s32.totalorder %v2689, 0
      %vm2812 = vcmp.lt.s32.totalorder %v2700, 0
      %vm2813 = vcmp.lt.s32.totalorder %v2711, 0
      %vm2814 = vcmp.lt.s32.totalorder %v2722, 0
      %vm2815 = vcmp.lt.s32.totalorder %v2733, 0
      %vm2816 = vcmp.lt.s32.totalorder %v2744, 0
      %vm2817 = vmand %vm2781, %vm2745
      %vm2818 = vmand %vm2782, %vm2746
      %vm2819 = vmand %vm2783, %vm2747
      %vm2820 = vmand %vm2784, %vm2748
      %vm2821 = vmand %vm2785, %vm2749
      %vm2822 = vmand %vm2786, %vm2750
      %vm2823 = vmand %vm2787, %vm2751
      %vm2824 = vmand %vm2788, %vm2752
      %vm2825 = vmand %vm2789, %vm2753
      %vm2826 = vmand %vm2790, %vm2754
      %vm2827 = vmand %vm2791, %vm2755
      %vm2828 = vmand %vm2792, %vm2756
      %vm2829 = vmand %vm2793, %vm2757
      %vm2830 = vmand %vm2794, %vm2758
      %vm2831 = vmand %vm2795, %vm2759
      %vm2832 = vmand %vm2796, %vm2760
      %vm2833 = vmand %vm2797, %vm2761
      %vm2834 = vmand %vm2798, %vm2762
      %vm2835 = vmand %vm2799, %vm2763
      %vm2836 = vmand %vm2800, %vm2764
      %vm2837 = vmand %vm2801, %vm2765
      %vm2838 = vmand %vm2802, %vm2766
      %vm2839 = vmand %vm2803, %vm2767
      %vm2840 = vmand %vm2804, %vm2768
      %vm2841 = vmand %vm2805, %vm2769
      %vm2842 = vmand %vm2806, %vm2770
      %vm2843 = vmand %vm2807, %vm2771
      %vm2844 = vmand %vm2808, %vm2772
      %vm2845 = vmand %vm2809, %vm2773
      %vm2846 = vmand %vm2810, %vm2774
      %vm2847 = vmand %vm2811, %vm2775
      %vm2848 = vmand %vm2812, %vm2776
      %vm2849 = vmand %vm2813, %vm2777
      %vm2850 = vmand %vm2814, %vm2778
      %vm2851 = vmand %vm2815, %vm2779
      %vm2852 = vmand %vm2816, %vm2780
      %v2853 = vadd.s32 %v2359, 18
      %v2854 = vadd.s32 %v2370, 18
      %v2855 = vadd.s32 %v2381, 18
      %v2856 = vadd.s32 %v2392, 18
      %v2857 = vadd.s32 %v2403, 18
      %v2858 = vadd.s32 %v2414, 18
      %v2859 = vadd.s32 %v2425, 18
      %v2860 = vadd.s32 %v2436, 18
      %v2861 = vadd.s32 %v2447, 18
      %v2862 = vadd.s32 %v2458, 18
      %v2863 = vadd.s32 %v2469, 18
      %v2864 = vadd.s32 %v2480, 18
      %v2865 = vadd.s32 %v2491, 18
      %v2866 = vadd.s32 %v2502, 18
      %v2867 = vadd.s32 %v2513, 18
      %v2868 = vadd.s32 %v2524, 18
      %v2869 = vadd.s32 %v2535, 18
      %v2870 = vadd.s32 %v2546, 18
      %v2871 = vadd.s32 %v2557, 18
      %v2872 = vadd.s32 %v2568, 18
      %v2873 = vadd.s32 %v2579, 18
      %v2874 = vadd.s32 %v2590, 18
      %v2875 = vadd.s32 %v2601, 18
      %v2876 = vadd.s32 %v2612, 18
      %v2877 = vadd.s32 %v2623, 18
      %v2878 = vadd.s32 %v2634, 18
      %v2879 = vadd.s32 %v2645, 18
      %v2880 = vadd.s32 %v2656, 18
      %v2881 = vadd.s32 %v2667, 18
      %v2882 = vadd.s32 %v2678, 18
      %v2883 = vadd.s32 %v2689, 18
      %v2884 = vadd.s32 %v2700, 18
      %v2885 = vadd.s32 %v2711, 18
      %v2886 = vadd.s32 %v2722, 18
      %v2887 = vadd.s32 %v2733, 18
      %v2888 = vadd.s32 %v2744, 18
      %v2889 = vsel %vm2817, %v2853, %v2359
      %v2890 = vsel %vm2818, %v2854, %v2370
      %v2891 = vsel %vm2819, %v2855, %v2381
      %v2892 = vsel %vm2820, %v2856, %v2392
      %v2893 = vsel %vm2821, %v2857, %v2403
      %v2894 = vsel %vm2822, %v2858, %v2414
      %v2895 = vsel %vm2823, %v2859, %v2425
      %v2896 = vsel %vm2824, %v2860, %v2436
      %v2897 = vsel %vm2825, %v2861, %v2447
      %v2898 = vsel %vm2826, %v2862, %v2458
      %v2899 = vsel %vm2827, %v2863, %v2469
      %v2900 = vsel %vm2828, %v2864, %v2480
      %v2901 = vsel %vm2829, %v2865, %v2491
      %v2902 = vsel %vm2830, %v2866, %v2502
      %v2903 = vsel %vm2831, %v2867, %v2513
      %v2904 = vsel %vm2832, %v2868, %v2524
      %v2905 = vsel %vm2833, %v2869, %v2535
      %v2906 = vsel %vm2834, %v2870, %v2546
      %v2907 = vsel %vm2835, %v2871, %v2557
      %v2908 = vsel %vm2836, %v2872, %v2568
      %v2909 = vsel %vm2837, %v2873, %v2579
      %v2910 = vsel %vm2838, %v2874, %v2590
      %v2911 = vsel %vm2839, %v2875, %v2601
      %v2912 = vsel %vm2840, %v2876, %v2612
      %v2913 = vsel %vm2841, %v2877, %v2623
      %v2914 = vsel %vm2842, %v2878, %v2634
      %v2915 = vsel %vm2843, %v2879, %v2645
      %v2916 = vsel %vm2844, %v2880, %v2656
      %v2917 = vsel %vm2845, %v2881, %v2667
      %v2918 = vsel %vm2846, %v2882, %v2678
      %v2919 = vsel %vm2847, %v2883, %v2689
      %v2920 = vsel %vm2848, %v2884, %v2700
      %v2921 = vsel %vm2849, %v2885, %v2711
      %v2922 = vsel %vm2850, %v2886, %v2722
      %v2923 = vsel %vm2851, %v2887, %v2733
      %v2924 = vsel %vm2852, %v2888, %v2744
      %vm2925 = vcmp.lt.s32.totalorder %v2889, 16
      %vm2926 = vcmp.lt.s32.totalorder %v2890, 16
      %vm2927 = vcmp.lt.s32.totalorder %v2891, 16
      %vm2928 = vcmp.lt.s32.totalorder %v2892, 16
      %vm2929 = vcmp.lt.s32.totalorder %v2893, 16
      %vm2930 = vcmp.lt.s32.totalorder %v2894, 16
      %vm2931 = vcmp.lt.s32.totalorder %v2895, 16
      %vm2932 = vcmp.lt.s32.totalorder %v2896, 16
      %vm2933 = vcmp.lt.s32.totalorder %v2897, 16
      %vm2934 = vcmp.lt.s32.totalorder %v2898, 16
      %vm2935 = vcmp.lt.s32.totalorder %v2899, 16
      %vm2936 = vcmp.lt.s32.totalorder %v2900, 16
      %vm2937 = vcmp.lt.s32.totalorder %v2901, 16
      %vm2938 = vcmp.lt.s32.totalorder %v2902, 16
      %vm2939 = vcmp.lt.s32.totalorder %v2903, 16
      %vm2940 = vcmp.lt.s32.totalorder %v2904, 16
      %vm2941 = vcmp.lt.s32.totalorder %v2905, 16
      %vm2942 = vcmp.lt.s32.totalorder %v2906, 16
      %vm2943 = vcmp.lt.s32.totalorder %v2907, 16
      %vm2944 = vcmp.lt.s32.totalorder %v2908, 16
      %vm2945 = vcmp.lt.s32.totalorder %v2909, 16
      %vm2946 = vcmp.lt.s32.totalorder %v2910, 16
      %vm2947 = vcmp.lt.s32.totalorder %v2911, 16
      %vm2948 = vcmp.lt.s32.totalorder %v2912, 16
      %vm2949 = vcmp.lt.s32.totalorder %v2913, 16
      %vm2950 = vcmp.lt.s32.totalorder %v2914, 16
      %vm2951 = vcmp.lt.s32.totalorder %v2915, 16
      %vm2952 = vcmp.lt.s32.totalorder %v2916, 16
      %vm2953 = vcmp.lt.s32.totalorder %v2917, 16
      %vm2954 = vcmp.lt.s32.totalorder %v2918, 16
      %vm2955 = vcmp.lt.s32.totalorder %v2919, 16
      %vm2956 = vcmp.lt.s32.totalorder %v2920, 16
      %vm2957 = vcmp.lt.s32.totalorder %v2921, 16
      %vm2958 = vcmp.lt.s32.totalorder %v2922, 16
      %vm2959 = vcmp.lt.s32.totalorder %v2923, 16
      %vm2960 = vcmp.lt.s32.totalorder %v2924, 16
      %v2961 = vsel %vm2925, %v2276, 0.0
      %v2962 = vsel %vm2926, %v2277, 0.0
      %v2963 = vsel %vm2927, %v2278, 0.0
      %v2964 = vsel %vm2928, %v2279, 0.0
      %v2965 = vsel %vm2929, %v2280, 0.0
      %v2966 = vsel %vm2930, %v2281, 0.0
      %v2967 = vsel %vm2931, %v2282, 0.0
      %v2968 = vsel %vm2932, %v2283, 0.0
      %v2969 = vsel %vm2933, %v2284, 0.0
      %v2970 = vsel %vm2934, %v2285, 0.0
      %v2971 = vsel %vm2935, %v2286, 0.0
      %v2972 = vsel %vm2936, %v2287, 0.0
      %v2973 = vsel %vm2937, %v2288, 0.0
      %v2974 = vsel %vm2938, %v2289, 0.0
      %v2975 = vsel %vm2939, %v2290, 0.0
      %v2976 = vsel %vm2940, %v2291, 0.0
      %v2977 = vsel %vm2941, %v2292, 0.0
      %v2978 = vsel %vm2942, %v2293, 0.0
      %v2979 = vsel %vm2943, %v2294, 0.0
      %v2980 = vsel %vm2944, %v2295, 0.0
      %v2981 = vsel %vm2945, %v2296, 0.0
      %v2982 = vsel %vm2946, %v2297, 0.0
      %v2983 = vsel %vm2947, %v2298, 0.0
      %v2984 = vsel %vm2948, %v2299, 0.0
      %v2985 = vsel %vm2949, %v2300, 0.0
      %v2986 = vsel %vm2950, %v2301, 0.0
      %v2987 = vsel %vm2951, %v2302, 0.0
      %v2988 = vsel %vm2952, %v2303, 0.0
      %v2989 = vsel %vm2953, %v2304, 0.0
      %v2990 = vsel %vm2954, %v2305, 0.0
      %v2991 = vsel %vm2955, %v2306, 0.0
      %v2992 = vsel %vm2956, %v2307, 0.0
      %v2993 = vsel %vm2957, %v2308, 0.0
      %v2994 = vsel %vm2958, %v2309, 0.0
      %v2995 = vsel %vm2959, %v2310, 0.0
      %v2996 = vsel %vm2960, %v2311, 0.0
      %v2997 = vpack.c.bf16 %v2962, %v2961
      %v2998 = vpack.c.bf16 %v2964, %v2963
      %v2999 = vpack.c.bf16 %v2966, %v2965
      %v3000 = vpack.c.bf16 %v2968, %v2967
      %v3001 = vpack.c.bf16 %v2970, %v2969
      %v3002 = vpack.c.bf16 %v2972, %v2971
      %v3003 = vpack.c.bf16 %v2974, %v2973
      %v3004 = vpack.c.bf16 %v2976, %v2975
      %v3005 = vpack.c.bf16 %v2978, %v2977
      %v3006 = vpack.c.bf16 %v2980, %v2979
      %v3007 = vpack.c.bf16 %v2982, %v2981
      %v3008 = vpack.c.bf16 %v2984, %v2983
      %v3009 = vpack.c.bf16 %v2986, %v2985
      %v3010 = vpack.c.bf16 %v2988, %v2987
      %v3011 = vpack.c.bf16 %v2990, %v2989
      %v3012 = vpack.c.bf16 %v2992, %v2991
      %v3013 = vpack.c.bf16 %v2994, %v2993
      %v3014 = vpack.c.bf16 %v2996, %v2995
      %v3033 = vunpack.c.l.b16 %v2997
      %v3034 = vunpack.c.h.b16 %v2997
      %v3035 = vunpack.c.l.b16 %v2998
      %v3036 = vunpack.c.h.b16 %v2998
      %v3037 = vunpack.c.l.b16 %v2999
      %v3038 = vunpack.c.h.b16 %v2999
      %v3039 = vunpack.c.l.b16 %v3000
      %v3040 = vunpack.c.h.b16 %v3000
      %v3041 = vunpack.c.l.b16 %v3001
      %v3042 = vunpack.c.h.b16 %v3001
      %v3043 = vunpack.c.l.b16 %v3002
      %v3044 = vunpack.c.h.b16 %v3002
      %v3045 = vunpack.c.l.b16 %v3003
      %v3046 = vunpack.c.h.b16 %v3003
      %v3047 = vunpack.c.l.b16 %v3004
      %v3048 = vunpack.c.h.b16 %v3004
      %v3049 = vunpack.c.l.b16 %v3005
      %v3050 = vunpack.c.h.b16 %v3005
      %v3051 = vunpack.c.l.b16 %v3006
      %v3052 = vunpack.c.h.b16 %v3006
      %v3053 = vunpack.c.l.b16 %v3007
      %v3054 = vunpack.c.h.b16 %v3007
      %v3055 = vunpack.c.l.b16 %v3008
      %v3056 = vunpack.c.h.b16 %v3008
      %v3057 = vunpack.c.l.b16 %v3009
      %v3058 = vunpack.c.h.b16 %v3009
      %v3059 = vunpack.c.l.b16 %v3010
      %v3060 = vunpack.c.h.b16 %v3010
      %v3061 = vunpack.c.l.b16 %v3011
      %v3062 = vunpack.c.h.b16 %v3011
      %v3063 = vunpack.c.l.b16 %v3012
      %v3064 = vunpack.c.h.b16 %v3012
      %v3065 = vunpack.c.l.b16 %v3013
      %v3066 = vunpack.c.h.b16 %v3013
      %v3067 = vunpack.c.l.b16 %v3014
      %v3068 = vunpack.c.h.b16 %v3014
      %v3069 = vpack.c.b16 %v3033, %v3033
      %v3070 = vpack.c.b16 %v3034, %v3034
      %v3071 = vpack.c.b16 %v3035, %v3035
      %v3072 = vpack.c.b16 %v3036, %v3036
      %v3073 = vpack.c.b16 %v3037, %v3037
      %v3074 = vpack.c.b16 %v3038, %v3038
      %v3075 = vpack.c.b16 %v3039, %v3039
      %v3076 = vpack.c.b16 %v3040, %v3040
      %v3077 = vpack.c.b16 %v3041, %v3041
      %v3078 = vpack.c.b16 %v3042, %v3042
      %v3079 = vpack.c.b16 %v3043, %v3043
      %v3080 = vpack.c.b16 %v3044, %v3044
      %v3081 = vpack.c.b16 %v3045, %v3045
      %v3082 = vpack.c.b16 %v3046, %v3046
      %v3083 = vpack.c.b16 %v3047, %v3047
      %v3084 = vpack.c.b16 %v3048, %v3048
      %v3085 = vpack.c.b16 %v3049, %v3049
      %v3086 = vpack.c.b16 %v3050, %v3050
      %v3087 = vpack.c.b16 %v3051, %v3051
      %v3088 = vpack.c.b16 %v3052, %v3052
      %v3089 = vpack.c.b16 %v3053, %v3053
      %v3090 = vpack.c.b16 %v3054, %v3054
      %v3091 = vpack.c.b16 %v3055, %v3055
      %v3092 = vpack.c.b16 %v3056, %v3056
      %v3093 = vpack.c.b16 %v3057, %v3057
      %v3094 = vpack.c.b16 %v3058, %v3058
      %v3095 = vpack.c.b16 %v3059, %v3059
      %v3096 = vpack.c.b16 %v3060, %v3060
      %v3097 = vpack.c.b16 %v3061, %v3061
      %v3098 = vpack.c.b16 %v3062, %v3062
      %v3099 = vpack.c.b16 %v3063, %v3063
      %v3100 = vpack.c.b16 %v3064, %v3064
      %v3101 = vpack.c.b16 %v3065, %v3065
      %v3102 = vpack.c.b16 %v3066, %v3066
      %v3103 = vpack.c.b16 %v3067, %v3067
      %v3104 = vpack.c.b16 %v3068, %v3068
      %vm3105 = vsmask.f32 5392
      %vm3106 = vmor %vm365, %vm3105
      %v3108 = vshrl.u32 %v3069, 16
      %v3110 = vrot.slane %v3108, 6
      %v3111 = vshll.u32 %v3069, 16
      %v3113 = vrot.slane %v3111, 7
      %v3114 = vor.u32 %v3110, %v3113
      %v3115 = vrot.slane %v3114, 4
      %v3117 = vshrl.u32 %v3070, 16
      %v3119 = vrot.slane %v3117, 6
      %v3120 = vshll.u32 %v3070, 16
      %v3122 = vrot.slane %v3120, 7
      %v3123 = vor.u32 %v3119, %v3122
      %v3124 = vsel %vm3106, %v3115, %v3123
      %v3125 = vrot.slane %v3123, 4
      %v3127 = vshrl.u32 %v3071, 16
      %v3129 = vrot.slane %v3127, 6
      %v3130 = vshll.u32 %v3071, 16
      %v3132 = vrot.slane %v3130, 7
      %v3133 = vor.u32 %v3129, %v3132
      %v3134 = vsel %vm3106, %v3125, %v3133
      %v3135 = vrot.slane %v3133, 4
      %v3137 = vshrl.u32 %v3072, 16
      %v3139 = vrot.slane %v3137, 6
      %v3140 = vshll.u32 %v3072, 16
      %v3142 = vrot.slane %v3140, 7
      %v3143 = vor.u32 %v3139, %v3142
      %v3144 = vsel %vm3106, %v3135, %v3143
      %v3145 = vrot.slane %v3143, 4
      %v3147 = vshrl.u32 %v3073, 16
      %v3149 = vrot.slane %v3147, 6
      %v3150 = vshll.u32 %v3073, 16
      %v3152 = vrot.slane %v3150, 7
      %v3153 = vor.u32 %v3149, %v3152
      %v3154 = vsel %vm3106, %v3145, %v3153
      %v3155 = vrot.slane %v3153, 4
      %v3157 = vshrl.u32 %v3074, 16
      %v3159 = vrot.slane %v3157, 6
      %v3160 = vshll.u32 %v3074, 16
      %v3162 = vrot.slane %v3160, 7
      %v3163 = vor.u32 %v3159, %v3162
      %v3164 = vsel %vm3106, %v3155, %v3163
      %v3165 = vrot.slane %v3163, 4
      %v3167 = vshrl.u32 %v3075, 16
      %v3169 = vrot.slane %v3167, 6
      %v3170 = vshll.u32 %v3075, 16
      %v3172 = vrot.slane %v3170, 7
      %v3173 = vor.u32 %v3169, %v3172
      %v3174 = vsel %vm3106, %v3165, %v3173
      %v3175 = vrot.slane %v3173, 4
      %v3177 = vshrl.u32 %v3076, 16
      %v3179 = vrot.slane %v3177, 6
      %v3180 = vshll.u32 %v3076, 16
      %v3182 = vrot.slane %v3180, 7
      %v3183 = vor.u32 %v3179, %v3182
      %v3184 = vsel %vm3106, %v3175, %v3183
      %v3185 = vrot.slane %v3183, 4
      %v3187 = vshrl.u32 %v3077, 16
      %v3189 = vrot.slane %v3187, 6
      %v3190 = vshll.u32 %v3077, 16
      %v3192 = vrot.slane %v3190, 7
      %v3193 = vor.u32 %v3189, %v3192
      %v3194 = vsel %vm3106, %v3185, %v3193
      %v3195 = vrot.slane %v3193, 4
      %v3197 = vshrl.u32 %v3078, 16
      %v3199 = vrot.slane %v3197, 6
      %v3200 = vshll.u32 %v3078, 16
      %v3202 = vrot.slane %v3200, 7
      %v3203 = vor.u32 %v3199, %v3202
      %v3204 = vsel %vm3106, %v3195, %v3203
      %v3205 = vrot.slane %v3203, 4
      %v3207 = vshrl.u32 %v3079, 16
      %v3209 = vrot.slane %v3207, 6
      %v3210 = vshll.u32 %v3079, 16
      %v3212 = vrot.slane %v3210, 7
      %v3213 = vor.u32 %v3209, %v3212
      %v3214 = vsel %vm3106, %v3205, %v3213
      %v3215 = vrot.slane %v3213, 4
      %v3217 = vshrl.u32 %v3080, 16
      %v3219 = vrot.slane %v3217, 6
      %v3220 = vshll.u32 %v3080, 16
      %v3222 = vrot.slane %v3220, 7
      %v3223 = vor.u32 %v3219, %v3222
      %v3224 = vsel %vm3106, %v3215, %v3223
      %v3225 = vrot.slane %v3223, 4
      %v3227 = vshrl.u32 %v3081, 16
      %v3229 = vrot.slane %v3227, 6
      %v3230 = vshll.u32 %v3081, 16
      %v3232 = vrot.slane %v3230, 7
      %v3233 = vor.u32 %v3229, %v3232
      %v3234 = vsel %vm3106, %v3225, %v3233
      %v3235 = vrot.slane %v3233, 4
      %v3237 = vshrl.u32 %v3082, 16
      %v3239 = vrot.slane %v3237, 6
      %v3240 = vshll.u32 %v3082, 16
      %v3242 = vrot.slane %v3240, 7
      %v3243 = vor.u32 %v3239, %v3242
      %v3244 = vsel %vm3106, %v3235, %v3243
      %v3245 = vrot.slane %v3243, 4
      %v3247 = vshrl.u32 %v3083, 16
      %v3249 = vrot.slane %v3247, 6
      %v3250 = vshll.u32 %v3083, 16
      %v3252 = vrot.slane %v3250, 7
      %v3253 = vor.u32 %v3249, %v3252
      %v3254 = vsel %vm3106, %v3245, %v3253
      %v3255 = vrot.slane %v3253, 4
      %v3257 = vshrl.u32 %v3084, 16
      %v3259 = vrot.slane %v3257, 6
      %v3260 = vshll.u32 %v3084, 16
      %v3262 = vrot.slane %v3260, 7
      %v3263 = vor.u32 %v3259, %v3262
      %v3264 = vsel %vm3106, %v3255, %v3263
      %v3265 = vrot.slane %v3263, 4
      %v3267 = vshrl.u32 %v3085, 16
      %v3269 = vrot.slane %v3267, 6
      %v3270 = vshll.u32 %v3085, 16
      %v3272 = vrot.slane %v3270, 7
      %v3273 = vor.u32 %v3269, %v3272
      %v3274 = vsel %vm3106, %v3265, %v3273
      %v3275 = vrot.slane %v3273, 4
      %v3277 = vshrl.u32 %v3086, 16
      %v3279 = vrot.slane %v3277, 6
      %v3280 = vshll.u32 %v3086, 16
      %v3282 = vrot.slane %v3280, 7
      %v3283 = vor.u32 %v3279, %v3282
      %v3284 = vsel %vm3106, %v3275, %v3283
      %v3285 = vrot.slane %v3283, 4
      %v3287 = vshrl.u32 %v3087, 16
      %v3289 = vrot.slane %v3287, 6
      %v3290 = vshll.u32 %v3087, 16
      %v3292 = vrot.slane %v3290, 7
      %v3293 = vor.u32 %v3289, %v3292
      %v3294 = vsel %vm3106, %v3285, %v3293
      %v3295 = vrot.slane %v3293, 4
      %v3297 = vshrl.u32 %v3088, 16
      %v3299 = vrot.slane %v3297, 6
      %v3300 = vshll.u32 %v3088, 16
      %v3302 = vrot.slane %v3300, 7
      %v3303 = vor.u32 %v3299, %v3302
      %v3304 = vsel %vm3106, %v3295, %v3303
      %v3305 = vrot.slane %v3303, 4
      %v3307 = vshrl.u32 %v3089, 16
      %v3309 = vrot.slane %v3307, 6
      %v3310 = vshll.u32 %v3089, 16
      %v3312 = vrot.slane %v3310, 7
      %v3313 = vor.u32 %v3309, %v3312
      %v3314 = vsel %vm3106, %v3305, %v3313
      %v3315 = vrot.slane %v3313, 4
      %v3317 = vshrl.u32 %v3090, 16
      %v3319 = vrot.slane %v3317, 6
      %v3320 = vshll.u32 %v3090, 16
      %v3322 = vrot.slane %v3320, 7
      %v3323 = vor.u32 %v3319, %v3322
      %v3324 = vsel %vm3106, %v3315, %v3323
      %v3325 = vrot.slane %v3323, 4
      %v3327 = vshrl.u32 %v3091, 16
      %v3329 = vrot.slane %v3327, 6
      %v3330 = vshll.u32 %v3091, 16
      %v3332 = vrot.slane %v3330, 7
      %v3333 = vor.u32 %v3329, %v3332
      %v3334 = vsel %vm3106, %v3325, %v3333
      %v3335 = vrot.slane %v3333, 4
      %v3337 = vshrl.u32 %v3092, 16
      %v3339 = vrot.slane %v3337, 6
      %v3340 = vshll.u32 %v3092, 16
      %v3342 = vrot.slane %v3340, 7
      %v3343 = vor.u32 %v3339, %v3342
      %v3344 = vsel %vm3106, %v3335, %v3343
      %v3345 = vrot.slane %v3343, 4
      %v3347 = vshrl.u32 %v3093, 16
      %v3349 = vrot.slane %v3347, 6
      %v3350 = vshll.u32 %v3093, 16
      %v3352 = vrot.slane %v3350, 7
      %v3353 = vor.u32 %v3349, %v3352
      %v3354 = vsel %vm3106, %v3345, %v3353
      %v3355 = vrot.slane %v3353, 4
      %v3357 = vshrl.u32 %v3094, 16
      %v3359 = vrot.slane %v3357, 6
      %v3360 = vshll.u32 %v3094, 16
      %v3362 = vrot.slane %v3360, 7
      %v3363 = vor.u32 %v3359, %v3362
      %v3364 = vsel %vm3106, %v3355, %v3363
      %v3365 = vrot.slane %v3363, 4
      %v3367 = vshrl.u32 %v3095, 16
      %v3369 = vrot.slane %v3367, 6
      %v3370 = vshll.u32 %v3095, 16
      %v3372 = vrot.slane %v3370, 7
      %v3373 = vor.u32 %v3369, %v3372
      %v3374 = vsel %vm3106, %v3365, %v3373
      %v3375 = vrot.slane %v3373, 4
      %v3377 = vshrl.u32 %v3096, 16
      %v3379 = vrot.slane %v3377, 6
      %v3380 = vshll.u32 %v3096, 16
      %v3382 = vrot.slane %v3380, 7
      %v3383 = vor.u32 %v3379, %v3382
      %v3384 = vsel %vm3106, %v3375, %v3383
      %v3385 = vrot.slane %v3383, 4
      %v3387 = vshrl.u32 %v3097, 16
      %v3389 = vrot.slane %v3387, 6
      %v3390 = vshll.u32 %v3097, 16
      %v3392 = vrot.slane %v3390, 7
      %v3393 = vor.u32 %v3389, %v3392
      %v3394 = vsel %vm3106, %v3385, %v3393
      %v3395 = vrot.slane %v3393, 4
      %v3397 = vshrl.u32 %v3098, 16
      %v3399 = vrot.slane %v3397, 6
      %v3400 = vshll.u32 %v3098, 16
      %v3402 = vrot.slane %v3400, 7
      %v3403 = vor.u32 %v3399, %v3402
      %v3404 = vsel %vm3106, %v3395, %v3403
      %v3405 = vrot.slane %v3403, 4
      %v3407 = vshrl.u32 %v3099, 16
      %v3409 = vrot.slane %v3407, 6
      %v3410 = vshll.u32 %v3099, 16
      %v3412 = vrot.slane %v3410, 7
      %v3413 = vor.u32 %v3409, %v3412
      %v3414 = vsel %vm3106, %v3405, %v3413
      %v3415 = vrot.slane %v3413, 4
      %v3417 = vshrl.u32 %v3100, 16
      %v3419 = vrot.slane %v3417, 6
      %v3420 = vshll.u32 %v3100, 16
      %v3422 = vrot.slane %v3420, 7
      %v3423 = vor.u32 %v3419, %v3422
      %v3424 = vsel %vm3106, %v3415, %v3423
      %v3425 = vrot.slane %v3423, 4
      %v3427 = vshrl.u32 %v3101, 16
      %v3429 = vrot.slane %v3427, 6
      %v3430 = vshll.u32 %v3101, 16
      %v3432 = vrot.slane %v3430, 7
      %v3433 = vor.u32 %v3429, %v3432
      %v3434 = vsel %vm3106, %v3425, %v3433
      %v3435 = vrot.slane %v3433, 4
      %v3437 = vshrl.u32 %v3102, 16
      %v3439 = vrot.slane %v3437, 6
      %v3440 = vshll.u32 %v3102, 16
      %v3442 = vrot.slane %v3440, 7
      %v3443 = vor.u32 %v3439, %v3442
      %v3444 = vsel %vm3106, %v3435, %v3443
      %v3445 = vrot.slane %v3443, 4
      %v3447 = vshrl.u32 %v3103, 16
      %v3449 = vrot.slane %v3447, 6
      %v3450 = vshll.u32 %v3103, 16
      %v3452 = vrot.slane %v3450, 7
      %v3453 = vor.u32 %v3449, %v3452
      %v3454 = vsel %vm3106, %v3445, %v3453
      %v3455 = vrot.slane %v3453, 4
      %v3457 = vshrl.u32 %v3104, 16
      %v3459 = vrot.slane %v3457, 6
      %v3460 = vshll.u32 %v3104, 16
      %v3462 = vrot.slane %v3460, 7
      %v3463 = vor.u32 %v3459, %v3462
      %v3464 = vsel %vm3106, %v3455, %v3463
      %v3465 = vrot.slane %v3463, 4
      %vm3503 = vcmask 60417
      %vm3504 = vsmask.f32 7942
      %vm3505 = vmand %vm3503, %vm3504
      %v3506 = vld [vmem:[#allocation3 + $0x8] sm:$0xe]
      %v3507 = vsel %vm3505, %v3114, %v3506
      %3508 = vst [vmem:[#allocation3 + $0x8] sm:$0xe] %v3507
      %3509 = vst.msk [vmem:[#allocation3 + $0xc] sm:$0xf] %vm377, %v3124
      %3510 = vst.msk [vmem:[#allocation3 + $0x10] sm:$0xf] %vm377, %v3134
      %3511 = vst.msk [vmem:[#allocation3 + $0x14] sm:$0xf] %vm377, %v3144
      %3512 = vst.msk [vmem:[#allocation3 + $0x18] sm:$0xf] %vm377, %v3154
      %3513 = vst.msk [vmem:[#allocation3 + $0x1c] sm:$0xf] %vm377, %v3164
      %3514 = vst.msk [vmem:[#allocation3 + $0x20] sm:$0xf] %vm377, %v3174
      %3515 = vst.msk [vmem:[#allocation3 + $0x24] sm:$0xf] %vm377, %v3184
      %3516 = vst.msk [vmem:[#allocation3 + $0x28] sm:$0xf] %vm377, %v3194
      %3517 = vst.msk [vmem:[#allocation3 + $0x2c] sm:$0xf] %vm377, %v3204
      %3518 = vst.msk [vmem:[#allocation3 + $0x30] sm:$0xf] %vm377, %v3214
      %3519 = vst.msk [vmem:[#allocation3 + $0x34] sm:$0xf] %vm377, %v3224
      %3520 = vst.msk [vmem:[#allocation3 + $0x38] sm:$0xf] %vm377, %v3234
      %3521 = vst.msk [vmem:[#allocation3 + $0x3c] sm:$0xf] %vm377, %v3244
      %3522 = vst.msk [vmem:[#allocation3 + $0x40] sm:$0xf] %vm377, %v3254
      %3523 = vst.msk [vmem:[#allocation3 + $0x44] sm:$0xf] %vm377, %v3264
      %3524 = vst.msk [vmem:[#allocation3 + $0x48] sm:$0xf] %vm377, %v3274
      %3525 = vst.msk [vmem:[#allocation3 + $0x4c] sm:$0xf] %vm377, %v3284
      %3526 = vst.msk [vmem:[#allocation3 + $0x50] sm:$0xf] %vm377, %v3294
      %3527 = vst.msk [vmem:[#allocation3 + $0x54] sm:$0xf] %vm377, %v3304
      %3528 = vst.msk [vmem:[#allocation3 + $0x58] sm:$0xf] %vm377, %v3314
      %3529 = vst.msk [vmem:[#allocation3 + $0x5c] sm:$0xf] %vm377, %v3324
      %3530 = vst.msk [vmem:[#allocation3 + $0x60] sm:$0xf] %vm377, %v3334
      %3531 = vst.msk [vmem:[#allocation3 + $0x64] sm:$0xf] %vm377, %v3344
      %3532 = vst.msk [vmem:[#allocation3 + $0x68] sm:$0xf] %vm377, %v3354
      %3533 = vst.msk [vmem:[#allocation3 + $0x6c] sm:$0xf] %vm377, %v3364
      %3534 = vst.msk [vmem:[#allocation3 + $0x70] sm:$0xf] %vm377, %v3374
      %3535 = vst.msk [vmem:[#allocation3 + $0x74] sm:$0xf] %vm377, %v3384
      %3536 = vst.msk [vmem:[#allocation3 + $0x78] sm:$0xf] %vm377, %v3394
      %3537 = vst.msk [vmem:[#allocation3 + $0x7c] sm:$0xf] %vm377, %v3404
      %3538 = vst.msk [vmem:[#allocation3 + $0x80] sm:$0xf] %vm377, %v3414
      %3539 = vst.msk [vmem:[#allocation3 + $0x84] sm:$0xf] %vm377, %v3424
      %3540 = vst.msk [vmem:[#allocation3 + $0x88] sm:$0xf] %vm377, %v3434
      %3541 = vst.msk [vmem:[#allocation3 + $0x8c] sm:$0xf] %vm377, %v3444
      %3542 = vst.msk [vmem:[#allocation3 + $0x90] sm:$0xf] %vm377, %v3454
      %3543 = vst.msk [vmem:[#allocation3 + $0x94] sm:$0xf] %vm377, %v3464
      %v3544 = vld [vmem:[#allocation3 + $0x98] sm:$0x3]
      %v3545 = vsel %vm381, %v3465, %v3544
      %3546 = vst [vmem:[#allocation3 + $0x98] sm:$0x3] %v3545
      %v3547 = vld [vmem:[#allocation3] sm:$0xf]
      %v3548 = vld [vmem:[#allocation3 + $0x4] sm:$0xf]
      %v3549 = vld [vmem:[#allocation3 + $0x8] sm:$0xf]
      %v3550 = vld [vmem:[#allocation3 + $0xc] sm:$0xf]
      %v3551 = vld [vmem:[#allocation3 + $0x10] sm:$0xf]
      %v3552 = vld [vmem:[#allocation3 + $0x14] sm:$0xf]
      %v3553 = vld [vmem:[#allocation3 + $0x18] sm:$0xf]
      %v3554 = vld [vmem:[#allocation3 + $0x1c] sm:$0xf]
      %v3555 = vld [vmem:[#allocation3 + $0x20] sm:$0xf]
      %v3556 = vld [vmem:[#allocation3 + $0x24] sm:$0xf]
      %v3557 = vld [vmem:[#allocation3 + $0x28] sm:$0xf]
      %v3558 = vld [vmem:[#allocation3 + $0x2c] sm:$0xf]
      %v3559 = vld [vmem:[#allocation3 + $0x30] sm:$0xf]
      %v3560 = vld [vmem:[#allocation3 + $0x34] sm:$0xf]
      %v3561 = vld [vmem:[#allocation3 + $0x38] sm:$0xf]
      %v3562 = vld [vmem:[#allocation3 + $0x3c] sm:$0xf]
      %v3563 = vld [vmem:[#allocation3 + $0x40] sm:$0xf]
      %v3564 = vld [vmem:[#allocation3 + $0x44] sm:$0xf]
      %v3565 = vld [vmem:[#allocation3 + $0x48] sm:$0xf]
      %v3566 = vld [vmem:[#allocation3 + $0x4c] sm:$0xf]
      %v3567 = vld [vmem:[#allocation3 + $0x50] sm:$0xf]
      %v3568 = vld [vmem:[#allocation3 + $0x54] sm:$0xf]
      %v3569 = vld [vmem:[#allocation3 + $0x58] sm:$0xf]
      %v3570 = vld [vmem:[#allocation3 + $0x5c] sm:$0xf]
      %v3571 = vld [vmem:[#allocation3 + $0x60] sm:$0xf]
      %v3572 = vld [vmem:[#allocation3 + $0x64] sm:$0xf]
      %v3573 = vld [vmem:[#allocation3 + $0x68] sm:$0xf]
      %v3574 = vld [vmem:[#allocation3 + $0x6c] sm:$0xf]
      %v3575 = vld [vmem:[#allocation3 + $0x70] sm:$0xf]
      %v3576 = vld [vmem:[#allocation3 + $0x74] sm:$0xf]
      %v3577 = vld [vmem:[#allocation3 + $0x78] sm:$0xf]
      %v3578 = vld [vmem:[#allocation3 + $0x7c] sm:$0xf]
      %v3579 = vld [vmem:[#allocation3 + $0x80] sm:$0xf]
      %v3580 = vld [vmem:[#allocation3 + $0x84] sm:$0xf]
      %v3581 = vld [vmem:[#allocation3 + $0x88] sm:$0xf]
      %v3582 = vld [vmem:[#allocation3 + $0x8c] sm:$0xf]
      %v3583 = vld [vmem:[#allocation3 + $0x90] sm:$0x1]
      %v3584 = vld [vmem:[#allocation3] sm:$0xe]
      %v3585 = vld [vmem:[#allocation3 + $0x8] sm:$0xe]
      %v3586 = vld [vmem:[#allocation3 + $0x90] sm:$0xf]
      %v3587 = vld [vmem:[#allocation3 + $0x94] sm:$0xf]
      %v3588 = vld [vmem:[#allocation3 + $0x98] sm:$0x1]
      %v3589 = vld [vmem:[#allocation3 + $0x98] sm:$0x3]
      %v3590 = vld [vmem:[#allocation3 + $0x8] sm:$0xc]
      %v3591 = vld [vmem:[#allocation3 + $0x10] sm:$0xc]
      %v3592 = vld [vmem:[#allocation3 + $0x98] sm:$0xf]
      %v3593 = vld [vmem:[#allocation3 + $0x9c] sm:$0xf]
      %v3594 = vld [vmem:[#allocation3 + $0xa0] sm:$0x3]
      %v3595 = vld [vmem:[#allocation3 + $0xa0] sm:$0x7]
      %v3596 = vld [vmem:[#allocation3 + $0x10] sm:$0x8]
      %v3633 = vunpack.c.l.b16 %v3547
      %v3634 = vunpack.c.l.b16 %v3548
      %v3635 = vunpack.c.l.b16 %v3549
      %v3636 = vunpack.c.l.b16 %v3550
      %v3637 = vunpack.c.l.b16 %v3551
      %v3638 = vunpack.c.l.b16 %v3552
      %v3639 = vunpack.c.l.b16 %v3553
      %v3640 = vunpack.c.l.b16 %v3554
      %v3641 = vunpack.c.l.b16 %v3555
      %v3642 = vunpack.c.l.b16 %v3556
      %v3643 = vunpack.c.l.b16 %v3557
      %v3644 = vunpack.c.l.b16 %v3558
      %v3645 = vunpack.c.l.b16 %v3559
      %v3646 = vunpack.c.l.b16 %v3560
      %v3647 = vunpack.c.l.b16 %v3561
      %v3648 = vunpack.c.l.b16 %v3562
      %v3649 = vunpack.c.l.b16 %v3563
      %v3650 = vunpack.c.l.b16 %v3564
      %v3651 = vunpack.c.l.b16 %v3565
      %v3652 = vunpack.c.l.b16 %v3566
      %v3653 = vunpack.c.l.b16 %v3567
      %v3654 = vunpack.c.l.b16 %v3568
      %v3655 = vunpack.c.l.b16 %v3569
      %v3656 = vunpack.c.l.b16 %v3570
      %v3657 = vunpack.c.l.b16 %v3571
      %v3658 = vunpack.c.l.b16 %v3572
      %v3659 = vunpack.c.l.b16 %v3573
      %v3660 = vunpack.c.l.b16 %v3574
      %v3661 = vunpack.c.l.b16 %v3575
      %v3662 = vunpack.c.l.b16 %v3576
      %v3663 = vunpack.c.l.b16 %v3577
      %v3664 = vunpack.c.l.b16 %v3578
      %v3665 = vunpack.c.l.b16 %v3579
      %v3666 = vunpack.c.l.b16 %v3580
      %v3667 = vunpack.c.l.b16 %v3581
      %v3668 = vunpack.c.l.b16 %v3582
      %v3669 = vpack.c.b16 %v3634, %v3633
      %v3670 = vpack.c.b16 %v3636, %v3635
      %v3671 = vpack.c.b16 %v3638, %v3637
      %v3672 = vpack.c.b16 %v3640, %v3639
      %v3673 = vpack.c.b16 %v3642, %v3641
      %v3674 = vpack.c.b16 %v3644, %v3643
      %v3675 = vpack.c.b16 %v3646, %v3645
      %v3676 = vpack.c.b16 %v3648, %v3647
      %v3677 = vpack.c.b16 %v3650, %v3649
      %v3678 = vpack.c.b16 %v3652, %v3651
      %v3679 = vpack.c.b16 %v3654, %v3653
      %v3680 = vpack.c.b16 %v3656, %v3655
      %v3681 = vpack.c.b16 %v3658, %v3657
      %v3682 = vpack.c.b16 %v3660, %v3659
      %v3683 = vpack.c.b16 %v3662, %v3661
      %v3684 = vpack.c.b16 %v3664, %v3663
      %v3685 = vpack.c.b16 %v3666, %v3665
      %v3686 = vpack.c.b16 %v3668, %v3667
      %v3688 = vunpack.c.l.b16 %v3583
      %v3689 = vpack.c.b16 %v3688, %v3688
      %v3691 = vshrl.u32 %v3669, 16
      %v3693 = vshll.u32 %v3669, 16
      %v3695 = vrot.slane %v3693, 1
      %v3696 = vor.u32 %v3691, %v3695
      %v3698 = vshll.u32 %v3670, 16
      %v3700 = vrot.slane %v3698, 1
      %v3701 = vsel %vm874, %v3696, %v3700
      %v3702 = vshrl.u32 %v3670, 16
      %v3704 = vor.u32 %v3702, %v3700
      %v3706 = vshll.u32 %v3671, 16
      %v3708 = vrot.slane %v3706, 1
      %v3709 = vsel %vm874, %v3704, %v3708
      %v3710 = vshrl.u32 %v3671, 16
      %v3712 = vor.u32 %v3710, %v3708
      %v3714 = vshll.u32 %v3672, 16
      %v3716 = vrot.slane %v3714, 1
      %v3717 = vsel %vm874, %v3712, %v3716
      %v3718 = vshrl.u32 %v3672, 16
      %v3720 = vor.u32 %v3718, %v3716
      %v3722 = vshll.u32 %v3673, 16
      %v3724 = vrot.slane %v3722, 1
      %v3725 = vsel %vm874, %v3720, %v3724
      %v3726 = vshrl.u32 %v3673, 16
      %v3728 = vor.u32 %v3726, %v3724
      %v3730 = vshll.u32 %v3674, 16
      %v3732 = vrot.slane %v3730, 1
      %v3733 = vsel %vm874, %v3728, %v3732
      %v3734 = vshrl.u32 %v3674, 16
      %v3736 = vor.u32 %v3734, %v3732
      %v3738 = vshll.u32 %v3675, 16
      %v3740 = vrot.slane %v3738, 1
      %v3741 = vsel %vm874, %v3736, %v3740
      %v3742 = vshrl.u32 %v3675, 16
      %v3744 = vor.u32 %v3742, %v3740
      %v3746 = vshll.u32 %v3676, 16
      %v3748 = vrot.slane %v3746, 1
      %v3749 = vsel %vm874, %v3744, %v3748
      %v3750 = vshrl.u32 %v3676, 16
      %v3752 = vor.u32 %v3750, %v3748
      %v3754 = vshll.u32 %v3677, 16
      %v3756 = vrot.slane %v3754, 1
      %v3757 = vsel %vm874, %v3752, %v3756
      %v3758 = vshrl.u32 %v3677, 16
      %v3760 = vor.u32 %v3758, %v3756
      %v3762 = vshll.u32 %v3678, 16
      %v3764 = vrot.slane %v3762, 1
      %v3765 = vsel %vm874, %v3760, %v3764
      %v3766 = vshrl.u32 %v3678, 16
      %v3768 = vor.u32 %v3766, %v3764
      %v3770 = vshll.u32 %v3679, 16
      %v3772 = vrot.slane %v3770, 1
      %v3773 = vsel %vm874, %v3768, %v3772
      %v3774 = vshrl.u32 %v3679, 16
      %v3776 = vor.u32 %v3774, %v3772
      %v3778 = vshll.u32 %v3680, 16
      %v3780 = vrot.slane %v3778, 1
      %v3781 = vsel %vm874, %v3776, %v3780
      %v3782 = vshrl.u32 %v3680, 16
      %v3784 = vor.u32 %v3782, %v3780
      %v3786 = vshll.u32 %v3681, 16
      %v3788 = vrot.slane %v3786, 1
      %v3789 = vsel %vm874, %v3784, %v3788
      %v3790 = vshrl.u32 %v3681, 16
      %v3792 = vor.u32 %v3790, %v3788
      %v3794 = vshll.u32 %v3682, 16
      %v3796 = vrot.slane %v3794, 1
      %v3797 = vsel %vm874, %v3792, %v3796
      %v3798 = vshrl.u32 %v3682, 16
      %v3800 = vor.u32 %v3798, %v3796
      %v3802 = vshll.u32 %v3683, 16
      %v3804 = vrot.slane %v3802, 1
      %v3805 = vsel %vm874, %v3800, %v3804
      %v3806 = vshrl.u32 %v3683, 16
      %v3808 = vor.u32 %v3806, %v3804
      %v3810 = vshll.u32 %v3684, 16
      %v3812 = vrot.slane %v3810, 1
      %v3813 = vsel %vm874, %v3808, %v3812
      %v3814 = vshrl.u32 %v3684, 16
      %v3816 = vor.u32 %v3814, %v3812
      %v3818 = vshll.u32 %v3685, 16
      %v3820 = vrot.slane %v3818, 1
      %v3821 = vsel %vm874, %v3816, %v3820
      %v3822 = vshrl.u32 %v3685, 16
      %v3824 = vor.u32 %v3822, %v3820
      %v3826 = vshll.u32 %v3686, 16
      %v3828 = vrot.slane %v3826, 1
      %v3829 = vsel %vm874, %v3824, %v3828
      %v3830 = vshrl.u32 %v3686, 16
      %v3832 = vor.u32 %v3830, %v3828
      %v3834 = vshll.u32 %v3689, 16
      %v3836 = vrot.slane %v3834, 1
      %v3837 = vsel %vm874, %v3832, %v3836
      %3838 = vrot.lane.b32.xlu0 %v3701, 8
      %v3839 = vpop.permute.xlu0 %3838
      %3840 = vrot.lane.b32.xlu0 %v3709, 8
      %v3841 = vpop.permute.xlu0 %3840
      %3842 = vrot.lane.b32.xlu0 %v3717, 8
      %v3843 = vpop.permute.xlu0 %3842
      %3844 = vrot.lane.b32.xlu0 %v3725, 8
      %v3845 = vpop.permute.xlu0 %3844
      %3846 = vrot.lane.b32.xlu0 %v3733, 8
      %v3847 = vpop.permute.xlu0 %3846
      %3848 = vrot.lane.b32.xlu0 %v3741, 8
      %v3849 = vpop.permute.xlu0 %3848
      %3850 = vrot.lane.b32.xlu0 %v3749, 8
      %v3851 = vpop.permute.xlu0 %3850
      %3852 = vrot.lane.b32.xlu0 %v3757, 8
      %v3853 = vpop.permute.xlu0 %3852
      %3854 = vrot.lane.b32.xlu0 %v3765, 8
      %v3855 = vpop.permute.xlu0 %3854
      %3856 = vrot.lane.b32.xlu0 %v3773, 8
      %v3857 = vpop.permute.xlu0 %3856
      %3858 = vrot.lane.b32.xlu0 %v3781, 8
      %v3859 = vpop.permute.xlu0 %3858
      %3860 = vrot.lane.b32.xlu0 %v3789, 8
      %v3861 = vpop.permute.xlu0 %3860
      %3862 = vrot.lane.b32.xlu0 %v3797, 8
      %v3863 = vpop.permute.xlu0 %3862
      %3864 = vrot.lane.b32.xlu0 %v3805, 8
      %v3865 = vpop.permute.xlu0 %3864
      %3866 = vrot.lane.b32.xlu0 %v3813, 8
      %v3867 = vpop.permute.xlu0 %3866
      %3868 = vrot.lane.b32.xlu0 %v3821, 8
      %v3869 = vpop.permute.xlu0 %3868
      %3870 = vrot.lane.b32.xlu0 %v3829, 8
      %v3871 = vpop.permute.xlu0 %3870
      %3872 = vrot.lane.b32.xlu0 %v3837, 8
      %v3873 = vpop.permute.xlu0 %3872
      %v3875 = vunpack.c.l.b16 %v3584
      %v3876 = vpack.c.b16 %v3634, %v3875
      %v3877 = vrot.slane %v3876, 1
      %v3878 = vrot.slane %v3670, 1
      %v3879 = vsel %vm1062, %v3877, %v3878
      %v3880 = vrot.slane %v3671, 1
      %v3881 = vsel %vm1062, %v3878, %v3880
      %v3882 = vrot.slane %v3672, 1
      %v3883 = vsel %vm1062, %v3880, %v3882
      %v3884 = vrot.slane %v3673, 1
      %v3885 = vsel %vm1062, %v3882, %v3884
      %v3886 = vrot.slane %v3674, 1
      %v3887 = vsel %vm1062, %v3884, %v3886
      %v3888 = vrot.slane %v3675, 1
      %v3889 = vsel %vm1062, %v3886, %v3888
      %v3890 = vrot.slane %v3676, 1
      %v3891 = vsel %vm1062, %v3888, %v3890
      %v3892 = vrot.slane %v3677, 1
      %v3893 = vsel %vm1062, %v3890, %v3892
      %v3894 = vrot.slane %v3678, 1
      %v3895 = vsel %vm1062, %v3892, %v3894
      %v3896 = vrot.slane %v3679, 1
      %v3897 = vsel %vm1062, %v3894, %v3896
      %v3898 = vrot.slane %v3680, 1
      %v3899 = vsel %vm1062, %v3896, %v3898
      %v3900 = vrot.slane %v3681, 1
      %v3901 = vsel %vm1062, %v3898, %v3900
      %v3902 = vrot.slane %v3682, 1
      %v3903 = vsel %vm1062, %v3900, %v3902
      %v3904 = vrot.slane %v3683, 1
      %v3905 = vsel %vm1062, %v3902, %v3904
      %v3906 = vrot.slane %v3684, 1
      %v3907 = vsel %vm1062, %v3904, %v3906
      %v3908 = vrot.slane %v3685, 1
      %v3909 = vsel %vm1062, %v3906, %v3908
      %v3910 = vrot.slane %v3686, 1
      %v3911 = vsel %vm1062, %v3908, %v3910
      %v3912 = vrot.slane %v3689, 1
      %v3913 = vsel %vm1062, %v3910, %v3912
      %3914 = vrot.lane.b32.xlu0 %v3879, 16
      %v3915 = vpop.permute.xlu0 %3914
      %3916 = vrot.lane.b32.xlu0 %v3881, 16
      %v3917 = vpop.permute.xlu0 %3916
      %3918 = vrot.lane.b32.xlu0 %v3883, 16
      %v3919 = vpop.permute.xlu0 %3918
      %3920 = vrot.lane.b32.xlu0 %v3885, 16
      %v3921 = vpop.permute.xlu0 %3920
      %3922 = vrot.lane.b32.xlu0 %v3887, 16
      %v3923 = vpop.permute.xlu0 %3922
      %3924 = vrot.lane.b32.xlu0 %v3889, 16
      %v3925 = vpop.permute.xlu0 %3924
      %3926 = vrot.lane.b32.xlu0 %v3891, 16
      %v3927 = vpop.permute.xlu0 %3926
      %3928 = vrot.lane.b32.xlu0 %v3893, 16
      %v3929 = vpop.permute.xlu0 %3928
      %3930 = vrot.lane.b32.xlu0 %v3895, 16
      %v3931 = vpop.permute.xlu0 %3930
      %3932 = vrot.lane.b32.xlu0 %v3897, 16
      %v3933 = vpop.permute.xlu0 %3932
      %3934 = vrot.lane.b32.xlu0 %v3899, 16
      %v3935 = vpop.permute.xlu0 %3934
      %3936 = vrot.lane.b32.xlu0 %v3901, 16
      %v3937 = vpop.permute.xlu0 %3936
      %3938 = vrot.lane.b32.xlu0 %v3903, 16
      %v3939 = vpop.permute.xlu0 %3938
      %3940 = vrot.lane.b32.xlu0 %v3905, 16
      %v3941 = vpop.permute.xlu0 %3940
      %3942 = vrot.lane.b32.xlu0 %v3907, 16
      %v3943 = vpop.permute.xlu0 %3942
      %3944 = vrot.lane.b32.xlu0 %v3909, 16
      %v3945 = vpop.permute.xlu0 %3944
      %3946 = vrot.lane.b32.xlu0 %v3911, 16
      %v3947 = vpop.permute.xlu0 %3946
      %3948 = vrot.lane.b32.xlu0 %v3913, 16
      %v3949 = vpop.permute.xlu0 %3948
      %v3954 = vunpack.c.l.b16 %v3585
      %v3955 = vunpack.c.l.b16 %v3586
      %v3956 = vunpack.c.l.b16 %v3587
      %v3957 = vunpack.c.l.b16 %v3588
      %v3958 = vpack.c.b16 %v3636, %v3954
      %v3959 = vpack.c.b16 %v3956, %v3955
      %v3960 = vpack.c.b16 %v3957, %v3957
      %v3961 = vrot.slane %v3958, 1
      %v3962 = vsel %vm1062, %v3961, %v3880
      %v3963 = vrot.slane %v3959, 1
      %v3964 = vsel %vm1062, %v3910, %v3963
      %v3965 = vrot.slane %v3960, 1
      %v3966 = vsel %vm1062, %v3963, %v3965
      %3967 = vrot.lane.b32.xlu0 %v3962, 24
      %v3968 = vpop.permute.xlu0 %3967
      %3969 = vrot.lane.b32.xlu0 %v3883, 24
      %v3970 = vpop.permute.xlu0 %3969
      %3971 = vrot.lane.b32.xlu0 %v3885, 24
      %v3972 = vpop.permute.xlu0 %3971
      %3973 = vrot.lane.b32.xlu0 %v3887, 24
      %v3974 = vpop.permute.xlu0 %3973
      %3975 = vrot.lane.b32.xlu0 %v3889, 24
      %v3976 = vpop.permute.xlu0 %3975
      %3977 = vrot.lane.b32.xlu0 %v3891, 24
      %v3978 = vpop.permute.xlu0 %3977
      %3979 = vrot.lane.b32.xlu0 %v3893, 24
      %v3980 = vpop.permute.xlu0 %3979
      %3981 = vrot.lane.b32.xlu0 %v3895, 24
      %v3982 = vpop.permute.xlu0 %3981
      %3983 = vrot.lane.b32.xlu0 %v3897, 24
      %v3984 = vpop.permute.xlu0 %3983
      %3985 = vrot.lane.b32.xlu0 %v3899, 24
      %v3986 = vpop.permute.xlu0 %3985
      %3987 = vrot.lane.b32.xlu0 %v3901, 24
      %v3988 = vpop.permute.xlu0 %3987
      %3989 = vrot.lane.b32.xlu0 %v3903, 24
      %v3990 = vpop.permute.xlu0 %3989
      %3991 = vrot.lane.b32.xlu0 %v3905, 24
      %v3992 = vpop.permute.xlu0 %3991
      %3993 = vrot.lane.b32.xlu0 %v3907, 24
      %v3994 = vpop.permute.xlu0 %3993
      %3995 = vrot.lane.b32.xlu0 %v3909, 24
      %v3996 = vpop.permute.xlu0 %3995
      %3997 = vrot.lane.b32.xlu0 %v3911, 24
      %v3998 = vpop.permute.xlu0 %3997
      %3999 = vrot.lane.b32.xlu0 %v3964, 24
      %v4000 = vpop.permute.xlu0 %3999
      %4001 = vrot.lane.b32.xlu0 %v3966, 24
      %v4002 = vpop.permute.xlu0 %4001
      %v4004 = vunpack.c.l.b16 %v3589
      %v4005 = vpack.c.b16 %v4004, %v4004
      %v4007 = vshrl.u32 %v3958, 16
      %v4009 = vrot.slane %v4007, 1
      %v4010 = vshll.u32 %v3958, 16
      %v4012 = vrot.slane %v4010, 2
      %v4013 = vor.u32 %v4009, %v4012
      %v4014 = vrot.slane %v3710, 1
      %v4015 = vrot.slane %v3706, 2
      %v4016 = vor.u32 %v4014, %v4015
      %v4017 = vsel %vm1192, %v4013, %v4016
      %v4018 = vrot.slane %v3718, 1
      %v4019 = vrot.slane %v3714, 2
      %v4020 = vor.u32 %v4018, %v4019
      %v4021 = vsel %vm1192, %v4016, %v4020
      %v4022 = vrot.slane %v3726, 1
      %v4023 = vrot.slane %v3722, 2
      %v4024 = vor.u32 %v4022, %v4023
      %v4025 = vsel %vm1192, %v4020, %v4024
      %v4026 = vrot.slane %v3734, 1
      %v4027 = vrot.slane %v3730, 2
      %v4028 = vor.u32 %v4026, %v4027
      %v4029 = vsel %vm1192, %v4024, %v4028
      %v4030 = vrot.slane %v3742, 1
      %v4031 = vrot.slane %v3738, 2
      %v4032 = vor.u32 %v4030, %v4031
      %v4033 = vsel %vm1192, %v4028, %v4032
      %v4034 = vrot.slane %v3750, 1
      %v4035 = vrot.slane %v3746, 2
      %v4036 = vor.u32 %v4034, %v4035
      %v4037 = vsel %vm1192, %v4032, %v4036
      %v4038 = vrot.slane %v3758, 1
      %v4039 = vrot.slane %v3754, 2
      %v4040 = vor.u32 %v4038, %v4039
      %v4041 = vsel %vm1192, %v4036, %v4040
      %v4042 = vrot.slane %v3766, 1
      %v4043 = vrot.slane %v3762, 2
      %v4044 = vor.u32 %v4042, %v4043
      %v4045 = vsel %vm1192, %v4040, %v4044
      %v4046 = vrot.slane %v3774, 1
      %v4047 = vrot.slane %v3770, 2
      %v4048 = vor.u32 %v4046, %v4047
      %v4049 = vsel %vm1192, %v4044, %v4048
      %v4050 = vrot.slane %v3782, 1
      %v4051 = vrot.slane %v3778, 2
      %v4052 = vor.u32 %v4050, %v4051
      %v4053 = vsel %vm1192, %v4048, %v4052
      %v4054 = vrot.slane %v3790, 1
      %v4055 = vrot.slane %v3786, 2
      %v4056 = vor.u32 %v4054, %v4055
      %v4057 = vsel %vm1192, %v4052, %v4056
      %v4058 = vrot.slane %v3798, 1
      %v4059 = vrot.slane %v3794, 2
      %v4060 = vor.u32 %v4058, %v4059
      %v4061 = vsel %vm1192, %v4056, %v4060
      %v4062 = vrot.slane %v3806, 1
      %v4063 = vrot.slane %v3802, 2
      %v4064 = vor.u32 %v4062, %v4063
      %v4065 = vsel %vm1192, %v4060, %v4064
      %v4066 = vrot.slane %v3814, 1
      %v4067 = vrot.slane %v3810, 2
      %v4068 = vor.u32 %v4066, %v4067
      %v4069 = vsel %vm1192, %v4064, %v4068
      %v4070 = vrot.slane %v3822, 1
      %v4071 = vrot.slane %v3818, 2
      %v4072 = vor.u32 %v4070, %v4071
      %v4073 = vsel %vm1192, %v4068, %v4072
      %v4074 = vrot.slane %v3830, 1
      %v4075 = vrot.slane %v3826, 2
      %v4076 = vor.u32 %v4074, %v4075
      %v4077 = vsel %vm1192, %v4072, %v4076
      %v4079 = vshrl.u32 %v3959, 16
      %v4081 = vrot.slane %v4079, 1
      %v4082 = vshll.u32 %v3959, 16
      %v4084 = vrot.slane %v4082, 2
      %v4085 = vor.u32 %v4081, %v4084
      %v4086 = vsel %vm1192, %v4076, %v4085
      %v4088 = vshrl.u32 %v4005, 16
      %v4090 = vrot.slane %v4088, 1
      %v4091 = vshll.u32 %v4005, 16
      %v4093 = vrot.slane %v4091, 2
      %v4094 = vor.u32 %v4090, %v4093
      %v4095 = vsel %vm1192, %v4085, %v4094
      %4096 = vrot.lane.b32.xlu0 %v4017, 32
      %v4097 = vpop.permute.xlu0 %4096
      %4098 = vrot.lane.b32.xlu0 %v4021, 32
      %v4099 = vpop.permute.xlu0 %4098
      %4100 = vrot.lane.b32.xlu0 %v4025, 32
      %v4101 = vpop.permute.xlu0 %4100
      %4102 = vrot.lane.b32.xlu0 %v4029, 32
      %v4103 = vpop.permute.xlu0 %4102
      %4104 = vrot.lane.b32.xlu0 %v4033, 32
      %v4105 = vpop.permute.xlu0 %4104
      %4106 = vrot.lane.b32.xlu0 %v4037, 32
      %v4107 = vpop.permute.xlu0 %4106
      %4108 = vrot.lane.b32.xlu0 %v4041, 32
      %v4109 = vpop.permute.xlu0 %4108
      %4110 = vrot.lane.b32.xlu0 %v4045, 32
      %v4111 = vpop.permute.xlu0 %4110
      %4112 = vrot.lane.b32.xlu0 %v4049, 32
      %v4113 = vpop.permute.xlu0 %4112
      %4114 = vrot.lane.b32.xlu0 %v4053, 32
      %v4115 = vpop.permute.xlu0 %4114
      %4116 = vrot.lane.b32.xlu0 %v4057, 32
      %v4117 = vpop.permute.xlu0 %4116
      %4118 = vrot.lane.b32.xlu0 %v4061, 32
      %v4119 = vpop.permute.xlu0 %4118
      %4120 = vrot.lane.b32.xlu0 %v4065, 32
      %v4121 = vpop.permute.xlu0 %4120
      %4122 = vrot.lane.b32.xlu0 %v4069, 32
      %v4123 = vpop.permute.xlu0 %4122
      %4124 = vrot.lane.b32.xlu0 %v4073, 32
      %v4125 = vpop.permute.xlu0 %4124
      %4126 = vrot.lane.b32.xlu0 %v4077, 32
      %v4127 = vpop.permute.xlu0 %4126
      %4128 = vrot.lane.b32.xlu0 %v4086, 32
      %v4129 = vpop.permute.xlu0 %4128
      %4130 = vrot.lane.b32.xlu0 %v4095, 32
      %v4131 = vpop.permute.xlu0 %4130
      %v4133 = vunpack.c.l.b16 %v3590
      %v4134 = vpack.c.b16 %v3636, %v4133
      %v4135 = vrot.slane %v4134, 2
      %v4136 = vrot.slane %v3671, 2
      %v4137 = vsel %vm1322, %v4135, %v4136
      %v4138 = vrot.slane %v3672, 2
      %v4139 = vsel %vm1322, %v4136, %v4138
      %v4140 = vrot.slane %v3673, 2
      %v4141 = vsel %vm1322, %v4138, %v4140
      %v4142 = vrot.slane %v3674, 2
      %v4143 = vsel %vm1322, %v4140, %v4142
      %v4144 = vrot.slane %v3675, 2
      %v4145 = vsel %vm1322, %v4142, %v4144
      %v4146 = vrot.slane %v3676, 2
      %v4147 = vsel %vm1322, %v4144, %v4146
      %v4148 = vrot.slane %v3677, 2
      %v4149 = vsel %vm1322, %v4146, %v4148
      %v4150 = vrot.slane %v3678, 2
      %v4151 = vsel %vm1322, %v4148, %v4150
      %v4152 = vrot.slane %v3679, 2
      %v4153 = vsel %vm1322, %v4150, %v4152
      %v4154 = vrot.slane %v3680, 2
      %v4155 = vsel %vm1322, %v4152, %v4154
      %v4156 = vrot.slane %v3681, 2
      %v4157 = vsel %vm1322, %v4154, %v4156
      %v4158 = vrot.slane %v3682, 2
      %v4159 = vsel %vm1322, %v4156, %v4158
      %v4160 = vrot.slane %v3683, 2
      %v4161 = vsel %vm1322, %v4158, %v4160
      %v4162 = vrot.slane %v3684, 2
      %v4163 = vsel %vm1322, %v4160, %v4162
      %v4164 = vrot.slane %v3685, 2
      %v4165 = vsel %vm1322, %v4162, %v4164
      %v4166 = vrot.slane %v3686, 2
      %v4167 = vsel %vm1322, %v4164, %v4166
      %v4168 = vrot.slane %v3959, 2
      %v4169 = vsel %vm1322, %v4166, %v4168
      %v4170 = vrot.slane %v4005, 2
      %v4171 = vsel %vm1322, %v4168, %v4170
      %4172 = vrot.lane.b32.xlu0 %v4137, 40
      %v4173 = vpop.permute.xlu0 %4172
      %4174 = vrot.lane.b32.xlu0 %v4139, 40
      %v4175 = vpop.permute.xlu0 %4174
      %4176 = vrot.lane.b32.xlu0 %v4141, 40
      %v4177 = vpop.permute.xlu0 %4176
      %4178 = vrot.lane.b32.xlu0 %v4143, 40
      %v4179 = vpop.permute.xlu0 %4178
      %4180 = vrot.lane.b32.xlu0 %v4145, 40
      %v4181 = vpop.permute.xlu0 %4180
      %4182 = vrot.lane.b32.xlu0 %v4147, 40
      %v4183 = vpop.permute.xlu0 %4182
      %4184 = vrot.lane.b32.xlu0 %v4149, 40
      %v4185 = vpop.permute.xlu0 %4184
      %4186 = vrot.lane.b32.xlu0 %v4151, 40
      %v4187 = vpop.permute.xlu0 %4186
      %4188 = vrot.lane.b32.xlu0 %v4153, 40
      %v4189 = vpop.permute.xlu0 %4188
      %4190 = vrot.lane.b32.xlu0 %v4155, 40
      %v4191 = vpop.permute.xlu0 %4190
      %4192 = vrot.lane.b32.xlu0 %v4157, 40
      %v4193 = vpop.permute.xlu0 %4192
      %4194 = vrot.lane.b32.xlu0 %v4159, 40
      %v4195 = vpop.permute.xlu0 %4194
      %4196 = vrot.lane.b32.xlu0 %v4161, 40
      %v4197 = vpop.permute.xlu0 %4196
      %4198 = vrot.lane.b32.xlu0 %v4163, 40
      %v4199 = vpop.permute.xlu0 %4198
      %4200 = vrot.lane.b32.xlu0 %v4165, 40
      %v4201 = vpop.permute.xlu0 %4200
      %4202 = vrot.lane.b32.xlu0 %v4167, 40
      %v4203 = vpop.permute.xlu0 %4202
      %4204 = vrot.lane.b32.xlu0 %v4169, 40
      %v4205 = vpop.permute.xlu0 %4204
      %4206 = vrot.lane.b32.xlu0 %v4171, 40
      %v4207 = vpop.permute.xlu0 %4206
      %v4212 = vunpack.c.l.b16 %v3591
      %v4213 = vunpack.c.l.b16 %v3592
      %v4214 = vunpack.c.l.b16 %v3593
      %v4215 = vunpack.c.l.b16 %v3594
      %v4216 = vpack.c.b16 %v3638, %v4212
      %v4217 = vpack.c.b16 %v4214, %v4213
      %v4218 = vpack.c.b16 %v4215, %v4215
      %v4219 = vrot.slane %v4216, 2
      %v4220 = vsel %vm1322, %v4219, %v4138
      %v4221 = vrot.slane %v4217, 2
      %v4222 = vsel %vm1322, %v4168, %v4221
      %v4223 = vrot.slane %v4218, 2
      %v4224 = vsel %vm1322, %v4221, %v4223
      %4225 = vrot.lane.b32.xlu0 %v4220, 48
      %v4226 = vpop.permute.xlu0 %4225
      %4227 = vrot.lane.b32.xlu0 %v4141, 48
      %v4228 = vpop.permute.xlu0 %4227
      %4229 = vrot.lane.b32.xlu0 %v4143, 48
      %v4230 = vpop.permute.xlu0 %4229
      %4231 = vrot.lane.b32.xlu0 %v4145, 48
      %v4232 = vpop.permute.xlu0 %4231
      %4233 = vrot.lane.b32.xlu0 %v4147, 48
      %v4234 = vpop.permute.xlu0 %4233
      %4235 = vrot.lane.b32.xlu0 %v4149, 48
      %v4236 = vpop.permute.xlu0 %4235
      %4237 = vrot.lane.b32.xlu0 %v4151, 48
      %v4238 = vpop.permute.xlu0 %4237
      %4239 = vrot.lane.b32.xlu0 %v4153, 48
      %v4240 = vpop.permute.xlu0 %4239
      %4241 = vrot.lane.b32.xlu0 %v4155, 48
      %v4242 = vpop.permute.xlu0 %4241
      %4243 = vrot.lane.b32.xlu0 %v4157, 48
      %v4244 = vpop.permute.xlu0 %4243
      %4245 = vrot.lane.b32.xlu0 %v4159, 48
      %v4246 = vpop.permute.xlu0 %4245
      %4247 = vrot.lane.b32.xlu0 %v4161, 48
      %v4248 = vpop.permute.xlu0 %4247
      %4249 = vrot.lane.b32.xlu0 %v4163, 48
      %v4250 = vpop.permute.xlu0 %4249
      %4251 = vrot.lane.b32.xlu0 %v4165, 48
      %v4252 = vpop.permute.xlu0 %4251
      %4253 = vrot.lane.b32.xlu0 %v4167, 48
      %v4254 = vpop.permute.xlu0 %4253
      %4255 = vrot.lane.b32.xlu0 %v4169, 48
      %v4256 = vpop.permute.xlu0 %4255
      %4257 = vrot.lane.b32.xlu0 %v4222, 48
      %v4258 = vpop.permute.xlu0 %4257
      %4259 = vrot.lane.b32.xlu0 %v4224, 48
      %v4260 = vpop.permute.xlu0 %4259
      %v4262 = vunpack.c.l.b16 %v3595
      %v4263 = vpack.c.b16 %v4262, %v4262
      %v4265 = vshrl.u32 %v4216, 16
      %v4267 = vrot.slane %v4265, 2
      %v4268 = vshll.u32 %v4216, 16
      %v4270 = vrot.slane %v4268, 3
      %v4271 = vor.u32 %v4267, %v4270
      %v4272 = vrot.slane %v3718, 2
      %v4273 = vrot.slane %v3714, 3
      %v4274 = vor.u32 %v4272, %v4273
      %v4275 = vsel %vm1452, %v4271, %v4274
      %v4276 = vrot.slane %v3726, 2
      %v4277 = vrot.slane %v3722, 3
      %v4278 = vor.u32 %v4276, %v4277
      %v4279 = vsel %vm1452, %v4274, %v4278
      %v4280 = vrot.slane %v3734, 2
      %v4281 = vrot.slane %v3730, 3
      %v4282 = vor.u32 %v4280, %v4281
      %v4283 = vsel %vm1452, %v4278, %v4282
      %v4284 = vrot.slane %v3742, 2
      %v4285 = vrot.slane %v3738, 3
      %v4286 = vor.u32 %v4284, %v4285
      %v4287 = vsel %vm1452, %v4282, %v4286
      %v4288 = vrot.slane %v3750, 2
      %v4289 = vrot.slane %v3746, 3
      %v4290 = vor.u32 %v4288, %v4289
      %v4291 = vsel %vm1452, %v4286, %v4290
      %v4292 = vrot.slane %v3758, 2
      %v4293 = vrot.slane %v3754, 3
      %v4294 = vor.u32 %v4292, %v4293
      %v4295 = vsel %vm1452, %v4290, %v4294
      %v4296 = vrot.slane %v3766, 2
      %v4297 = vrot.slane %v3762, 3
      %v4298 = vor.u32 %v4296, %v4297
      %v4299 = vsel %vm1452, %v4294, %v4298
      %v4300 = vrot.slane %v3774, 2
      %v4301 = vrot.slane %v3770, 3
      %v4302 = vor.u32 %v4300, %v4301
      %v4303 = vsel %vm1452, %v4298, %v4302
      %v4304 = vrot.slane %v3782, 2
      %v4305 = vrot.slane %v3778, 3
      %v4306 = vor.u32 %v4304, %v4305
      %v4307 = vsel %vm1452, %v4302, %v4306
      %v4308 = vrot.slane %v3790, 2
      %v4309 = vrot.slane %v3786, 3
      %v4310 = vor.u32 %v4308, %v4309
      %v4311 = vsel %vm1452, %v4306, %v4310
      %v4312 = vrot.slane %v3798, 2
      %v4313 = vrot.slane %v3794, 3
      %v4314 = vor.u32 %v4312, %v4313
      %v4315 = vsel %vm1452, %v4310, %v4314
      %v4316 = vrot.slane %v3806, 2
      %v4317 = vrot.slane %v3802, 3
      %v4318 = vor.u32 %v4316, %v4317
      %v4319 = vsel %vm1452, %v4314, %v4318
      %v4320 = vrot.slane %v3814, 2
      %v4321 = vrot.slane %v3810, 3
      %v4322 = vor.u32 %v4320, %v4321
      %v4323 = vsel %vm1452, %v4318, %v4322
      %v4324 = vrot.slane %v3822, 2
      %v4325 = vrot.slane %v3818, 3
      %v4326 = vor.u32 %v4324, %v4325
      %v4327 = vsel %vm1452, %v4322, %v4326
      %v4328 = vrot.slane %v3830, 2
      %v4329 = vrot.slane %v3826, 3
      %v4330 = vor.u32 %v4328, %v4329
      %v4331 = vsel %vm1452, %v4326, %v4330
      %v4332 = vrot.slane %v4079, 2
      %v4333 = vrot.slane %v4082, 3
      %v4334 = vor.u32 %v4332, %v4333
      %v4335 = vsel %vm1452, %v4330, %v4334
      %v4337 = vshrl.u32 %v4217, 16
      %v4339 = vrot.slane %v4337, 2
      %v4340 = vshll.u32 %v4217, 16
      %v4342 = vrot.slane %v4340, 3
      %v4343 = vor.u32 %v4339, %v4342
      %v4344 = vsel %vm1452, %v4334, %v4343
      %v4346 = vshrl.u32 %v4263, 16
      %v4348 = vrot.slane %v4346, 2
      %v4349 = vshll.u32 %v4263, 16
      %v4351 = vrot.slane %v4349, 3
      %v4352 = vor.u32 %v4348, %v4351
      %v4353 = vsel %vm1452, %v4343, %v4352
      %4354 = vrot.lane.b32.xlu0 %v4275, 56
      %v4355 = vpop.permute.xlu0 %4354
      %4356 = vrot.lane.b32.xlu0 %v4279, 56
      %v4357 = vpop.permute.xlu0 %4356
      %4358 = vrot.lane.b32.xlu0 %v4283, 56
      %v4359 = vpop.permute.xlu0 %4358
      %4360 = vrot.lane.b32.xlu0 %v4287, 56
      %v4361 = vpop.permute.xlu0 %4360
      %4362 = vrot.lane.b32.xlu0 %v4291, 56
      %v4363 = vpop.permute.xlu0 %4362
      %4364 = vrot.lane.b32.xlu0 %v4295, 56
      %v4365 = vpop.permute.xlu0 %4364
      %4366 = vrot.lane.b32.xlu0 %v4299, 56
      %v4367 = vpop.permute.xlu0 %4366
      %4368 = vrot.lane.b32.xlu0 %v4303, 56
      %v4369 = vpop.permute.xlu0 %4368
      %4370 = vrot.lane.b32.xlu0 %v4307, 56
      %v4371 = vpop.permute.xlu0 %4370
      %4372 = vrot.lane.b32.xlu0 %v4311, 56
      %v4373 = vpop.permute.xlu0 %4372
      %4374 = vrot.lane.b32.xlu0 %v4315, 56
      %v4375 = vpop.permute.xlu0 %4374
      %4376 = vrot.lane.b32.xlu0 %v4319, 56
      %v4377 = vpop.permute.xlu0 %4376
      %4378 = vrot.lane.b32.xlu0 %v4323, 56
      %v4379 = vpop.permute.xlu0 %4378
      %4380 = vrot.lane.b32.xlu0 %v4327, 56
      %v4381 = vpop.permute.xlu0 %4380
      %4382 = vrot.lane.b32.xlu0 %v4331, 56
      %v4383 = vpop.permute.xlu0 %4382
      %4384 = vrot.lane.b32.xlu0 %v4335, 56
      %v4385 = vpop.permute.xlu0 %4384
      %4386 = vrot.lane.b32.xlu0 %v4344, 56
      %v4387 = vpop.permute.xlu0 %4386
      %4388 = vrot.lane.b32.xlu0 %v4353, 56
      %v4389 = vpop.permute.xlu0 %4388
      %v4391 = vunpack.c.l.b16 %v3596
      %v4392 = vpack.c.b16 %v3638, %v4391
      %v4393 = vrot.slane %v4392, 3
      %v4394 = vrot.slane %v3672, 3
      %v4395 = vsel %vm1582, %v4393, %v4394
      %v4396 = vrot.slane %v3673, 3
      %v4397 = vsel %vm1582, %v4394, %v4396
      %v4398 = vrot.slane %v3674, 3
      %v4399 = vsel %vm1582, %v4396, %v4398
      %v4400 = vrot.slane %v3675, 3
      %v4401 = vsel %vm1582, %v4398, %v4400
      %v4402 = vrot.slane %v3676, 3
      %v4403 = vsel %vm1582, %v4400, %v4402
      %v4404 = vrot.slane %v3677, 3
      %v4405 = vsel %vm1582, %v4402, %v4404
      %v4406 = vrot.slane %v3678, 3
      %v4407 = vsel %vm1582, %v4404, %v4406
      %v4408 = vrot.slane %v3679, 3
      %v4409 = vsel %vm1582, %v4406, %v4408
      %v4410 = vrot.slane %v3680, 3
      %v4411 = vsel %vm1582, %v4408, %v4410
      %v4412 = vrot.slane %v3681, 3
      %v4413 = vsel %vm1582, %v4410, %v4412
      %v4414 = vrot.slane %v3682, 3
      %v4415 = vsel %vm1582, %v4412, %v4414
      %v4416 = vrot.slane %v3683, 3
      %v4417 = vsel %vm1582, %v4414, %v4416
      %v4418 = vrot.slane %v3684, 3
      %v4419 = vsel %vm1582, %v4416, %v4418
      %v4420 = vrot.slane %v3685, 3
      %v4421 = vsel %vm1582, %v4418, %v4420
      %v4422 = vrot.slane %v3686, 3
      %v4423 = vsel %vm1582, %v4420, %v4422
      %v4424 = vrot.slane %v3959, 3
      %v4425 = vsel %vm1582, %v4422, %v4424
      %v4426 = vrot.slane %v4217, 3
      %v4427 = vsel %vm1582, %v4424, %v4426
      %v4428 = vrot.slane %v4263, 3
      %v4429 = vsel %vm1582, %v4426, %v4428
      %4430 = vrot.lane.b32.xlu0 %v4395, 64
      %v4431 = vpop.permute.xlu0 %4430
      %4432 = vrot.lane.b32.xlu0 %v4397, 64
      %v4433 = vpop.permute.xlu0 %4432
      %4434 = vrot.lane.b32.xlu0 %v4399, 64
      %v4435 = vpop.permute.xlu0 %4434
      %4436 = vrot.lane.b32.xlu0 %v4401, 64
      %v4437 = vpop.permute.xlu0 %4436
      %4438 = vrot.lane.b32.xlu0 %v4403, 64
      %v4439 = vpop.permute.xlu0 %4438
      %4440 = vrot.lane.b32.xlu0 %v4405, 64
      %v4441 = vpop.permute.xlu0 %4440
      %4442 = vrot.lane.b32.xlu0 %v4407, 64
      %v4443 = vpop.permute.xlu0 %4442
      %4444 = vrot.lane.b32.xlu0 %v4409, 64
      %v4445 = vpop.permute.xlu0 %4444
      %4446 = vrot.lane.b32.xlu0 %v4411, 64
      %v4447 = vpop.permute.xlu0 %4446
      %4448 = vrot.lane.b32.xlu0 %v4413, 64
      %v4449 = vpop.permute.xlu0 %4448
      %4450 = vrot.lane.b32.xlu0 %v4415, 64
      %v4451 = vpop.permute.xlu0 %4450
      %4452 = vrot.lane.b32.xlu0 %v4417, 64
      %v4453 = vpop.permute.xlu0 %4452
      %4454 = vrot.lane.b32.xlu0 %v4419, 64
      %v4455 = vpop.permute.xlu0 %4454
      %4456 = vrot.lane.b32.xlu0 %v4421, 64
      %v4457 = vpop.permute.xlu0 %4456
      %4458 = vrot.lane.b32.xlu0 %v4423, 64
      %v4459 = vpop.permute.xlu0 %4458
      %4460 = vrot.lane.b32.xlu0 %v4425, 64
      %v4461 = vpop.permute.xlu0 %4460
      %4462 = vrot.lane.b32.xlu0 %v4427, 64
      %v4463 = vpop.permute.xlu0 %4462
      %4464 = vrot.lane.b32.xlu0 %v4429, 64
      %v4465 = vpop.permute.xlu0 %4464
      %v4467 = vsel %vm1693, %v3669, %v3839
      %v4469 = vsel %vm1693, %v3670, %v3841
      %v4471 = vsel %vm1693, %v3671, %v3843
      %v4473 = vsel %vm1693, %v3672, %v3845
      %v4475 = vsel %vm1693, %v3673, %v3847
      %v4477 = vsel %vm1693, %v3674, %v3849
      %v4479 = vsel %vm1693, %v3675, %v3851
      %v4481 = vsel %vm1693, %v3676, %v3853
      %v4483 = vsel %vm1693, %v3677, %v3855
      %v4485 = vsel %vm1693, %v3678, %v3857
      %v4487 = vsel %vm1693, %v3679, %v3859
      %v4489 = vsel %vm1693, %v3680, %v3861
      %v4491 = vsel %vm1693, %v3681, %v3863
      %v4493 = vsel %vm1693, %v3682, %v3865
      %v4495 = vsel %vm1693, %v3683, %v3867
      %v4497 = vsel %vm1693, %v3684, %v3869
      %v4499 = vsel %vm1693, %v3685, %v3871
      %v4501 = vsel %vm1693, %v3686, %v3873
      %v4503 = vsel %vm1767, %v4467, %v3915
      %v4505 = vsel %vm1767, %v4469, %v3917
      %v4507 = vsel %vm1767, %v4471, %v3919
      %v4509 = vsel %vm1767, %v4473, %v3921
      %v4511 = vsel %vm1767, %v4475, %v3923
      %v4513 = vsel %vm1767, %v4477, %v3925
      %v4515 = vsel %vm1767, %v4479, %v3927
      %v4517 = vsel %vm1767, %v4481, %v3929
      %v4519 = vsel %vm1767, %v4483, %v3931
      %v4521 = vsel %vm1767, %v4485, %v3933
      %v4523 = vsel %vm1767, %v4487, %v3935
      %v4525 = vsel %vm1767, %v4489, %v3937
      %v4527 = vsel %vm1767, %v4491, %v3939
      %v4529 = vsel %vm1767, %v4493, %v3941
      %v4531 = vsel %vm1767, %v4495, %v3943
      %v4533 = vsel %vm1767, %v4497, %v3945
      %v4535 = vsel %vm1767, %v4499, %v3947
      %v4537 = vsel %vm1767, %v4501, %v3949
      %v4539 = vsel %vm1841, %v4503, %v3968
      %v4541 = vsel %vm1841, %v4505, %v3970
      %v4543 = vsel %vm1841, %v4507, %v3972
      %v4545 = vsel %vm1841, %v4509, %v3974
      %v4547 = vsel %vm1841, %v4511, %v3976
      %v4549 = vsel %vm1841, %v4513, %v3978
      %v4551 = vsel %vm1841, %v4515, %v3980
      %v4553 = vsel %vm1841, %v4517, %v3982
      %v4555 = vsel %vm1841, %v4519, %v3984
      %v4557 = vsel %vm1841, %v4521, %v3986
      %v4559 = vsel %vm1841, %v4523, %v3988
      %v4561 = vsel %vm1841, %v4525, %v3990
      %v4563 = vsel %vm1841, %v4527, %v3992
      %v4565 = vsel %vm1841, %v4529, %v3994
      %v4567 = vsel %vm1841, %v4531, %v3996
      %v4569 = vsel %vm1841, %v4533, %v3998
      %v4571 = vsel %vm1841, %v4535, %v4000
      %v4573 = vsel %vm1841, %v4537, %v4002
      %v4575 = vsel %vm1915, %v4539, %v4097
      %v4577 = vsel %vm1915, %v4541, %v4099
      %v4579 = vsel %vm1915, %v4543, %v4101
      %v4581 = vsel %vm1915, %v4545, %v4103
      %v4583 = vsel %vm1915, %v4547, %v4105
      %v4585 = vsel %vm1915, %v4549, %v4107
      %v4587 = vsel %vm1915, %v4551, %v4109
      %v4589 = vsel %vm1915, %v4553, %v4111
      %v4591 = vsel %vm1915, %v4555, %v4113
      %v4593 = vsel %vm1915, %v4557, %v4115
      %v4595 = vsel %vm1915, %v4559, %v4117
      %v4597 = vsel %vm1915, %v4561, %v4119
      %v4599 = vsel %vm1915, %v4563, %v4121
      %v4601 = vsel %vm1915, %v4565, %v4123
      %v4603 = vsel %vm1915, %v4567, %v4125
      %v4605 = vsel %vm1915, %v4569, %v4127
      %v4607 = vsel %vm1915, %v4571, %v4129
      %v4609 = vsel %vm1915, %v4573, %v4131
      %vm4610 = vcmask 326656
      %v4612 = vsel %vm4610, %v4575, %v4173
      %v4614 = vsel %vm4610, %v4577, %v4175
      %v4616 = vsel %vm4610, %v4579, %v4177
      %v4618 = vsel %vm4610, %v4581, %v4179
      %v4620 = vsel %vm4610, %v4583, %v4181
      %v4622 = vsel %vm4610, %v4585, %v4183
      %v4624 = vsel %vm4610, %v4587, %v4185
      %v4626 = vsel %vm4610, %v4589, %v4187
      %v4628 = vsel %vm4610, %v4591, %v4189
      %v4630 = vsel %vm4610, %v4593, %v4191
      %v4632 = vsel %vm4610, %v4595, %v4193
      %v4634 = vsel %vm4610, %v4597, %v4195
      %v4636 = vsel %vm4610, %v4599, %v4197
      %v4638 = vsel %vm4610, %v4601, %v4199
      %v4640 = vsel %vm4610, %v4603, %v4201
      %v4642 = vsel %vm4610, %v4605, %v4203
      %v4644 = vsel %vm4610, %v4607, %v4205
      %v4646 = vsel %vm4610, %v4609, %v4207
      %vm4647 = vcmask 392192
      %v4649 = vsel %vm4647, %v4612, %v4226
      %v4651 = vsel %vm4647, %v4614, %v4228
      %v4653 = vsel %vm4647, %v4616, %v4230
      %v4655 = vsel %vm4647, %v4618, %v4232
      %v4657 = vsel %vm4647, %v4620, %v4234
      %v4659 = vsel %vm4647, %v4622, %v4236
      %v4661 = vsel %vm4647, %v4624, %v4238
      %v4663 = vsel %vm4647, %v4626, %v4240
      %v4665 = vsel %vm4647, %v4628, %v4242
      %v4667 = vsel %vm4647, %v4630, %v4244
      %v4669 = vsel %vm4647, %v4632, %v4246
      %v4671 = vsel %vm4647, %v4634, %v4248
      %v4673 = vsel %vm4647, %v4636, %v4250
      %v4675 = vsel %vm4647, %v4638, %v4252
      %v4677 = vsel %vm4647, %v4640, %v4254
      %v4679 = vsel %vm4647, %v4642, %v4256
      %v4681 = vsel %vm4647, %v4644, %v4258
      %v4683 = vsel %vm4647, %v4646, %v4260
      %vm4684 = vcmask 457728
      %v4686 = vsel %vm4684, %v4649, %v4355
      %v4688 = vsel %vm4684, %v4651, %v4357
      %v4690 = vsel %vm4684, %v4653, %v4359
      %v4692 = vsel %vm4684, %v4655, %v4361
      %v4694 = vsel %vm4684, %v4657, %v4363
      %v4696 = vsel %vm4684, %v4659, %v4365
      %v4698 = vsel %vm4684, %v4661, %v4367
      %v4700 = vsel %vm4684, %v4663, %v4369
      %v4702 = vsel %vm4684, %v4665, %v4371
      %v4704 = vsel %vm4684, %v4667, %v4373
      %v4706 = vsel %vm4684, %v4669, %v4375
      %v4708 = vsel %vm4684, %v4671, %v4377
      %v4710 = vsel %vm4684, %v4673, %v4379
      %v4712 = vsel %vm4684, %v4675, %v4381
      %v4714 = vsel %vm4684, %v4677, %v4383
      %v4716 = vsel %vm4684, %v4679, %v4385
      %v4718 = vsel %vm4684, %v4681, %v4387
      %v4720 = vsel %vm4684, %v4683, %v4389
      %vm4721 = vcmask 523264
      %v4723 = vsel %vm4721, %v4686, %v4431
      %v4725 = vsel %vm4721, %v4688, %v4433
      %v4727 = vsel %vm4721, %v4690, %v4435
      %v4729 = vsel %vm4721, %v4692, %v4437
      %v4731 = vsel %vm4721, %v4694, %v4439
      %v4733 = vsel %vm4721, %v4696, %v4441
      %v4735 = vsel %vm4721, %v4698, %v4443
      %v4737 = vsel %vm4721, %v4700, %v4445
      %v4739 = vsel %vm4721, %v4702, %v4447
      %v4741 = vsel %vm4721, %v4704, %v4449
      %v4743 = vsel %vm4721, %v4706, %v4451
      %v4745 = vsel %vm4721, %v4708, %v4453
      %v4747 = vsel %vm4721, %v4710, %v4455
      %v4749 = vsel %vm4721, %v4712, %v4457
      %v4751 = vsel %vm4721, %v4714, %v4459
      %v4753 = vsel %vm4721, %v4716, %v4461
      %v4755 = vsel %vm4721, %v4718, %v4463
      %v4757 = vsel %vm4721, %v4720, %v4465
      %v4758 = vld [vmem:[%s4] sm:$0xf]
      %v4759 = vld [vmem:[%s4 + $0x4] sm:$0xf]
      %v4760 = vld [vmem:[%s4 + $0x8] sm:$0xf]
      %v4761 = vld [vmem:[%s4 + $0xc] sm:$0xf]
      %v4762 = vld [vmem:[%s4 + $0x10] sm:$0xf]
      %v4763 = vld [vmem:[%s4 + $0x14] sm:$0xf]
      %v4764 = vld [vmem:[%s4 + $0x18] sm:$0xf]
      %v4765 = vld [vmem:[%s4 + $0x1c] sm:$0xf]
      %v4766 = vld [vmem:[%s4 + $0x20] sm:$0xf]
      %v4776 = vunpack.c.l.b16 %v4758
      %v4777 = vunpack.c.l.b16 %v4759
      %v4778 = vunpack.c.l.b16 %v4760
      %v4779 = vunpack.c.l.b16 %v4761
      %v4780 = vunpack.c.l.b16 %v4762
      %v4781 = vunpack.c.l.b16 %v4763
      %v4782 = vunpack.c.l.b16 %v4764
      %v4783 = vunpack.c.l.b16 %v4765
      %v4784 = vunpack.c.l.b16 %v4766
      %v4785 = vpack.c.b16 %v4777, %v4776
      %v4786 = vpack.c.b16 %v4779, %v4778
      %v4787 = vpack.c.b16 %v4781, %v4780
      %v4788 = vpack.c.b16 %v4783, %v4782
      %v4789 = vpack.c.b16 %v4784, %v4784
      %vm4794 = vcmask 588800
      %v4795 = vsel %vm4794, %v4723, 0
      %v4797 = vsel %vm4794, %v4725, 0
      %v4799 = vsel %vm4794, %v4727, 0
      %v4801 = vsel %vm4794, %v4729, 0
      %v4803 = vsel %vm4794, %v4731, 0
      %v4805 = vsel %vm4794, %v4733, 0
      %v4807 = vsel %vm4794, %v4735, 0
      %v4809 = vsel %vm4794, %v4737, 0
      %v4811 = vsel %vm4794, %v4739, 0
      %v4813 = vsel %vm4794, %v4741, 0
      %v4815 = vsel %vm4794, %v4743, 0
      %v4817 = vsel %vm4794, %v4745, 0
      %v4819 = vsel %vm4794, %v4747, 0
      %v4821 = vsel %vm4794, %v4749, 0
      %v4823 = vsel %vm4794, %v4751, 0
      %v4825 = vsel %vm4794, %v4753, 0
      %v4827 = vsel %vm4794, %v4755, 0
      %v4829 = vsel %vm4794, %v4757, 0
      %vm4831 = vcmask 1043456
      %v4833 = vsel %vm4831, %v4789, 0
      %4835 = vmatprep.subr.bf16.mxu0 0
      %4836 = vmatpush1.bf16.msra.mxu0 0
      %4837 = vmatprep.subr.bf16.mxu0 0
      %4838 = vmatpush1.bf16.msra.mxu0 0
      %4839 = vmatprep.subr.bf16.mxu0 0
      %4840 = vmatpush1.bf16.msra.mxu0 0
      %4841 = vmatprep.subr.bf16.mxu0 0
      %4842 = vmatpush1.bf16.msra.mxu0 %v4833
      %4843 = vmatprep.subr.bf16.mxu0 0
      %4844 = vmatpush1.bf16.msra.mxu0 %v4788
      %4845 = vmatprep.subr.bf16.mxu0 0
      %4846 = vmatpush1.bf16.msra.mxu0 %v4787
      %4847 = vmatprep.subr.bf16.mxu0 0
      %4848 = vmatpush1.bf16.msra.mxu0 %v4786
      %4849 = vmatprep.subr.bf16.mxu0 0
      %4850 = vmatpush1.bf16.msra.mxu0 %v4785
      %4851 = vmatprep.subr.bf16.mxu0 0
      %4852 = vmatpush2.bf16.msra.mxu0 0
      %4853 = vmatprep.subr.bf16.mxu0 0
      %4854 = vmatpush2.bf16.msra.mxu0 0
      %4855 = vmatprep.subr.bf16.mxu0 0
      %4856 = vmatpush2.bf16.msra.mxu0 0
      %4857 = vmatprep.subr.bf16.mxu0 0
      %4858 = vmatpush2.bf16.msra.mxu0 0
      %4859 = vmatprep.subr.bf16.mxu0 0
      %4860 = vmatpush2.bf16.msra.mxu0 0
      %4861 = vmatprep.subr.bf16.mxu0 0
      %4862 = vmatpush2.bf16.msra.mxu0 0
      %4863 = vmatprep.subr.bf16.mxu0 0
      %4864 = vmatpush2.bf16.msra.mxu0 0
      %4865 = vmatprep.subr.bf16.mxu0 0
      %4866 = vmatpush2.bf16.msra.mxu0 0
      %4867 = vmatprep.mubr.bf16.mxu0 0
      %4868 = vmatmul.mubr.bf16.gmra.mxu0 %v4795
      %v4869 = vpop.f32.mrf.mxu0
      %v4870 = vadd.f32 0.0, %v4869
      %v4871 = vpop.f32.mrf.mxu0
      %v4872 = vpop.f32.mrf.mxu0
      %v4873 = vadd.f32 0.0, %v4872
      %v4874 = vpop.f32.mrf.mxu0
      %4875 = vmatprep.mubr.bf16.mxu0 0
      %4876 = vmatmul.mubr.bf16.gmra.mxu0 %v4797
      %v4877 = vpop.f32.mrf.mxu0
      %v4878 = vadd.f32 0.0, %v4877
      %v4879 = vpop.f32.mrf.mxu0
      %v4880 = vpop.f32.mrf.mxu0
      %v4881 = vadd.f32 0.0, %v4880
      %v4882 = vpop.f32.mrf.mxu0
      %4883 = vmatprep.mubr.bf16.mxu0 0
      %4884 = vmatmul.mubr.bf16.gmra.mxu0 %v4799
      %v4885 = vpop.f32.mrf.mxu0
      %v4886 = vadd.f32 0.0, %v4885
      %v4887 = vpop.f32.mrf.mxu0
      %v4888 = vpop.f32.mrf.mxu0
      %v4889 = vadd.f32 0.0, %v4888
      %v4890 = vpop.f32.mrf.mxu0
      %4891 = vmatprep.mubr.bf16.mxu0 0
      %4892 = vmatmul.mubr.bf16.gmra.mxu0 %v4801
      %v4893 = vpop.f32.mrf.mxu0
      %v4894 = vadd.f32 0.0, %v4893
      %v4895 = vpop.f32.mrf.mxu0
      %v4896 = vpop.f32.mrf.mxu0
      %v4897 = vadd.f32 0.0, %v4896
      %v4898 = vpop.f32.mrf.mxu0
      %4899 = vmatprep.mubr.bf16.mxu0 0
      %4900 = vmatmul.mubr.bf16.gmra.mxu0 %v4803
      %v4901 = vpop.f32.mrf.mxu0
      %v4902 = vadd.f32 0.0, %v4901
      %v4903 = vpop.f32.mrf.mxu0
      %v4904 = vpop.f32.mrf.mxu0
      %v4905 = vadd.f32 0.0, %v4904
      %v4906 = vpop.f32.mrf.mxu0
      %4907 = vmatprep.mubr.bf16.mxu0 0
      %4908 = vmatmul.mubr.bf16.gmra.mxu0 %v4805
      %v4909 = vpop.f32.mrf.mxu0
      %v4910 = vadd.f32 0.0, %v4909
      %v4911 = vpop.f32.mrf.mxu0
      %v4912 = vpop.f32.mrf.mxu0
      %v4913 = vadd.f32 0.0, %v4912
      %v4914 = vpop.f32.mrf.mxu0
      %4915 = vmatprep.mubr.bf16.mxu0 0
      %4916 = vmatmul.mubr.bf16.gmra.mxu0 %v4807
      %v4917 = vpop.f32.mrf.mxu0
      %v4918 = vadd.f32 0.0, %v4917
      %v4919 = vpop.f32.mrf.mxu0
      %v4920 = vpop.f32.mrf.mxu0
      %v4921 = vadd.f32 0.0, %v4920
      %v4922 = vpop.f32.mrf.mxu0
      %4923 = vmatprep.mubr.bf16.mxu0 0
      %4924 = vmatmul.mubr.bf16.gmra.mxu0 %v4809
      %v4925 = vpop.f32.mrf.mxu0
      %v4926 = vadd.f32 0.0, %v4925
      %v4927 = vpop.f32.mrf.mxu0
      %v4928 = vpop.f32.mrf.mxu0
      %v4929 = vadd.f32 0.0, %v4928
      %v4930 = vpop.f32.mrf.mxu0
      %4931 = vmatprep.mubr.bf16.mxu0 0
      %4932 = vmatmul.mubr.bf16.gmra.mxu0 %v4811
      %v4933 = vpop.f32.mrf.mxu0
      %v4934 = vadd.f32 0.0, %v4933
      %v4935 = vpop.f32.mrf.mxu0
      %v4936 = vpop.f32.mrf.mxu0
      %v4937 = vadd.f32 0.0, %v4936
      %v4938 = vpop.f32.mrf.mxu0
      %4939 = vmatprep.mubr.bf16.mxu0 0
      %4940 = vmatmul.mubr.bf16.gmra.mxu0 %v4813
      %v4941 = vpop.f32.mrf.mxu0
      %v4942 = vadd.f32 0.0, %v4941
      %v4943 = vpop.f32.mrf.mxu0
      %v4944 = vpop.f32.mrf.mxu0
      %v4945 = vadd.f32 0.0, %v4944
      %v4946 = vpop.f32.mrf.mxu0
      %4947 = vmatprep.mubr.bf16.mxu0 0
      %4948 = vmatmul.mubr.bf16.gmra.mxu0 %v4815
      %v4949 = vpop.f32.mrf.mxu0
      %v4950 = vadd.f32 0.0, %v4949
      %v4951 = vpop.f32.mrf.mxu0
      %v4952 = vpop.f32.mrf.mxu0
      %v4953 = vadd.f32 0.0, %v4952
      %v4954 = vpop.f32.mrf.mxu0
      %4955 = vmatprep.mubr.bf16.mxu0 0
      %4956 = vmatmul.mubr.bf16.gmra.mxu0 %v4817
      %v4957 = vpop.f32.mrf.mxu0
      %v4958 = vadd.f32 0.0, %v4957
      %v4959 = vpop.f32.mrf.mxu0
      %v4960 = vpop.f32.mrf.mxu0
      %v4961 = vadd.f32 0.0, %v4960
      %v4962 = vpop.f32.mrf.mxu0
      %4963 = vmatprep.mubr.bf16.mxu0 0
      %4964 = vmatmul.mubr.bf16.gmra.mxu0 %v4819
      %v4965 = vpop.f32.mrf.mxu0
      %v4966 = vadd.f32 0.0, %v4965
      %v4967 = vpop.f32.mrf.mxu0
      %v4968 = vpop.f32.mrf.mxu0
      %v4969 = vadd.f32 0.0, %v4968
      %v4970 = vpop.f32.mrf.mxu0
      %4971 = vmatprep.mubr.bf16.mxu0 0
      %4972 = vmatmul.mubr.bf16.gmra.mxu0 %v4821
      %v4973 = vpop.f32.mrf.mxu0
      %v4974 = vadd.f32 0.0, %v4973
      %v4975 = vpop.f32.mrf.mxu0
      %v4976 = vpop.f32.mrf.mxu0
      %v4977 = vadd.f32 0.0, %v4976
      %v4978 = vpop.f32.mrf.mxu0
      %4979 = vmatprep.mubr.bf16.mxu0 0
      %4980 = vmatmul.mubr.bf16.gmra.mxu0 %v4823
      %v4981 = vpop.f32.mrf.mxu0
      %v4982 = vadd.f32 0.0, %v4981
      %v4983 = vpop.f32.mrf.mxu0
      %v4984 = vpop.f32.mrf.mxu0
      %v4985 = vadd.f32 0.0, %v4984
      %v4986 = vpop.f32.mrf.mxu0
      %4987 = vmatprep.mubr.bf16.mxu0 0
      %4988 = vmatmul.mubr.bf16.gmra.mxu0 %v4825
      %v4989 = vpop.f32.mrf.mxu0
      %v4990 = vadd.f32 0.0, %v4989
      %v4991 = vpop.f32.mrf.mxu0
      %v4992 = vpop.f32.mrf.mxu0
      %v4993 = vadd.f32 0.0, %v4992
      %v4994 = vpop.f32.mrf.mxu0
      %4995 = vmatprep.mubr.bf16.mxu0 0
      %4996 = vmatmul.mubr.bf16.gmra.mxu0 %v4827
      %v4997 = vpop.f32.mrf.mxu0
      %v4998 = vadd.f32 0.0, %v4997
      %v4999 = vpop.f32.mrf.mxu0
      %v5000 = vpop.f32.mrf.mxu0
      %v5001 = vadd.f32 0.0, %v5000
      %v5002 = vpop.f32.mrf.mxu0
      %5003 = vmatprep.mubr.bf16.mxu0 0
      %5004 = vmatmul.mubr.bf16.gmra.mxu0 %v4829
      %v5005 = vpop.f32.mrf.mxu0
      %v5006 = vadd.f32 0.0, %v5005
      %v5007 = vpop.f32.mrf.mxu0
      %v5008 = vpop.f32.mrf.mxu0
      %v5009 = vadd.f32 0.0, %v5008
      %v5010 = vpop.f32.mrf.mxu0
      %5011 = vdwg.mxu0
      %v5012 = vld [vmem:[%s5] sm:$0x1]
      %v5014 = vlaneseq
      %v5015 = vshrl.u32 %v5014, 7
      %v5016 = vsub.s32 0, %v5015
      %v5017 = vrot.slane %v5012, %v5016
      %v5019 = vmul.f32 %v4870, %v5017
      %v5020 = vmul.f32 %v4873, %v5017
      %v5021 = vmul.f32 %v4878, %v5017
      %v5022 = vmul.f32 %v4881, %v5017
      %v5023 = vmul.f32 %v4886, %v5017
      %v5024 = vmul.f32 %v4889, %v5017
      %v5025 = vmul.f32 %v4894, %v5017
      %v5026 = vmul.f32 %v4897, %v5017
      %v5027 = vmul.f32 %v4902, %v5017
      %v5028 = vmul.f32 %v4905, %v5017
      %v5029 = vmul.f32 %v4910, %v5017
      %v5030 = vmul.f32 %v4913, %v5017
      %v5031 = vmul.f32 %v4918, %v5017
      %v5032 = vmul.f32 %v4921, %v5017
      %v5033 = vmul.f32 %v4926, %v5017
      %v5034 = vmul.f32 %v4929, %v5017
      %v5035 = vmul.f32 %v4934, %v5017
      %v5036 = vmul.f32 %v4937, %v5017
      %v5037 = vmul.f32 %v4942, %v5017
      %v5038 = vmul.f32 %v4945, %v5017
      %v5039 = vmul.f32 %v4950, %v5017
      %v5040 = vmul.f32 %v4953, %v5017
      %v5041 = vmul.f32 %v4958, %v5017
      %v5042 = vmul.f32 %v4961, %v5017
      %v5043 = vmul.f32 %v4966, %v5017
      %v5044 = vmul.f32 %v4969, %v5017
      %v5045 = vmul.f32 %v4974, %v5017
      %v5046 = vmul.f32 %v4977, %v5017
      %v5047 = vmul.f32 %v4982, %v5017
      %v5048 = vmul.f32 %v4985, %v5017
      %v5049 = vmul.f32 %v4990, %v5017
      %v5050 = vmul.f32 %v4993, %v5017
      %v5051 = vmul.f32 %v4998, %v5017
      %v5052 = vmul.f32 %v5001, %v5017
      %v5053 = vmul.f32 %v5006, %v5017
      %v5054 = vmul.f32 %v5009, %v5017
      %v5055 = vld [vmem:[%s6] sm:$0x1]
      %v5057 = vlaneseq
      %v5058 = vshrl.u32 %v5057, 7
      %v5059 = vsub.s32 0, %v5058
      %v5060 = vrot.slane %v5055, %v5059
      %v5062 = vadd.f32 %v5019, %v5060
      %v5063 = vadd.f32 %v5020, %v5060
      %v5064 = vadd.f32 %v5021, %v5060
      %v5065 = vadd.f32 %v5022, %v5060
      %v5066 = vadd.f32 %v5023, %v5060
      %v5067 = vadd.f32 %v5024, %v5060
      %v5068 = vadd.f32 %v5025, %v5060
      %v5069 = vadd.f32 %v5026, %v5060
      %v5070 = vadd.f32 %v5027, %v5060
      %v5071 = vadd.f32 %v5028, %v5060
      %v5072 = vadd.f32 %v5029, %v5060
      %v5073 = vadd.f32 %v5030, %v5060
      %v5074 = vadd.f32 %v5031, %v5060
      %v5075 = vadd.f32 %v5032, %v5060
      %v5076 = vadd.f32 %v5033, %v5060
      %v5077 = vadd.f32 %v5034, %v5060
      %v5078 = vadd.f32 %v5035, %v5060
      %v5079 = vadd.f32 %v5036, %v5060
      %v5080 = vadd.f32 %v5037, %v5060
      %v5081 = vadd.f32 %v5038, %v5060
      %v5082 = vadd.f32 %v5039, %v5060
      %v5083 = vadd.f32 %v5040, %v5060
      %v5084 = vadd.f32 %v5041, %v5060
      %v5085 = vadd.f32 %v5042, %v5060
      %v5086 = vadd.f32 %v5043, %v5060
      %v5087 = vadd.f32 %v5044, %v5060
      %v5088 = vadd.f32 %v5045, %v5060
      %v5089 = vadd.f32 %v5046, %v5060
      %v5090 = vadd.f32 %v5047, %v5060
      %v5091 = vadd.f32 %v5048, %v5060
      %v5092 = vadd.f32 %v5049, %v5060
      %v5093 = vadd.f32 %v5050, %v5060
      %v5094 = vadd.f32 %v5051, %v5060
      %v5095 = vadd.f32 %v5052, %v5060
      %v5096 = vadd.f32 %v5053, %v5060
      %v5097 = vadd.f32 %v5054, %v5060
      %v5098 = vmax.f32 %v5062, 0.0
      %v5099 = vmax.f32 %v5063, 0.0
      %v5100 = vmax.f32 %v5064, 0.0
      %v5101 = vmax.f32 %v5065, 0.0
      %v5102 = vmax.f32 %v5066, 0.0
      %v5103 = vmax.f32 %v5067, 0.0
      %v5104 = vmax.f32 %v5068, 0.0
      %v5105 = vmax.f32 %v5069, 0.0
      %v5106 = vmax.f32 %v5070, 0.0
      %v5107 = vmax.f32 %v5071, 0.0
      %v5108 = vmax.f32 %v5072, 0.0
      %v5109 = vmax.f32 %v5073, 0.0
      %v5110 = vmax.f32 %v5074, 0.0
      %v5111 = vmax.f32 %v5075, 0.0
      %v5112 = vmax.f32 %v5076, 0.0
      %v5113 = vmax.f32 %v5077, 0.0
      %v5114 = vmax.f32 %v5078, 0.0
      %v5115 = vmax.f32 %v5079, 0.0
      %v5116 = vmax.f32 %v5080, 0.0
      %v5117 = vmax.f32 %v5081, 0.0
      %v5118 = vmax.f32 %v5082, 0.0
      %v5119 = vmax.f32 %v5083, 0.0
      %v5120 = vmax.f32 %v5084, 0.0
      %v5121 = vmax.f32 %v5085, 0.0
      %v5122 = vmax.f32 %v5086, 0.0
      %v5123 = vmax.f32 %v5087, 0.0
      %v5124 = vmax.f32 %v5088, 0.0
      %v5125 = vmax.f32 %v5089, 0.0
      %v5126 = vmax.f32 %v5090, 0.0
      %v5127 = vmax.f32 %v5091, 0.0
      %v5128 = vmax.f32 %v5092, 0.0
      %v5129 = vmax.f32 %v5093, 0.0
      %v5130 = vmax.f32 %v5094, 0.0
      %v5131 = vmax.f32 %v5095, 0.0
      %v5132 = vmax.f32 %v5096, 0.0
      %v5133 = vmax.f32 %v5097, 0.0
      %v5134 = vsel %vm2925, %v5098, 0.0
      %v5135 = vsel %vm2926, %v5099, 0.0
      %v5136 = vsel %vm2927, %v5100, 0.0
      %v5137 = vsel %vm2928, %v5101, 0.0
      %v5138 = vsel %vm2929, %v5102, 0.0
      %v5139 = vsel %vm2930, %v5103, 0.0
      %v5140 = vsel %vm2931, %v5104, 0.0
      %v5141 = vsel %vm2932, %v5105, 0.0
      %v5142 = vsel %vm2933, %v5106, 0.0
      %v5143 = vsel %vm2934, %v5107, 0.0
      %v5144 = vsel %vm2935, %v5108, 0.0
      %v5145 = vsel %vm2936, %v5109, 0.0
      %v5146 = vsel %vm2937, %v5110, 0.0
      %v5147 = vsel %vm2938, %v5111, 0.0
      %v5148 = vsel %vm2939, %v5112, 0.0
      %v5149 = vsel %vm2940, %v5113, 0.0
      %v5150 = vsel %vm2941, %v5114, 0.0
      %v5151 = vsel %vm2942, %v5115, 0.0
      %v5152 = vsel %vm2943, %v5116, 0.0
      %v5153 = vsel %vm2944, %v5117, 0.0
      %v5154 = vsel %vm2945, %v5118, 0.0
      %v5155 = vsel %vm2946, %v5119, 0.0
      %v5156 = vsel %vm2947, %v5120, 0.0
      %v5157 = vsel %vm2948, %v5121, 0.0
      %v5158 = vsel %vm2949, %v5122, 0.0
      %v5159 = vsel %vm2950, %v5123, 0.0
      %v5160 = vsel %vm2951, %v5124, 0.0
      %v5161 = vsel %vm2952, %v5125, 0.0
      %v5162 = vsel %vm2953, %v5126, 0.0
      %v5163 = vsel %vm2954, %v5127, 0.0
      %v5164 = vsel %vm2955, %v5128, 0.0
      %v5165 = vsel %vm2956, %v5129, 0.0
      %v5166 = vsel %vm2957, %v5130, 0.0
      %v5167 = vsel %vm2958, %v5131, 0.0
      %v5168 = vsel %vm2959, %v5132, 0.0
      %v5169 = vsel %vm2960, %v5133, 0.0
      %v5170 = vpack.c.bf16 %v5135, %v5134
      %v5171 = vpack.c.bf16 %v5137, %v5136
      %v5172 = vpack.c.bf16 %v5139, %v5138
      %v5173 = vpack.c.bf16 %v5141, %v5140
      %v5174 = vpack.c.bf16 %v5143, %v5142
      %v5175 = vpack.c.bf16 %v5145, %v5144
      %v5176 = vpack.c.bf16 %v5147, %v5146
      %v5177 = vpack.c.bf16 %v5149, %v5148
      %v5178 = vpack.c.bf16 %v5151, %v5150
      %v5179 = vpack.c.bf16 %v5153, %v5152
      %v5180 = vpack.c.bf16 %v5155, %v5154
      %v5181 = vpack.c.bf16 %v5157, %v5156
      %v5182 = vpack.c.bf16 %v5159, %v5158
      %v5183 = vpack.c.bf16 %v5161, %v5160
      %v5184 = vpack.c.bf16 %v5163, %v5162
      %v5185 = vpack.c.bf16 %v5165, %v5164
      %v5186 = vpack.c.bf16 %v5167, %v5166
      %v5187 = vpack.c.bf16 %v5169, %v5168
      %v5206 = vunpack.c.l.b16 %v5170
      %v5207 = vunpack.c.h.b16 %v5170
      %v5208 = vunpack.c.l.b16 %v5171
      %v5209 = vunpack.c.h.b16 %v5171
      %v5210 = vunpack.c.l.b16 %v5172
      %v5211 = vunpack.c.h.b16 %v5172
      %v5212 = vunpack.c.l.b16 %v5173
      %v5213 = vunpack.c.h.b16 %v5173
      %v5214 = vunpack.c.l.b16 %v5174
      %v5215 = vunpack.c.h.b16 %v5174
      %v5216 = vunpack.c.l.b16 %v5175
      %v5217 = vunpack.c.h.b16 %v5175
      %v5218 = vunpack.c.l.b16 %v5176
      %v5219 = vunpack.c.h.b16 %v5176
      %v5220 = vunpack.c.l.b16 %v5177
      %v5221 = vunpack.c.h.b16 %v5177
      %v5222 = vunpack.c.l.b16 %v5178
      %v5223 = vunpack.c.h.b16 %v5178
      %v5224 = vunpack.c.l.b16 %v5179
      %v5225 = vunpack.c.h.b16 %v5179
      %v5226 = vunpack.c.l.b16 %v5180
      %v5227 = vunpack.c.h.b16 %v5180
      %v5228 = vunpack.c.l.b16 %v5181
      %v5229 = vunpack.c.h.b16 %v5181
      %v5230 = vunpack.c.l.b16 %v5182
      %v5231 = vunpack.c.h.b16 %v5182
      %v5232 = vunpack.c.l.b16 %v5183
      %v5233 = vunpack.c.h.b16 %v5183
      %v5234 = vunpack.c.l.b16 %v5184
      %v5235 = vunpack.c.h.b16 %v5184
      %v5236 = vunpack.c.l.b16 %v5185
      %v5237 = vunpack.c.h.b16 %v5185
      %v5238 = vunpack.c.l.b16 %v5186
      %v5239 = vunpack.c.h.b16 %v5186
      %v5240 = vunpack.c.l.b16 %v5187
      %v5241 = vunpack.c.h.b16 %v5187
      %v5242 = vpack.c.b16 %v5206, %v5206
      %v5243 = vpack.c.b16 %v5207, %v5207
      %v5244 = vpack.c.b16 %v5208, %v5208
      %v5245 = vpack.c.b16 %v5209, %v5209
      %v5246 = vpack.c.b16 %v5210, %v5210
      %v5247 = vpack.c.b16 %v5211, %v5211
      %v5248 = vpack.c.b16 %v5212, %v5212
      %v5249 = vpack.c.b16 %v5213, %v5213
      %v5250 = vpack.c.b16 %v5214, %v5214
      %v5251 = vpack.c.b16 %v5215, %v5215
      %v5252 = vpack.c.b16 %v5216, %v5216
      %v5253 = vpack.c.b16 %v5217, %v5217
      %v5254 = vpack.c.b16 %v5218, %v5218
      %v5255 = vpack.c.b16 %v5219, %v5219
      %v5256 = vpack.c.b16 %v5220, %v5220
      %v5257 = vpack.c.b16 %v5221, %v5221
      %v5258 = vpack.c.b16 %v5222, %v5222
      %v5259 = vpack.c.b16 %v5223, %v5223
      %v5260 = vpack.c.b16 %v5224, %v5224
      %v5261 = vpack.c.b16 %v5225, %v5225
      %v5262 = vpack.c.b16 %v5226, %v5226
      %v5263 = vpack.c.b16 %v5227, %v5227
      %v5264 = vpack.c.b16 %v5228, %v5228
      %v5265 = vpack.c.b16 %v5229, %v5229
      %v5266 = vpack.c.b16 %v5230, %v5230
      %v5267 = vpack.c.b16 %v5231, %v5231
      %v5268 = vpack.c.b16 %v5232, %v5232
      %v5269 = vpack.c.b16 %v5233, %v5233
      %v5270 = vpack.c.b16 %v5234, %v5234
      %v5271 = vpack.c.b16 %v5235, %v5235
      %v5272 = vpack.c.b16 %v5236, %v5236
      %v5273 = vpack.c.b16 %v5237, %v5237
      %v5274 = vpack.c.b16 %v5238, %v5238
      %v5275 = vpack.c.b16 %v5239, %v5239
      %v5276 = vpack.c.b16 %v5240, %v5240
      %v5277 = vpack.c.b16 %v5241, %v5241
      %v5279 = vshrl.u32 %v5242, 16
      %v5281 = vrot.slane %v5279, 6
      %v5282 = vshll.u32 %v5242, 16
      %v5284 = vrot.slane %v5282, 7
      %v5285 = vor.u32 %v5281, %v5284
      %v5286 = vrot.slane %v5285, 4
      %v5288 = vshrl.u32 %v5243, 16
      %v5290 = vrot.slane %v5288, 6
      %v5291 = vshll.u32 %v5243, 16
      %v5293 = vrot.slane %v5291, 7
      %v5294 = vor.u32 %v5290, %v5293
      %v5295 = vsel %vm3106, %v5286, %v5294
      %v5296 = vrot.slane %v5294, 4
      %v5298 = vshrl.u32 %v5244, 16
      %v5300 = vrot.slane %v5298, 6
      %v5301 = vshll.u32 %v5244, 16
      %v5303 = vrot.slane %v5301, 7
      %v5304 = vor.u32 %v5300, %v5303
      %v5305 = vsel %vm3106, %v5296, %v5304
      %v5306 = vrot.slane %v5304, 4
      %v5308 = vshrl.u32 %v5245, 16
      %v5310 = vrot.slane %v5308, 6
      %v5311 = vshll.u32 %v5245, 16
      %v5313 = vrot.slane %v5311, 7
      %v5314 = vor.u32 %v5310, %v5313
      %v5315 = vsel %vm3106, %v5306, %v5314
      %v5316 = vrot.slane %v5314, 4
      %v5318 = vshrl.u32 %v5246, 16
      %v5320 = vrot.slane %v5318, 6
      %v5321 = vshll.u32 %v5246, 16
      %v5323 = vrot.slane %v5321, 7
      %v5324 = vor.u32 %v5320, %v5323
      %v5325 = vsel %vm3106, %v5316, %v5324
      %v5326 = vrot.slane %v5324, 4
      %v5328 = vshrl.u32 %v5247, 16
      %v5330 = vrot.slane %v5328, 6
      %v5331 = vshll.u32 %v5247, 16
      %v5333 = vrot.slane %v5331, 7
      %v5334 = vor.u32 %v5330, %v5333
      %v5335 = vsel %vm3106, %v5326, %v5334
      %v5336 = vrot.slane %v5334, 4
      %v5338 = vshrl.u32 %v5248, 16
      %v5340 = vrot.slane %v5338, 6
      %v5341 = vshll.u32 %v5248, 16
      %v5343 = vrot.slane %v5341, 7
      %v5344 = vor.u32 %v5340, %v5343
      %v5345 = vsel %vm3106, %v5336, %v5344
      %v5346 = vrot.slane %v5344, 4
      %v5348 = vshrl.u32 %v5249, 16
      %v5350 = vrot.slane %v5348, 6
      %v5351 = vshll.u32 %v5249, 16
      %v5353 = vrot.slane %v5351, 7
      %v5354 = vor.u32 %v5350, %v5353
      %v5355 = vsel %vm3106, %v5346, %v5354
      %v5356 = vrot.slane %v5354, 4
      %v5358 = vshrl.u32 %v5250, 16
      %v5360 = vrot.slane %v5358, 6
      %v5361 = vshll.u32 %v5250, 16
      %v5363 = vrot.slane %v5361, 7
      %v5364 = vor.u32 %v5360, %v5363
      %v5365 = vsel %vm3106, %v5356, %v5364
      %v5366 = vrot.slane %v5364, 4
      %v5368 = vshrl.u32 %v5251, 16
      %v5370 = vrot.slane %v5368, 6
      %v5371 = vshll.u32 %v5251, 16
      %v5373 = vrot.slane %v5371, 7
      %v5374 = vor.u32 %v5370, %v5373
      %v5375 = vsel %vm3106, %v5366, %v5374
      %v5376 = vrot.slane %v5374, 4
      %v5378 = vshrl.u32 %v5252, 16
      %v5380 = vrot.slane %v5378, 6
      %v5381 = vshll.u32 %v5252, 16
      %v5383 = vrot.slane %v5381, 7
      %v5384 = vor.u32 %v5380, %v5383
      %v5385 = vsel %vm3106, %v5376, %v5384
      %v5386 = vrot.slane %v5384, 4
      %v5388 = vshrl.u32 %v5253, 16
      %v5390 = vrot.slane %v5388, 6
      %v5391 = vshll.u32 %v5253, 16
      %v5393 = vrot.slane %v5391, 7
      %v5394 = vor.u32 %v5390, %v5393
      %v5395 = vsel %vm3106, %v5386, %v5394
      %v5396 = vrot.slane %v5394, 4
      %v5398 = vshrl.u32 %v5254, 16
      %v5400 = vrot.slane %v5398, 6
      %v5401 = vshll.u32 %v5254, 16
      %v5403 = vrot.slane %v5401, 7
      %v5404 = vor.u32 %v5400, %v5403
      %v5405 = vsel %vm3106, %v5396, %v5404
      %v5406 = vrot.slane %v5404, 4
      %v5408 = vshrl.u32 %v5255, 16
      %v5410 = vrot.slane %v5408, 6
      %v5411 = vshll.u32 %v5255, 16
      %v5413 = vrot.slane %v5411, 7
      %v5414 = vor.u32 %v5410, %v5413
      %v5415 = vsel %vm3106, %v5406, %v5414
      %v5416 = vrot.slane %v5414, 4
      %v5418 = vshrl.u32 %v5256, 16
      %v5420 = vrot.slane %v5418, 6
      %v5421 = vshll.u32 %v5256, 16
      %v5423 = vrot.slane %v5421, 7
      %v5424 = vor.u32 %v5420, %v5423
      %v5425 = vsel %vm3106, %v5416, %v5424
      %v5426 = vrot.slane %v5424, 4
      %v5428 = vshrl.u32 %v5257, 16
      %v5430 = vrot.slane %v5428, 6
      %v5431 = vshll.u32 %v5257, 16
      %v5433 = vrot.slane %v5431, 7
      %v5434 = vor.u32 %v5430, %v5433
      %v5435 = vsel %vm3106, %v5426, %v5434
      %v5436 = vrot.slane %v5434, 4
      %v5438 = vshrl.u32 %v5258, 16
      %v5440 = vrot.slane %v5438, 6
      %v5441 = vshll.u32 %v5258, 16
      %v5443 = vrot.slane %v5441, 7
      %v5444 = vor.u32 %v5440, %v5443
      %v5445 = vsel %vm3106, %v5436, %v5444
      %v5446 = vrot.slane %v5444, 4
      %v5448 = vshrl.u32 %v5259, 16
      %v5450 = vrot.slane %v5448, 6
      %v5451 = vshll.u32 %v5259, 16
      %v5453 = vrot.slane %v5451, 7
      %v5454 = vor.u32 %v5450, %v5453
      %v5455 = vsel %vm3106, %v5446, %v5454
      %v5456 = vrot.slane %v5454, 4
      %v5458 = vshrl.u32 %v5260, 16
      %v5460 = vrot.slane %v5458, 6
      %v5461 = vshll.u32 %v5260, 16
      %v5463 = vrot.slane %v5461, 7
      %v5464 = vor.u32 %v5460, %v5463
      %v5465 = vsel %vm3106, %v5456, %v5464
      %v5466 = vrot.slane %v5464, 4
      %v5468 = vshrl.u32 %v5261, 16
      %v5470 = vrot.slane %v5468, 6
      %v5471 = vshll.u32 %v5261, 16
      %v5473 = vrot.slane %v5471, 7
      %v5474 = vor.u32 %v5470, %v5473
      %v5475 = vsel %vm3106, %v5466, %v5474
      %v5476 = vrot.slane %v5474, 4
      %v5478 = vshrl.u32 %v5262, 16
      %v5480 = vrot.slane %v5478, 6
      %v5481 = vshll.u32 %v5262, 16
      %v5483 = vrot.slane %v5481, 7
      %v5484 = vor.u32 %v5480, %v5483
      %v5485 = vsel %vm3106, %v5476, %v5484
      %v5486 = vrot.slane %v5484, 4
      %v5488 = vshrl.u32 %v5263, 16
      %v5490 = vrot.slane %v5488, 6
      %v5491 = vshll.u32 %v5263, 16
      %v5493 = vrot.slane %v5491, 7
      %v5494 = vor.u32 %v5490, %v5493
      %v5495 = vsel %vm3106, %v5486, %v5494
      %v5496 = vrot.slane %v5494, 4
      %v5498 = vshrl.u32 %v5264, 16
      %v5500 = vrot.slane %v5498, 6
      %v5501 = vshll.u32 %v5264, 16
      %v5503 = vrot.slane %v5501, 7
      %v5504 = vor.u32 %v5500, %v5503
      %v5505 = vsel %vm3106, %v5496, %v5504
      %v5506 = vrot.slane %v5504, 4
      %v5508 = vshrl.u32 %v5265, 16
      %v5510 = vrot.slane %v5508, 6
      %v5511 = vshll.u32 %v5265, 16
      %v5513 = vrot.slane %v5511, 7
      %v5514 = vor.u32 %v5510, %v5513
      %v5515 = vsel %vm3106, %v5506, %v5514
      %v5516 = vrot.slane %v5514, 4
      %v5518 = vshrl.u32 %v5266, 16
      %v5520 = vrot.slane %v5518, 6
      %v5521 = vshll.u32 %v5266, 16
      %v5523 = vrot.slane %v5521, 7
      %v5524 = vor.u32 %v5520, %v5523
      %v5525 = vsel %vm3106, %v5516, %v5524
      %v5526 = vrot.slane %v5524, 4
      %v5528 = vshrl.u32 %v5267, 16
      %v5530 = vrot.slane %v5528, 6
      %v5531 = vshll.u32 %v5267, 16
      %v5533 = vrot.slane %v5531, 7
      %v5534 = vor.u32 %v5530, %v5533
      %v5535 = vsel %vm3106, %v5526, %v5534
      %v5536 = vrot.slane %v5534, 4
      %v5538 = vshrl.u32 %v5268, 16
      %v5540 = vrot.slane %v5538, 6
      %v5541 = vshll.u32 %v5268, 16
      %v5543 = vrot.slane %v5541, 7
      %v5544 = vor.u32 %v5540, %v5543
      %v5545 = vsel %vm3106, %v5536, %v5544
      %v5546 = vrot.slane %v5544, 4
      %v5548 = vshrl.u32 %v5269, 16
      %v5550 = vrot.slane %v5548, 6
      %v5551 = vshll.u32 %v5269, 16
      %v5553 = vrot.slane %v5551, 7
      %v5554 = vor.u32 %v5550, %v5553
      %v5555 = vsel %vm3106, %v5546, %v5554
      %v5556 = vrot.slane %v5554, 4
      %v5558 = vshrl.u32 %v5270, 16
      %v5560 = vrot.slane %v5558, 6
      %v5561 = vshll.u32 %v5270, 16
      %v5563 = vrot.slane %v5561, 7
      %v5564 = vor.u32 %v5560, %v5563
      %v5565 = vsel %vm3106, %v5556, %v5564
      %v5566 = vrot.slane %v5564, 4
      %v5568 = vshrl.u32 %v5271, 16
      %v5570 = vrot.slane %v5568, 6
      %v5571 = vshll.u32 %v5271, 16
      %v5573 = vrot.slane %v5571, 7
      %v5574 = vor.u32 %v5570, %v5573
      %v5575 = vsel %vm3106, %v5566, %v5574
      %v5576 = vrot.slane %v5574, 4
      %v5578 = vshrl.u32 %v5272, 16
      %v5580 = vrot.slane %v5578, 6
      %v5581 = vshll.u32 %v5272, 16
      %v5583 = vrot.slane %v5581, 7
      %v5584 = vor.u32 %v5580, %v5583
      %v5585 = vsel %vm3106, %v5576, %v5584
      %v5586 = vrot.slane %v5584, 4
      %v5588 = vshrl.u32 %v5273, 16
      %v5590 = vrot.slane %v5588, 6
      %v5591 = vshll.u32 %v5273, 16
      %v5593 = vrot.slane %v5591, 7
      %v5594 = vor.u32 %v5590, %v5593
      %v5595 = vsel %vm3106, %v5586, %v5594
      %v5596 = vrot.slane %v5594, 4
      %v5598 = vshrl.u32 %v5274, 16
      %v5600 = vrot.slane %v5598, 6
      %v5601 = vshll.u32 %v5274, 16
      %v5603 = vrot.slane %v5601, 7
      %v5604 = vor.u32 %v5600, %v5603
      %v5605 = vsel %vm3106, %v5596, %v5604
      %v5606 = vrot.slane %v5604, 4
      %v5608 = vshrl.u32 %v5275, 16
      %v5610 = vrot.slane %v5608, 6
      %v5611 = vshll.u32 %v5275, 16
      %v5613 = vrot.slane %v5611, 7
      %v5614 = vor.u32 %v5610, %v5613
      %v5615 = vsel %vm3106, %v5606, %v5614
      %v5616 = vrot.slane %v5614, 4
      %v5618 = vshrl.u32 %v5276, 16
      %v5620 = vrot.slane %v5618, 6
      %v5621 = vshll.u32 %v5276, 16
      %v5623 = vrot.slane %v5621, 7
      %v5624 = vor.u32 %v5620, %v5623
      %v5625 = vsel %vm3106, %v5616, %v5624
      %v5626 = vrot.slane %v5624, 4
      %v5628 = vshrl.u32 %v5277, 16
      %v5630 = vrot.slane %v5628, 6
      %v5631 = vshll.u32 %v5277, 16
      %v5633 = vrot.slane %v5631, 7
      %v5634 = vor.u32 %v5630, %v5633
      %v5635 = vsel %vm3106, %v5626, %v5634
      %v5636 = vrot.slane %v5634, 4
      %v5674 = vld [vmem:[#allocation4 + $0x8] sm:$0xe]
      %v5675 = vsel %vm3505, %v5285, %v5674
      %5676 = vst [vmem:[#allocation4 + $0x8] sm:$0xe] %v5675
      %5677 = vst.msk [vmem:[#allocation4 + $0xc] sm:$0xf] %vm377, %v5295
      %5678 = vst.msk [vmem:[#allocation4 + $0x10] sm:$0xf] %vm377, %v5305
      %5679 = vst.msk [vmem:[#allocation4 + $0x14] sm:$0xf] %vm377, %v5315
      %5680 = vst.msk [vmem:[#allocation4 + $0x18] sm:$0xf] %vm377, %v5325
      %5681 = vst.msk [vmem:[#allocation4 + $0x1c] sm:$0xf] %vm377, %v5335
      %5682 = vst.msk [vmem:[#allocation4 + $0x20] sm:$0xf] %vm377, %v5345
      %5683 = vst.msk [vmem:[#allocation4 + $0x24] sm:$0xf] %vm377, %v5355
      %5684 = vst.msk [vmem:[#allocation4 + $0x28] sm:$0xf] %vm377, %v5365
      %5685 = vst.msk [vmem:[#allocation4 + $0x2c] sm:$0xf] %vm377, %v5375
      %5686 = vst.msk [vmem:[#allocation4 + $0x30] sm:$0xf] %vm377, %v5385
      %5687 = vst.msk [vmem:[#allocation4 + $0x34] sm:$0xf] %vm377, %v5395
      %5688 = vst.msk [vmem:[#allocation4 + $0x38] sm:$0xf] %vm377, %v5405
      %5689 = vst.msk [vmem:[#allocation4 + $0x3c] sm:$0xf] %vm377, %v5415
      %5690 = vst.msk [vmem:[#allocation4 + $0x40] sm:$0xf] %vm377, %v5425
      %5691 = vst.msk [vmem:[#allocation4 + $0x44] sm:$0xf] %vm377, %v5435
      %5692 = vst.msk [vmem:[#allocation4 + $0x48] sm:$0xf] %vm377, %v5445
      %5693 = vst.msk [vmem:[#allocation4 + $0x4c] sm:$0xf] %vm377, %v5455
      %5694 = vst.msk [vmem:[#allocation4 + $0x50] sm:$0xf] %vm377, %v5465
      %5695 = vst.msk [vmem:[#allocation4 + $0x54] sm:$0xf] %vm377, %v5475
      %5696 = vst.msk [vmem:[#allocation4 + $0x58] sm:$0xf] %vm377, %v5485
      %5697 = vst.msk [vmem:[#allocation4 + $0x5c] sm:$0xf] %vm377, %v5495
      %5698 = vst.msk [vmem:[#allocation4 + $0x60] sm:$0xf] %vm377, %v5505
      %5699 = vst.msk [vmem:[#allocation4 + $0x64] sm:$0xf] %vm377, %v5515
      %5700 = vst.msk [vmem:[#allocation4 + $0x68] sm:$0xf] %vm377, %v5525
      %5701 = vst.msk [vmem:[#allocation4 + $0x6c] sm:$0xf] %vm377, %v5535
      %5702 = vst.msk [vmem:[#allocation4 + $0x70] sm:$0xf] %vm377, %v5545
      %5703 = vst.msk [vmem:[#allocation4 + $0x74] sm:$0xf] %vm377, %v5555
      %5704 = vst.msk [vmem:[#allocation4 + $0x78] sm:$0xf] %vm377, %v5565
      %5705 = vst.msk [vmem:[#allocation4 + $0x7c] sm:$0xf] %vm377, %v5575
      %5706 = vst.msk [vmem:[#allocation4 + $0x80] sm:$0xf] %vm377, %v5585
      %5707 = vst.msk [vmem:[#allocation4 + $0x84] sm:$0xf] %vm377, %v5595
      %5708 = vst.msk [vmem:[#allocation4 + $0x88] sm:$0xf] %vm377, %v5605
      %5709 = vst.msk [vmem:[#allocation4 + $0x8c] sm:$0xf] %vm377, %v5615
      %5710 = vst.msk [vmem:[#allocation4 + $0x90] sm:$0xf] %vm377, %v5625
      %5711 = vst.msk [vmem:[#allocation4 + $0x94] sm:$0xf] %vm377, %v5635
      %v5712 = vld [vmem:[#allocation4 + $0x98] sm:$0x3]
      %v5713 = vsel %vm381, %v5636, %v5712
      %5714 = vst [vmem:[#allocation4 + $0x98] sm:$0x3] %v5713
      %v5715 = vld [vmem:[#allocation4] sm:$0xf]
      %v5716 = vld [vmem:[#allocation4 + $0x4] sm:$0xf]
      %v5717 = vld [vmem:[#allocation4 + $0x8] sm:$0xf]
      %v5718 = vld [vmem:[#allocation4 + $0xc] sm:$0xf]
      %v5719 = vld [vmem:[#allocation4 + $0x10] sm:$0xf]
      %v5720 = vld [vmem:[#allocation4 + $0x14] sm:$0xf]
      %v5721 = vld [vmem:[#allocation4 + $0x18] sm:$0xf]
      %v5722 = vld [vmem:[#allocation4 + $0x1c] sm:$0xf]
      %v5723 = vld [vmem:[#allocation4 + $0x20] sm:$0xf]
      %v5724 = vld [vmem:[#allocation4 + $0x24] sm:$0xf]
      %v5725 = vld [vmem:[#allocation4 + $0x28] sm:$0xf]
      %v5726 = vld [vmem:[#allocation4 + $0x2c] sm:$0xf]
      %v5727 = vld [vmem:[#allocation4 + $0x30] sm:$0xf]
      %v5728 = vld [vmem:[#allocation4 + $0x34] sm:$0xf]
      %v5729 = vld [vmem:[#allocation4 + $0x38] sm:$0xf]
      %v5730 = vld [vmem:[#allocation4 + $0x3c] sm:$0xf]
      %v5731 = vld [vmem:[#allocation4 + $0x40] sm:$0xf]
      %v5732 = vld [vmem:[#allocation4 + $0x44] sm:$0xf]
      %v5733 = vld [vmem:[#allocation4 + $0x48] sm:$0xf]
      %v5734 = vld [vmem:[#allocation4 + $0x4c] sm:$0xf]
      %v5735 = vld [vmem:[#allocation4 + $0x50] sm:$0xf]
      %v5736 = vld [vmem:[#allocation4 + $0x54] sm:$0xf]
      %v5737 = vld [vmem:[#allocation4 + $0x58] sm:$0xf]
      %v5738 = vld [vmem:[#allocation4 + $0x5c] sm:$0xf]
      %v5739 = vld [vmem:[#allocation4 + $0x60] sm:$0xf]
      %v5740 = vld [vmem:[#allocation4 + $0x64] sm:$0xf]
      %v5741 = vld [vmem:[#allocation4 + $0x68] sm:$0xf]
      %v5742 = vld [vmem:[#allocation4 + $0x6c] sm:$0xf]
      %v5743 = vld [vmem:[#allocation4 + $0x70] sm:$0xf]
      %v5744 = vld [vmem:[#allocation4 + $0x74] sm:$0xf]
      %v5745 = vld [vmem:[#allocation4 + $0x78] sm:$0xf]
      %v5746 = vld [vmem:[#allocation4 + $0x7c] sm:$0xf]
      %v5747 = vld [vmem:[#allocation4 + $0x80] sm:$0xf]
      %v5748 = vld [vmem:[#allocation4 + $0x84] sm:$0xf]
      %v5749 = vld [vmem:[#allocation4 + $0x88] sm:$0xf]
      %v5750 = vld [vmem:[#allocation4 + $0x8c] sm:$0xf]
      %v5751 = vld [vmem:[#allocation4 + $0x90] sm:$0x1]
      %v5752 = vld [vmem:[#allocation4] sm:$0xe]
      %v5753 = vld [vmem:[#allocation4 + $0x8] sm:$0xe]
      %v5754 = vld [vmem:[#allocation4 + $0x90] sm:$0xf]
      %v5755 = vld [vmem:[#allocation4 + $0x94] sm:$0xf]
      %v5756 = vld [vmem:[#allocation4 + $0x98] sm:$0x1]
      %v5757 = vld [vmem:[#allocation4 + $0x98] sm:$0x3]
      %v5758 = vld [vmem:[#allocation4 + $0x8] sm:$0xc]
      %v5759 = vld [vmem:[#allocation4 + $0x10] sm:$0xc]
      %v5760 = vld [vmem:[#allocation4 + $0x98] sm:$0xf]
      %v5761 = vld [vmem:[#allocation4 + $0x9c] sm:$0xf]
      %v5762 = vld [vmem:[#allocation4 + $0xa0] sm:$0x3]
      %v5763 = vld [vmem:[#allocation4 + $0xa0] sm:$0x7]
      %v5764 = vld [vmem:[#allocation4 + $0x10] sm:$0x8]
      %v5801 = vunpack.c.l.b16 %v5715
      %v5802 = vunpack.c.l.b16 %v5716
      %v5803 = vunpack.c.l.b16 %v5717
      %v5804 = vunpack.c.l.b16 %v5718
      %v5805 = vunpack.c.l.b16 %v5719
      %v5806 = vunpack.c.l.b16 %v5720
      %v5807 = vunpack.c.l.b16 %v5721
      %v5808 = vunpack.c.l.b16 %v5722
      %v5809 = vunpack.c.l.b16 %v5723
      %v5810 = vunpack.c.l.b16 %v5724
      %v5811 = vunpack.c.l.b16 %v5725
      %v5812 = vunpack.c.l.b16 %v5726
      %v5813 = vunpack.c.l.b16 %v5727
      %v5814 = vunpack.c.l.b16 %v5728
      %v5815 = vunpack.c.l.b16 %v5729
      %v5816 = vunpack.c.l.b16 %v5730
      %v5817 = vunpack.c.l.b16 %v5731
      %v5818 = vunpack.c.l.b16 %v5732
      %v5819 = vunpack.c.l.b16 %v5733
      %v5820 = vunpack.c.l.b16 %v5734
      %v5821 = vunpack.c.l.b16 %v5735
      %v5822 = vunpack.c.l.b16 %v5736
      %v5823 = vunpack.c.l.b16 %v5737
      %v5824 = vunpack.c.l.b16 %v5738
      %v5825 = vunpack.c.l.b16 %v5739
      %v5826 = vunpack.c.l.b16 %v5740
      %v5827 = vunpack.c.l.b16 %v5741
      %v5828 = vunpack.c.l.b16 %v5742
      %v5829 = vunpack.c.l.b16 %v5743
      %v5830 = vunpack.c.l.b16 %v5744
      %v5831 = vunpack.c.l.b16 %v5745
      %v5832 = vunpack.c.l.b16 %v5746
      %v5833 = vunpack.c.l.b16 %v5747
      %v5834 = vunpack.c.l.b16 %v5748
      %v5835 = vunpack.c.l.b16 %v5749
      %v5836 = vunpack.c.l.b16 %v5750
      %v5837 = vpack.c.b16 %v5802, %v5801
      %v5838 = vpack.c.b16 %v5804, %v5803
      %v5839 = vpack.c.b16 %v5806, %v5805
      %v5840 = vpack.c.b16 %v5808, %v5807
      %v5841 = vpack.c.b16 %v5810, %v5809
      %v5842 = vpack.c.b16 %v5812, %v5811
      %v5843 = vpack.c.b16 %v5814, %v5813
      %v5844 = vpack.c.b16 %v5816, %v5815
      %v5845 = vpack.c.b16 %v5818, %v5817
      %v5846 = vpack.c.b16 %v5820, %v5819
      %v5847 = vpack.c.b16 %v5822, %v5821
      %v5848 = vpack.c.b16 %v5824, %v5823
      %v5849 = vpack.c.b16 %v5826, %v5825
      %v5850 = vpack.c.b16 %v5828, %v5827
      %v5851 = vpack.c.b16 %v5830, %v5829
      %v5852 = vpack.c.b16 %v5832, %v5831
      %v5853 = vpack.c.b16 %v5834, %v5833
      %v5854 = vpack.c.b16 %v5836, %v5835
      %v5856 = vunpack.c.l.b16 %v5751
      %v5857 = vpack.c.b16 %v5856, %v5856
      %v5859 = vshrl.u32 %v5837, 16
      %v5861 = vshll.u32 %v5837, 16
      %v5863 = vrot.slane %v5861, 1
      %v5864 = vor.u32 %v5859, %v5863
      %v5866 = vshll.u32 %v5838, 16
      %v5868 = vrot.slane %v5866, 1
      %v5869 = vsel %vm874, %v5864, %v5868
      %v5870 = vshrl.u32 %v5838, 16
      %v5872 = vor.u32 %v5870, %v5868
      %v5874 = vshll.u32 %v5839, 16
      %v5876 = vrot.slane %v5874, 1
      %v5877 = vsel %vm874, %v5872, %v5876
      %v5878 = vshrl.u32 %v5839, 16
      %v5880 = vor.u32 %v5878, %v5876
      %v5882 = vshll.u32 %v5840, 16
      %v5884 = vrot.slane %v5882, 1
      %v5885 = vsel %vm874, %v5880, %v5884
      %v5886 = vshrl.u32 %v5840, 16
      %v5888 = vor.u32 %v5886, %v5884
      %v5890 = vshll.u32 %v5841, 16
      %v5892 = vrot.slane %v5890, 1
      %v5893 = vsel %vm874, %v5888, %v5892
      %v5894 = vshrl.u32 %v5841, 16
      %v5896 = vor.u32 %v5894, %v5892
      %v5898 = vshll.u32 %v5842, 16
      %v5900 = vrot.slane %v5898, 1
      %v5901 = vsel %vm874, %v5896, %v5900
      %v5902 = vshrl.u32 %v5842, 16
      %v5904 = vor.u32 %v5902, %v5900
      %v5906 = vshll.u32 %v5843, 16
      %v5908 = vrot.slane %v5906, 1
      %v5909 = vsel %vm874, %v5904, %v5908
      %v5910 = vshrl.u32 %v5843, 16
      %v5912 = vor.u32 %v5910, %v5908
      %v5914 = vshll.u32 %v5844, 16
      %v5916 = vrot.slane %v5914, 1
      %v5917 = vsel %vm874, %v5912, %v5916
      %v5918 = vshrl.u32 %v5844, 16
      %v5920 = vor.u32 %v5918, %v5916
      %v5922 = vshll.u32 %v5845, 16
      %v5924 = vrot.slane %v5922, 1
      %v5925 = vsel %vm874, %v5920, %v5924
      %v5926 = vshrl.u32 %v5845, 16
      %v5928 = vor.u32 %v5926, %v5924
      %v5930 = vshll.u32 %v5846, 16
      %v5932 = vrot.slane %v5930, 1
      %v5933 = vsel %vm874, %v5928, %v5932
      %v5934 = vshrl.u32 %v5846, 16
      %v5936 = vor.u32 %v5934, %v5932
      %v5938 = vshll.u32 %v5847, 16
      %v5940 = vrot.slane %v5938, 1
      %v5941 = vsel %vm874, %v5936, %v5940
      %v5942 = vshrl.u32 %v5847, 16
      %v5944 = vor.u32 %v5942, %v5940
      %v5946 = vshll.u32 %v5848, 16
      %v5948 = vrot.slane %v5946, 1
      %v5949 = vsel %vm874, %v5944, %v5948
      %v5950 = vshrl.u32 %v5848, 16
      %v5952 = vor.u32 %v5950, %v5948
      %v5954 = vshll.u32 %v5849, 16
      %v5956 = vrot.slane %v5954, 1
      %v5957 = vsel %vm874, %v5952, %v5956
      %v5958 = vshrl.u32 %v5849, 16
      %v5960 = vor.u32 %v5958, %v5956
      %v5962 = vshll.u32 %v5850, 16
      %v5964 = vrot.slane %v5962, 1
      %v5965 = vsel %vm874, %v5960, %v5964
      %v5966 = vshrl.u32 %v5850, 16
      %v5968 = vor.u32 %v5966, %v5964
      %v5970 = vshll.u32 %v5851, 16
      %v5972 = vrot.slane %v5970, 1
      %v5973 = vsel %vm874, %v5968, %v5972
      %v5974 = vshrl.u32 %v5851, 16
      %v5976 = vor.u32 %v5974, %v5972
      %v5978 = vshll.u32 %v5852, 16
      %v5980 = vrot.slane %v5978, 1
      %v5981 = vsel %vm874, %v5976, %v5980
      %v5982 = vshrl.u32 %v5852, 16
      %v5984 = vor.u32 %v5982, %v5980
      %v5986 = vshll.u32 %v5853, 16
      %v5988 = vrot.slane %v5986, 1
      %v5989 = vsel %vm874, %v5984, %v5988
      %v5990 = vshrl.u32 %v5853, 16
      %v5992 = vor.u32 %v5990, %v5988
      %v5994 = vshll.u32 %v5854, 16
      %v5996 = vrot.slane %v5994, 1
      %v5997 = vsel %vm874, %v5992, %v5996
      %v5998 = vshrl.u32 %v5854, 16
      %v6000 = vor.u32 %v5998, %v5996
      %v6002 = vshll.u32 %v5857, 16
      %v6004 = vrot.slane %v6002, 1
      %v6005 = vsel %vm874, %v6000, %v6004
      %6006 = vrot.lane.b32.xlu0 %v5869, 8
      %v6007 = vpop.permute.xlu0 %6006
      %6008 = vrot.lane.b32.xlu0 %v5877, 8
      %v6009 = vpop.permute.xlu0 %6008
      %6010 = vrot.lane.b32.xlu0 %v5885, 8
      %v6011 = vpop.permute.xlu0 %6010
      %6012 = vrot.lane.b32.xlu0 %v5893, 8
      %v6013 = vpop.permute.xlu0 %6012
      %6014 = vrot.lane.b32.xlu0 %v5901, 8
      %v6015 = vpop.permute.xlu0 %6014
      %6016 = vrot.lane.b32.xlu0 %v5909, 8
      %v6017 = vpop.permute.xlu0 %6016
      %6018 = vrot.lane.b32.xlu0 %v5917, 8
      %v6019 = vpop.permute.xlu0 %6018
      %6020 = vrot.lane.b32.xlu0 %v5925, 8
      %v6021 = vpop.permute.xlu0 %6020
      %6022 = vrot.lane.b32.xlu0 %v5933, 8
      %v6023 = vpop.permute.xlu0 %6022
      %6024 = vrot.lane.b32.xlu0 %v5941, 8
      %v6025 = vpop.permute.xlu0 %6024
      %6026 = vrot.lane.b32.xlu0 %v5949, 8
      %v6027 = vpop.permute.xlu0 %6026
      %6028 = vrot.lane.b32.xlu0 %v5957, 8
      %v6029 = vpop.permute.xlu0 %6028
      %6030 = vrot.lane.b32.xlu0 %v5965, 8
      %v6031 = vpop.permute.xlu0 %6030
      %6032 = vrot.lane.b32.xlu0 %v5973, 8
      %v6033 = vpop.permute.xlu0 %6032
      %6034 = vrot.lane.b32.xlu0 %v5981, 8
      %v6035 = vpop.permute.xlu0 %6034
      %6036 = vrot.lane.b32.xlu0 %v5989, 8
      %v6037 = vpop.permute.xlu0 %6036
      %6038 = vrot.lane.b32.xlu0 %v5997, 8
      %v6039 = vpop.permute.xlu0 %6038
      %6040 = vrot.lane.b32.xlu0 %v6005, 8
      %v6041 = vpop.permute.xlu0 %6040
      %v6043 = vunpack.c.l.b16 %v5752
      %v6044 = vpack.c.b16 %v5802, %v6043
      %v6045 = vrot.slane %v6044, 1
      %v6046 = vrot.slane %v5838, 1
      %v6047 = vsel %vm1062, %v6045, %v6046
      %v6048 = vrot.slane %v5839, 1
      %v6049 = vsel %vm1062, %v6046, %v6048
      %v6050 = vrot.slane %v5840, 1
      %v6051 = vsel %vm1062, %v6048, %v6050
      %v6052 = vrot.slane %v5841, 1
      %v6053 = vsel %vm1062, %v6050, %v6052
      %v6054 = vrot.slane %v5842, 1
      %v6055 = vsel %vm1062, %v6052, %v6054
      %v6056 = vrot.slane %v5843, 1
      %v6057 = vsel %vm1062, %v6054, %v6056
      %v6058 = vrot.slane %v5844, 1
      %v6059 = vsel %vm1062, %v6056, %v6058
      %v6060 = vrot.slane %v5845, 1
      %v6061 = vsel %vm1062, %v6058, %v6060
      %v6062 = vrot.slane %v5846, 1
      %v6063 = vsel %vm1062, %v6060, %v6062
      %v6064 = vrot.slane %v5847, 1
      %v6065 = vsel %vm1062, %v6062, %v6064
      %v6066 = vrot.slane %v5848, 1
      %v6067 = vsel %vm1062, %v6064, %v6066
      %v6068 = vrot.slane %v5849, 1
      %v6069 = vsel %vm1062, %v6066, %v6068
      %v6070 = vrot.slane %v5850, 1
      %v6071 = vsel %vm1062, %v6068, %v6070
      %v6072 = vrot.slane %v5851, 1
      %v6073 = vsel %vm1062, %v6070, %v6072
      %v6074 = vrot.slane %v5852, 1
      %v6075 = vsel %vm1062, %v6072, %v6074
      %v6076 = vrot.slane %v5853, 1
      %v6077 = vsel %vm1062, %v6074, %v6076
      %v6078 = vrot.slane %v5854, 1
      %v6079 = vsel %vm1062, %v6076, %v6078
      %v6080 = vrot.slane %v5857, 1
      %v6081 = vsel %vm1062, %v6078, %v6080
      %6082 = vrot.lane.b32.xlu0 %v6047, 16
      %v6083 = vpop.permute.xlu0 %6082
      %6084 = vrot.lane.b32.xlu0 %v6049, 16
      %v6085 = vpop.permute.xlu0 %6084
      %6086 = vrot.lane.b32.xlu0 %v6051, 16
      %v6087 = vpop.permute.xlu0 %6086
      %6088 = vrot.lane.b32.xlu0 %v6053, 16
      %v6089 = vpop.permute.xlu0 %6088
      %6090 = vrot.lane.b32.xlu0 %v6055, 16
      %v6091 = vpop.permute.xlu0 %6090
      %6092 = vrot.lane.b32.xlu0 %v6057, 16
      %v6093 = vpop.permute.xlu0 %6092
      %6094 = vrot.lane.b32.xlu0 %v6059, 16
      %v6095 = vpop.permute.xlu0 %6094
      %6096 = vrot.lane.b32.xlu0 %v6061, 16
      %v6097 = vpop.permute.xlu0 %6096
      %6098 = vrot.lane.b32.xlu0 %v6063, 16
      %v6099 = vpop.permute.xlu0 %6098
      %6100 = vrot.lane.b32.xlu0 %v6065, 16
      %v6101 = vpop.permute.xlu0 %6100
      %6102 = vrot.lane.b32.xlu0 %v6067, 16
      %v6103 = vpop.permute.xlu0 %6102
      %6104 = vrot.lane.b32.xlu0 %v6069, 16
      %v6105 = vpop.permute.xlu0 %6104
      %6106 = vrot.lane.b32.xlu0 %v6071, 16
      %v6107 = vpop.permute.xlu0 %6106
      %6108 = vrot.lane.b32.xlu0 %v6073, 16
      %v6109 = vpop.permute.xlu0 %6108
      %6110 = vrot.lane.b32.xlu0 %v6075, 16
      %v6111 = vpop.permute.xlu0 %6110
      %6112 = vrot.lane.b32.xlu0 %v6077, 16
      %v6113 = vpop.permute.xlu0 %6112
      %6114 = vrot.lane.b32.xlu0 %v6079, 16
      %v6115 = vpop.permute.xlu0 %6114
      %6116 = vrot.lane.b32.xlu0 %v6081, 16
      %v6117 = vpop.permute.xlu0 %6116
      %v6122 = vunpack.c.l.b16 %v5753
      %v6123 = vunpack.c.l.b16 %v5754
      %v6124 = vunpack.c.l.b16 %v5755
      %v6125 = vunpack.c.l.b16 %v5756
      %v6126 = vpack.c.b16 %v5804, %v6122
      %v6127 = vpack.c.b16 %v6124, %v6123
      %v6128 = vpack.c.b16 %v6125, %v6125
      %v6129 = vrot.slane %v6126, 1
      %v6130 = vsel %vm1062, %v6129, %v6048
      %v6131 = vrot.slane %v6127, 1
      %v6132 = vsel %vm1062, %v6078, %v6131
      %v6133 = vrot.slane %v6128, 1
      %v6134 = vsel %vm1062, %v6131, %v6133
      %6135 = vrot.lane.b32.xlu0 %v6130, 24
      %v6136 = vpop.permute.xlu0 %6135
      %6137 = vrot.lane.b32.xlu0 %v6051, 24
      %v6138 = vpop.permute.xlu0 %6137
      %6139 = vrot.lane.b32.xlu0 %v6053, 24
      %v6140 = vpop.permute.xlu0 %6139
      %6141 = vrot.lane.b32.xlu0 %v6055, 24
      %v6142 = vpop.permute.xlu0 %6141
      %6143 = vrot.lane.b32.xlu0 %v6057, 24
      %v6144 = vpop.permute.xlu0 %6143
      %6145 = vrot.lane.b32.xlu0 %v6059, 24
      %v6146 = vpop.permute.xlu0 %6145
      %6147 = vrot.lane.b32.xlu0 %v6061, 24
      %v6148 = vpop.permute.xlu0 %6147
      %6149 = vrot.lane.b32.xlu0 %v6063, 24
      %v6150 = vpop.permute.xlu0 %6149
      %6151 = vrot.lane.b32.xlu0 %v6065, 24
      %v6152 = vpop.permute.xlu0 %6151
      %6153 = vrot.lane.b32.xlu0 %v6067, 24
      %v6154 = vpop.permute.xlu0 %6153
      %6155 = vrot.lane.b32.xlu0 %v6069, 24
      %v6156 = vpop.permute.xlu0 %6155
      %6157 = vrot.lane.b32.xlu0 %v6071, 24
      %v6158 = vpop.permute.xlu0 %6157
      %6159 = vrot.lane.b32.xlu0 %v6073, 24
      %v6160 = vpop.permute.xlu0 %6159
      %6161 = vrot.lane.b32.xlu0 %v6075, 24
      %v6162 = vpop.permute.xlu0 %6161
      %6163 = vrot.lane.b32.xlu0 %v6077, 24
      %v6164 = vpop.permute.xlu0 %6163
      %6165 = vrot.lane.b32.xlu0 %v6079, 24
      %v6166 = vpop.permute.xlu0 %6165
      %6167 = vrot.lane.b32.xlu0 %v6132, 24
      %v6168 = vpop.permute.xlu0 %6167
      %6169 = vrot.lane.b32.xlu0 %v6134, 24
      %v6170 = vpop.permute.xlu0 %6169
      %v6172 = vunpack.c.l.b16 %v5757
      %v6173 = vpack.c.b16 %v6172, %v6172
      %v6175 = vshrl.u32 %v6126, 16
      %v6177 = vrot.slane %v6175, 1
      %v6178 = vshll.u32 %v6126, 16
      %v6180 = vrot.slane %v6178, 2
      %v6181 = vor.u32 %v6177, %v6180
      %v6182 = vrot.slane %v5878, 1
      %v6183 = vrot.slane %v5874, 2
      %v6184 = vor.u32 %v6182, %v6183
      %v6185 = vsel %vm1192, %v6181, %v6184
      %v6186 = vrot.slane %v5886, 1
      %v6187 = vrot.slane %v5882, 2
      %v6188 = vor.u32 %v6186, %v6187
      %v6189 = vsel %vm1192, %v6184, %v6188
      %v6190 = vrot.slane %v5894, 1
      %v6191 = vrot.slane %v5890, 2
      %v6192 = vor.u32 %v6190, %v6191
      %v6193 = vsel %vm1192, %v6188, %v6192
      %v6194 = vrot.slane %v5902, 1
      %v6195 = vrot.slane %v5898, 2
      %v6196 = vor.u32 %v6194, %v6195
      %v6197 = vsel %vm1192, %v6192, %v6196
      %v6198 = vrot.slane %v5910, 1
      %v6199 = vrot.slane %v5906, 2
      %v6200 = vor.u32 %v6198, %v6199
      %v6201 = vsel %vm1192, %v6196, %v6200
      %v6202 = vrot.slane %v5918, 1
      %v6203 = vrot.slane %v5914, 2
      %v6204 = vor.u32 %v6202, %v6203
      %v6205 = vsel %vm1192, %v6200, %v6204
      %v6206 = vrot.slane %v5926, 1
      %v6207 = vrot.slane %v5922, 2
      %v6208 = vor.u32 %v6206, %v6207
      %v6209 = vsel %vm1192, %v6204, %v6208
      %v6210 = vrot.slane %v5934, 1
      %v6211 = vrot.slane %v5930, 2
      %v6212 = vor.u32 %v6210, %v6211
      %v6213 = vsel %vm1192, %v6208, %v6212
      %v6214 = vrot.slane %v5942, 1
      %v6215 = vrot.slane %v5938, 2
      %v6216 = vor.u32 %v6214, %v6215
      %v6217 = vsel %vm1192, %v6212, %v6216
      %v6218 = vrot.slane %v5950, 1
      %v6219 = vrot.slane %v5946, 2
      %v6220 = vor.u32 %v6218, %v6219
      %v6221 = vsel %vm1192, %v6216, %v6220
      %v6222 = vrot.slane %v5958, 1
      %v6223 = vrot.slane %v5954, 2
      %v6224 = vor.u32 %v6222, %v6223
      %v6225 = vsel %vm1192, %v6220, %v6224
      %v6226 = vrot.slane %v5966, 1
      %v6227 = vrot.slane %v5962, 2
      %v6228 = vor.u32 %v6226, %v6227
      %v6229 = vsel %vm1192, %v6224, %v6228
      %v6230 = vrot.slane %v5974, 1
      %v6231 = vrot.slane %v5970, 2
      %v6232 = vor.u32 %v6230, %v6231
      %v6233 = vsel %vm1192, %v6228, %v6232
      %v6234 = vrot.slane %v5982, 1
      %v6235 = vrot.slane %v5978, 2
      %v6236 = vor.u32 %v6234, %v6235
      %v6237 = vsel %vm1192, %v6232, %v6236
      %v6238 = vrot.slane %v5990, 1
      %v6239 = vrot.slane %v5986, 2
      %v6240 = vor.u32 %v6238, %v6239
      %v6241 = vsel %vm1192, %v6236, %v6240
      %v6242 = vrot.slane %v5998, 1
      %v6243 = vrot.slane %v5994, 2
      %v6244 = vor.u32 %v6242, %v6243
      %v6245 = vsel %vm1192, %v6240, %v6244
      %v6247 = vshrl.u32 %v6127, 16
      %v6249 = vrot.slane %v6247, 1
      %v6250 = vshll.u32 %v6127, 16
      %v6252 = vrot.slane %v6250, 2
      %v6253 = vor.u32 %v6249, %v6252
      %v6254 = vsel %vm1192, %v6244, %v6253
      %v6256 = vshrl.u32 %v6173, 16
      %v6258 = vrot.slane %v6256, 1
      %v6259 = vshll.u32 %v6173, 16
      %v6261 = vrot.slane %v6259, 2
      %v6262 = vor.u32 %v6258, %v6261
      %v6263 = vsel %vm1192, %v6253, %v6262
      %6264 = vrot.lane.b32.xlu0 %v6185, 32
      %v6265 = vpop.permute.xlu0 %6264
      %6266 = vrot.lane.b32.xlu0 %v6189, 32
      %v6267 = vpop.permute.xlu0 %6266
      %6268 = vrot.lane.b32.xlu0 %v6193, 32
      %v6269 = vpop.permute.xlu0 %6268
      %6270 = vrot.lane.b32.xlu0 %v6197, 32
      %v6271 = vpop.permute.xlu0 %6270
      %6272 = vrot.lane.b32.xlu0 %v6201, 32
      %v6273 = vpop.permute.xlu0 %6272
      %6274 = vrot.lane.b32.xlu0 %v6205, 32
      %v6275 = vpop.permute.xlu0 %6274
      %6276 = vrot.lane.b32.xlu0 %v6209, 32
      %v6277 = vpop.permute.xlu0 %6276
      %6278 = vrot.lane.b32.xlu0 %v6213, 32
      %v6279 = vpop.permute.xlu0 %6278
      %6280 = vrot.lane.b32.xlu0 %v6217, 32
      %v6281 = vpop.permute.xlu0 %6280
      %6282 = vrot.lane.b32.xlu0 %v6221, 32
      %v6283 = vpop.permute.xlu0 %6282
      %6284 = vrot.lane.b32.xlu0 %v6225, 32
      %v6285 = vpop.permute.xlu0 %6284
      %6286 = vrot.lane.b32.xlu0 %v6229, 32
      %v6287 = vpop.permute.xlu0 %6286
      %6288 = vrot.lane.b32.xlu0 %v6233, 32
      %v6289 = vpop.permute.xlu0 %6288
      %6290 = vrot.lane.b32.xlu0 %v6237, 32
      %v6291 = vpop.permute.xlu0 %6290
      %6292 = vrot.lane.b32.xlu0 %v6241, 32
      %v6293 = vpop.permute.xlu0 %6292
      %6294 = vrot.lane.b32.xlu0 %v6245, 32
      %v6295 = vpop.permute.xlu0 %6294
      %6296 = vrot.lane.b32.xlu0 %v6254, 32
      %v6297 = vpop.permute.xlu0 %6296
      %6298 = vrot.lane.b32.xlu0 %v6263, 32
      %v6299 = vpop.permute.xlu0 %6298
      %v6301 = vunpack.c.l.b16 %v5758
      %v6302 = vpack.c.b16 %v5804, %v6301
      %v6303 = vrot.slane %v6302, 2
      %v6304 = vrot.slane %v5839, 2
      %v6305 = vsel %vm1322, %v6303, %v6304
      %v6306 = vrot.slane %v5840, 2
      %v6307 = vsel %vm1322, %v6304, %v6306
      %v6308 = vrot.slane %v5841, 2
      %v6309 = vsel %vm1322, %v6306, %v6308
      %v6310 = vrot.slane %v5842, 2
      %v6311 = vsel %vm1322, %v6308, %v6310
      %v6312 = vrot.slane %v5843, 2
      %v6313 = vsel %vm1322, %v6310, %v6312
      %v6314 = vrot.slane %v5844, 2
      %v6315 = vsel %vm1322, %v6312, %v6314
      %v6316 = vrot.slane %v5845, 2
      %v6317 = vsel %vm1322, %v6314, %v6316
      %v6318 = vrot.slane %v5846, 2
      %v6319 = vsel %vm1322, %v6316, %v6318
      %v6320 = vrot.slane %v5847, 2
      %v6321 = vsel %vm1322, %v6318, %v6320
      %v6322 = vrot.slane %v5848, 2
      %v6323 = vsel %vm1322, %v6320, %v6322
      %v6324 = vrot.slane %v5849, 2
      %v6325 = vsel %vm1322, %v6322, %v6324
      %v6326 = vrot.slane %v5850, 2
      %v6327 = vsel %vm1322, %v6324, %v6326
      %v6328 = vrot.slane %v5851, 2
      %v6329 = vsel %vm1322, %v6326, %v6328
      %v6330 = vrot.slane %v5852, 2
      %v6331 = vsel %vm1322, %v6328, %v6330
      %v6332 = vrot.slane %v5853, 2
      %v6333 = vsel %vm1322, %v6330, %v6332
      %v6334 = vrot.slane %v5854, 2
      %v6335 = vsel %vm1322, %v6332, %v6334
      %v6336 = vrot.slane %v6127, 2
      %v6337 = vsel %vm1322, %v6334, %v6336
      %v6338 = vrot.slane %v6173, 2
      %v6339 = vsel %vm1322, %v6336, %v6338
      %6340 = vrot.lane.b32.xlu0 %v6305, 40
      %v6341 = vpop.permute.xlu0 %6340
      %6342 = vrot.lane.b32.xlu0 %v6307, 40
      %v6343 = vpop.permute.xlu0 %6342
      %6344 = vrot.lane.b32.xlu0 %v6309, 40
      %v6345 = vpop.permute.xlu0 %6344
      %6346 = vrot.lane.b32.xlu0 %v6311, 40
      %v6347 = vpop.permute.xlu0 %6346
      %6348 = vrot.lane.b32.xlu0 %v6313, 40
      %v6349 = vpop.permute.xlu0 %6348
      %6350 = vrot.lane.b32.xlu0 %v6315, 40
      %v6351 = vpop.permute.xlu0 %6350
      %6352 = vrot.lane.b32.xlu0 %v6317, 40
      %v6353 = vpop.permute.xlu0 %6352
      %6354 = vrot.lane.b32.xlu0 %v6319, 40
      %v6355 = vpop.permute.xlu0 %6354
      %6356 = vrot.lane.b32.xlu0 %v6321, 40
      %v6357 = vpop.permute.xlu0 %6356
      %6358 = vrot.lane.b32.xlu0 %v6323, 40
      %v6359 = vpop.permute.xlu0 %6358
      %6360 = vrot.lane.b32.xlu0 %v6325, 40
      %v6361 = vpop.permute.xlu0 %6360
      %6362 = vrot.lane.b32.xlu0 %v6327, 40
      %v6363 = vpop.permute.xlu0 %6362
      %6364 = vrot.lane.b32.xlu0 %v6329, 40
      %v6365 = vpop.permute.xlu0 %6364
      %6366 = vrot.lane.b32.xlu0 %v6331, 40
      %v6367 = vpop.permute.xlu0 %6366
      %6368 = vrot.lane.b32.xlu0 %v6333, 40
      %v6369 = vpop.permute.xlu0 %6368
      %6370 = vrot.lane.b32.xlu0 %v6335, 40
      %v6371 = vpop.permute.xlu0 %6370
      %6372 = vrot.lane.b32.xlu0 %v6337, 40
      %v6373 = vpop.permute.xlu0 %6372
      %6374 = vrot.lane.b32.xlu0 %v6339, 40
      %v6375 = vpop.permute.xlu0 %6374
      %v6380 = vunpack.c.l.b16 %v5759
      %v6381 = vunpack.c.l.b16 %v5760
      %v6382 = vunpack.c.l.b16 %v5761
      %v6383 = vunpack.c.l.b16 %v5762
      %v6384 = vpack.c.b16 %v5806, %v6380
      %v6385 = vpack.c.b16 %v6382, %v6381
      %v6386 = vpack.c.b16 %v6383, %v6383
      %v6387 = vrot.slane %v6384, 2
      %v6388 = vsel %vm1322, %v6387, %v6306
      %v6389 = vrot.slane %v6385, 2
      %v6390 = vsel %vm1322, %v6336, %v6389
      %v6391 = vrot.slane %v6386, 2
      %v6392 = vsel %vm1322, %v6389, %v6391
      %6393 = vrot.lane.b32.xlu0 %v6388, 48
      %v6394 = vpop.permute.xlu0 %6393
      %6395 = vrot.lane.b32.xlu0 %v6309, 48
      %v6396 = vpop.permute.xlu0 %6395
      %6397 = vrot.lane.b32.xlu0 %v6311, 48
      %v6398 = vpop.permute.xlu0 %6397
      %6399 = vrot.lane.b32.xlu0 %v6313, 48
      %v6400 = vpop.permute.xlu0 %6399
      %6401 = vrot.lane.b32.xlu0 %v6315, 48
      %v6402 = vpop.permute.xlu0 %6401
      %6403 = vrot.lane.b32.xlu0 %v6317, 48
      %v6404 = vpop.permute.xlu0 %6403
      %6405 = vrot.lane.b32.xlu0 %v6319, 48
      %v6406 = vpop.permute.xlu0 %6405
      %6407 = vrot.lane.b32.xlu0 %v6321, 48
      %v6408 = vpop.permute.xlu0 %6407
      %6409 = vrot.lane.b32.xlu0 %v6323, 48
      %v6410 = vpop.permute.xlu0 %6409
      %6411 = vrot.lane.b32.xlu0 %v6325, 48
      %v6412 = vpop.permute.xlu0 %6411
      %6413 = vrot.lane.b32.xlu0 %v6327, 48
      %v6414 = vpop.permute.xlu0 %6413
      %6415 = vrot.lane.b32.xlu0 %v6329, 48
      %v6416 = vpop.permute.xlu0 %6415
      %6417 = vrot.lane.b32.xlu0 %v6331, 48
      %v6418 = vpop.permute.xlu0 %6417
      %6419 = vrot.lane.b32.xlu0 %v6333, 48
      %v6420 = vpop.permute.xlu0 %6419
      %6421 = vrot.lane.b32.xlu0 %v6335, 48
      %v6422 = vpop.permute.xlu0 %6421
      %6423 = vrot.lane.b32.xlu0 %v6337, 48
      %v6424 = vpop.permute.xlu0 %6423
      %6425 = vrot.lane.b32.xlu0 %v6390, 48
      %v6426 = vpop.permute.xlu0 %6425
      %6427 = vrot.lane.b32.xlu0 %v6392, 48
      %v6428 = vpop.permute.xlu0 %6427
      %v6430 = vunpack.c.l.b16 %v5763
      %v6431 = vpack.c.b16 %v6430, %v6430
      %v6433 = vshrl.u32 %v6384, 16
      %v6435 = vrot.slane %v6433, 2
      %v6436 = vshll.u32 %v6384, 16
      %v6438 = vrot.slane %v6436, 3
      %v6439 = vor.u32 %v6435, %v6438
      %v6440 = vrot.slane %v5886, 2
      %v6441 = vrot.slane %v5882, 3
      %v6442 = vor.u32 %v6440, %v6441
      %v6443 = vsel %vm1452, %v6439, %v6442
      %v6444 = vrot.slane %v5894, 2
      %v6445 = vrot.slane %v5890, 3
      %v6446 = vor.u32 %v6444, %v6445
      %v6447 = vsel %vm1452, %v6442, %v6446
      %v6448 = vrot.slane %v5902, 2
      %v6449 = vrot.slane %v5898, 3
      %v6450 = vor.u32 %v6448, %v6449
      %v6451 = vsel %vm1452, %v6446, %v6450
      %v6452 = vrot.slane %v5910, 2
      %v6453 = vrot.slane %v5906, 3
      %v6454 = vor.u32 %v6452, %v6453
      %v6455 = vsel %vm1452, %v6450, %v6454
      %v6456 = vrot.slane %v5918, 2
      %v6457 = vrot.slane %v5914, 3
      %v6458 = vor.u32 %v6456, %v6457
      %v6459 = vsel %vm1452, %v6454, %v6458
      %v6460 = vrot.slane %v5926, 2
      %v6461 = vrot.slane %v5922, 3
      %v6462 = vor.u32 %v6460, %v6461
      %v6463 = vsel %vm1452, %v6458, %v6462
      %v6464 = vrot.slane %v5934, 2
      %v6465 = vrot.slane %v5930, 3
      %v6466 = vor.u32 %v6464, %v6465
      %v6467 = vsel %vm1452, %v6462, %v6466
      %v6468 = vrot.slane %v5942, 2
      %v6469 = vrot.slane %v5938, 3
      %v6470 = vor.u32 %v6468, %v6469
      %v6471 = vsel %vm1452, %v6466, %v6470
      %v6472 = vrot.slane %v5950, 2
      %v6473 = vrot.slane %v5946, 3
      %v6474 = vor.u32 %v6472, %v6473
      %v6475 = vsel %vm1452, %v6470, %v6474
      %v6476 = vrot.slane %v5958, 2
      %v6477 = vrot.slane %v5954, 3
      %v6478 = vor.u32 %v6476, %v6477
      %v6479 = vsel %vm1452, %v6474, %v6478
      %v6480 = vrot.slane %v5966, 2
      %v6481 = vrot.slane %v5962, 3
      %v6482 = vor.u32 %v6480, %v6481
      %v6483 = vsel %vm1452, %v6478, %v6482
      %v6484 = vrot.slane %v5974, 2
      %v6485 = vrot.slane %v5970, 3
      %v6486 = vor.u32 %v6484, %v6485
      %v6487 = vsel %vm1452, %v6482, %v6486
      %v6488 = vrot.slane %v5982, 2
      %v6489 = vrot.slane %v5978, 3
      %v6490 = vor.u32 %v6488, %v6489
      %v6491 = vsel %vm1452, %v6486, %v6490
      %v6492 = vrot.slane %v5990, 2
      %v6493 = vrot.slane %v5986, 3
      %v6494 = vor.u32 %v6492, %v6493
      %v6495 = vsel %vm1452, %v6490, %v6494
      %v6496 = vrot.slane %v5998, 2
      %v6497 = vrot.slane %v5994, 3
      %v6498 = vor.u32 %v6496, %v6497
      %v6499 = vsel %vm1452, %v6494, %v6498
      %v6500 = vrot.slane %v6247, 2
      %v6501 = vrot.slane %v6250, 3
      %v6502 = vor.u32 %v6500, %v6501
      %v6503 = vsel %vm1452, %v6498, %v6502
      %v6505 = vshrl.u32 %v6385, 16
      %v6507 = vrot.slane %v6505, 2
      %v6508 = vshll.u32 %v6385, 16
      %v6510 = vrot.slane %v6508, 3
      %v6511 = vor.u32 %v6507, %v6510
      %v6512 = vsel %vm1452, %v6502, %v6511
      %v6514 = vshrl.u32 %v6431, 16
      %v6516 = vrot.slane %v6514, 2
      %v6517 = vshll.u32 %v6431, 16
      %v6519 = vrot.slane %v6517, 3
      %v6520 = vor.u32 %v6516, %v6519
      %v6521 = vsel %vm1452, %v6511, %v6520
      %6522 = vrot.lane.b32.xlu0 %v6443, 56
      %v6523 = vpop.permute.xlu0 %6522
      %6524 = vrot.lane.b32.xlu0 %v6447, 56
      %v6525 = vpop.permute.xlu0 %6524
      %6526 = vrot.lane.b32.xlu0 %v6451, 56
      %v6527 = vpop.permute.xlu0 %6526
      %6528 = vrot.lane.b32.xlu0 %v6455, 56
      %v6529 = vpop.permute.xlu0 %6528
      %6530 = vrot.lane.b32.xlu0 %v6459, 56
      %v6531 = vpop.permute.xlu0 %6530
      %6532 = vrot.lane.b32.xlu0 %v6463, 56
      %v6533 = vpop.permute.xlu0 %6532
      %6534 = vrot.lane.b32.xlu0 %v6467, 56
      %v6535 = vpop.permute.xlu0 %6534
      %6536 = vrot.lane.b32.xlu0 %v6471, 56
      %v6537 = vpop.permute.xlu0 %6536
      %6538 = vrot.lane.b32.xlu0 %v6475, 56
      %v6539 = vpop.permute.xlu0 %6538
      %6540 = vrot.lane.b32.xlu0 %v6479, 56
      %v6541 = vpop.permute.xlu0 %6540
      %6542 = vrot.lane.b32.xlu0 %v6483, 56
      %v6543 = vpop.permute.xlu0 %6542
      %6544 = vrot.lane.b32.xlu0 %v6487, 56
      %v6545 = vpop.permute.xlu0 %6544
      %6546 = vrot.lane.b32.xlu0 %v6491, 56
      %v6547 = vpop.permute.xlu0 %6546
      %6548 = vrot.lane.b32.xlu0 %v6495, 56
      %v6549 = vpop.permute.xlu0 %6548
      %6550 = vrot.lane.b32.xlu0 %v6499, 56
      %v6551 = vpop.permute.xlu0 %6550
      %6552 = vrot.lane.b32.xlu0 %v6503, 56
      %v6553 = vpop.permute.xlu0 %6552
      %6554 = vrot.lane.b32.xlu0 %v6512, 56
      %v6555 = vpop.permute.xlu0 %6554
      %6556 = vrot.lane.b32.xlu0 %v6521, 56
      %v6557 = vpop.permute.xlu0 %6556
      %v6559 = vunpack.c.l.b16 %v5764
      %v6560 = vpack.c.b16 %v5806, %v6559
      %v6561 = vrot.slane %v6560, 3
      %v6562 = vrot.slane %v5840, 3
      %v6563 = vsel %vm1582, %v6561, %v6562
      %v6564 = vrot.slane %v5841, 3
      %v6565 = vsel %vm1582, %v6562, %v6564
      %v6566 = vrot.slane %v5842, 3
      %v6567 = vsel %vm1582, %v6564, %v6566
      %v6568 = vrot.slane %v5843, 3
      %v6569 = vsel %vm1582, %v6566, %v6568
      %v6570 = vrot.slane %v5844, 3
      %v6571 = vsel %vm1582, %v6568, %v6570
      %v6572 = vrot.slane %v5845, 3
      %v6573 = vsel %vm1582, %v6570, %v6572
      %v6574 = vrot.slane %v5846, 3
      %v6575 = vsel %vm1582, %v6572, %v6574
      %v6576 = vrot.slane %v5847, 3
      %v6577 = vsel %vm1582, %v6574, %v6576
      %v6578 = vrot.slane %v5848, 3
      %v6579 = vsel %vm1582, %v6576, %v6578
      %v6580 = vrot.slane %v5849, 3
      %v6581 = vsel %vm1582, %v6578, %v6580
      %v6582 = vrot.slane %v5850, 3
      %v6583 = vsel %vm1582, %v6580, %v6582
      %v6584 = vrot.slane %v5851, 3
      %v6585 = vsel %vm1582, %v6582, %v6584
      %v6586 = vrot.slane %v5852, 3
      %v6587 = vsel %vm1582, %v6584, %v6586
      %v6588 = vrot.slane %v5853, 3
      %v6589 = vsel %vm1582, %v6586, %v6588
      %v6590 = vrot.slane %v5854, 3
      %v6591 = vsel %vm1582, %v6588, %v6590
      %v6592 = vrot.slane %v6127, 3
      %v6593 = vsel %vm1582, %v6590, %v6592
      %v6594 = vrot.slane %v6385, 3
      %v6595 = vsel %vm1582, %v6592, %v6594
      %v6596 = vrot.slane %v6431, 3
      %v6597 = vsel %vm1582, %v6594, %v6596
      %6598 = vrot.lane.b32.xlu0 %v6563, 64
      %v6599 = vpop.permute.xlu0 %6598
      %6600 = vrot.lane.b32.xlu0 %v6565, 64
      %v6601 = vpop.permute.xlu0 %6600
      %6602 = vrot.lane.b32.xlu0 %v6567, 64
      %v6603 = vpop.permute.xlu0 %6602
      %6604 = vrot.lane.b32.xlu0 %v6569, 64
      %v6605 = vpop.permute.xlu0 %6604
      %6606 = vrot.lane.b32.xlu0 %v6571, 64
      %v6607 = vpop.permute.xlu0 %6606
      %6608 = vrot.lane.b32.xlu0 %v6573, 64
      %v6609 = vpop.permute.xlu0 %6608
      %6610 = vrot.lane.b32.xlu0 %v6575, 64
      %v6611 = vpop.permute.xlu0 %6610
      %6612 = vrot.lane.b32.xlu0 %v6577, 64
      %v6613 = vpop.permute.xlu0 %6612
      %6614 = vrot.lane.b32.xlu0 %v6579, 64
      %v6615 = vpop.permute.xlu0 %6614
      %6616 = vrot.lane.b32.xlu0 %v6581, 64
      %v6617 = vpop.permute.xlu0 %6616
      %6618 = vrot.lane.b32.xlu0 %v6583, 64
      %v6619 = vpop.permute.xlu0 %6618
      %6620 = vrot.lane.b32.xlu0 %v6585, 64
      %v6621 = vpop.permute.xlu0 %6620
      %6622 = vrot.lane.b32.xlu0 %v6587, 64
      %v6623 = vpop.permute.xlu0 %6622
      %6624 = vrot.lane.b32.xlu0 %v6589, 64
      %v6625 = vpop.permute.xlu0 %6624
      %6626 = vrot.lane.b32.xlu0 %v6591, 64
      %v6627 = vpop.permute.xlu0 %6626
      %6628 = vrot.lane.b32.xlu0 %v6593, 64
      %v6629 = vpop.permute.xlu0 %6628
      %6630 = vrot.lane.b32.xlu0 %v6595, 64
      %v6631 = vpop.permute.xlu0 %6630
      %6632 = vrot.lane.b32.xlu0 %v6597, 64
      %v6633 = vpop.permute.xlu0 %6632
      %v6635 = vsel %vm1693, %v5837, %v6007
      %v6637 = vsel %vm1693, %v5838, %v6009
      %v6639 = vsel %vm1693, %v5839, %v6011
      %v6641 = vsel %vm1693, %v5840, %v6013
      %v6643 = vsel %vm1693, %v5841, %v6015
      %v6645 = vsel %vm1693, %v5842, %v6017
      %v6647 = vsel %vm1693, %v5843, %v6019
      %v6649 = vsel %vm1693, %v5844, %v6021
      %v6651 = vsel %vm1693, %v5845, %v6023
      %v6653 = vsel %vm1693, %v5846, %v6025
      %v6655 = vsel %vm1693, %v5847, %v6027
      %v6657 = vsel %vm1693, %v5848, %v6029
      %v6659 = vsel %vm1693, %v5849, %v6031
      %v6661 = vsel %vm1693, %v5850, %v6033
      %v6663 = vsel %vm1693, %v5851, %v6035
      %v6665 = vsel %vm1693, %v5852, %v6037
      %v6667 = vsel %vm1693, %v5853, %v6039
      %v6669 = vsel %vm1693, %v5854, %v6041
      %v6671 = vsel %vm1767, %v6635, %v6083
      %v6673 = vsel %vm1767, %v6637, %v6085
      %v6675 = vsel %vm1767, %v6639, %v6087
      %v6677 = vsel %vm1767, %v6641, %v6089
      %v6679 = vsel %vm1767, %v6643, %v6091
      %v6681 = vsel %vm1767, %v6645, %v6093
      %v6683 = vsel %vm1767, %v6647, %v6095
      %v6685 = vsel %vm1767, %v6649, %v6097
      %v6687 = vsel %vm1767, %v6651, %v6099
      %v6689 = vsel %vm1767, %v6653, %v6101
      %v6691 = vsel %vm1767, %v6655, %v6103
      %v6693 = vsel %vm1767, %v6657, %v6105
      %v6695 = vsel %vm1767, %v6659, %v6107
      %v6697 = vsel %vm1767, %v6661, %v6109
      %v6699 = vsel %vm1767, %v6663, %v6111
      %v6701 = vsel %vm1767, %v6665, %v6113
      %v6703 = vsel %vm1767, %v6667, %v6115
      %v6705 = vsel %vm1767, %v6669, %v6117
      %v6707 = vsel %vm1841, %v6671, %v6136
      %v6709 = vsel %vm1841, %v6673, %v6138
      %v6711 = vsel %vm1841, %v6675, %v6140
      %v6713 = vsel %vm1841, %v6677, %v6142
      %v6715 = vsel %vm1841, %v6679, %v6144
      %v6717 = vsel %vm1841, %v6681, %v6146
      %v6719 = vsel %vm1841, %v6683, %v6148
      %v6721 = vsel %vm1841, %v6685, %v6150
      %v6723 = vsel %vm1841, %v6687, %v6152
      %v6725 = vsel %vm1841, %v6689, %v6154
      %v6727 = vsel %vm1841, %v6691, %v6156
      %v6729 = vsel %vm1841, %v6693, %v6158
      %v6731 = vsel %vm1841, %v6695, %v6160
      %v6733 = vsel %vm1841, %v6697, %v6162
      %v6735 = vsel %vm1841, %v6699, %v6164
      %v6737 = vsel %vm1841, %v6701, %v6166
      %v6739 = vsel %vm1841, %v6703, %v6168
      %v6741 = vsel %vm1841, %v6705, %v6170
      %v6743 = vsel %vm1915, %v6707, %v6265
      %v6745 = vsel %vm1915, %v6709, %v6267
      %v6747 = vsel %vm1915, %v6711, %v6269
      %v6749 = vsel %vm1915, %v6713, %v6271
      %v6751 = vsel %vm1915, %v6715, %v6273
      %v6753 = vsel %vm1915, %v6717, %v6275
      %v6755 = vsel %vm1915, %v6719, %v6277
      %v6757 = vsel %vm1915, %v6721, %v6279
      %v6759 = vsel %vm1915, %v6723, %v6281
      %v6761 = vsel %vm1915, %v6725, %v6283
      %v6763 = vsel %vm1915, %v6727, %v6285
      %v6765 = vsel %vm1915, %v6729, %v6287
      %v6767 = vsel %vm1915, %v6731, %v6289
      %v6769 = vsel %vm1915, %v6733, %v6291
      %v6771 = vsel %vm1915, %v6735, %v6293
      %v6773 = vsel %vm1915, %v6737, %v6295
      %v6775 = vsel %vm1915, %v6739, %v6297
      %v6777 = vsel %vm1915, %v6741, %v6299
      %v6779 = vsel %vm4610, %v6743, %v6341
      %v6781 = vsel %vm4610, %v6745, %v6343
      %v6783 = vsel %vm4610, %v6747, %v6345
      %v6785 = vsel %vm4610, %v6749, %v6347
      %v6787 = vsel %vm4610, %v6751, %v6349
      %v6789 = vsel %vm4610, %v6753, %v6351
      %v6791 = vsel %vm4610, %v6755, %v6353
      %v6793 = vsel %vm4610, %v6757, %v6355
      %v6795 = vsel %vm4610, %v6759, %v6357
      %v6797 = vsel %vm4610, %v6761, %v6359
      %v6799 = vsel %vm4610, %v6763, %v6361
      %v6801 = vsel %vm4610, %v6765, %v6363
      %v6803 = vsel %vm4610, %v6767, %v6365
      %v6805 = vsel %vm4610, %v6769, %v6367
      %v6807 = vsel %vm4610, %v6771, %v6369
      %v6809 = vsel %vm4610, %v6773, %v6371
      %v6811 = vsel %vm4610, %v6775, %v6373
      %v6813 = vsel %vm4610, %v6777, %v6375
      %v6815 = vsel %vm4647, %v6779, %v6394
      %v6817 = vsel %vm4647, %v6781, %v6396
      %v6819 = vsel %vm4647, %v6783, %v6398
      %v6821 = vsel %vm4647, %v6785, %v6400
      %v6823 = vsel %vm4647, %v6787, %v6402
      %v6825 = vsel %vm4647, %v6789, %v6404
      %v6827 = vsel %vm4647, %v6791, %v6406
      %v6829 = vsel %vm4647, %v6793, %v6408
      %v6831 = vsel %vm4647, %v6795, %v6410
      %v6833 = vsel %vm4647, %v6797, %v6412
      %v6835 = vsel %vm4647, %v6799, %v6414
      %v6837 = vsel %vm4647, %v6801, %v6416
      %v6839 = vsel %vm4647, %v6803, %v6418
      %v6841 = vsel %vm4647, %v6805, %v6420
      %v6843 = vsel %vm4647, %v6807, %v6422
      %v6845 = vsel %vm4647, %v6809, %v6424
      %v6847 = vsel %vm4647, %v6811, %v6426
      %v6849 = vsel %vm4647, %v6813, %v6428
      %v6851 = vsel %vm4684, %v6815, %v6523
      %v6853 = vsel %vm4684, %v6817, %v6525
      %v6855 = vsel %vm4684, %v6819, %v6527
      %v6857 = vsel %vm4684, %v6821, %v6529
      %v6859 = vsel %vm4684, %v6823, %v6531
      %v6861 = vsel %vm4684, %v6825, %v6533
      %v6863 = vsel %vm4684, %v6827, %v6535
      %v6865 = vsel %vm4684, %v6829, %v6537
      %v6867 = vsel %vm4684, %v6831, %v6539
      %v6869 = vsel %vm4684, %v6833, %v6541
      %v6871 = vsel %vm4684, %v6835, %v6543
      %v6873 = vsel %vm4684, %v6837, %v6545
      %v6875 = vsel %vm4684, %v6839, %v6547
      %v6877 = vsel %vm4684, %v6841, %v6549
      %v6879 = vsel %vm4684, %v6843, %v6551
      %v6881 = vsel %vm4684, %v6845, %v6553
      %v6883 = vsel %vm4684, %v6847, %v6555
      %v6885 = vsel %vm4684, %v6849, %v6557
      %v6887 = vsel %vm4721, %v6851, %v6599
      %v6889 = vsel %vm4721, %v6853, %v6601
      %v6891 = vsel %vm4721, %v6855, %v6603
      %v6893 = vsel %vm4721, %v6857, %v6605
      %v6895 = vsel %vm4721, %v6859, %v6607
      %v6897 = vsel %vm4721, %v6861, %v6609
      %v6899 = vsel %vm4721, %v6863, %v6611
      %v6901 = vsel %vm4721, %v6865, %v6613
      %v6903 = vsel %vm4721, %v6867, %v6615
      %v6905 = vsel %vm4721, %v6869, %v6617
      %v6907 = vsel %vm4721, %v6871, %v6619
      %v6909 = vsel %vm4721, %v6873, %v6621
      %v6911 = vsel %vm4721, %v6875, %v6623
      %v6913 = vsel %vm4721, %v6877, %v6625
      %v6915 = vsel %vm4721, %v6879, %v6627
      %v6917 = vsel %vm4721, %v6881, %v6629
      %v6919 = vsel %vm4721, %v6883, %v6631
      %v6921 = vsel %vm4721, %v6885, %v6633
      %v6922 = vld [vmem:[%s7] sm:$0xf]
      %v6923 = vld [vmem:[%s7 + $0x4] sm:$0xf]
      %v6924 = vld [vmem:[%s7 + $0x8] sm:$0xf]
      %v6925 = vld [vmem:[%s7 + $0xc] sm:$0xf]
      %v6926 = vld [vmem:[%s7 + $0x10] sm:$0xf]
      %v6927 = vld [vmem:[%s7 + $0x14] sm:$0xf]
      %v6928 = vld [vmem:[%s7 + $0x18] sm:$0xf]
      %v6929 = vld [vmem:[%s7 + $0x1c] sm:$0xf]
      %v6930 = vld [vmem:[%s7 + $0x20] sm:$0xf]
      %v6940 = vunpack.c.l.b16 %v6922
      %v6941 = vunpack.c.l.b16 %v6923
      %v6942 = vunpack.c.l.b16 %v6924
      %v6943 = vunpack.c.l.b16 %v6925
      %v6944 = vunpack.c.l.b16 %v6926
      %v6945 = vunpack.c.l.b16 %v6927
      %v6946 = vunpack.c.l.b16 %v6928
      %v6947 = vunpack.c.l.b16 %v6929
      %v6948 = vunpack.c.l.b16 %v6930
      %v6949 = vpack.c.b16 %v6941, %v6940
      %v6950 = vpack.c.b16 %v6943, %v6942
      %v6951 = vpack.c.b16 %v6945, %v6944
      %v6952 = vpack.c.b16 %v6947, %v6946
      %v6953 = vpack.c.b16 %v6948, %v6948
      %v6958 = vsel %vm4794, %v6887, 0
      %v6960 = vsel %vm4794, %v6889, 0
      %v6962 = vsel %vm4794, %v6891, 0
      %v6964 = vsel %vm4794, %v6893, 0
      %v6966 = vsel %vm4794, %v6895, 0
      %v6968 = vsel %vm4794, %v6897, 0
      %v6970 = vsel %vm4794, %v6899, 0
      %v6972 = vsel %vm4794, %v6901, 0
      %v6974 = vsel %vm4794, %v6903, 0
      %v6976 = vsel %vm4794, %v6905, 0
      %v6978 = vsel %vm4794, %v6907, 0
      %v6980 = vsel %vm4794, %v6909, 0
      %v6982 = vsel %vm4794, %v6911, 0
      %v6984 = vsel %vm4794, %v6913, 0
      %v6986 = vsel %vm4794, %v6915, 0
      %v6988 = vsel %vm4794, %v6917, 0
      %v6990 = vsel %vm4794, %v6919, 0
      %v6992 = vsel %vm4794, %v6921, 0
      %v6995 = vsel %vm4831, %v6953, 0
      %6997 = vmatprep.subr.bf16.mxu0 0
      %6998 = vmatpush1.bf16.msra.mxu0 0
      %6999 = vmatprep.subr.bf16.mxu0 0
      %7000 = vmatpush1.bf16.msra.mxu0 0
      %7001 = vmatprep.subr.bf16.mxu0 0
      %7002 = vmatpush1.bf16.msra.mxu0 0
      %7003 = vmatprep.subr.bf16.mxu0 0
      %7004 = vmatpush1.bf16.msra.mxu0 %v6995
      %7005 = vmatprep.subr.bf16.mxu0 0
      %7006 = vmatpush1.bf16.msra.mxu0 %v6952
      %7007 = vmatprep.subr.bf16.mxu0 0
      %7008 = vmatpush1.bf16.msra.mxu0 %v6951
      %7009 = vmatprep.subr.bf16.mxu0 0
      %7010 = vmatpush1.bf16.msra.mxu0 %v6950
      %7011 = vmatprep.subr.bf16.mxu0 0
      %7012 = vmatpush1.bf16.msra.mxu0 %v6949
      %7013 = vmatprep.subr.bf16.mxu0 0
      %7014 = vmatpush2.bf16.msra.mxu0 0
      %7015 = vmatprep.subr.bf16.mxu0 0
      %7016 = vmatpush2.bf16.msra.mxu0 0
      %7017 = vmatprep.subr.bf16.mxu0 0
      %7018 = vmatpush2.bf16.msra.mxu0 0
      %7019 = vmatprep.subr.bf16.mxu0 0
      %7020 = vmatpush2.bf16.msra.mxu0 0
      %7021 = vmatprep.subr.bf16.mxu0 0
      %7022 = vmatpush2.bf16.msra.mxu0 0
      %7023 = vmatprep.subr.bf16.mxu0 0
      %7024 = vmatpush2.bf16.msra.mxu0 0
      %7025 = vmatprep.subr.bf16.mxu0 0
      %7026 = vmatpush2.bf16.msra.mxu0 0
      %7027 = vmatprep.subr.bf16.mxu0 0
      %7028 = vmatpush2.bf16.msra.mxu0 0
      %7029 = vmatprep.mubr.bf16.mxu0 0
      %7030 = vmatmul.mubr.bf16.gmra.mxu0 %v6958
      %v7031 = vpop.f32.mrf.mxu0
      %v7032 = vadd.f32 0.0, %v7031
      %v7033 = vpop.f32.mrf.mxu0
      %v7034 = vpop.f32.mrf.mxu0
      %v7035 = vadd.f32 0.0, %v7034
      %v7036 = vpop.f32.mrf.mxu0
      %7037 = vmatprep.mubr.bf16.mxu0 0
      %7038 = vmatmul.mubr.bf16.gmra.mxu0 %v6960
      %v7039 = vpop.f32.mrf.mxu0
      %v7040 = vadd.f32 0.0, %v7039
      %v7041 = vpop.f32.mrf.mxu0
      %v7042 = vpop.f32.mrf.mxu0
      %v7043 = vadd.f32 0.0, %v7042
      %v7044 = vpop.f32.mrf.mxu0
      %7045 = vmatprep.mubr.bf16.mxu0 0
      %7046 = vmatmul.mubr.bf16.gmra.mxu0 %v6962
      %v7047 = vpop.f32.mrf.mxu0
      %v7048 = vadd.f32 0.0, %v7047
      %v7049 = vpop.f32.mrf.mxu0
      %v7050 = vpop.f32.mrf.mxu0
      %v7051 = vadd.f32 0.0, %v7050
      %v7052 = vpop.f32.mrf.mxu0
      %7053 = vmatprep.mubr.bf16.mxu0 0
      %7054 = vmatmul.mubr.bf16.gmra.mxu0 %v6964
      %v7055 = vpop.f32.mrf.mxu0
      %v7056 = vadd.f32 0.0, %v7055
      %v7057 = vpop.f32.mrf.mxu0
      %v7058 = vpop.f32.mrf.mxu0
      %v7059 = vadd.f32 0.0, %v7058
      %v7060 = vpop.f32.mrf.mxu0
      %7061 = vmatprep.mubr.bf16.mxu0 0
      %7062 = vmatmul.mubr.bf16.gmra.mxu0 %v6966
      %v7063 = vpop.f32.mrf.mxu0
      %v7064 = vadd.f32 0.0, %v7063
      %v7065 = vpop.f32.mrf.mxu0
      %v7066 = vpop.f32.mrf.mxu0
      %v7067 = vadd.f32 0.0, %v7066
      %v7068 = vpop.f32.mrf.mxu0
      %7069 = vmatprep.mubr.bf16.mxu0 0
      %7070 = vmatmul.mubr.bf16.gmra.mxu0 %v6968
      %v7071 = vpop.f32.mrf.mxu0
      %v7072 = vadd.f32 0.0, %v7071
      %v7073 = vpop.f32.mrf.mxu0
      %v7074 = vpop.f32.mrf.mxu0
      %v7075 = vadd.f32 0.0, %v7074
      %v7076 = vpop.f32.mrf.mxu0
      %7077 = vmatprep.mubr.bf16.mxu0 0
      %7078 = vmatmul.mubr.bf16.gmra.mxu0 %v6970
      %v7079 = vpop.f32.mrf.mxu0
      %v7080 = vadd.f32 0.0, %v7079
      %v7081 = vpop.f32.mrf.mxu0
      %v7082 = vpop.f32.mrf.mxu0
      %v7083 = vadd.f32 0.0, %v7082
      %v7084 = vpop.f32.mrf.mxu0
      %7085 = vmatprep.mubr.bf16.mxu0 0
      %7086 = vmatmul.mubr.bf16.gmra.mxu0 %v6972
      %v7087 = vpop.f32.mrf.mxu0
      %v7088 = vadd.f32 0.0, %v7087
      %v7089 = vpop.f32.mrf.mxu0
      %v7090 = vpop.f32.mrf.mxu0
      %v7091 = vadd.f32 0.0, %v7090
      %v7092 = vpop.f32.mrf.mxu0
      %7093 = vmatprep.mubr.bf16.mxu0 0
      %7094 = vmatmul.mubr.bf16.gmra.mxu0 %v6974
      %v7095 = vpop.f32.mrf.mxu0
      %v7096 = vadd.f32 0.0, %v7095
      %v7097 = vpop.f32.mrf.mxu0
      %v7098 = vpop.f32.mrf.mxu0
      %v7099 = vadd.f32 0.0, %v7098
      %v7100 = vpop.f32.mrf.mxu0
      %7101 = vmatprep.mubr.bf16.mxu0 0
      %7102 = vmatmul.mubr.bf16.gmra.mxu0 %v6976
      %v7103 = vpop.f32.mrf.mxu0
      %v7104 = vadd.f32 0.0, %v7103
      %v7105 = vpop.f32.mrf.mxu0
      %v7106 = vpop.f32.mrf.mxu0
      %v7107 = vadd.f32 0.0, %v7106
      %v7108 = vpop.f32.mrf.mxu0
      %7109 = vmatprep.mubr.bf16.mxu0 0
      %7110 = vmatmul.mubr.bf16.gmra.mxu0 %v6978
      %v7111 = vpop.f32.mrf.mxu0
      %v7112 = vadd.f32 0.0, %v7111
      %v7113 = vpop.f32.mrf.mxu0
      %v7114 = vpop.f32.mrf.mxu0
      %v7115 = vadd.f32 0.0, %v7114
      %v7116 = vpop.f32.mrf.mxu0
      %7117 = vmatprep.mubr.bf16.mxu0 0
      %7118 = vmatmul.mubr.bf16.gmra.mxu0 %v6980
      %v7119 = vpop.f32.mrf.mxu0
      %v7120 = vadd.f32 0.0, %v7119
      %v7121 = vpop.f32.mrf.mxu0
      %v7122 = vpop.f32.mrf.mxu0
      %v7123 = vadd.f32 0.0, %v7122
      %v7124 = vpop.f32.mrf.mxu0
      %7125 = vmatprep.mubr.bf16.mxu0 0
      %7126 = vmatmul.mubr.bf16.gmra.mxu0 %v6982
      %v7127 = vpop.f32.mrf.mxu0
      %v7128 = vadd.f32 0.0, %v7127
      %v7129 = vpop.f32.mrf.mxu0
      %v7130 = vpop.f32.mrf.mxu0
      %v7131 = vadd.f32 0.0, %v7130
      %v7132 = vpop.f32.mrf.mxu0
      %7133 = vmatprep.mubr.bf16.mxu0 0
      %7134 = vmatmul.mubr.bf16.gmra.mxu0 %v6984
      %v7135 = vpop.f32.mrf.mxu0
      %v7136 = vadd.f32 0.0, %v7135
      %v7137 = vpop.f32.mrf.mxu0
      %v7138 = vpop.f32.mrf.mxu0
      %v7139 = vadd.f32 0.0, %v7138
      %v7140 = vpop.f32.mrf.mxu0
      %7141 = vmatprep.mubr.bf16.mxu0 0
      %7142 = vmatmul.mubr.bf16.gmra.mxu0 %v6986
      %v7143 = vpop.f32.mrf.mxu0
      %v7144 = vadd.f32 0.0, %v7143
      %v7145 = vpop.f32.mrf.mxu0
      %v7146 = vpop.f32.mrf.mxu0
      %v7147 = vadd.f32 0.0, %v7146
      %v7148 = vpop.f32.mrf.mxu0
      %7149 = vmatprep.mubr.bf16.mxu0 0
      %7150 = vmatmul.mubr.bf16.gmra.mxu0 %v6988
      %v7151 = vpop.f32.mrf.mxu0
      %v7152 = vadd.f32 0.0, %v7151
      %v7153 = vpop.f32.mrf.mxu0
      %v7154 = vpop.f32.mrf.mxu0
      %v7155 = vadd.f32 0.0, %v7154
      %v7156 = vpop.f32.mrf.mxu0
      %7157 = vmatprep.mubr.bf16.mxu0 0
      %7158 = vmatmul.mubr.bf16.gmra.mxu0 %v6990
      %v7159 = vpop.f32.mrf.mxu0
      %v7160 = vadd.f32 0.0, %v7159
      %v7161 = vpop.f32.mrf.mxu0
      %v7162 = vpop.f32.mrf.mxu0
      %v7163 = vadd.f32 0.0, %v7162
      %v7164 = vpop.f32.mrf.mxu0
      %7165 = vmatprep.mubr.bf16.mxu0 0
      %7166 = vmatmul.mubr.bf16.gmra.mxu0 %v6992
      %v7167 = vpop.f32.mrf.mxu0
      %v7168 = vadd.f32 0.0, %v7167
      %v7169 = vpop.f32.mrf.mxu0
      %v7170 = vpop.f32.mrf.mxu0
      %v7171 = vadd.f32 0.0, %v7170
      %v7172 = vpop.f32.mrf.mxu0
      %7173 = vdwg.mxu0
      %v7174 = vld [vmem:[%s8] sm:$0x1]
      %v7176 = vlaneseq
      %v7177 = vshrl.u32 %v7176, 7
      %v7178 = vsub.s32 0, %v7177
      %v7179 = vrot.slane %v7174, %v7178
      %v7181 = vmul.f32 %v7032, %v7179
      %v7182 = vmul.f32 %v7035, %v7179
      %v7183 = vmul.f32 %v7040, %v7179
      %v7184 = vmul.f32 %v7043, %v7179
      %v7185 = vmul.f32 %v7048, %v7179
      %v7186 = vmul.f32 %v7051, %v7179
      %v7187 = vmul.f32 %v7056, %v7179
      %v7188 = vmul.f32 %v7059, %v7179
      %v7189 = vmul.f32 %v7064, %v7179
      %v7190 = vmul.f32 %v7067, %v7179
      %v7191 = vmul.f32 %v7072, %v7179
      %v7192 = vmul.f32 %v7075, %v7179
      %v7193 = vmul.f32 %v7080, %v7179
      %v7194 = vmul.f32 %v7083, %v7179
      %v7195 = vmul.f32 %v7088, %v7179
      %v7196 = vmul.f32 %v7091, %v7179
      %v7197 = vmul.f32 %v7096, %v7179
      %v7198 = vmul.f32 %v7099, %v7179
      %v7199 = vmul.f32 %v7104, %v7179
      %v7200 = vmul.f32 %v7107, %v7179
      %v7201 = vmul.f32 %v7112, %v7179
      %v7202 = vmul.f32 %v7115, %v7179
      %v7203 = vmul.f32 %v7120, %v7179
      %v7204 = vmul.f32 %v7123, %v7179
      %v7205 = vmul.f32 %v7128, %v7179
      %v7206 = vmul.f32 %v7131, %v7179
      %v7207 = vmul.f32 %v7136, %v7179
      %v7208 = vmul.f32 %v7139, %v7179
      %v7209 = vmul.f32 %v7144, %v7179
      %v7210 = vmul.f32 %v7147, %v7179
      %v7211 = vmul.f32 %v7152, %v7179
      %v7212 = vmul.f32 %v7155, %v7179
      %v7213 = vmul.f32 %v7160, %v7179
      %v7214 = vmul.f32 %v7163, %v7179
      %v7215 = vmul.f32 %v7168, %v7179
      %v7216 = vmul.f32 %v7171, %v7179
      %v7217 = vld [vmem:[%s9] sm:$0x1]
      %v7219 = vlaneseq
      %v7220 = vshrl.u32 %v7219, 7
      %v7221 = vsub.s32 0, %v7220
      %v7222 = vrot.slane %v7217, %v7221
      %v7224 = vadd.f32 %v7181, %v7222
      %v7225 = vadd.f32 %v7182, %v7222
      %v7226 = vadd.f32 %v7183, %v7222
      %v7227 = vadd.f32 %v7184, %v7222
      %v7228 = vadd.f32 %v7185, %v7222
      %v7229 = vadd.f32 %v7186, %v7222
      %v7230 = vadd.f32 %v7187, %v7222
      %v7231 = vadd.f32 %v7188, %v7222
      %v7232 = vadd.f32 %v7189, %v7222
      %v7233 = vadd.f32 %v7190, %v7222
      %v7234 = vadd.f32 %v7191, %v7222
      %v7235 = vadd.f32 %v7192, %v7222
      %v7236 = vadd.f32 %v7193, %v7222
      %v7237 = vadd.f32 %v7194, %v7222
      %v7238 = vadd.f32 %v7195, %v7222
      %v7239 = vadd.f32 %v7196, %v7222
      %v7240 = vadd.f32 %v7197, %v7222
      %v7241 = vadd.f32 %v7198, %v7222
      %v7242 = vadd.f32 %v7199, %v7222
      %v7243 = vadd.f32 %v7200, %v7222
      %v7244 = vadd.f32 %v7201, %v7222
      %v7245 = vadd.f32 %v7202, %v7222
      %v7246 = vadd.f32 %v7203, %v7222
      %v7247 = vadd.f32 %v7204, %v7222
      %v7248 = vadd.f32 %v7205, %v7222
      %v7249 = vadd.f32 %v7206, %v7222
      %v7250 = vadd.f32 %v7207, %v7222
      %v7251 = vadd.f32 %v7208, %v7222
      %v7252 = vadd.f32 %v7209, %v7222
      %v7253 = vadd.f32 %v7210, %v7222
      %v7254 = vadd.f32 %v7211, %v7222
      %v7255 = vadd.f32 %v7212, %v7222
      %v7256 = vadd.f32 %v7213, %v7222
      %v7257 = vadd.f32 %v7214, %v7222
      %v7258 = vadd.f32 %v7215, %v7222
      %v7259 = vadd.f32 %v7216, %v7222
      %v7260 = vmax.f32 %v7224, 0.0
      %v7261 = vmax.f32 %v7225, 0.0
      %v7262 = vmax.f32 %v7226, 0.0
      %v7263 = vmax.f32 %v7227, 0.0
      %v7264 = vmax.f32 %v7228, 0.0
      %v7265 = vmax.f32 %v7229, 0.0
      %v7266 = vmax.f32 %v7230, 0.0
      %v7267 = vmax.f32 %v7231, 0.0
      %v7268 = vmax.f32 %v7232, 0.0
      %v7269 = vmax.f32 %v7233, 0.0
      %v7270 = vmax.f32 %v7234, 0.0
      %v7271 = vmax.f32 %v7235, 0.0
      %v7272 = vmax.f32 %v7236, 0.0
      %v7273 = vmax.f32 %v7237, 0.0
      %v7274 = vmax.f32 %v7238, 0.0
      %v7275 = vmax.f32 %v7239, 0.0
      %v7276 = vmax.f32 %v7240, 0.0
      %v7277 = vmax.f32 %v7241, 0.0
      %v7278 = vmax.f32 %v7242, 0.0
      %v7279 = vmax.f32 %v7243, 0.0
      %v7280 = vmax.f32 %v7244, 0.0
      %v7281 = vmax.f32 %v7245, 0.0
      %v7282 = vmax.f32 %v7246, 0.0
      %v7283 = vmax.f32 %v7247, 0.0
      %v7284 = vmax.f32 %v7248, 0.0
      %v7285 = vmax.f32 %v7249, 0.0
      %v7286 = vmax.f32 %v7250, 0.0
      %v7287 = vmax.f32 %v7251, 0.0
      %v7288 = vmax.f32 %v7252, 0.0
      %v7289 = vmax.f32 %v7253, 0.0
      %v7290 = vmax.f32 %v7254, 0.0
      %v7291 = vmax.f32 %v7255, 0.0
      %v7292 = vmax.f32 %v7256, 0.0
      %v7293 = vmax.f32 %v7257, 0.0
      %v7294 = vmax.f32 %v7258, 0.0
      %v7295 = vmax.f32 %v7259, 0.0
      %7296 = vst.msk [vmem:[%s359] sm:$0xff] %vm1693, %v7260
      %7297 = vst.msk [vmem:[%s359 + $0x8] sm:$0xff] %vm1693, %v7261
      %7298 = vst.msk [vmem:[%s359 + $0x10] sm:$0xff] %vm1693, %v7262
      %7299 = vst.msk [vmem:[%s359 + $0x18] sm:$0xff] %vm1693, %v7263
      %7300 = vst.msk [vmem:[%s359 + $0x20] sm:$0xff] %vm1693, %v7264
      %7301 = vst.msk [vmem:[%s359 + $0x28] sm:$0xff] %vm1693, %v7265
      %7302 = vst.msk [vmem:[%s359 + $0x30] sm:$0xff] %vm1693, %v7266
      %7303 = vst.msk [vmem:[%s359 + $0x38] sm:$0xff] %vm1693, %v7267
      %7304 = vst.msk [vmem:[%s359 + $0x40] sm:$0xff] %vm1693, %v7268
      %7305 = vst.msk [vmem:[%s359 + $0x48] sm:$0xff] %vm1693, %v7269
      %7306 = vst.msk [vmem:[%s359 + $0x50] sm:$0xff] %vm1693, %v7270
      %7307 = vst.msk [vmem:[%s359 + $0x58] sm:$0xff] %vm1693, %v7271
      %7308 = vst.msk [vmem:[%s359 + $0x60] sm:$0xff] %vm1693, %v7272
      %7309 = vst.msk [vmem:[%s359 + $0x68] sm:$0xff] %vm1693, %v7273
      %7310 = vst.msk [vmem:[%s359 + $0x70] sm:$0xff] %vm1693, %v7274
      %7311 = vst.msk [vmem:[%s359 + $0x78] sm:$0xff] %vm1693, %v7275
      %7312 = vst.msk [vmem:[%s359 + $0x80] sm:$0xff] %vm1693, %v7276
      %7313 = vst.msk [vmem:[%s359 + $0x88] sm:$0xff] %vm1693, %v7277
      %7314 = vst.msk [vmem:[%s359 + $0x90] sm:$0xff] %vm1693, %v7278
      %7315 = vst.msk [vmem:[%s359 + $0x98] sm:$0xff] %vm1693, %v7279
      %7316 = vst.msk [vmem:[%s359 + $0xa0] sm:$0xff] %vm1693, %v7280
      %7317 = vst.msk [vmem:[%s359 + $0xa8] sm:$0xff] %vm1693, %v7281
      %7318 = vst.msk [vmem:[%s359 + $0xb0] sm:$0xff] %vm1693, %v7282
      %7319 = vst.msk [vmem:[%s359 + $0xb8] sm:$0xff] %vm1693, %v7283
      %7320 = vst.msk [vmem:[%s359 + $0xc0] sm:$0xff] %vm1693, %v7284
      %7321 = vst.msk [vmem:[%s359 + $0xc8] sm:$0xff] %vm1693, %v7285
      %7322 = vst.msk [vmem:[%s359 + $0xd0] sm:$0xff] %vm1693, %v7286
      %7323 = vst.msk [vmem:[%s359 + $0xd8] sm:$0xff] %vm1693, %v7287
      %7324 = vst.msk [vmem:[%s359 + $0xe0] sm:$0xff] %vm1693, %v7288
      %7325 = vst.msk [vmem:[%s359 + $0xe8] sm:$0xff] %vm1693, %v7289
      %7326 = vst.msk [vmem:[%s359 + $0xf0] sm:$0xff] %vm1693, %v7290
      %7327 = vst.msk [vmem:[%s359 + $0xf8] sm:$0xff] %vm1693, %v7291
      %7328 = vst.msk [vmem:[%s359 + $0x100] sm:$0xff] %vm1693, %v7292
      %7329 = vst.msk [vmem:[%s359 + $0x108] sm:$0xff] %vm1693, %v7293
      %7330 = vst.msk [vmem:[%s359 + $0x110] sm:$0xff] %vm1693, %v7294
      %7331 = vst.msk [vmem:[%s359 + $0x118] sm:$0xff] %vm1693, %v7295
      %p7332 = scmp.lt.s32.totalorder %s21, 1
      %s7333 = scalar_select %p7332, %s21, 1
      %s7334 = smul.addr %s7333, 36
      %s7335 = smul.addr %s7334, 8
      %s7336 = scalar_lea.vmem %s10, %s7335
      // Predicated region
      $region61: #{triple_conv_forward.1} parent=59 // pred_check
        %p7337 = pneg %p254
      $region62: #{triple_conv_forward.1} parent=59 // pred_check_branch
        %7339 = sbr.rel (%p7337) target = $region64
      $region63: #{triple_conv_forward.1} parent=59 // pred_region
        _
      $region64: #{triple_conv_forward.1} parent=59 // pred_fallthru
        _
    $region60: #{triple_conv_forward.1} parent=5 // pred_fallthru
      _
    %p7340 = scmp.le.s32.totalorder 2, %s16
    // Predicated region
    $region65: #{triple_conv_forward.1} parent=5 // pred_check
      %p7341 = pneg %p7340
    $region66: #{triple_conv_forward.1} parent=5 // pred_check_branch
      %7343 = sbr.rel (%p7341) target = $region68
    $region67: #{triple_conv_forward.1} parent=5 // pred_region
      %s7344 = ssub.s32 %s16, 2
      // Predicated region
      $region69: #{triple_conv_forward.1} parent=67 // pred_check
        %p7345 = pneg %p260
      $region70: #{triple_conv_forward.1} parent=67 // pred_check_branch
        %7347 = sbr.rel (%p7345) target = $region72
      $region71: #{triple_conv_forward.1} parent=67 // pred_region
        %p7348 = scmp.lt.s32.totalorder %s22, 1
        %s7349 = scalar_select %p7348, %s22, 1
        %s7350 = smul.addr %s7349, 36
        %s7351 = smul.addr %s7350, 8
        %s7352 = scalar_lea.vmem %s10, %s7351
      $region72: #{triple_conv_forward.1} parent=67 // pred_fallthru
        _
    $region68: #{triple_conv_forward.1} parent=5 // pred_fallthru
      _
  $region6: #{triple_conv_forward.1} parent=0 // loop_footer
    %s20 = sadd.s32 1, %s16
  $region7: #{triple_conv_forward.1} parent=0 // loop_footer_branch
    %15 = sbr.rel target = $region3
  $region8: #{triple_conv_forward.1} parent=0 // loop_exit
    _

</llo_original>
